<compile_context>
chip_gen: v5e
topology: v5e:2x2
jax: 0.10.0
libtpu: 0.0.40
codegen_flags: <defaults>
</compile_context>

<pallas_src>
import numpy as np
import jax
import jax.numpy as jnp
from jax import lax
from jax.experimental import pallas as pl
from jax.experimental.pallas import tpu as pltpu

# ---------------------------------------------------------------------------
# Config (scaled-down but structurally identical to the reference module)
# ---------------------------------------------------------------------------
NUM_HIDDENS = 32
NUM_RES_LAYERS = 2
NUM_RES_HIDDENS = 8
IN_CH = 3
IMG = 16
BATCH = 2

FOLD = 4                  # space-to-depth factor: all layers run on a 4x4 grid
FG = IMG // FOLD          # folded grid size (4)
FP = FG + 2               # zero-framed folded grid (6)
FLAT = FP * FP            # rows per image in the flattened canvas (36)
MARGIN = 8                # sublane-aligned slack so shifted tap slices stay in-bounds
CANVAS_ROWS = FLAT + 2 * MARGIN
CF = FOLD * FOLD * IN_CH  # folded input/output channel count (48)


# ---------------------------------------------------------------------------
# Parameters (deterministic synthetic init, PyTorch layouts)
# ---------------------------------------------------------------------------
def _init(key, shape, scale=0.05):
    return scale * jax.random.normal(key, shape, dtype=jnp.float32)


def make_params(num_hiddens, num_residual_layers, num_residual_hiddens, in_ch=3):
    key = jax.random.PRNGKey(0)
    keys = iter(jax.random.split(key, 64))
    H, Rh = num_hiddens, num_residual_hiddens
    p = {}
    p["e_c1_w"] = _init(next(keys), (H // 2, in_ch, 4, 4))
    p["e_c1_b"] = _init(next(keys), (H // 2,))
    p["e_c2_w"] = _init(next(keys), (H, H // 2, 4, 4))
    p["e_c2_b"] = _init(next(keys), (H,))
    p["e_c3_w"] = _init(next(keys), (H, H, 3, 3))
    p["e_c3_b"] = _init(next(keys), (H,))
    p["e_res"] = [{"w3": _init(next(keys), (Rh, H, 3, 3)),
                   "w1": _init(next(keys), (H, Rh, 1, 1))}
                  for _ in range(num_residual_layers)]
    p["d_c1_w"] = _init(next(keys), (H, H, 3, 3))
    p["d_c1_b"] = _init(next(keys), (H,))
    p["d_res"] = [{"w3": _init(next(keys), (Rh, H, 3, 3)),
                   "w1": _init(next(keys), (H, Rh, 1, 1))}
                  for _ in range(num_residual_layers)]
    p["d_t1_w"] = _init(next(keys), (H, H // 2, 4, 4))   # ConvT: [Cin,Cout,KH,KW]
    p["d_t1_b"] = _init(next(keys), (H // 2,))
    p["d_t2_w"] = _init(next(keys), (H // 2, in_ch, 4, 4))
    p["d_t2_b"] = _init(next(keys), (in_ch,))
    return p


# ---------------------------------------------------------------------------
# One-time weight repacking: every layer becomes a 3x3 stride-1 conv on the
# folded 4x4 grid, stored as 9 (Cin_f, Cout_f) tap matrices in bf16.
# ---------------------------------------------------------------------------
def _pack_folded_conv(w_oihw, fi, fo, stride, pad):
    """Conv2d(stride, pad) as a 3x3 s1 conv; input folded by fi, output by fo
    (requires fi == stride * fo).  Returns (9, fi*fi*Cin, fo*fo*Cout) f32."""
    w = np.asarray(w_oihw, np.float32)
    co, ci, kh, kw = w.shape
    out = np.zeros((3, 3, fi * fi * ci, fo * fo * co), np.float32)
    for da in (-1, 0, 1):
        for db in (-1, 0, 1):
            for r in range(fo):
                for s in range(fo):
                    for p in range(fi):
                        for q in range(fi):
                            i = fi * da + p + pad - stride * r
                            j = fi * db + q + pad - stride * s
                            if 0 <= i < kh and 0 <= j < kw:
                                ic = (p * fi + q) * ci
                                oc = (r * fo + s) * co
                                out[da + 1, db + 1, ic:ic + ci, oc:oc + co] = w[:, :, i, j].T
    return out.reshape(9, fi * fi * ci, fo * fo * co)


def _pack_folded_convT(w_iohw, fi, fo, stride, pad):
    """ConvTranspose2d(stride, pad) as a 3x3 s1 conv; input folded by fi,
    output by fo (requires fo == stride * fi)."""
    w = np.asarray(w_iohw, np.float32)
    ci, co, kh, kw = w.shape
    out = np.zeros((3, 3, fi * fi * ci, fo * fo * co), np.float32)
    for da in (-1, 0, 1):
        for db in (-1, 0, 1):
            for r in range(fi):
                for s in range(fi):
                    for t in range(fo):
                        for u in range(fo):
                            i = t + pad - fo * da - stride * r
                            j = u + pad - fo * db - stride * s
                            if 0 <= i < kh and 0 <= j < kw:
                                ic = (r * fi + s) * ci
                                oc = (t * fo + u) * co
                                out[da + 1, db + 1, ic:ic + ci, oc:oc + co] = w[:, :, i, j]
    return out.reshape(9, fi * fi * ci, fo * fo * co)


def _pack_1x1(w_oihw):
    w = np.asarray(w_oihw, np.float32)
    return w[:, :, 0, 0].T[None]          # (1, Cin, Cout)


def make_plan(num_res_layers):
    # ("conv", has_bias, relu) consumes 1-2 refs; ("res",) consumes 2; ("relu",) 0.
    plan = [("conv", True, True), ("conv", True, True), ("conv", True, False)]
    plan += [("res",)] * num_res_layers + [("relu",)]
    plan += [("conv", True, False)]
    plan += [("res",)] * num_res_layers + [("relu",)]
    plan += [("conv", True, True), ("conv", True, False)]
    return plan


def pack_params(p):
    flat = []

    def add(w, b):
        flat.append(jnp.asarray(w, jnp.bfloat16))
        if b is not None:
            flat.append(jnp.asarray(np.asarray(b), jnp.float32).reshape(1, -1))

    add(_pack_folded_conv(p["e_c1_w"], 4, 2, 2, 1), np.tile(np.asarray(p["e_c1_b"]), 4))
    add(_pack_folded_conv(p["e_c2_w"], 2, 1, 2, 1), p["e_c2_b"])
    add(_pack_folded_conv(p["e_c3_w"], 1, 1, 1, 1), p["e_c3_b"])
    for blk in p["e_res"]:
        add(_pack_folded_conv(blk["w3"], 1, 1, 1, 1), None)
        add(_pack_1x1(blk["w1"]), None)
    add(_pack_folded_conv(p["d_c1_w"], 1, 1, 1, 1), p["d_c1_b"])
    for blk in p["d_res"]:
        add(_pack_folded_conv(blk["w3"], 1, 1, 1, 1), None)
        add(_pack_1x1(blk["w1"]), None)
    add(_pack_folded_convT(p["d_t1_w"], 1, 2, 2, 1), np.tile(np.asarray(p["d_t1_b"]), 4))
    add(_pack_folded_convT(p["d_t2_w"], 2, 4, 2, 1), np.tile(np.asarray(p["d_t2_b"]), 16))
    return flat


# ---------------------------------------------------------------------------
# The fused Pallas kernel
# ---------------------------------------------------------------------------
def _make_kernel(plan):
    tap_offsets = [da * FP + db for da in (-1, 0, 1) for db in (-1, 0, 1)]

    def kernel(*refs):
        x_ref, mask_ref = refs[0], refs[1]
        out_ref, canvas = refs[-2], refs[-1]
        wrefs = list(refs[2:-2])

        mask = mask_ref[...]                                   # (FLAT, 1) f32
        canvas[...] = jnp.zeros_like(canvas)                   # zero margins/frame

        def conv_apply(act, w_ref, b_ref, relu):
            ntap, cin, cout = w_ref.shape
            # park the current activation (with its zero border) on the canvas
            canvas[MARGIN:MARGIN + FLAT, :cin] = act.astype(jnp.float32)
            offs = tap_offsets if ntap == 9 else [0]
            acc = jnp.zeros((FLAT, cout), jnp.float32)
            for t, d in enumerate(offs):
                lhs = canvas[MARGIN + d:MARGIN + d + FLAT, :cin].astype(jnp.bfloat16)
                acc = acc + jnp.dot(lhs, w_ref[t],
                                    preferred_element_type=jnp.float32)
            if b_ref is not None:
                acc = acc + b_ref[...]
            acc = acc * mask                                   # re-zero padding ring
            if relu:
                acc = jnp.maximum(acc, 0.0)
            return acc

        pos = 0
        a = x_ref[0]                                           # (FLAT, CF) f32
        for step in plan:
            if step[0] == "conv":
                _, has_bias, relu = step
                w = wrefs[pos]; pos += 1
                b = None
                if has_bias:
                    b = wrefs[pos]; pos += 1
                a = conv_apply(a, w, b, relu)
            elif step[0] == "res":
                w3 = wrefs[pos]; w1 = wrefs[pos + 1]; pos += 2
                h = conv_apply(jnp.maximum(a, 0.0), w3, None, True)
                h = conv_apply(h, w1, None, False)
                a = a + h
            else:                                              # "relu"
                a = jnp.maximum(a, 0.0)
        out_ref[0] = a

    return kernel


# ---------------------------------------------------------------------------
# XLA-side (one-time per forward) layout glue
# ---------------------------------------------------------------------------
def make_interior_mask():
    m = np.zeros((FP, FP), np.float32)
    m[1:-1, 1:-1] = 1.0
    return jnp.asarray(m.reshape(FLAT, 1))


def fold_and_frame(x_nchw):
    n = x_nchw.shape[0]
    x = jnp.transpose(x_nchw, (0, 2, 3, 1))                              # NHWC
    x = x.reshape(n, FG, FOLD, FG, FOLD, IN_CH)
    x = jnp.transpose(x, (0, 1, 3, 2, 4, 5)).reshape(n, FG, FG, CF)      # fold 4
    x = jnp.pad(x, ((0, 0), (1, 1), (1, 1), (0, 0)))                     # zero frame
    return x.reshape(n, FLAT, CF).astype(jnp.float32)


def unframe_and_unfold(y):
    n = y.shape[0]
    y = y.reshape(n, FP, FP, CF)[:, 1:-1, 1:-1, :]
    y = y.reshape(n, FG, FG, FOLD, FOLD, IN_CH)
    y = jnp.transpose(y, (0, 1, 3, 2, 4, 5)).reshape(n, IMG, IMG, IN_CH)
    return jnp.transpose(y, (0, 3, 1, 2))                                # NCHW


def build_autoencoder_forward(params):
    plan = make_plan(NUM_RES_LAYERS)
    flat_w = pack_params(params)
    mask = make_interior_mask()
    kernel = _make_kernel(plan)

    cmax = max(max(w.shape[1], w.shape[2]) for w in flat_w if w.ndim == 3)

    w_specs = []
    for w in flat_w:
        if w.ndim == 3:
            w_specs.append(pl.BlockSpec(w.shape, lambda n: (0, 0, 0)))
        else:
            w_specs.append(pl.BlockSpec(w.shape, lambda n: (0, 0)))

    fused = pl.pallas_call(
        kernel,
        out_shape=jax.ShapeDtypeStruct((BATCH, FLAT, CF), jnp.float32),
        grid=(BATCH,),
        in_specs=[pl.BlockSpec((1, FLAT, CF), lambda n: (n, 0, 0)),
                  pl.BlockSpec((FLAT, 1), lambda n: (0, 0))] + w_specs,
        out_specs=pl.BlockSpec((1, FLAT, CF), lambda n: (n, 0, 0)),
        scratch_shapes=[pltpu.VMEM((CANVAS_ROWS, cmax), jnp.float32)],
        compiler_params=pltpu.CompilerParams(
            dimension_semantics=("parallel",)),
    )

    @jax.jit
    def forward(x_nchw):
        xf = fold_and_frame(x_nchw)
        out = fused(xf, mask, *flat_w)
        return unframe_and_unfold(out)

    return forward


# ---------------------------------------------------------------------------
# Plain-XLA reference of the same module (test harness only)
# ---------------------------------------------------------------------------
def _conv_ref(x, w_oihw, b, stride, pad):
    w = jnp.transpose(jnp.asarray(w_oihw, jnp.float32), (2, 3, 1, 0))
    y = lax.conv_general_dilated(x, w, (stride, stride), [(pad, pad), (pad, pad)],
                                 dimension_numbers=("NHWC", "HWIO", "NHWC"))
    return y if b is None else y + jnp.asarray(b, jnp.float32)


def _convT_ref(x, w_iohw, b, stride, pad):
    w = jnp.asarray(w_iohw, jnp.float32)
    k = w.shape[-1]
    w_eq = jnp.transpose(w[:, :, ::-1, ::-1], (1, 0, 2, 3))
    w_eq = jnp.transpose(w_eq, (2, 3, 1, 0))
    y = lax.conv_general_dilated(x, w_eq, (1, 1), [(k - 1 - pad,) * 2] * 2,
                                 lhs_dilation=(stride, stride),
                                 dimension_numbers=("NHWC", "HWIO", "NHWC"))
    return y if b is None else y + jnp.asarray(b, jnp.float32)


@jax.jit
def reference_forward(x_nchw, p):
    x = jnp.transpose(x_nchw, (0, 2, 3, 1)).astype(jnp.float32)

    def res_stack(x, blocks):
        for blk in blocks:
            h = jax.nn.relu(x)
            h = jax.nn.relu(_conv_ref(h, blk["w3"], None, 1, 1))
            h = _conv_ref(h, blk["w1"], None, 1, 0)
            x = x + h
        return jax.nn.relu(x)

    x = jax.nn.relu(_conv_ref(x, p["e_c1_w"], p["e_c1_b"], 2, 1))
    x = jax.nn.relu(_conv_ref(x, p["e_c2_w"], p["e_c2_b"], 2, 1))
    x = _conv_ref(x, p["e_c3_w"], p["e_c3_b"], 1, 1)
    x = res_stack(x, p["e_res"])
    x = _conv_ref(x, p["d_c1_w"], p["d_c1_b"], 1, 1)
    x = res_stack(x, p["d_res"])
    x = jax.nn.relu(_convT_ref(x, p["d_t1_w"], p["d_t1_b"], 2, 1))
    x = _convT_ref(x, p["d_t2_w"], p["d_t2_b"], 2, 1)
    return jnp.transpose(x, (0, 3, 1, 2))


# ---------------------------------------------------------------------------
if __name__ == "__main__":
    params = make_params(NUM_HIDDENS, NUM_RES_LAYERS, NUM_RES_HIDDENS, IN_CH)
    forward = build_autoencoder_forward(params)

    key = jax.random.PRNGKey(0)
    x = jax.random.normal(key, (BATCH, IN_CH, IMG, IMG), dtype=jnp.float32)

    out = forward(x)
    jax.block_until_ready(out)

    assert out.shape == (BATCH, IN_CH, IMG, IMG), out.shape
    assert bool(jnp.all(jnp.isfinite(out)))

    # correctness vs a plain-XLA f32 reference of the same module (bf16 matmuls
    # in the kernel -> small tolerance)
    ref = reference_forward(x, params)
    err = float(jnp.max(jnp.abs(out - ref)))
    assert err < 2e-2, f"max abs error vs reference: {err}"

    print("KERNEL_OK")
</pallas_src>

<mosaic_0001>
module attributes {stable_mosaic.version = 11 : i64} {
  func.func @kernel(%arg0: i32, %arg1: memref<1x36x48xf32, #tpu.memory_space<vmem>>, %arg2: memref<36x1xf32, #tpu.memory_space<vmem>>, %arg3: memref<9x48x64xbf16, #tpu.memory_space<vmem>>, %arg4: memref<1x64xf32, #tpu.memory_space<vmem>>, %arg5: memref<9x64x32xbf16, #tpu.memory_space<vmem>>, %arg6: memref<1x32xf32, #tpu.memory_space<vmem>>, %arg7: memref<9x32x32xbf16, #tpu.memory_space<vmem>>, %arg8: memref<1x32xf32, #tpu.memory_space<vmem>>, %arg9: memref<9x32x8xbf16, #tpu.memory_space<vmem>>, %arg10: memref<1x8x32xbf16, #tpu.memory_space<vmem>>, %arg11: memref<9x32x8xbf16, #tpu.memory_space<vmem>>, %arg12: memref<1x8x32xbf16, #tpu.memory_space<vmem>>, %arg13: memref<9x32x32xbf16, #tpu.memory_space<vmem>>, %arg14: memref<1x32xf32, #tpu.memory_space<vmem>>, %arg15: memref<9x32x8xbf16, #tpu.memory_space<vmem>>, %arg16: memref<1x8x32xbf16, #tpu.memory_space<vmem>>, %arg17: memref<9x32x8xbf16, #tpu.memory_space<vmem>>, %arg18: memref<1x8x32xbf16, #tpu.memory_space<vmem>>, %arg19: memref<9x32x64xbf16, #tpu.memory_space<vmem>>, %arg20: memref<1x64xf32, #tpu.memory_space<vmem>>, %arg21: memref<9x64x48xbf16, #tpu.memory_space<vmem>>, %arg22: memref<1x48xf32, #tpu.memory_space<vmem>>, %arg23: memref<1x36x48xf32, #tpu.memory_space<vmem>>, %arg24: memref<52x64xf32, #tpu.memory_space<vmem>>) attributes {dimension_semantics = [#tpu.dimension_semantics<parallel>], iteration_bounds = array<i64: 2>, scalar_prefetch = 0 : i64, scratch_operands = 1 : i64, tpu.core_type = #tpu.core_type<tc>, window_params = [{transform_indices = @transform_0, window_bounds = array<i64: 1, 36, 48>}, {pipeline_mode = #tpu.pipeline_mode<synchronous>, transform_indices = @transform_1, window_bounds = array<i64: 36, 1>}, {pipeline_mode = #tpu.pipeline_mode<synchronous>, transform_indices = @transform_2, window_bounds = array<i64: 9, 48, 64>}, {pipeline_mode = #tpu.pipeline_mode<synchronous>, transform_indices = @transform_3, window_bounds = array<i64: 1, 64>}, {pipeline_mode = #tpu.pipeline_mode<synchronous>, transform_indices = @transform_4, window_bounds = array<i64: 9, 64, 32>}, {pipeline_mode = #tpu.pipeline_mode<synchronous>, transform_indices = @transform_5, window_bounds = array<i64: 1, 32>}, {pipeline_mode = #tpu.pipeline_mode<synchronous>, transform_indices = @transform_6, window_bounds = array<i64: 9, 32, 32>}, {pipeline_mode = #tpu.pipeline_mode<synchronous>, transform_indices = @transform_7, window_bounds = array<i64: 1, 32>}, {pipeline_mode = #tpu.pipeline_mode<synchronous>, transform_indices = @transform_8, window_bounds = array<i64: 9, 32, 8>}, {pipeline_mode = #tpu.pipeline_mode<synchronous>, transform_indices = @transform_9, window_bounds = array<i64: 1, 8, 32>}, {pipeline_mode = #tpu.pipeline_mode<synchronous>, transform_indices = @transform_10, window_bounds = array<i64: 9, 32, 8>}, {pipeline_mode = #tpu.pipeline_mode<synchronous>, transform_indices = @transform_11, window_bounds = array<i64: 1, 8, 32>}, {pipeline_mode = #tpu.pipeline_mode<synchronous>, transform_indices = @transform_12, window_bounds = array<i64: 9, 32, 32>}, {pipeline_mode = #tpu.pipeline_mode<synchronous>, transform_indices = @transform_13, window_bounds = array<i64: 1, 32>}, {pipeline_mode = #tpu.pipeline_mode<synchronous>, transform_indices = @transform_14, window_bounds = array<i64: 9, 32, 8>}, {pipeline_mode = #tpu.pipeline_mode<synchronous>, transform_indices = @transform_15, window_bounds = array<i64: 1, 8, 32>}, {pipeline_mode = #tpu.pipeline_mode<synchronous>, transform_indices = @transform_16, window_bounds = array<i64: 9, 32, 8>}, {pipeline_mode = #tpu.pipeline_mode<synchronous>, transform_indices = @transform_17, window_bounds = array<i64: 1, 8, 32>}, {pipeline_mode = #tpu.pipeline_mode<synchronous>, transform_indices = @transform_18, window_bounds = array<i64: 9, 32, 64>}, {pipeline_mode = #tpu.pipeline_mode<synchronous>, transform_indices = @transform_19, window_bounds = array<i64: 1, 64>}, {pipeline_mode = #tpu.pipeline_mode<synchronous>, transform_indices = @transform_20, window_bounds = array<i64: 9, 64, 48>}, {pipeline_mode = #tpu.pipeline_mode<synchronous>, transform_indices = @transform_21, window_bounds = array<i64: 1, 48>}, {transform_indices = @transform_22, window_bounds = array<i64: 1, 36, 48>}]} {
    %c0 = arith.constant 0 : index
    %c0_0 = arith.constant 0 : index
    %0 = vector.load %arg2[%c0, %c0_0] : memref<36x1xf32, #tpu.memory_space<vmem>>, vector<36x1xf32>
    %cst = arith.constant 0.000000e+00 : f32
    %1 = vector.broadcast %cst : f32 to vector<52x64xf32>
    %c0_1 = arith.constant 0 : index
    %c0_2 = arith.constant 0 : index
    %2 = vector.load %arg24[%c0_1, %c0_2] : memref<52x64xf32, #tpu.memory_space<vmem>>, vector<52x64xf32>
    tpu.vector_store %arg24[%c0_1, %c0_2], %1 {strides = array<i32>} : memref<52x64xf32, #tpu.memory_space<vmem>>, vector<52x64xf32>,
    %c0_3 = arith.constant 0 : index
    %c0_4 = arith.constant 0 : index
    %c0_5 = arith.constant 0 : index
    %3 = vector.load %arg1[%c0_3, %c0_4, %c0_5] : memref<1x36x48xf32, #tpu.memory_space<vmem>>, vector<1x36x48xf32>
    %4 = vector.shape_cast %3 : vector<1x36x48xf32> to vector<36x48xf32>
    %c8 = arith.constant 8 : index
    %c0_6 = arith.constant 0 : index
    %5 = vector.load %arg24[%c8, %c0_6] : memref<52x64xf32, #tpu.memory_space<vmem>>, vector<36x48xf32>
    tpu.vector_store %arg24[%c8, %c0_6], %4 {strides = array<i32>} : memref<52x64xf32, #tpu.memory_space<vmem>>, vector<36x48xf32>,
    %cst_7 = arith.constant 0.000000e+00 : f32
    %6 = vector.broadcast %cst_7 : f32 to vector<36x64xf32>
    %c1 = arith.constant 1 : index
    %c0_8 = arith.constant 0 : index
    %7 = vector.load %arg24[%c1, %c0_8] : memref<52x64xf32, #tpu.memory_space<vmem>>, vector<36x48xf32>
    %8 = arith.truncf %7 : vector<36x48xf32> to vector<36x48xbf16>
    %c0_9 = arith.constant 0 : index
    %c0_10 = arith.constant 0 : index
    %c0_11 = arith.constant 0 : index
    %9 = vector.load %arg3[%c0_9, %c0_10, %c0_11] : memref<9x48x64xbf16, #tpu.memory_space<vmem>>, vector<1x48x64xbf16>
    %10 = vector.shape_cast %9 : vector<1x48x64xbf16> to vector<48x64xbf16>
    %cst_12 = arith.constant dense<0.000000e+00> : vector<36x64xf32>
    %11 = tpu.matmul %8, %10, %cst_12 {dimension_numbers = #tpu.dot_dimension_numbers<[1], [0], [0], [1], [0, 0, 1, 1], [], []>} : vector<36x48xbf16>, vector<48x64xbf16>, vector<36x64xf32> -> vector<36x64xf32>
    %12 = arith.addf %6, %11 : vector<36x64xf32>
    %c2 = arith.constant 2 : index
    %c0_13 = arith.constant 0 : index
    %13 = vector.load %arg24[%c2, %c0_13] : memref<52x64xf32, #tpu.memory_space<vmem>>, vector<36x48xf32>
    %14 = arith.truncf %13 : vector<36x48xf32> to vector<36x48xbf16>
    %c1_14 = arith.constant 1 : index
    %c0_15 = arith.constant 0 : index
    %c0_16 = arith.constant 0 : index
    %15 = vector.load %arg3[%c1_14, %c0_15, %c0_16] : memref<9x48x64xbf16, #tpu.memory_space<vmem>>, vector<1x48x64xbf16>
    %16 = vector.shape_cast %15 : vector<1x48x64xbf16> to vector<48x64xbf16>
    %cst_17 = arith.constant dense<0.000000e+00> : vector<36x64xf32>
    %17 = tpu.matmul %14, %16, %cst_17 {dimension_numbers = #tpu.dot_dimension_numbers<[1], [0], [0], [1], [0, 0, 1, 1], [], []>} : vector<36x48xbf16>, vector<48x64xbf16>, vector<36x64xf32> -> vector<36x64xf32>
    %18 = arith.addf %12, %17 : vector<36x64xf32>
    %c3 = arith.constant 3 : index
    %c0_18 = arith.constant 0 : index
    %19 = vector.load %arg24[%c3, %c0_18] : memref<52x64xf32, #tpu.memory_space<vmem>>, vector<36x48xf32>
    %20 = arith.truncf %19 : vector<36x48xf32> to vector<36x48xbf16>
    %c2_19 = arith.constant 2 : index
    %c0_20 = arith.constant 0 : index
    %c0_21 = arith.constant 0 : index
    %21 = vector.load %arg3[%c2_19, %c0_20, %c0_21] : memref<9x48x64xbf16, #tpu.memory_space<vmem>>, vector<1x48x64xbf16>
    %22 = vector.shape_cast %21 : vector<1x48x64xbf16> to vector<48x64xbf16>
    %cst_22 = arith.constant dense<0.000000e+00> : vector<36x64xf32>
    %23 = tpu.matmul %20, %22, %cst_22 {dimension_numbers = #tpu.dot_dimension_numbers<[1], [0], [0], [1], [0, 0, 1, 1], [], []>} : vector<36x48xbf16>, vector<48x64xbf16>, vector<36x64xf32> -> vector<36x64xf32>
    %24 = arith.addf %18, %23 : vector<36x64xf32>
    %c7 = arith.constant 7 : index
    %c0_23 = arith.constant 0 : index
    %25 = vector.load %arg24[%c7, %c0_23] : memref<52x64xf32, #tpu.memory_space<vmem>>, vector<36x48xf32>
    %26 = arith.truncf %25 : vector<36x48xf32> to vector<36x48xbf16>
    %c3_24 = arith.constant 3 : index
    %c0_25 = arith.constant 0 : index
    %c0_26 = arith.constant 0 : index
    %27 = vector.load %arg3[%c3_24, %c0_25, %c0_26] : memref<9x48x64xbf16, #tpu.memory_space<vmem>>, vector<1x48x64xbf16>
    %28 = vector.shape_cast %27 : vector<1x48x64xbf16> to vector<48x64xbf16>
    %cst_27 = arith.constant dense<0.000000e+00> : vector<36x64xf32>
    %29 = tpu.matmul %26, %28, %cst_27 {dimension_numbers = #tpu.dot_dimension_numbers<[1], [0], [0], [1], [0, 0, 1, 1], [], []>} : vector<36x48xbf16>, vector<48x64xbf16>, vector<36x64xf32> -> vector<36x64xf32>
    %30 = arith.addf %24, %29 : vector<36x64xf32>
    %c8_28 = arith.constant 8 : index
    %c0_29 = arith.constant 0 : index
    %31 = vector.load %arg24[%c8_28, %c0_29] : memref<52x64xf32, #tpu.memory_space<vmem>>, vector<36x48xf32>
    %32 = arith.truncf %31 : vector<36x48xf32> to vector<36x48xbf16>
    %c4 = arith.constant 4 : index
    %c0_30 = arith.constant 0 : index
    %c0_31 = arith.constant 0 : index
    %33 = vector.load %arg3[%c4, %c0_30, %c0_31] : memref<9x48x64xbf16, #tpu.memory_space<vmem>>, vector<1x48x64xbf16>
    %34 = vector.shape_cast %33 : vector<1x48x64xbf16> to vector<48x64xbf16>
    %cst_32 = arith.constant dense<0.000000e+00> : vector<36x64xf32>
    %35 = tpu.matmul %32, %34, %cst_32 {dimension_numbers = #tpu.dot_dimension_numbers<[1], [0], [0], [1], [0, 0, 1, 1], [], []>} : vector<36x48xbf16>, vector<48x64xbf16>, vector<36x64xf32> -> vector<36x64xf32>
    %36 = arith.addf %30, %35 : vector<36x64xf32>
    %c9 = arith.constant 9 : index
    %c0_33 = arith.constant 0 : index
    %37 = vector.load %arg24[%c9, %c0_33] : memref<52x64xf32, #tpu.memory_space<vmem>>, vector<36x48xf32>
    %38 = arith.truncf %37 : vector<36x48xf32> to vector<36x48xbf16>
    %c5 = arith.constant 5 : index
    %c0_34 = arith.constant 0 : index
    %c0_35 = arith.constant 0 : index
    %39 = vector.load %arg3[%c5, %c0_34, %c0_35] : memref<9x48x64xbf16, #tpu.memory_space<vmem>>, vector<1x48x64xbf16>
    %40 = vector.shape_cast %39 : vector<1x48x64xbf16> to vector<48x64xbf16>
    %cst_36 = arith.constant dense<0.000000e+00> : vector<36x64xf32>
    %41 = tpu.matmul %38, %40, %cst_36 {dimension_numbers = #tpu.dot_dimension_numbers<[1], [0], [0], [1], [0, 0, 1, 1], [], []>} : vector<36x48xbf16>, vector<48x64xbf16>, vector<36x64xf32> -> vector<36x64xf32>
    %42 = arith.addf %36, %41 : vector<36x64xf32>
    %c13 = arith.constant 13 : index
    %c0_37 = arith.constant 0 : index
    %43 = vector.load %arg24[%c13, %c0_37] : memref<52x64xf32, #tpu.memory_space<vmem>>, vector<36x48xf32>
    %44 = arith.truncf %43 : vector<36x48xf32> to vector<36x48xbf16>
    %c6 = arith.constant 6 : index
    %c0_38 = arith.constant 0 : index
    %c0_39 = arith.constant 0 : index
    %45 = vector.load %arg3[%c6, %c0_38, %c0_39] : memref<9x48x64xbf16, #tpu.memory_space<vmem>>, vector<1x48x64xbf16>
    %46 = vector.shape_cast %45 : vector<1x48x64xbf16> to vector<48x64xbf16>
    %cst_40 = arith.constant dense<0.000000e+00> : vector<36x64xf32>
    %47 = tpu.matmul %44, %46, %cst_40 {dimension_numbers = #tpu.dot_dimension_numbers<[1], [0], [0], [1], [0, 0, 1, 1], [], []>} : vector<36x48xbf16>, vector<48x64xbf16>, vector<36x64xf32> -> vector<36x64xf32>
    %48 = arith.addf %42, %47 : vector<36x64xf32>
    %c14 = arith.constant 14 : index
    %c0_41 = arith.constant 0 : index
    %49 = vector.load %arg24[%c14, %c0_41] : memref<52x64xf32, #tpu.memory_space<vmem>>, vector<36x48xf32>
    %50 = arith.truncf %49 : vector<36x48xf32> to vector<36x48xbf16>
    %c7_42 = arith.constant 7 : index
    %c0_43 = arith.constant 0 : index
    %c0_44 = arith.constant 0 : index
    %51 = vector.load %arg3[%c7_42, %c0_43, %c0_44] : memref<9x48x64xbf16, #tpu.memory_space<vmem>>, vector<1x48x64xbf16>
    %52 = vector.shape_cast %51 : vector<1x48x64xbf16> to vector<48x64xbf16>
    %cst_45 = arith.constant dense<0.000000e+00> : vector<36x64xf32>
    %53 = tpu.matmul %50, %52, %cst_45 {dimension_numbers = #tpu.dot_dimension_numbers<[1], [0], [0], [1], [0, 0, 1, 1], [], []>} : vector<36x48xbf16>, vector<48x64xbf16>, vector<36x64xf32> -> vector<36x64xf32>
    %54 = arith.addf %48, %53 : vector<36x64xf32>
    %c15 = arith.constant 15 : index
    %c0_46 = arith.constant 0 : index
    %55 = vector.load %arg24[%c15, %c0_46] : memref<52x64xf32, #tpu.memory_space<vmem>>, vector<36x48xf32>
    %56 = arith.truncf %55 : vector<36x48xf32> to vector<36x48xbf16>
    %c8_47 = arith.constant 8 : index
    %c0_48 = arith.constant 0 : index
    %c0_49 = arith.constant 0 : index
    %57 = vector.load %arg3[%c8_47, %c0_48, %c0_49] : memref<9x48x64xbf16, #tpu.memory_space<vmem>>, vector<1x48x64xbf16>
    %58 = vector.shape_cast %57 : vector<1x48x64xbf16> to vector<48x64xbf16>
    %cst_50 = arith.constant dense<0.000000e+00> : vector<36x64xf32>
    %59 = tpu.matmul %56, %58, %cst_50 {dimension_numbers = #tpu.dot_dimension_numbers<[1], [0], [0], [1], [0, 0, 1, 1], [], []>} : vector<36x48xbf16>, vector<48x64xbf16>, vector<36x64xf32> -> vector<36x64xf32>
    %60 = arith.addf %54, %59 : vector<36x64xf32>
    %c0_51 = arith.constant 0 : index
    %c0_52 = arith.constant 0 : index
    %61 = vector.load %arg4[%c0_51, %c0_52] : memref<1x64xf32, #tpu.memory_space<vmem>>, vector<1x64xf32>
    %62 = vector.broadcast %61 : vector<1x64xf32> to vector<36x64xf32>
    %63 = arith.addf %60, %62 : vector<36x64xf32>
    %64 = vector.broadcast %0 : vector<36x1xf32> to vector<36x64xf32>
    %65 = arith.mulf %63, %64 : vector<36x64xf32>
    %cst_53 = arith.constant 0.000000e+00 : f32
    %66 = vector.broadcast %cst_53 : f32 to vector<36x64xf32>
    %67 = arith.maximumf %65, %66 : vector<36x64xf32>
    %c8_54 = arith.constant 8 : index
    %c0_55 = arith.constant 0 : index
    %68 = vector.load %arg24[%c8_54, %c0_55] : memref<52x64xf32, #tpu.memory_space<vmem>>, vector<36x64xf32>
    tpu.vector_store %arg24[%c8_54, %c0_55], %67 {strides = array<i32>} : memref<52x64xf32, #tpu.memory_space<vmem>>, vector<36x64xf32>,
    %cst_56 = arith.constant 0.000000e+00 : f32
    %69 = vector.broadcast %cst_56 : f32 to vector<36x32xf32>
    %c1_57 = arith.constant 1 : index
    %c0_58 = arith.constant 0 : index
    %70 = vector.load %arg24[%c1_57, %c0_58] : memref<52x64xf32, #tpu.memory_space<vmem>>, vector<36x64xf32>
    %71 = arith.truncf %70 : vector<36x64xf32> to vector<36x64xbf16>
    %c0_59 = arith.constant 0 : index
    %c0_60 = arith.constant 0 : index
    %c0_61 = arith.constant 0 : index
    %72 = vector.load %arg5[%c0_59, %c0_60, %c0_61] : memref<9x64x32xbf16, #tpu.memory_space<vmem>>, vector<1x64x32xbf16>
    %73 = vector.shape_cast %72 : vector<1x64x32xbf16> to vector<64x32xbf16>
    %cst_62 = arith.constant dense<0.000000e+00> : vector<36x32xf32>
    %74 = tpu.matmul %71, %73, %cst_62 {dimension_numbers = #tpu.dot_dimension_numbers<[1], [0], [0], [1], [0, 0, 1, 1], [], []>} : vector<36x64xbf16>, vector<64x32xbf16>, vector<36x32xf32> -> vector<36x32xf32>
    %75 = arith.addf %69, %74 : vector<36x32xf32>
    %c2_63 = arith.constant 2 : index
    %c0_64 = arith.constant 0 : index
    %76 = vector.load %arg24[%c2_63, %c0_64] : memref<52x64xf32, #tpu.memory_space<vmem>>, vector<36x64xf32>
    %77 = arith.truncf %76 : vector<36x64xf32> to vector<36x64xbf16>
    %c1_65 = arith.constant 1 : index
    %c0_66 = arith.constant 0 : index
    %c0_67 = arith.constant 0 : index
    %78 = vector.load %arg5[%c1_65, %c0_66, %c0_67] : memref<9x64x32xbf16, #tpu.memory_space<vmem>>, vector<1x64x32xbf16>
    %79 = vector.shape_cast %78 : vector<1x64x32xbf16> to vector<64x32xbf16>
    %cst_68 = arith.constant dense<0.000000e+00> : vector<36x32xf32>
    %80 = tpu.matmul %77, %79, %cst_68 {dimension_numbers = #tpu.dot_dimension_numbers<[1], [0], [0], [1], [0, 0, 1, 1], [], []>} : vector<36x64xbf16>, vector<64x32xbf16>, vector<36x32xf32> -> vector<36x32xf32>
    %81 = arith.addf %75, %80 : vector<36x32xf32>
    %c3_69 = arith.constant 3 : index
    %c0_70 = arith.constant 0 : index
    %82 = vector.load %arg24[%c3_69, %c0_70] : memref<52x64xf32, #tpu.memory_space<vmem>>, vector<36x64xf32>
    %83 = arith.truncf %82 : vector<36x64xf32> to vector<36x64xbf16>
    %c2_71 = arith.constant 2 : index
    %c0_72 = arith.constant 0 : index
    %c0_73 = arith.constant 0 : index
    %84 = vector.load %arg5[%c2_71, %c0_72, %c0_73] : memref<9x64x32xbf16, #tpu.memory_space<vmem>>, vector<1x64x32xbf16>
    %85 = vector.shape_cast %84 : vector<1x64x32xbf16> to vector<64x32xbf16>
    %cst_74 = arith.constant dense<0.000000e+00> : vector<36x32xf32>
    %86 = tpu.matmul %83, %85, %cst_74 {dimension_numbers = #tpu.dot_dimension_numbers<[1], [0], [0], [1], [0, 0, 1, 1], [], []>} : vector<36x64xbf16>, vector<64x32xbf16>, vector<36x32xf32> -> vector<36x32xf32>
    %87 = arith.addf %81, %86 : vector<36x32xf32>
    %c7_75 = arith.constant 7 : index
    %c0_76 = arith.constant 0 : index
    %88 = vector.load %arg24[%c7_75, %c0_76] : memref<52x64xf32, #tpu.memory_space<vmem>>, vector<36x64xf32>
    %89 = arith.truncf %88 : vector<36x64xf32> to vector<36x64xbf16>
    %c3_77 = arith.constant 3 : index
    %c0_78 = arith.constant 0 : index
    %c0_79 = arith.constant 0 : index
    %90 = vector.load %arg5[%c3_77, %c0_78, %c0_79] : memref<9x64x32xbf16, #tpu.memory_space<vmem>>, vector<1x64x32xbf16>
    %91 = vector.shape_cast %90 : vector<1x64x32xbf16> to vector<64x32xbf16>
    %cst_80 = arith.constant dense<0.000000e+00> : vector<36x32xf32>
    %92 = tpu.matmul %89, %91, %cst_80 {dimension_numbers = #tpu.dot_dimension_numbers<[1], [0], [0], [1], [0, 0, 1, 1], [], []>} : vector<36x64xbf16>, vector<64x32xbf16>, vector<36x32xf32> -> vector<36x32xf32>
    %93 = arith.addf %87, %92 : vector<36x32xf32>
    %c8_81 = arith.constant 8 : index
    %c0_82 = arith.constant 0 : index
    %94 = vector.load %arg24[%c8_81, %c0_82] : memref<52x64xf32, #tpu.memory_space<vmem>>, vector<36x64xf32>
    %95 = arith.truncf %94 : vector<36x64xf32> to vector<36x64xbf16>
    %c4_83 = arith.constant 4 : index
    %c0_84 = arith.constant 0 : index
    %c0_85 = arith.constant 0 : index
    %96 = vector.load %arg5[%c4_83, %c0_84, %c0_85] : memref<9x64x32xbf16, #tpu.memory_space<vmem>>, vector<1x64x32xbf16>
    %97 = vector.shape_cast %96 : vector<1x64x32xbf16> to vector<64x32xbf16>
    %cst_86 = arith.constant dense<0.000000e+00> : vector<36x32xf32>
    %98 = tpu.matmul %95, %97, %cst_86 {dimension_numbers = #tpu.dot_dimension_numbers<[1], [0], [0], [1], [0, 0, 1, 1], [], []>} : vector<36x64xbf16>, vector<64x32xbf16>, vector<36x32xf32> -> vector<36x32xf32>
    %99 = arith.addf %93, %98 : vector<36x32xf32>
    %c9_87 = arith.constant 9 : index
    %c0_88 = arith.constant 0 : index
    %100 = vector.load %arg24[%c9_87, %c0_88] : memref<52x64xf32, #tpu.memory_space<vmem>>, vector<36x64xf32>
    %101 = arith.truncf %100 : vector<36x64xf32> to vector<36x64xbf16>
    %c5_89 = arith.constant 5 : index
    %c0_90 = arith.constant 0 : index
    %c0_91 = arith.constant 0 : index
    %102 = vector.load %arg5[%c5_89, %c0_90, %c0_91] : memref<9x64x32xbf16, #tpu.memory_space<vmem>>, vector<1x64x32xbf16>
    %103 = vector.shape_cast %102 : vector<1x64x32xbf16> to vector<64x32xbf16>
    %cst_92 = arith.constant dense<0.000000e+00> : vector<36x32xf32>
    %104 = tpu.matmul %101, %103, %cst_92 {dimension_numbers = #tpu.dot_dimension_numbers<[1], [0], [0], [1], [0, 0, 1, 1], [], []>} : vector<36x64xbf16>, vector<64x32xbf16>, vector<36x32xf32> -> vector<36x32xf32>
    %105 = arith.addf %99, %104 : vector<36x32xf32>
    %c13_93 = arith.constant 13 : index
    %c0_94 = arith.constant 0 : index
    %106 = vector.load %arg24[%c13_93, %c0_94] : memref<52x64xf32, #tpu.memory_space<vmem>>, vector<36x64xf32>
    %107 = arith.truncf %106 : vector<36x64xf32> to vector<36x64xbf16>
    %c6_95 = arith.constant 6 : index
    %c0_96 = arith.constant 0 : index
    %c0_97 = arith.constant 0 : index
    %108 = vector.load %arg5[%c6_95, %c0_96, %c0_97] : memref<9x64x32xbf16, #tpu.memory_space<vmem>>, vector<1x64x32xbf16>
    %109 = vector.shape_cast %108 : vector<1x64x32xbf16> to vector<64x32xbf16>
    %cst_98 = arith.constant dense<0.000000e+00> : vector<36x32xf32>
    %110 = tpu.matmul %107, %109, %cst_98 {dimension_numbers = #tpu.dot_dimension_numbers<[1], [0], [0], [1], [0, 0, 1, 1], [], []>} : vector<36x64xbf16>, vector<64x32xbf16>, vector<36x32xf32> -> vector<36x32xf32>
    %111 = arith.addf %105, %110 : vector<36x32xf32>
    %c14_99 = arith.constant 14 : index
    %c0_100 = arith.constant 0 : index
    %112 = vector.load %arg24[%c14_99, %c0_100] : memref<52x64xf32, #tpu.memory_space<vmem>>, vector<36x64xf32>
    %113 = arith.truncf %112 : vector<36x64xf32> to vector<36x64xbf16>
    %c7_101 = arith.constant 7 : index
    %c0_102 = arith.constant 0 : index
    %c0_103 = arith.constant 0 : index
    %114 = vector.load %arg5[%c7_101, %c0_102, %c0_103] : memref<9x64x32xbf16, #tpu.memory_space<vmem>>, vector<1x64x32xbf16>
    %115 = vector.shape_cast %114 : vector<1x64x32xbf16> to vector<64x32xbf16>
    %cst_104 = arith.constant dense<0.000000e+00> : vector<36x32xf32>
    %116 = tpu.matmul %113, %115, %cst_104 {dimension_numbers = #tpu.dot_dimension_numbers<[1], [0], [0], [1], [0, 0, 1, 1], [], []>} : vector<36x64xbf16>, vector<64x32xbf16>, vector<36x32xf32> -> vector<36x32xf32>
    %117 = arith.addf %111, %116 : vector<36x32xf32>
    %c15_105 = arith.constant 15 : index
    %c0_106 = arith.constant 0 : index
    %118 = vector.load %arg24[%c15_105, %c0_106] : memref<52x64xf32, #tpu.memory_space<vmem>>, vector<36x64xf32>
    %119 = arith.truncf %118 : vector<36x64xf32> to vector<36x64xbf16>
    %c8_107 = arith.constant 8 : index
    %c0_108 = arith.constant 0 : index
    %c0_109 = arith.constant 0 : index
    %120 = vector.load %arg5[%c8_107, %c0_108, %c0_109] : memref<9x64x32xbf16, #tpu.memory_space<vmem>>, vector<1x64x32xbf16>
    %121 = vector.shape_cast %120 : vector<1x64x32xbf16> to vector<64x32xbf16>
    %cst_110 = arith.constant dense<0.000000e+00> : vector<36x32xf32>
    %122 = tpu.matmul %119, %121, %cst_110 {dimension_numbers = #tpu.dot_dimension_numbers<[1], [0], [0], [1], [0, 0, 1, 1], [], []>} : vector<36x64xbf16>, vector<64x32xbf16>, vector<36x32xf32> -> vector<36x32xf32>
    %123 = arith.addf %117, %122 : vector<36x32xf32>
    %c0_111 = arith.constant 0 : index
    %c0_112 = arith.constant 0 : index
    %124 = vector.load %arg6[%c0_111, %c0_112] : memref<1x32xf32, #tpu.memory_space<vmem>>, vector<1x32xf32>
    %125 = vector.broadcast %124 : vector<1x32xf32> to vector<36x32xf32>
    %126 = arith.addf %123, %125 : vector<36x32xf32>
    %127 = vector.broadcast %0 : vector<36x1xf32> to vector<36x32xf32>
    %128 = arith.mulf %126, %127 : vector<36x32xf32>
    %cst_113 = arith.constant 0.000000e+00 : f32
    %129 = vector.broadcast %cst_113 : f32 to vector<36x32xf32>
    %130 = arith.maximumf %128, %129 : vector<36x32xf32>
    %c8_114 = arith.constant 8 : index
    %c0_115 = arith.constant 0 : index
    %131 = vector.load %arg24[%c8_114, %c0_115] : memref<52x64xf32, #tpu.memory_space<vmem>>, vector<36x32xf32>
    tpu.vector_store %arg24[%c8_114, %c0_115], %130 {strides = array<i32>} : memref<52x64xf32, #tpu.memory_space<vmem>>, vector<36x32xf32>,
    %cst_116 = arith.constant 0.000000e+00 : f32
    %132 = vector.broadcast %cst_116 : f32 to vector<36x32xf32>
    %c1_117 = arith.constant 1 : index
    %c0_118 = arith.constant 0 : index
    %133 = vector.load %arg24[%c1_117, %c0_118] : memref<52x64xf32, #tpu.memory_space<vmem>>, vector<36x32xf32>
    %134 = arith.truncf %133 : vector<36x32xf32> to vector<36x32xbf16>
    %c0_119 = arith.constant 0 : index
    %c0_120 = arith.constant 0 : index
    %c0_121 = arith.constant 0 : index
    %135 = vector.load %arg7[%c0_119, %c0_120, %c0_121] : memref<9x32x32xbf16, #tpu.memory_space<vmem>>, vector<1x32x32xbf16>
    %136 = vector.shape_cast %135 : vector<1x32x32xbf16> to vector<32x32xbf16>
    %cst_122 = arith.constant dense<0.000000e+00> : vector<36x32xf32>
    %137 = tpu.matmul %134, %136, %cst_122 {dimension_numbers = #tpu.dot_dimension_numbers<[1], [0], [0], [1], [0, 0, 1, 1], [], []>} : vector<36x32xbf16>, vector<32x32xbf16>, vector<36x32xf32> -> vector<36x32xf32>
    %138 = arith.addf %132, %137 : vector<36x32xf32>
    %c2_123 = arith.constant 2 : index
    %c0_124 = arith.constant 0 : index
    %139 = vector.load %arg24[%c2_123, %c0_124] : memref<52x64xf32, #tpu.memory_space<vmem>>, vector<36x32xf32>
    %140 = arith.truncf %139 : vector<36x32xf32> to vector<36x32xbf16>
    %c1_125 = arith.constant 1 : index
    %c0_126 = arith.constant 0 : index
    %c0_127 = arith.constant 0 : index
    %141 = vector.load %arg7[%c1_125, %c0_126, %c0_127] : memref<9x32x32xbf16, #tpu.memory_space<vmem>>, vector<1x32x32xbf16>
    %142 = vector.shape_cast %141 : vector<1x32x32xbf16> to vector<32x32xbf16>
    %cst_128 = arith.constant dense<0.000000e+00> : vector<36x32xf32>
    %143 = tpu.matmul %140, %142, %cst_128 {dimension_numbers = #tpu.dot_dimension_numbers<[1], [0], [0], [1], [0, 0, 1, 1], [], []>} : vector<36x32xbf16>, vector<32x32xbf16>, vector<36x32xf32> -> vector<36x32xf32>
    %144 = arith.addf %138, %143 : vector<36x32xf32>
    %c3_129 = arith.constant 3 : index
    %c0_130 = arith.constant 0 : index
    %145 = vector.load %arg24[%c3_129, %c0_130] : memref<52x64xf32, #tpu.memory_space<vmem>>, vector<36x32xf32>
    %146 = arith.truncf %145 : vector<36x32xf32> to vector<36x32xbf16>
    %c2_131 = arith.constant 2 : index
    %c0_132 = arith.constant 0 : index
    %c0_133 = arith.constant 0 : index
    %147 = vector.load %arg7[%c2_131, %c0_132, %c0_133] : memref<9x32x32xbf16, #tpu.memory_space<vmem>>, vector<1x32x32xbf16>
    %148 = vector.shape_cast %147 : vector<1x32x32xbf16> to vector<32x32xbf16>
    %cst_134 = arith.constant dense<0.000000e+00> : vector<36x32xf32>
    %149 = tpu.matmul %146, %148, %cst_134 {dimension_numbers = #tpu.dot_dimension_numbers<[1], [0], [0], [1], [0, 0, 1, 1], [], []>} : vector<36x32xbf16>, vector<32x32xbf16>, vector<36x32xf32> -> vector<36x32xf32>
    %150 = arith.addf %144, %149 : vector<36x32xf32>
    %c7_135 = arith.constant 7 : index
    %c0_136 = arith.constant 0 : index
    %151 = vector.load %arg24[%c7_135, %c0_136] : memref<52x64xf32, #tpu.memory_space<vmem>>, vector<36x32xf32>
    %152 = arith.truncf %151 : vector<36x32xf32> to vector<36x32xbf16>
    %c3_137 = arith.constant 3 : index
    %c0_138 = arith.constant 0 : index
    %c0_139 = arith.constant 0 : index
    %153 = vector.load %arg7[%c3_137, %c0_138, %c0_139] : memref<9x32x32xbf16, #tpu.memory_space<vmem>>, vector<1x32x32xbf16>
    %154 = vector.shape_cast %153 : vector<1x32x32xbf16> to vector<32x32xbf16>
    %cst_140 = arith.constant dense<0.000000e+00> : vector<36x32xf32>
    %155 = tpu.matmul %152, %154, %cst_140 {dimension_numbers = #tpu.dot_dimension_numbers<[1], [0], [0], [1], [0, 0, 1, 1], [], []>} : vector<36x32xbf16>, vector<32x32xbf16>, vector<36x32xf32> -> vector<36x32xf32>
    %156 = arith.addf %150, %155 : vector<36x32xf32>
    %c8_141 = arith.constant 8 : index
    %c0_142 = arith.constant 0 : index
    %157 = vector.load %arg24[%c8_141, %c0_142] : memref<52x64xf32, #tpu.memory_space<vmem>>, vector<36x32xf32>
    %158 = arith.truncf %157 : vector<36x32xf32> to vector<36x32xbf16>
    %c4_143 = arith.constant 4 : index
    %c0_144 = arith.constant 0 : index
    %c0_145 = arith.constant 0 : index
    %159 = vector.load %arg7[%c4_143, %c0_144, %c0_145] : memref<9x32x32xbf16, #tpu.memory_space<vmem>>, vector<1x32x32xbf16>
    %160 = vector.shape_cast %159 : vector<1x32x32xbf16> to vector<32x32xbf16>
    %cst_146 = arith.constant dense<0.000000e+00> : vector<36x32xf32>
    %161 = tpu.matmul %158, %160, %cst_146 {dimension_numbers = #tpu.dot_dimension_numbers<[1], [0], [0], [1], [0, 0, 1, 1], [], []>} : vector<36x32xbf16>, vector<32x32xbf16>, vector<36x32xf32> -> vector<36x32xf32>
    %162 = arith.addf %156, %161 : vector<36x32xf32>
    %c9_147 = arith.constant 9 : index
    %c0_148 = arith.constant 0 : index
    %163 = vector.load %arg24[%c9_147, %c0_148] : memref<52x64xf32, #tpu.memory_space<vmem>>, vector<36x32xf32>
    %164 = arith.truncf %163 : vector<36x32xf32> to vector<36x32xbf16>
    %c5_149 = arith.constant 5 : index
    %c0_150 = arith.constant 0 : index
    %c0_151 = arith.constant 0 : index
    %165 = vector.load %arg7[%c5_149, %c0_150, %c0_151] : memref<9x32x32xbf16, #tpu.memory_space<vmem>>, vector<1x32x32xbf16>
    %166 = vector.shape_cast %165 : vector<1x32x32xbf16> to vector<32x32xbf16>
    %cst_152 = arith.constant dense<0.000000e+00> : vector<36x32xf32>
    %167 = tpu.matmul %164, %166, %cst_152 {dimension_numbers = #tpu.dot_dimension_numbers<[1], [0], [0], [1], [0, 0, 1, 1], [], []>} : vector<36x32xbf16>, vector<32x32xbf16>, vector<36x32xf32> -> vector<36x32xf32>
    %168 = arith.addf %162, %167 : vector<36x32xf32>
    %c13_153 = arith.constant 13 : index
    %c0_154 = arith.constant 0 : index
    %169 = vector.load %arg24[%c13_153, %c0_154] : memref<52x64xf32, #tpu.memory_space<vmem>>, vector<36x32xf32>
    %170 = arith.truncf %169 : vector<36x32xf32> to vector<36x32xbf16>
    %c6_155 = arith.constant 6 : index
    %c0_156 = arith.constant 0 : index
    %c0_157 = arith.constant 0 : index
    %171 = vector.load %arg7[%c6_155, %c0_156, %c0_157] : memref<9x32x32xbf16, #tpu.memory_space<vmem>>, vector<1x32x32xbf16>
    %172 = vector.shape_cast %171 : vector<1x32x32xbf16> to vector<32x32xbf16>
    %cst_158 = arith.constant dense<0.000000e+00> : vector<36x32xf32>
    %173 = tpu.matmul %170, %172, %cst_158 {dimension_numbers = #tpu.dot_dimension_numbers<[1], [0], [0], [1], [0, 0, 1, 1], [], []>} : vector<36x32xbf16>, vector<32x32xbf16>, vector<36x32xf32> -> vector<36x32xf32>
    %174 = arith.addf %168, %173 : vector<36x32xf32>
    %c14_159 = arith.constant 14 : index
    %c0_160 = arith.constant 0 : index
    %175 = vector.load %arg24[%c14_159, %c0_160] : memref<52x64xf32, #tpu.memory_space<vmem>>, vector<36x32xf32>
    %176 = arith.truncf %175 : vector<36x32xf32> to vector<36x32xbf16>
    %c7_161 = arith.constant 7 : index
    %c0_162 = arith.constant 0 : index
    %c0_163 = arith.constant 0 : index
    %177 = vector.load %arg7[%c7_161, %c0_162, %c0_163] : memref<9x32x32xbf16, #tpu.memory_space<vmem>>, vector<1x32x32xbf16>
    %178 = vector.shape_cast %177 : vector<1x32x32xbf16> to vector<32x32xbf16>
    %cst_164 = arith.constant dense<0.000000e+00> : vector<36x32xf32>
    %179 = tpu.matmul %176, %178, %cst_164 {dimension_numbers = #tpu.dot_dimension_numbers<[1], [0], [0], [1], [0, 0, 1, 1], [], []>} : vector<36x32xbf16>, vector<32x32xbf16>, vector<36x32xf32> -> vector<36x32xf32>
    %180 = arith.addf %174, %179 : vector<36x32xf32>
    %c15_165 = arith.constant 15 : index
    %c0_166 = arith.constant 0 : index
    %181 = vector.load %arg24[%c15_165, %c0_166] : memref<52x64xf32, #tpu.memory_space<vmem>>, vector<36x32xf32>
    %182 = arith.truncf %181 : vector<36x32xf32> to vector<36x32xbf16>
    %c8_167 = arith.constant 8 : index
    %c0_168 = arith.constant 0 : index
    %c0_169 = arith.constant 0 : index
    %183 = vector.load %arg7[%c8_167, %c0_168, %c0_169] : memref<9x32x32xbf16, #tpu.memory_space<vmem>>, vector<1x32x32xbf16>
    %184 = vector.shape_cast %183 : vector<1x32x32xbf16> to vector<32x32xbf16>
    %cst_170 = arith.constant dense<0.000000e+00> : vector<36x32xf32>
    %185 = tpu.matmul %182, %184, %cst_170 {dimension_numbers = #tpu.dot_dimension_numbers<[1], [0], [0], [1], [0, 0, 1, 1], [], []>} : vector<36x32xbf16>, vector<32x32xbf16>, vector<36x32xf32> -> vector<36x32xf32>
    %186 = arith.addf %180, %185 : vector<36x32xf32>
    %c0_171 = arith.constant 0 : index
    %c0_172 = arith.constant 0 : index
    %187 = vector.load %arg8[%c0_171, %c0_172] : memref<1x32xf32, #tpu.memory_space<vmem>>, vector<1x32xf32>
    %188 = vector.broadcast %187 : vector<1x32xf32> to vector<36x32xf32>
    %189 = arith.addf %186, %188 : vector<36x32xf32>
    %190 = vector.broadcast %0 : vector<36x1xf32> to vector<36x32xf32>
    %191 = arith.mulf %189, %190 : vector<36x32xf32>
    %cst_173 = arith.constant 0.000000e+00 : f32
    %192 = vector.broadcast %cst_173 : f32 to vector<36x32xf32>
    %193 = arith.maximumf %191, %192 : vector<36x32xf32>
    %c8_174 = arith.constant 8 : index
    %c0_175 = arith.constant 0 : index
    %194 = vector.load %arg24[%c8_174, %c0_175] : memref<52x64xf32, #tpu.memory_space<vmem>>, vector<36x32xf32>
    tpu.vector_store %arg24[%c8_174, %c0_175], %193 {strides = array<i32>} : memref<52x64xf32, #tpu.memory_space<vmem>>, vector<36x32xf32>,
    %cst_176 = arith.constant 0.000000e+00 : f32
    %195 = vector.broadcast %cst_176 : f32 to vector<36x8xf32>
    %c1_177 = arith.constant 1 : index
    %c0_178 = arith.constant 0 : index
    %196 = vector.load %arg24[%c1_177, %c0_178] : memref<52x64xf32, #tpu.memory_space<vmem>>, vector<36x32xf32>
    %197 = arith.truncf %196 : vector<36x32xf32> to vector<36x32xbf16>
    %c0_179 = arith.constant 0 : index
    %c0_180 = arith.constant 0 : index
    %c0_181 = arith.constant 0 : index
    %198 = vector.load %arg9[%c0_179, %c0_180, %c0_181] : memref<9x32x8xbf16, #tpu.memory_space<vmem>>, vector<1x32x8xbf16>
    %199 = vector.shape_cast %198 : vector<1x32x8xbf16> to vector<32x8xbf16>
    %cst_182 = arith.constant dense<0.000000e+00> : vector<36x8xf32>
    %200 = tpu.matmul %197, %199, %cst_182 {dimension_numbers = #tpu.dot_dimension_numbers<[1], [0], [0], [1], [0, 0, 1, 1], [], []>} : vector<36x32xbf16>, vector<32x8xbf16>, vector<36x8xf32> -> vector<36x8xf32>
    %201 = arith.addf %195, %200 : vector<36x8xf32>
    %c2_183 = arith.constant 2 : index
    %c0_184 = arith.constant 0 : index
    %202 = vector.load %arg24[%c2_183, %c0_184] : memref<52x64xf32, #tpu.memory_space<vmem>>, vector<36x32xf32>
    %203 = arith.truncf %202 : vector<36x32xf32> to vector<36x32xbf16>
    %c1_185 = arith.constant 1 : index
    %c0_186 = arith.constant 0 : index
    %c0_187 = arith.constant 0 : index
    %204 = vector.load %arg9[%c1_185, %c0_186, %c0_187] : memref<9x32x8xbf16, #tpu.memory_space<vmem>>, vector<1x32x8xbf16>
    %205 = vector.shape_cast %204 : vector<1x32x8xbf16> to vector<32x8xbf16>
    %cst_188 = arith.constant dense<0.000000e+00> : vector<36x8xf32>
    %206 = tpu.matmul %203, %205, %cst_188 {dimension_numbers = #tpu.dot_dimension_numbers<[1], [0], [0], [1], [0, 0, 1, 1], [], []>} : vector<36x32xbf16>, vector<32x8xbf16>, vector<36x8xf32> -> vector<36x8xf32>
    %207 = arith.addf %201, %206 : vector<36x8xf32>
    %c3_189 = arith.constant 3 : index
    %c0_190 = arith.constant 0 : index
    %208 = vector.load %arg24[%c3_189, %c0_190] : memref<52x64xf32, #tpu.memory_space<vmem>>, vector<36x32xf32>
    %209 = arith.truncf %208 : vector<36x32xf32> to vector<36x32xbf16>
    %c2_191 = arith.constant 2 : index
    %c0_192 = arith.constant 0 : index
    %c0_193 = arith.constant 0 : index
    %210 = vector.load %arg9[%c2_191, %c0_192, %c0_193] : memref<9x32x8xbf16, #tpu.memory_space<vmem>>, vector<1x32x8xbf16>
    %211 = vector.shape_cast %210 : vector<1x32x8xbf16> to vector<32x8xbf16>
    %cst_194 = arith.constant dense<0.000000e+00> : vector<36x8xf32>
    %212 = tpu.matmul %209, %211, %cst_194 {dimension_numbers = #tpu.dot_dimension_numbers<[1], [0], [0], [1], [0, 0, 1, 1], [], []>} : vector<36x32xbf16>, vector<32x8xbf16>, vector<36x8xf32> -> vector<36x8xf32>
    %213 = arith.addf %207, %212 : vector<36x8xf32>
    %c7_195 = arith.constant 7 : index
    %c0_196 = arith.constant 0 : index
    %214 = vector.load %arg24[%c7_195, %c0_196] : memref<52x64xf32, #tpu.memory_space<vmem>>, vector<36x32xf32>
    %215 = arith.truncf %214 : vector<36x32xf32> to vector<36x32xbf16>
    %c3_197 = arith.constant 3 : index
    %c0_198 = arith.constant 0 : index
    %c0_199 = arith.constant 0 : index
    %216 = vector.load %arg9[%c3_197, %c0_198, %c0_199] : memref<9x32x8xbf16, #tpu.memory_space<vmem>>, vector<1x32x8xbf16>
    %217 = vector.shape_cast %216 : vector<1x32x8xbf16> to vector<32x8xbf16>
    %cst_200 = arith.constant dense<0.000000e+00> : vector<36x8xf32>
    %218 = tpu.matmul %215, %217, %cst_200 {dimension_numbers = #tpu.dot_dimension_numbers<[1], [0], [0], [1], [0, 0, 1, 1], [], []>} : vector<36x32xbf16>, vector<32x8xbf16>, vector<36x8xf32> -> vector<36x8xf32>
    %219 = arith.addf %213, %218 : vector<36x8xf32>
    %c8_201 = arith.constant 8 : index
    %c0_202 = arith.constant 0 : index
    %220 = vector.load %arg24[%c8_201, %c0_202] : memref<52x64xf32, #tpu.memory_space<vmem>>, vector<36x32xf32>
    %221 = arith.truncf %220 : vector<36x32xf32> to vector<36x32xbf16>
    %c4_203 = arith.constant 4 : index
    %c0_204 = arith.constant 0 : index
    %c0_205 = arith.constant 0 : index
    %222 = vector.load %arg9[%c4_203, %c0_204, %c0_205] : memref<9x32x8xbf16, #tpu.memory_space<vmem>>, vector<1x32x8xbf16>
    %223 = vector.shape_cast %222 : vector<1x32x8xbf16> to vector<32x8xbf16>
    %cst_206 = arith.constant dense<0.000000e+00> : vector<36x8xf32>
    %224 = tpu.matmul %221, %223, %cst_206 {dimension_numbers = #tpu.dot_dimension_numbers<[1], [0], [0], [1], [0, 0, 1, 1], [], []>} : vector<36x32xbf16>, vector<32x8xbf16>, vector<36x8xf32> -> vector<36x8xf32>
    %225 = arith.addf %219, %224 : vector<36x8xf32>
    %c9_207 = arith.constant 9 : index
    %c0_208 = arith.constant 0 : index
    %226 = vector.load %arg24[%c9_207, %c0_208] : memref<52x64xf32, #tpu.memory_space<vmem>>, vector<36x32xf32>
    %227 = arith.truncf %226 : vector<36x32xf32> to vector<36x32xbf16>
    %c5_209 = arith.constant 5 : index
    %c0_210 = arith.constant 0 : index
    %c0_211 = arith.constant 0 : index
    %228 = vector.load %arg9[%c5_209, %c0_210, %c0_211] : memref<9x32x8xbf16, #tpu.memory_space<vmem>>, vector<1x32x8xbf16>
    %229 = vector.shape_cast %228 : vector<1x32x8xbf16> to vector<32x8xbf16>
    %cst_212 = arith.constant dense<0.000000e+00> : vector<36x8xf32>
    %230 = tpu.matmul %227, %229, %cst_212 {dimension_numbers = #tpu.dot_dimension_numbers<[1], [0], [0], [1], [0, 0, 1, 1], [], []>} : vector<36x32xbf16>, vector<32x8xbf16>, vector<36x8xf32> -> vector<36x8xf32>
    %231 = arith.addf %225, %230 : vector<36x8xf32>
    %c13_213 = arith.constant 13 : index
    %c0_214 = arith.constant 0 : index
    %232 = vector.load %arg24[%c13_213, %c0_214] : memref<52x64xf32, #tpu.memory_space<vmem>>, vector<36x32xf32>
    %233 = arith.truncf %232 : vector<36x32xf32> to vector<36x32xbf16>
    %c6_215 = arith.constant 6 : index
    %c0_216 = arith.constant 0 : index
    %c0_217 = arith.constant 0 : index
    %234 = vector.load %arg9[%c6_215, %c0_216, %c0_217] : memref<9x32x8xbf16, #tpu.memory_space<vmem>>, vector<1x32x8xbf16>
    %235 = vector.shape_cast %234 : vector<1x32x8xbf16> to vector<32x8xbf16>
    %cst_218 = arith.constant dense<0.000000e+00> : vector<36x8xf32>
    %236 = tpu.matmul %233, %235, %cst_218 {dimension_numbers = #tpu.dot_dimension_numbers<[1], [0], [0], [1], [0, 0, 1, 1], [], []>} : vector<36x32xbf16>, vector<32x8xbf16>, vector<36x8xf32> -> vector<36x8xf32>
    %237 = arith.addf %231, %236 : vector<36x8xf32>
    %c14_219 = arith.constant 14 : index
    %c0_220 = arith.constant 0 : index
    %238 = vector.load %arg24[%c14_219, %c0_220] : memref<52x64xf32, #tpu.memory_space<vmem>>, vector<36x32xf32>
    %239 = arith.truncf %238 : vector<36x32xf32> to vector<36x32xbf16>
    %c7_221 = arith.constant 7 : index
    %c0_222 = arith.constant 0 : index
    %c0_223 = arith.constant 0 : index
    %240 = vector.load %arg9[%c7_221, %c0_222, %c0_223] : memref<9x32x8xbf16, #tpu.memory_space<vmem>>, vector<1x32x8xbf16>
    %241 = vector.shape_cast %240 : vector<1x32x8xbf16> to vector<32x8xbf16>
    %cst_224 = arith.constant dense<0.000000e+00> : vector<36x8xf32>
    %242 = tpu.matmul %239, %241, %cst_224 {dimension_numbers = #tpu.dot_dimension_numbers<[1], [0], [0], [1], [0, 0, 1, 1], [], []>} : vector<36x32xbf16>, vector<32x8xbf16>, vector<36x8xf32> -> vector<36x8xf32>
    %243 = arith.addf %237, %242 : vector<36x8xf32>
    %c15_225 = arith.constant 15 : index
    %c0_226 = arith.constant 0 : index
    %244 = vector.load %arg24[%c15_225, %c0_226] : memref<52x64xf32, #tpu.memory_space<vmem>>, vector<36x32xf32>
    %245 = arith.truncf %244 : vector<36x32xf32> to vector<36x32xbf16>
    %c8_227 = arith.constant 8 : index
    %c0_228 = arith.constant 0 : index
    %c0_229 = arith.constant 0 : index
    %246 = vector.load %arg9[%c8_227, %c0_228, %c0_229] : memref<9x32x8xbf16, #tpu.memory_space<vmem>>, vector<1x32x8xbf16>
    %247 = vector.shape_cast %246 : vector<1x32x8xbf16> to vector<32x8xbf16>
    %cst_230 = arith.constant dense<0.000000e+00> : vector<36x8xf32>
    %248 = tpu.matmul %245, %247, %cst_230 {dimension_numbers = #tpu.dot_dimension_numbers<[1], [0], [0], [1], [0, 0, 1, 1], [], []>} : vector<36x32xbf16>, vector<32x8xbf16>, vector<36x8xf32> -> vector<36x8xf32>
    %249 = arith.addf %243, %248 : vector<36x8xf32>
    %250 = vector.broadcast %0 : vector<36x1xf32> to vector<36x8xf32>
    %251 = arith.mulf %249, %250 : vector<36x8xf32>
    %cst_231 = arith.constant 0.000000e+00 : f32
    %252 = vector.broadcast %cst_231 : f32 to vector<36x8xf32>
    %253 = arith.maximumf %251, %252 : vector<36x8xf32>
    %c8_232 = arith.constant 8 : index
    %c0_233 = arith.constant 0 : index
    %254 = vector.load %arg24[%c8_232, %c0_233] : memref<52x64xf32, #tpu.memory_space<vmem>>, vector<36x8xf32>
    tpu.vector_store %arg24[%c8_232, %c0_233], %253 {strides = array<i32>} : memref<52x64xf32, #tpu.memory_space<vmem>>, vector<36x8xf32>,
    %cst_234 = arith.constant 0.000000e+00 : f32
    %255 = vector.broadcast %cst_234 : f32 to vector<36x32xf32>
    %c8_235 = arith.constant 8 : index
    %c0_236 = arith.constant 0 : index
    %256 = vector.load %arg24[%c8_235, %c0_236] : memref<52x64xf32, #tpu.memory_space<vmem>>, vector<36x8xf32>
    %257 = arith.truncf %256 : vector<36x8xf32> to vector<36x8xbf16>
    %c0_237 = arith.constant 0 : index
    %c0_238 = arith.constant 0 : index
    %c0_239 = arith.constant 0 : index
    %258 = vector.load %arg10[%c0_237, %c0_238, %c0_239] : memref<1x8x32xbf16, #tpu.memory_space<vmem>>, vector<1x8x32xbf16>
    %259 = vector.shape_cast %258 : vector<1x8x32xbf16> to vector<8x32xbf16>
    %cst_240 = arith.constant dense<0.000000e+00> : vector<36x32xf32>
    %260 = tpu.matmul %257, %259, %cst_240 {dimension_numbers = #tpu.dot_dimension_numbers<[1], [0], [0], [1], [0, 0, 1, 1], [], []>} : vector<36x8xbf16>, vector<8x32xbf16>, vector<36x32xf32> -> vector<36x32xf32>
    %261 = arith.addf %255, %260 : vector<36x32xf32>
    %262 = vector.broadcast %0 : vector<36x1xf32> to vector<36x32xf32>
    %263 = arith.mulf %261, %262 : vector<36x32xf32>
    %264 = arith.addf %191, %263 : vector<36x32xf32>
    %cst_241 = arith.constant 0.000000e+00 : f32
    %265 = vector.broadcast %cst_241 : f32 to vector<36x32xf32>
    %266 = arith.maximumf %264, %265 : vector<36x32xf32>
    %c8_242 = arith.constant 8 : index
    %c0_243 = arith.constant 0 : index
    %267 = vector.load %arg24[%c8_242, %c0_243] : memref<52x64xf32, #tpu.memory_space<vmem>>, vector<36x32xf32>
    tpu.vector_store %arg24[%c8_242, %c0_243], %266 {strides = array<i32>} : memref<52x64xf32, #tpu.memory_space<vmem>>, vector<36x32xf32>,
    %cst_244 = arith.constant 0.000000e+00 : f32
    %268 = vector.broadcast %cst_244 : f32 to vector<36x8xf32>
    %c1_245 = arith.constant 1 : index
    %c0_246 = arith.constant 0 : index
    %269 = vector.load %arg24[%c1_245, %c0_246] : memref<52x64xf32, #tpu.memory_space<vmem>>, vector<36x32xf32>
    %270 = arith.truncf %269 : vector<36x32xf32> to vector<36x32xbf16>
    %c0_247 = arith.constant 0 : index
    %c0_248 = arith.constant 0 : index
    %c0_249 = arith.constant 0 : index
    %271 = vector.load %arg11[%c0_247, %c0_248, %c0_249] : memref<9x32x8xbf16, #tpu.memory_space<vmem>>, vector<1x32x8xbf16>
    %272 = vector.shape_cast %271 : vector<1x32x8xbf16> to vector<32x8xbf16>
    %cst_250 = arith.constant dense<0.000000e+00> : vector<36x8xf32>
    %273 = tpu.matmul %270, %272, %cst_250 {dimension_numbers = #tpu.dot_dimension_numbers<[1], [0], [0], [1], [0, 0, 1, 1], [], []>} : vector<36x32xbf16>, vector<32x8xbf16>, vector<36x8xf32> -> vector<36x8xf32>
    %274 = arith.addf %268, %273 : vector<36x8xf32>
    %c2_251 = arith.constant 2 : index
    %c0_252 = arith.constant 0 : index
    %275 = vector.load %arg24[%c2_251, %c0_252] : memref<52x64xf32, #tpu.memory_space<vmem>>, vector<36x32xf32>
    %276 = arith.truncf %275 : vector<36x32xf32> to vector<36x32xbf16>
    %c1_253 = arith.constant 1 : index
    %c0_254 = arith.constant 0 : index
    %c0_255 = arith.constant 0 : index
    %277 = vector.load %arg11[%c1_253, %c0_254, %c0_255] : memref<9x32x8xbf16, #tpu.memory_space<vmem>>, vector<1x32x8xbf16>
    %278 = vector.shape_cast %277 : vector<1x32x8xbf16> to vector<32x8xbf16>
    %cst_256 = arith.constant dense<0.000000e+00> : vector<36x8xf32>
    %279 = tpu.matmul %276, %278, %cst_256 {dimension_numbers = #tpu.dot_dimension_numbers<[1], [0], [0], [1], [0, 0, 1, 1], [], []>} : vector<36x32xbf16>, vector<32x8xbf16>, vector<36x8xf32> -> vector<36x8xf32>
    %280 = arith.addf %274, %279 : vector<36x8xf32>
    %c3_257 = arith.constant 3 : index
    %c0_258 = arith.constant 0 : index
    %281 = vector.load %arg24[%c3_257, %c0_258] : memref<52x64xf32, #tpu.memory_space<vmem>>, vector<36x32xf32>
    %282 = arith.truncf %281 : vector<36x32xf32> to vector<36x32xbf16>
    %c2_259 = arith.constant 2 : index
    %c0_260 = arith.constant 0 : index
    %c0_261 = arith.constant 0 : index
    %283 = vector.load %arg11[%c2_259, %c0_260, %c0_261] : memref<9x32x8xbf16, #tpu.memory_space<vmem>>, vector<1x32x8xbf16>
    %284 = vector.shape_cast %283 : vector<1x32x8xbf16> to vector<32x8xbf16>
    %cst_262 = arith.constant dense<0.000000e+00> : vector<36x8xf32>
    %285 = tpu.matmul %282, %284, %cst_262 {dimension_numbers = #tpu.dot_dimension_numbers<[1], [0], [0], [1], [0, 0, 1, 1], [], []>} : vector<36x32xbf16>, vector<32x8xbf16>, vector<36x8xf32> -> vector<36x8xf32>
    %286 = arith.addf %280, %285 : vector<36x8xf32>
    %c7_263 = arith.constant 7 : index
    %c0_264 = arith.constant 0 : index
    %287 = vector.load %arg24[%c7_263, %c0_264] : memref<52x64xf32, #tpu.memory_space<vmem>>, vector<36x32xf32>
    %288 = arith.truncf %287 : vector<36x32xf32> to vector<36x32xbf16>
    %c3_265 = arith.constant 3 : index
    %c0_266 = arith.constant 0 : index
    %c0_267 = arith.constant 0 : index
    %289 = vector.load %arg11[%c3_265, %c0_266, %c0_267] : memref<9x32x8xbf16, #tpu.memory_space<vmem>>, vector<1x32x8xbf16>
    %290 = vector.shape_cast %289 : vector<1x32x8xbf16> to vector<32x8xbf16>
    %cst_268 = arith.constant dense<0.000000e+00> : vector<36x8xf32>
    %291 = tpu.matmul %288, %290, %cst_268 {dimension_numbers = #tpu.dot_dimension_numbers<[1], [0], [0], [1], [0, 0, 1, 1], [], []>} : vector<36x32xbf16>, vector<32x8xbf16>, vector<36x8xf32> -> vector<36x8xf32>
    %292 = arith.addf %286, %291 : vector<36x8xf32>
    %c8_269 = arith.constant 8 : index
    %c0_270 = arith.constant 0 : index
    %293 = vector.load %arg24[%c8_269, %c0_270] : memref<52x64xf32, #tpu.memory_space<vmem>>, vector<36x32xf32>
    %294 = arith.truncf %293 : vector<36x32xf32> to vector<36x32xbf16>
    %c4_271 = arith.constant 4 : index
    %c0_272 = arith.constant 0 : index
    %c0_273 = arith.constant 0 : index
    %295 = vector.load %arg11[%c4_271, %c0_272, %c0_273] : memref<9x32x8xbf16, #tpu.memory_space<vmem>>, vector<1x32x8xbf16>
    %296 = vector.shape_cast %295 : vector<1x32x8xbf16> to vector<32x8xbf16>
    %cst_274 = arith.constant dense<0.000000e+00> : vector<36x8xf32>
    %297 = tpu.matmul %294, %296, %cst_274 {dimension_numbers = #tpu.dot_dimension_numbers<[1], [0], [0], [1], [0, 0, 1, 1], [], []>} : vector<36x32xbf16>, vector<32x8xbf16>, vector<36x8xf32> -> vector<36x8xf32>
    %298 = arith.addf %292, %297 : vector<36x8xf32>
    %c9_275 = arith.constant 9 : index
    %c0_276 = arith.constant 0 : index
    %299 = vector.load %arg24[%c9_275, %c0_276] : memref<52x64xf32, #tpu.memory_space<vmem>>, vector<36x32xf32>
    %300 = arith.truncf %299 : vector<36x32xf32> to vector<36x32xbf16>
    %c5_277 = arith.constant 5 : index
    %c0_278 = arith.constant 0 : index
    %c0_279 = arith.constant 0 : index
    %301 = vector.load %arg11[%c5_277, %c0_278, %c0_279] : memref<9x32x8xbf16, #tpu.memory_space<vmem>>, vector<1x32x8xbf16>
    %302 = vector.shape_cast %301 : vector<1x32x8xbf16> to vector<32x8xbf16>
    %cst_280 = arith.constant dense<0.000000e+00> : vector<36x8xf32>
    %303 = tpu.matmul %300, %302, %cst_280 {dimension_numbers = #tpu.dot_dimension_numbers<[1], [0], [0], [1], [0, 0, 1, 1], [], []>} : vector<36x32xbf16>, vector<32x8xbf16>, vector<36x8xf32> -> vector<36x8xf32>
    %304 = arith.addf %298, %303 : vector<36x8xf32>
    %c13_281 = arith.constant 13 : index
    %c0_282 = arith.constant 0 : index
    %305 = vector.load %arg24[%c13_281, %c0_282] : memref<52x64xf32, #tpu.memory_space<vmem>>, vector<36x32xf32>
    %306 = arith.truncf %305 : vector<36x32xf32> to vector<36x32xbf16>
    %c6_283 = arith.constant 6 : index
    %c0_284 = arith.constant 0 : index
    %c0_285 = arith.constant 0 : index
    %307 = vector.load %arg11[%c6_283, %c0_284, %c0_285] : memref<9x32x8xbf16, #tpu.memory_space<vmem>>, vector<1x32x8xbf16>
    %308 = vector.shape_cast %307 : vector<1x32x8xbf16> to vector<32x8xbf16>
    %cst_286 = arith.constant dense<0.000000e+00> : vector<36x8xf32>
    %309 = tpu.matmul %306, %308, %cst_286 {dimension_numbers = #tpu.dot_dimension_numbers<[1], [0], [0], [1], [0, 0, 1, 1], [], []>} : vector<36x32xbf16>, vector<32x8xbf16>, vector<36x8xf32> -> vector<36x8xf32>
    %310 = arith.addf %304, %309 : vector<36x8xf32>
    %c14_287 = arith.constant 14 : index
    %c0_288 = arith.constant 0 : index
    %311 = vector.load %arg24[%c14_287, %c0_288] : memref<52x64xf32, #tpu.memory_space<vmem>>, vector<36x32xf32>
    %312 = arith.truncf %311 : vector<36x32xf32> to vector<36x32xbf16>
    %c7_289 = arith.constant 7 : index
    %c0_290 = arith.constant 0 : index
    %c0_291 = arith.constant 0 : index
    %313 = vector.load %arg11[%c7_289, %c0_290, %c0_291] : memref<9x32x8xbf16, #tpu.memory_space<vmem>>, vector<1x32x8xbf16>
    %314 = vector.shape_cast %313 : vector<1x32x8xbf16> to vector<32x8xbf16>
    %cst_292 = arith.constant dense<0.000000e+00> : vector<36x8xf32>
    %315 = tpu.matmul %312, %314, %cst_292 {dimension_numbers = #tpu.dot_dimension_numbers<[1], [0], [0], [1], [0, 0, 1, 1], [], []>} : vector<36x32xbf16>, vector<32x8xbf16>, vector<36x8xf32> -> vector<36x8xf32>
    %316 = arith.addf %310, %315 : vector<36x8xf32>
    %c15_293 = arith.constant 15 : index
    %c0_294 = arith.constant 0 : index
    %317 = vector.load %arg24[%c15_293, %c0_294] : memref<52x64xf32, #tpu.memory_space<vmem>>, vector<36x32xf32>
    %318 = arith.truncf %317 : vector<36x32xf32> to vector<36x32xbf16>
    %c8_295 = arith.constant 8 : index
    %c0_296 = arith.constant 0 : index
    %c0_297 = arith.constant 0 : index
    %319 = vector.load %arg11[%c8_295, %c0_296, %c0_297] : memref<9x32x8xbf16, #tpu.memory_space<vmem>>, vector<1x32x8xbf16>
    %320 = vector.shape_cast %319 : vector<1x32x8xbf16> to vector<32x8xbf16>
    %cst_298 = arith.constant dense<0.000000e+00> : vector<36x8xf32>
    %321 = tpu.matmul %318, %320, %cst_298 {dimension_numbers = #tpu.dot_dimension_numbers<[1], [0], [0], [1], [0, 0, 1, 1], [], []>} : vector<36x32xbf16>, vector<32x8xbf16>, vector<36x8xf32> -> vector<36x8xf32>
    %322 = arith.addf %316, %321 : vector<36x8xf32>
    %323 = vector.broadcast %0 : vector<36x1xf32> to vector<36x8xf32>
    %324 = arith.mulf %322, %323 : vector<36x8xf32>
    %cst_299 = arith.constant 0.000000e+00 : f32
    %325 = vector.broadcast %cst_299 : f32 to vector<36x8xf32>
    %326 = arith.maximumf %324, %325 : vector<36x8xf32>
    %c8_300 = arith.constant 8 : index
    %c0_301 = arith.constant 0 : index
    %327 = vector.load %arg24[%c8_300, %c0_301] : memref<52x64xf32, #tpu.memory_space<vmem>>, vector<36x8xf32>
    tpu.vector_store %arg24[%c8_300, %c0_301], %326 {strides = array<i32>} : memref<52x64xf32, #tpu.memory_space<vmem>>, vector<36x8xf32>,
    %cst_302 = arith.constant 0.000000e+00 : f32
    %328 = vector.broadcast %cst_302 : f32 to vector<36x32xf32>
    %c8_303 = arith.constant 8 : index
    %c0_304 = arith.constant 0 : index
    %329 = vector.load %arg24[%c8_303, %c0_304] : memref<52x64xf32, #tpu.memory_space<vmem>>, vector<36x8xf32>
    %330 = arith.truncf %329 : vector<36x8xf32> to vector<36x8xbf16>
    %c0_305 = arith.constant 0 : index
    %c0_306 = arith.constant 0 : index
    %c0_307 = arith.constant 0 : index
    %331 = vector.load %arg12[%c0_305, %c0_306, %c0_307] : memref<1x8x32xbf16, #tpu.memory_space<vmem>>, vector<1x8x32xbf16>
    %332 = vector.shape_cast %331 : vector<1x8x32xbf16> to vector<8x32xbf16>
    %cst_308 = arith.constant dense<0.000000e+00> : vector<36x32xf32>
    %333 = tpu.matmul %330, %332, %cst_308 {dimension_numbers = #tpu.dot_dimension_numbers<[1], [0], [0], [1], [0, 0, 1, 1], [], []>} : vector<36x8xbf16>, vector<8x32xbf16>, vector<36x32xf32> -> vector<36x32xf32>
    %334 = arith.addf %328, %333 : vector<36x32xf32>
    %335 = vector.broadcast %0 : vector<36x1xf32> to vector<36x32xf32>
    %336 = arith.mulf %334, %335 : vector<36x32xf32>
    %337 = arith.addf %264, %336 : vector<36x32xf32>
    %cst_309 = arith.constant 0.000000e+00 : f32
    %338 = vector.broadcast %cst_309 : f32 to vector<36x32xf32>
    %339 = arith.maximumf %337, %338 : vector<36x32xf32>
    %c8_310 = arith.constant 8 : index
    %c0_311 = arith.constant 0 : index
    %340 = vector.load %arg24[%c8_310, %c0_311] : memref<52x64xf32, #tpu.memory_space<vmem>>, vector<36x32xf32>
    tpu.vector_store %arg24[%c8_310, %c0_311], %339 {strides = array<i32>} : memref<52x64xf32, #tpu.memory_space<vmem>>, vector<36x32xf32>,
    %cst_312 = arith.constant 0.000000e+00 : f32
    %341 = vector.broadcast %cst_312 : f32 to vector<36x32xf32>
    %c1_313 = arith.constant 1 : index
    %c0_314 = arith.constant 0 : index
    %342 = vector.load %arg24[%c1_313, %c0_314] : memref<52x64xf32, #tpu.memory_space<vmem>>, vector<36x32xf32>
    %343 = arith.truncf %342 : vector<36x32xf32> to vector<36x32xbf16>
    %c0_315 = arith.constant 0 : index
    %c0_316 = arith.constant 0 : index
    %c0_317 = arith.constant 0 : index
    %344 = vector.load %arg13[%c0_315, %c0_316, %c0_317] : memref<9x32x32xbf16, #tpu.memory_space<vmem>>, vector<1x32x32xbf16>
    %345 = vector.shape_cast %344 : vector<1x32x32xbf16> to vector<32x32xbf16>
    %cst_318 = arith.constant dense<0.000000e+00> : vector<36x32xf32>
    %346 = tpu.matmul %343, %345, %cst_318 {dimension_numbers = #tpu.dot_dimension_numbers<[1], [0], [0], [1], [0, 0, 1, 1], [], []>} : vector<36x32xbf16>, vector<32x32xbf16>, vector<36x32xf32> -> vector<36x32xf32>
    %347 = arith.addf %341, %346 : vector<36x32xf32>
    %c2_319 = arith.constant 2 : index
    %c0_320 = arith.constant 0 : index
    %348 = vector.load %arg24[%c2_319, %c0_320] : memref<52x64xf32, #tpu.memory_space<vmem>>, vector<36x32xf32>
    %349 = arith.truncf %348 : vector<36x32xf32> to vector<36x32xbf16>
    %c1_321 = arith.constant 1 : index
    %c0_322 = arith.constant 0 : index
    %c0_323 = arith.constant 0 : index
    %350 = vector.load %arg13[%c1_321, %c0_322, %c0_323] : memref<9x32x32xbf16, #tpu.memory_space<vmem>>, vector<1x32x32xbf16>
    %351 = vector.shape_cast %350 : vector<1x32x32xbf16> to vector<32x32xbf16>
    %cst_324 = arith.constant dense<0.000000e+00> : vector<36x32xf32>
    %352 = tpu.matmul %349, %351, %cst_324 {dimension_numbers = #tpu.dot_dimension_numbers<[1], [0], [0], [1], [0, 0, 1, 1], [], []>} : vector<36x32xbf16>, vector<32x32xbf16>, vector<36x32xf32> -> vector<36x32xf32>
    %353 = arith.addf %347, %352 : vector<36x32xf32>
    %c3_325 = arith.constant 3 : index
    %c0_326 = arith.constant 0 : index
    %354 = vector.load %arg24[%c3_325, %c0_326] : memref<52x64xf32, #tpu.memory_space<vmem>>, vector<36x32xf32>
    %355 = arith.truncf %354 : vector<36x32xf32> to vector<36x32xbf16>
    %c2_327 = arith.constant 2 : index
    %c0_328 = arith.constant 0 : index
    %c0_329 = arith.constant 0 : index
    %356 = vector.load %arg13[%c2_327, %c0_328, %c0_329] : memref<9x32x32xbf16, #tpu.memory_space<vmem>>, vector<1x32x32xbf16>
    %357 = vector.shape_cast %356 : vector<1x32x32xbf16> to vector<32x32xbf16>
    %cst_330 = arith.constant dense<0.000000e+00> : vector<36x32xf32>
    %358 = tpu.matmul %355, %357, %cst_330 {dimension_numbers = #tpu.dot_dimension_numbers<[1], [0], [0], [1], [0, 0, 1, 1], [], []>} : vector<36x32xbf16>, vector<32x32xbf16>, vector<36x32xf32> -> vector<36x32xf32>
    %359 = arith.addf %353, %358 : vector<36x32xf32>
    %c7_331 = arith.constant 7 : index
    %c0_332 = arith.constant 0 : index
    %360 = vector.load %arg24[%c7_331, %c0_332] : memref<52x64xf32, #tpu.memory_space<vmem>>, vector<36x32xf32>
    %361 = arith.truncf %360 : vector<36x32xf32> to vector<36x32xbf16>
    %c3_333 = arith.constant 3 : index
    %c0_334 = arith.constant 0 : index
    %c0_335 = arith.constant 0 : index
    %362 = vector.load %arg13[%c3_333, %c0_334, %c0_335] : memref<9x32x32xbf16, #tpu.memory_space<vmem>>, vector<1x32x32xbf16>
    %363 = vector.shape_cast %362 : vector<1x32x32xbf16> to vector<32x32xbf16>
    %cst_336 = arith.constant dense<0.000000e+00> : vector<36x32xf32>
    %364 = tpu.matmul %361, %363, %cst_336 {dimension_numbers = #tpu.dot_dimension_numbers<[1], [0], [0], [1], [0, 0, 1, 1], [], []>} : vector<36x32xbf16>, vector<32x32xbf16>, vector<36x32xf32> -> vector<36x32xf32>
    %365 = arith.addf %359, %364 : vector<36x32xf32>
    %c8_337 = arith.constant 8 : index
    %c0_338 = arith.constant 0 : index
    %366 = vector.load %arg24[%c8_337, %c0_338] : memref<52x64xf32, #tpu.memory_space<vmem>>, vector<36x32xf32>
    %367 = arith.truncf %366 : vector<36x32xf32> to vector<36x32xbf16>
    %c4_339 = arith.constant 4 : index
    %c0_340 = arith.constant 0 : index
    %c0_341 = arith.constant 0 : index
    %368 = vector.load %arg13[%c4_339, %c0_340, %c0_341] : memref<9x32x32xbf16, #tpu.memory_space<vmem>>, vector<1x32x32xbf16>
    %369 = vector.shape_cast %368 : vector<1x32x32xbf16> to vector<32x32xbf16>
    %cst_342 = arith.constant dense<0.000000e+00> : vector<36x32xf32>
    %370 = tpu.matmul %367, %369, %cst_342 {dimension_numbers = #tpu.dot_dimension_numbers<[1], [0], [0], [1], [0, 0, 1, 1], [], []>} : vector<36x32xbf16>, vector<32x32xbf16>, vector<36x32xf32> -> vector<36x32xf32>
    %371 = arith.addf %365, %370 : vector<36x32xf32>
    %c9_343 = arith.constant 9 : index
    %c0_344 = arith.constant 0 : index
    %372 = vector.load %arg24[%c9_343, %c0_344] : memref<52x64xf32, #tpu.memory_space<vmem>>, vector<36x32xf32>
    %373 = arith.truncf %372 : vector<36x32xf32> to vector<36x32xbf16>
    %c5_345 = arith.constant 5 : index
    %c0_346 = arith.constant 0 : index
    %c0_347 = arith.constant 0 : index
    %374 = vector.load %arg13[%c5_345, %c0_346, %c0_347] : memref<9x32x32xbf16, #tpu.memory_space<vmem>>, vector<1x32x32xbf16>
    %375 = vector.shape_cast %374 : vector<1x32x32xbf16> to vector<32x32xbf16>
    %cst_348 = arith.constant dense<0.000000e+00> : vector<36x32xf32>
    %376 = tpu.matmul %373, %375, %cst_348 {dimension_numbers = #tpu.dot_dimension_numbers<[1], [0], [0], [1], [0, 0, 1, 1], [], []>} : vector<36x32xbf16>, vector<32x32xbf16>, vector<36x32xf32> -> vector<36x32xf32>
    %377 = arith.addf %371, %376 : vector<36x32xf32>
    %c13_349 = arith.constant 13 : index
    %c0_350 = arith.constant 0 : index
    %378 = vector.load %arg24[%c13_349, %c0_350] : memref<52x64xf32, #tpu.memory_space<vmem>>, vector<36x32xf32>
    %379 = arith.truncf %378 : vector<36x32xf32> to vector<36x32xbf16>
    %c6_351 = arith.constant 6 : index
    %c0_352 = arith.constant 0 : index
    %c0_353 = arith.constant 0 : index
    %380 = vector.load %arg13[%c6_351, %c0_352, %c0_353] : memref<9x32x32xbf16, #tpu.memory_space<vmem>>, vector<1x32x32xbf16>
    %381 = vector.shape_cast %380 : vector<1x32x32xbf16> to vector<32x32xbf16>
    %cst_354 = arith.constant dense<0.000000e+00> : vector<36x32xf32>
    %382 = tpu.matmul %379, %381, %cst_354 {dimension_numbers = #tpu.dot_dimension_numbers<[1], [0], [0], [1], [0, 0, 1, 1], [], []>} : vector<36x32xbf16>, vector<32x32xbf16>, vector<36x32xf32> -> vector<36x32xf32>
    %383 = arith.addf %377, %382 : vector<36x32xf32>
    %c14_355 = arith.constant 14 : index
    %c0_356 = arith.constant 0 : index
    %384 = vector.load %arg24[%c14_355, %c0_356] : memref<52x64xf32, #tpu.memory_space<vmem>>, vector<36x32xf32>
    %385 = arith.truncf %384 : vector<36x32xf32> to vector<36x32xbf16>
    %c7_357 = arith.constant 7 : index
    %c0_358 = arith.constant 0 : index
    %c0_359 = arith.constant 0 : index
    %386 = vector.load %arg13[%c7_357, %c0_358, %c0_359] : memref<9x32x32xbf16, #tpu.memory_space<vmem>>, vector<1x32x32xbf16>
    %387 = vector.shape_cast %386 : vector<1x32x32xbf16> to vector<32x32xbf16>
    %cst_360 = arith.constant dense<0.000000e+00> : vector<36x32xf32>
    %388 = tpu.matmul %385, %387, %cst_360 {dimension_numbers = #tpu.dot_dimension_numbers<[1], [0], [0], [1], [0, 0, 1, 1], [], []>} : vector<36x32xbf16>, vector<32x32xbf16>, vector<36x32xf32> -> vector<36x32xf32>
    %389 = arith.addf %383, %388 : vector<36x32xf32>
    %c15_361 = arith.constant 15 : index
    %c0_362 = arith.constant 0 : index
    %390 = vector.load %arg24[%c15_361, %c0_362] : memref<52x64xf32, #tpu.memory_space<vmem>>, vector<36x32xf32>
    %391 = arith.truncf %390 : vector<36x32xf32> to vector<36x32xbf16>
    %c8_363 = arith.constant 8 : index
    %c0_364 = arith.constant 0 : index
    %c0_365 = arith.constant 0 : index
    %392 = vector.load %arg13[%c8_363, %c0_364, %c0_365] : memref<9x32x32xbf16, #tpu.memory_space<vmem>>, vector<1x32x32xbf16>
    %393 = vector.shape_cast %392 : vector<1x32x32xbf16> to vector<32x32xbf16>
    %cst_366 = arith.constant dense<0.000000e+00> : vector<36x32xf32>
    %394 = tpu.matmul %391, %393, %cst_366 {dimension_numbers = #tpu.dot_dimension_numbers<[1], [0], [0], [1], [0, 0, 1, 1], [], []>} : vector<36x32xbf16>, vector<32x32xbf16>, vector<36x32xf32> -> vector<36x32xf32>
    %395 = arith.addf %389, %394 : vector<36x32xf32>
    %c0_367 = arith.constant 0 : index
    %c0_368 = arith.constant 0 : index
    %396 = vector.load %arg14[%c0_367, %c0_368] : memref<1x32xf32, #tpu.memory_space<vmem>>, vector<1x32xf32>
    %397 = vector.broadcast %396 : vector<1x32xf32> to vector<36x32xf32>
    %398 = arith.addf %395, %397 : vector<36x32xf32>
    %399 = vector.broadcast %0 : vector<36x1xf32> to vector<36x32xf32>
    %400 = arith.mulf %398, %399 : vector<36x32xf32>
    %cst_369 = arith.constant 0.000000e+00 : f32
    %401 = vector.broadcast %cst_369 : f32 to vector<36x32xf32>
    %402 = arith.maximumf %400, %401 : vector<36x32xf32>
    %c8_370 = arith.constant 8 : index
    %c0_371 = arith.constant 0 : index
    %403 = vector.load %arg24[%c8_370, %c0_371] : memref<52x64xf32, #tpu.memory_space<vmem>>, vector<36x32xf32>
    tpu.vector_store %arg24[%c8_370, %c0_371], %402 {strides = array<i32>} : memref<52x64xf32, #tpu.memory_space<vmem>>, vector<36x32xf32>,
    %cst_372 = arith.constant 0.000000e+00 : f32
    %404 = vector.broadcast %cst_372 : f32 to vector<36x8xf32>
    %c1_373 = arith.constant 1 : index
    %c0_374 = arith.constant 0 : index
    %405 = vector.load %arg24[%c1_373, %c0_374] : memref<52x64xf32, #tpu.memory_space<vmem>>, vector<36x32xf32>
    %406 = arith.truncf %405 : vector<36x32xf32> to vector<36x32xbf16>
    %c0_375 = arith.constant 0 : index
    %c0_376 = arith.constant 0 : index
    %c0_377 = arith.constant 0 : index
    %407 = vector.load %arg15[%c0_375, %c0_376, %c0_377] : memref<9x32x8xbf16, #tpu.memory_space<vmem>>, vector<1x32x8xbf16>
    %408 = vector.shape_cast %407 : vector<1x32x8xbf16> to vector<32x8xbf16>
    %cst_378 = arith.constant dense<0.000000e+00> : vector<36x8xf32>
    %409 = tpu.matmul %406, %408, %cst_378 {dimension_numbers = #tpu.dot_dimension_numbers<[1], [0], [0], [1], [0, 0, 1, 1], [], []>} : vector<36x32xbf16>, vector<32x8xbf16>, vector<36x8xf32> -> vector<36x8xf32>
    %410 = arith.addf %404, %409 : vector<36x8xf32>
    %c2_379 = arith.constant 2 : index
    %c0_380 = arith.constant 0 : index
    %411 = vector.load %arg24[%c2_379, %c0_380] : memref<52x64xf32, #tpu.memory_space<vmem>>, vector<36x32xf32>
    %412 = arith.truncf %411 : vector<36x32xf32> to vector<36x32xbf16>
    %c1_381 = arith.constant 1 : index
    %c0_382 = arith.constant 0 : index
    %c0_383 = arith.constant 0 : index
    %413 = vector.load %arg15[%c1_381, %c0_382, %c0_383] : memref<9x32x8xbf16, #tpu.memory_space<vmem>>, vector<1x32x8xbf16>
    %414 = vector.shape_cast %413 : vector<1x32x8xbf16> to vector<32x8xbf16>
    %cst_384 = arith.constant dense<0.000000e+00> : vector<36x8xf32>
    %415 = tpu.matmul %412, %414, %cst_384 {dimension_numbers = #tpu.dot_dimension_numbers<[1], [0], [0], [1], [0, 0, 1, 1], [], []>} : vector<36x32xbf16>, vector<32x8xbf16>, vector<36x8xf32> -> vector<36x8xf32>
    %416 = arith.addf %410, %415 : vector<36x8xf32>
    %c3_385 = arith.constant 3 : index
    %c0_386 = arith.constant 0 : index
    %417 = vector.load %arg24[%c3_385, %c0_386] : memref<52x64xf32, #tpu.memory_space<vmem>>, vector<36x32xf32>
    %418 = arith.truncf %417 : vector<36x32xf32> to vector<36x32xbf16>
    %c2_387 = arith.constant 2 : index
    %c0_388 = arith.constant 0 : index
    %c0_389 = arith.constant 0 : index
    %419 = vector.load %arg15[%c2_387, %c0_388, %c0_389] : memref<9x32x8xbf16, #tpu.memory_space<vmem>>, vector<1x32x8xbf16>
    %420 = vector.shape_cast %419 : vector<1x32x8xbf16> to vector<32x8xbf16>
    %cst_390 = arith.constant dense<0.000000e+00> : vector<36x8xf32>
    %421 = tpu.matmul %418, %420, %cst_390 {dimension_numbers = #tpu.dot_dimension_numbers<[1], [0], [0], [1], [0, 0, 1, 1], [], []>} : vector<36x32xbf16>, vector<32x8xbf16>, vector<36x8xf32> -> vector<36x8xf32>
    %422 = arith.addf %416, %421 : vector<36x8xf32>
    %c7_391 = arith.constant 7 : index
    %c0_392 = arith.constant 0 : index
    %423 = vector.load %arg24[%c7_391, %c0_392] : memref<52x64xf32, #tpu.memory_space<vmem>>, vector<36x32xf32>
    %424 = arith.truncf %423 : vector<36x32xf32> to vector<36x32xbf16>
    %c3_393 = arith.constant 3 : index
    %c0_394 = arith.constant 0 : index
    %c0_395 = arith.constant 0 : index
    %425 = vector.load %arg15[%c3_393, %c0_394, %c0_395] : memref<9x32x8xbf16, #tpu.memory_space<vmem>>, vector<1x32x8xbf16>
    %426 = vector.shape_cast %425 : vector<1x32x8xbf16> to vector<32x8xbf16>
    %cst_396 = arith.constant dense<0.000000e+00> : vector<36x8xf32>
    %427 = tpu.matmul %424, %426, %cst_396 {dimension_numbers = #tpu.dot_dimension_numbers<[1], [0], [0], [1], [0, 0, 1, 1], [], []>} : vector<36x32xbf16>, vector<32x8xbf16>, vector<36x8xf32> -> vector<36x8xf32>
    %428 = arith.addf %422, %427 : vector<36x8xf32>
    %c8_397 = arith.constant 8 : index
    %c0_398 = arith.constant 0 : index
    %429 = vector.load %arg24[%c8_397, %c0_398] : memref<52x64xf32, #tpu.memory_space<vmem>>, vector<36x32xf32>
    %430 = arith.truncf %429 : vector<36x32xf32> to vector<36x32xbf16>
    %c4_399 = arith.constant 4 : index
    %c0_400 = arith.constant 0 : index
    %c0_401 = arith.constant 0 : index
    %431 = vector.load %arg15[%c4_399, %c0_400, %c0_401] : memref<9x32x8xbf16, #tpu.memory_space<vmem>>, vector<1x32x8xbf16>
    %432 = vector.shape_cast %431 : vector<1x32x8xbf16> to vector<32x8xbf16>
    %cst_402 = arith.constant dense<0.000000e+00> : vector<36x8xf32>
    %433 = tpu.matmul %430, %432, %cst_402 {dimension_numbers = #tpu.dot_dimension_numbers<[1], [0], [0], [1], [0, 0, 1, 1], [], []>} : vector<36x32xbf16>, vector<32x8xbf16>, vector<36x8xf32> -> vector<36x8xf32>
    %434 = arith.addf %428, %433 : vector<36x8xf32>
    %c9_403 = arith.constant 9 : index
    %c0_404 = arith.constant 0 : index
    %435 = vector.load %arg24[%c9_403, %c0_404] : memref<52x64xf32, #tpu.memory_space<vmem>>, vector<36x32xf32>
    %436 = arith.truncf %435 : vector<36x32xf32> to vector<36x32xbf16>
    %c5_405 = arith.constant 5 : index
    %c0_406 = arith.constant 0 : index
    %c0_407 = arith.constant 0 : index
    %437 = vector.load %arg15[%c5_405, %c0_406, %c0_407] : memref<9x32x8xbf16, #tpu.memory_space<vmem>>, vector<1x32x8xbf16>
    %438 = vector.shape_cast %437 : vector<1x32x8xbf16> to vector<32x8xbf16>
    %cst_408 = arith.constant dense<0.000000e+00> : vector<36x8xf32>
    %439 = tpu.matmul %436, %438, %cst_408 {dimension_numbers = #tpu.dot_dimension_numbers<[1], [0], [0], [1], [0, 0, 1, 1], [], []>} : vector<36x32xbf16>, vector<32x8xbf16>, vector<36x8xf32> -> vector<36x8xf32>
    %440 = arith.addf %434, %439 : vector<36x8xf32>
    %c13_409 = arith.constant 13 : index
    %c0_410 = arith.constant 0 : index
    %441 = vector.load %arg24[%c13_409, %c0_410] : memref<52x64xf32, #tpu.memory_space<vmem>>, vector<36x32xf32>
    %442 = arith.truncf %441 : vector<36x32xf32> to vector<36x32xbf16>
    %c6_411 = arith.constant 6 : index
    %c0_412 = arith.constant 0 : index
    %c0_413 = arith.constant 0 : index
    %443 = vector.load %arg15[%c6_411, %c0_412, %c0_413] : memref<9x32x8xbf16, #tpu.memory_space<vmem>>, vector<1x32x8xbf16>
    %444 = vector.shape_cast %443 : vector<1x32x8xbf16> to vector<32x8xbf16>
    %cst_414 = arith.constant dense<0.000000e+00> : vector<36x8xf32>
    %445 = tpu.matmul %442, %444, %cst_414 {dimension_numbers = #tpu.dot_dimension_numbers<[1], [0], [0], [1], [0, 0, 1, 1], [], []>} : vector<36x32xbf16>, vector<32x8xbf16>, vector<36x8xf32> -> vector<36x8xf32>
    %446 = arith.addf %440, %445 : vector<36x8xf32>
    %c14_415 = arith.constant 14 : index
    %c0_416 = arith.constant 0 : index
    %447 = vector.load %arg24[%c14_415, %c0_416] : memref<52x64xf32, #tpu.memory_space<vmem>>, vector<36x32xf32>
    %448 = arith.truncf %447 : vector<36x32xf32> to vector<36x32xbf16>
    %c7_417 = arith.constant 7 : index
    %c0_418 = arith.constant 0 : index
    %c0_419 = arith.constant 0 : index
    %449 = vector.load %arg15[%c7_417, %c0_418, %c0_419] : memref<9x32x8xbf16, #tpu.memory_space<vmem>>, vector<1x32x8xbf16>
    %450 = vector.shape_cast %449 : vector<1x32x8xbf16> to vector<32x8xbf16>
    %cst_420 = arith.constant dense<0.000000e+00> : vector<36x8xf32>
    %451 = tpu.matmul %448, %450, %cst_420 {dimension_numbers = #tpu.dot_dimension_numbers<[1], [0], [0], [1], [0, 0, 1, 1], [], []>} : vector<36x32xbf16>, vector<32x8xbf16>, vector<36x8xf32> -> vector<36x8xf32>
    %452 = arith.addf %446, %451 : vector<36x8xf32>
    %c15_421 = arith.constant 15 : index
    %c0_422 = arith.constant 0 : index
    %453 = vector.load %arg24[%c15_421, %c0_422] : memref<52x64xf32, #tpu.memory_space<vmem>>, vector<36x32xf32>
    %454 = arith.truncf %453 : vector<36x32xf32> to vector<36x32xbf16>
    %c8_423 = arith.constant 8 : index
    %c0_424 = arith.constant 0 : index
    %c0_425 = arith.constant 0 : index
    %455 = vector.load %arg15[%c8_423, %c0_424, %c0_425] : memref<9x32x8xbf16, #tpu.memory_space<vmem>>, vector<1x32x8xbf16>
    %456 = vector.shape_cast %455 : vector<1x32x8xbf16> to vector<32x8xbf16>
    %cst_426 = arith.constant dense<0.000000e+00> : vector<36x8xf32>
    %457 = tpu.matmul %454, %456, %cst_426 {dimension_numbers = #tpu.dot_dimension_numbers<[1], [0], [0], [1], [0, 0, 1, 1], [], []>} : vector<36x32xbf16>, vector<32x8xbf16>, vector<36x8xf32> -> vector<36x8xf32>
    %458 = arith.addf %452, %457 : vector<36x8xf32>
    %459 = vector.broadcast %0 : vector<36x1xf32> to vector<36x8xf32>
    %460 = arith.mulf %458, %459 : vector<36x8xf32>
    %cst_427 = arith.constant 0.000000e+00 : f32
    %461 = vector.broadcast %cst_427 : f32 to vector<36x8xf32>
    %462 = arith.maximumf %460, %461 : vector<36x8xf32>
    %c8_428 = arith.constant 8 : index
    %c0_429 = arith.constant 0 : index
    %463 = vector.load %arg24[%c8_428, %c0_429] : memref<52x64xf32, #tpu.memory_space<vmem>>, vector<36x8xf32>
    tpu.vector_store %arg24[%c8_428, %c0_429], %462 {strides = array<i32>} : memref<52x64xf32, #tpu.memory_space<vmem>>, vector<36x8xf32>,
    %cst_430 = arith.constant 0.000000e+00 : f32
    %464 = vector.broadcast %cst_430 : f32 to vector<36x32xf32>
    %c8_431 = arith.constant 8 : index
    %c0_432 = arith.constant 0 : index
    %465 = vector.load %arg24[%c8_431, %c0_432] : memref<52x64xf32, #tpu.memory_space<vmem>>, vector<36x8xf32>
    %466 = arith.truncf %465 : vector<36x8xf32> to vector<36x8xbf16>
    %c0_433 = arith.constant 0 : index
    %c0_434 = arith.constant 0 : index
    %c0_435 = arith.constant 0 : index
    %467 = vector.load %arg16[%c0_433, %c0_434, %c0_435] : memref<1x8x32xbf16, #tpu.memory_space<vmem>>, vector<1x8x32xbf16>
    %468 = vector.shape_cast %467 : vector<1x8x32xbf16> to vector<8x32xbf16>
    %cst_436 = arith.constant dense<0.000000e+00> : vector<36x32xf32>
    %469 = tpu.matmul %466, %468, %cst_436 {dimension_numbers = #tpu.dot_dimension_numbers<[1], [0], [0], [1], [0, 0, 1, 1], [], []>} : vector<36x8xbf16>, vector<8x32xbf16>, vector<36x32xf32> -> vector<36x32xf32>
    %470 = arith.addf %464, %469 : vector<36x32xf32>
    %471 = vector.broadcast %0 : vector<36x1xf32> to vector<36x32xf32>
    %472 = arith.mulf %470, %471 : vector<36x32xf32>
    %473 = arith.addf %400, %472 : vector<36x32xf32>
    %cst_437 = arith.constant 0.000000e+00 : f32
    %474 = vector.broadcast %cst_437 : f32 to vector<36x32xf32>
    %475 = arith.maximumf %473, %474 : vector<36x32xf32>
    %c8_438 = arith.constant 8 : index
    %c0_439 = arith.constant 0 : index
    %476 = vector.load %arg24[%c8_438, %c0_439] : memref<52x64xf32, #tpu.memory_space<vmem>>, vector<36x32xf32>
    tpu.vector_store %arg24[%c8_438, %c0_439], %475 {strides = array<i32>} : memref<52x64xf32, #tpu.memory_space<vmem>>, vector<36x32xf32>,
    %cst_440 = arith.constant 0.000000e+00 : f32
    %477 = vector.broadcast %cst_440 : f32 to vector<36x8xf32>
    %c1_441 = arith.constant 1 : index
    %c0_442 = arith.constant 0 : index
    %478 = vector.load %arg24[%c1_441, %c0_442] : memref<52x64xf32, #tpu.memory_space<vmem>>, vector<36x32xf32>
    %479 = arith.truncf %478 : vector<36x32xf32> to vector<36x32xbf16>
    %c0_443 = arith.constant 0 : index
    %c0_444 = arith.constant 0 : index
    %c0_445 = arith.constant 0 : index
    %480 = vector.load %arg17[%c0_443, %c0_444, %c0_445] : memref<9x32x8xbf16, #tpu.memory_space<vmem>>, vector<1x32x8xbf16>
    %481 = vector.shape_cast %480 : vector<1x32x8xbf16> to vector<32x8xbf16>
    %cst_446 = arith.constant dense<0.000000e+00> : vector<36x8xf32>
    %482 = tpu.matmul %479, %481, %cst_446 {dimension_numbers = #tpu.dot_dimension_numbers<[1], [0], [0], [1], [0, 0, 1, 1], [], []>} : vector<36x32xbf16>, vector<32x8xbf16>, vector<36x8xf32> -> vector<36x8xf32>
    %483 = arith.addf %477, %482 : vector<36x8xf32>
    %c2_447 = arith.constant 2 : index
    %c0_448 = arith.constant 0 : index
    %484 = vector.load %arg24[%c2_447, %c0_448] : memref<52x64xf32, #tpu.memory_space<vmem>>, vector<36x32xf32>
    %485 = arith.truncf %484 : vector<36x32xf32> to vector<36x32xbf16>
    %c1_449 = arith.constant 1 : index
    %c0_450 = arith.constant 0 : index
    %c0_451 = arith.constant 0 : index
    %486 = vector.load %arg17[%c1_449, %c0_450, %c0_451] : memref<9x32x8xbf16, #tpu.memory_space<vmem>>, vector<1x32x8xbf16>
    %487 = vector.shape_cast %486 : vector<1x32x8xbf16> to vector<32x8xbf16>
    %cst_452 = arith.constant dense<0.000000e+00> : vector<36x8xf32>
    %488 = tpu.matmul %485, %487, %cst_452 {dimension_numbers = #tpu.dot_dimension_numbers<[1], [0], [0], [1], [0, 0, 1, 1], [], []>} : vector<36x32xbf16>, vector<32x8xbf16>, vector<36x8xf32> -> vector<36x8xf32>
    %489 = arith.addf %483, %488 : vector<36x8xf32>
    %c3_453 = arith.constant 3 : index
    %c0_454 = arith.constant 0 : index
    %490 = vector.load %arg24[%c3_453, %c0_454] : memref<52x64xf32, #tpu.memory_space<vmem>>, vector<36x32xf32>
    %491 = arith.truncf %490 : vector<36x32xf32> to vector<36x32xbf16>
    %c2_455 = arith.constant 2 : index
    %c0_456 = arith.constant 0 : index
    %c0_457 = arith.constant 0 : index
    %492 = vector.load %arg17[%c2_455, %c0_456, %c0_457] : memref<9x32x8xbf16, #tpu.memory_space<vmem>>, vector<1x32x8xbf16>
    %493 = vector.shape_cast %492 : vector<1x32x8xbf16> to vector<32x8xbf16>
    %cst_458 = arith.constant dense<0.000000e+00> : vector<36x8xf32>
    %494 = tpu.matmul %491, %493, %cst_458 {dimension_numbers = #tpu.dot_dimension_numbers<[1], [0], [0], [1], [0, 0, 1, 1], [], []>} : vector<36x32xbf16>, vector<32x8xbf16>, vector<36x8xf32> -> vector<36x8xf32>
    %495 = arith.addf %489, %494 : vector<36x8xf32>
    %c7_459 = arith.constant 7 : index
    %c0_460 = arith.constant 0 : index
    %496 = vector.load %arg24[%c7_459, %c0_460] : memref<52x64xf32, #tpu.memory_space<vmem>>, vector<36x32xf32>
    %497 = arith.truncf %496 : vector<36x32xf32> to vector<36x32xbf16>
    %c3_461 = arith.constant 3 : index
    %c0_462 = arith.constant 0 : index
    %c0_463 = arith.constant 0 : index
    %498 = vector.load %arg17[%c3_461, %c0_462, %c0_463] : memref<9x32x8xbf16, #tpu.memory_space<vmem>>, vector<1x32x8xbf16>
    %499 = vector.shape_cast %498 : vector<1x32x8xbf16> to vector<32x8xbf16>
    %cst_464 = arith.constant dense<0.000000e+00> : vector<36x8xf32>
    %500 = tpu.matmul %497, %499, %cst_464 {dimension_numbers = #tpu.dot_dimension_numbers<[1], [0], [0], [1], [0, 0, 1, 1], [], []>} : vector<36x32xbf16>, vector<32x8xbf16>, vector<36x8xf32> -> vector<36x8xf32>
    %501 = arith.addf %495, %500 : vector<36x8xf32>
    %c8_465 = arith.constant 8 : index
    %c0_466 = arith.constant 0 : index
    %502 = vector.load %arg24[%c8_465, %c0_466] : memref<52x64xf32, #tpu.memory_space<vmem>>, vector<36x32xf32>
    %503 = arith.truncf %502 : vector<36x32xf32> to vector<36x32xbf16>
    %c4_467 = arith.constant 4 : index
    %c0_468 = arith.constant 0 : index
    %c0_469 = arith.constant 0 : index
    %504 = vector.load %arg17[%c4_467, %c0_468, %c0_469] : memref<9x32x8xbf16, #tpu.memory_space<vmem>>, vector<1x32x8xbf16>
    %505 = vector.shape_cast %504 : vector<1x32x8xbf16> to vector<32x8xbf16>
    %cst_470 = arith.constant dense<0.000000e+00> : vector<36x8xf32>
    %506 = tpu.matmul %503, %505, %cst_470 {dimension_numbers = #tpu.dot_dimension_numbers<[1], [0], [0], [1], [0, 0, 1, 1], [], []>} : vector<36x32xbf16>, vector<32x8xbf16>, vector<36x8xf32> -> vector<36x8xf32>
    %507 = arith.addf %501, %506 : vector<36x8xf32>
    %c9_471 = arith.constant 9 : index
    %c0_472 = arith.constant 0 : index
    %508 = vector.load %arg24[%c9_471, %c0_472] : memref<52x64xf32, #tpu.memory_space<vmem>>, vector<36x32xf32>
    %509 = arith.truncf %508 : vector<36x32xf32> to vector<36x32xbf16>
    %c5_473 = arith.constant 5 : index
    %c0_474 = arith.constant 0 : index
    %c0_475 = arith.constant 0 : index
    %510 = vector.load %arg17[%c5_473, %c0_474, %c0_475] : memref<9x32x8xbf16, #tpu.memory_space<vmem>>, vector<1x32x8xbf16>
    %511 = vector.shape_cast %510 : vector<1x32x8xbf16> to vector<32x8xbf16>
    %cst_476 = arith.constant dense<0.000000e+00> : vector<36x8xf32>
    %512 = tpu.matmul %509, %511, %cst_476 {dimension_numbers = #tpu.dot_dimension_numbers<[1], [0], [0], [1], [0, 0, 1, 1], [], []>} : vector<36x32xbf16>, vector<32x8xbf16>, vector<36x8xf32> -> vector<36x8xf32>
    %513 = arith.addf %507, %512 : vector<36x8xf32>
    %c13_477 = arith.constant 13 : index
    %c0_478 = arith.constant 0 : index
    %514 = vector.load %arg24[%c13_477, %c0_478] : memref<52x64xf32, #tpu.memory_space<vmem>>, vector<36x32xf32>
    %515 = arith.truncf %514 : vector<36x32xf32> to vector<36x32xbf16>
    %c6_479 = arith.constant 6 : index
    %c0_480 = arith.constant 0 : index
    %c0_481 = arith.constant 0 : index
    %516 = vector.load %arg17[%c6_479, %c0_480, %c0_481] : memref<9x32x8xbf16, #tpu.memory_space<vmem>>, vector<1x32x8xbf16>
    %517 = vector.shape_cast %516 : vector<1x32x8xbf16> to vector<32x8xbf16>
    %cst_482 = arith.constant dense<0.000000e+00> : vector<36x8xf32>
    %518 = tpu.matmul %515, %517, %cst_482 {dimension_numbers = #tpu.dot_dimension_numbers<[1], [0], [0], [1], [0, 0, 1, 1], [], []>} : vector<36x32xbf16>, vector<32x8xbf16>, vector<36x8xf32> -> vector<36x8xf32>
    %519 = arith.addf %513, %518 : vector<36x8xf32>
    %c14_483 = arith.constant 14 : index
    %c0_484 = arith.constant 0 : index
    %520 = vector.load %arg24[%c14_483, %c0_484] : memref<52x64xf32, #tpu.memory_space<vmem>>, vector<36x32xf32>
    %521 = arith.truncf %520 : vector<36x32xf32> to vector<36x32xbf16>
    %c7_485 = arith.constant 7 : index
    %c0_486 = arith.constant 0 : index
    %c0_487 = arith.constant 0 : index
    %522 = vector.load %arg17[%c7_485, %c0_486, %c0_487] : memref<9x32x8xbf16, #tpu.memory_space<vmem>>, vector<1x32x8xbf16>
    %523 = vector.shape_cast %522 : vector<1x32x8xbf16> to vector<32x8xbf16>
    %cst_488 = arith.constant dense<0.000000e+00> : vector<36x8xf32>
    %524 = tpu.matmul %521, %523, %cst_488 {dimension_numbers = #tpu.dot_dimension_numbers<[1], [0], [0], [1], [0, 0, 1, 1], [], []>} : vector<36x32xbf16>, vector<32x8xbf16>, vector<36x8xf32> -> vector<36x8xf32>
    %525 = arith.addf %519, %524 : vector<36x8xf32>
    %c15_489 = arith.constant 15 : index
    %c0_490 = arith.constant 0 : index
    %526 = vector.load %arg24[%c15_489, %c0_490] : memref<52x64xf32, #tpu.memory_space<vmem>>, vector<36x32xf32>
    %527 = arith.truncf %526 : vector<36x32xf32> to vector<36x32xbf16>
    %c8_491 = arith.constant 8 : index
    %c0_492 = arith.constant 0 : index
    %c0_493 = arith.constant 0 : index
    %528 = vector.load %arg17[%c8_491, %c0_492, %c0_493] : memref<9x32x8xbf16, #tpu.memory_space<vmem>>, vector<1x32x8xbf16>
    %529 = vector.shape_cast %528 : vector<1x32x8xbf16> to vector<32x8xbf16>
    %cst_494 = arith.constant dense<0.000000e+00> : vector<36x8xf32>
    %530 = tpu.matmul %527, %529, %cst_494 {dimension_numbers = #tpu.dot_dimension_numbers<[1], [0], [0], [1], [0, 0, 1, 1], [], []>} : vector<36x32xbf16>, vector<32x8xbf16>, vector<36x8xf32> -> vector<36x8xf32>
    %531 = arith.addf %525, %530 : vector<36x8xf32>
    %532 = vector.broadcast %0 : vector<36x1xf32> to vector<36x8xf32>
    %533 = arith.mulf %531, %532 : vector<36x8xf32>
    %cst_495 = arith.constant 0.000000e+00 : f32
    %534 = vector.broadcast %cst_495 : f32 to vector<36x8xf32>
    %535 = arith.maximumf %533, %534 : vector<36x8xf32>
    %c8_496 = arith.constant 8 : index
    %c0_497 = arith.constant 0 : index
    %536 = vector.load %arg24[%c8_496, %c0_497] : memref<52x64xf32, #tpu.memory_space<vmem>>, vector<36x8xf32>
    tpu.vector_store %arg24[%c8_496, %c0_497], %535 {strides = array<i32>} : memref<52x64xf32, #tpu.memory_space<vmem>>, vector<36x8xf32>,
    %cst_498 = arith.constant 0.000000e+00 : f32
    %537 = vector.broadcast %cst_498 : f32 to vector<36x32xf32>
    %c8_499 = arith.constant 8 : index
    %c0_500 = arith.constant 0 : index
    %538 = vector.load %arg24[%c8_499, %c0_500] : memref<52x64xf32, #tpu.memory_space<vmem>>, vector<36x8xf32>
    %539 = arith.truncf %538 : vector<36x8xf32> to vector<36x8xbf16>
    %c0_501 = arith.constant 0 : index
    %c0_502 = arith.constant 0 : index
    %c0_503 = arith.constant 0 : index
    %540 = vector.load %arg18[%c0_501, %c0_502, %c0_503] : memref<1x8x32xbf16, #tpu.memory_space<vmem>>, vector<1x8x32xbf16>
    %541 = vector.shape_cast %540 : vector<1x8x32xbf16> to vector<8x32xbf16>
    %cst_504 = arith.constant dense<0.000000e+00> : vector<36x32xf32>
    %542 = tpu.matmul %539, %541, %cst_504 {dimension_numbers = #tpu.dot_dimension_numbers<[1], [0], [0], [1], [0, 0, 1, 1], [], []>} : vector<36x8xbf16>, vector<8x32xbf16>, vector<36x32xf32> -> vector<36x32xf32>
    %543 = arith.addf %537, %542 : vector<36x32xf32>
    %544 = vector.broadcast %0 : vector<36x1xf32> to vector<36x32xf32>
    %545 = arith.mulf %543, %544 : vector<36x32xf32>
    %546 = arith.addf %473, %545 : vector<36x32xf32>
    %cst_505 = arith.constant 0.000000e+00 : f32
    %547 = vector.broadcast %cst_505 : f32 to vector<36x32xf32>
    %548 = arith.maximumf %546, %547 : vector<36x32xf32>
    %c8_506 = arith.constant 8 : index
    %c0_507 = arith.constant 0 : index
    %549 = vector.load %arg24[%c8_506, %c0_507] : memref<52x64xf32, #tpu.memory_space<vmem>>, vector<36x32xf32>
    tpu.vector_store %arg24[%c8_506, %c0_507], %548 {strides = array<i32>} : memref<52x64xf32, #tpu.memory_space<vmem>>, vector<36x32xf32>,
    %cst_508 = arith.constant 0.000000e+00 : f32
    %550 = vector.broadcast %cst_508 : f32 to vector<36x64xf32>
    %c1_509 = arith.constant 1 : index
    %c0_510 = arith.constant 0 : index
    %551 = vector.load %arg24[%c1_509, %c0_510] : memref<52x64xf32, #tpu.memory_space<vmem>>, vector<36x32xf32>
    %552 = arith.truncf %551 : vector<36x32xf32> to vector<36x32xbf16>
    %c0_511 = arith.constant 0 : index
    %c0_512 = arith.constant 0 : index
    %c0_513 = arith.constant 0 : index
    %553 = vector.load %arg19[%c0_511, %c0_512, %c0_513] : memref<9x32x64xbf16, #tpu.memory_space<vmem>>, vector<1x32x64xbf16>
    %554 = vector.shape_cast %553 : vector<1x32x64xbf16> to vector<32x64xbf16>
    %cst_514 = arith.constant dense<0.000000e+00> : vector<36x64xf32>
    %555 = tpu.matmul %552, %554, %cst_514 {dimension_numbers = #tpu.dot_dimension_numbers<[1], [0], [0], [1], [0, 0, 1, 1], [], []>} : vector<36x32xbf16>, vector<32x64xbf16>, vector<36x64xf32> -> vector<36x64xf32>
    %556 = arith.addf %550, %555 : vector<36x64xf32>
    %c2_515 = arith.constant 2 : index
    %c0_516 = arith.constant 0 : index
    %557 = vector.load %arg24[%c2_515, %c0_516] : memref<52x64xf32, #tpu.memory_space<vmem>>, vector<36x32xf32>
    %558 = arith.truncf %557 : vector<36x32xf32> to vector<36x32xbf16>
    %c1_517 = arith.constant 1 : index
    %c0_518 = arith.constant 0 : index
    %c0_519 = arith.constant 0 : index
    %559 = vector.load %arg19[%c1_517, %c0_518, %c0_519] : memref<9x32x64xbf16, #tpu.memory_space<vmem>>, vector<1x32x64xbf16>
    %560 = vector.shape_cast %559 : vector<1x32x64xbf16> to vector<32x64xbf16>
    %cst_520 = arith.constant dense<0.000000e+00> : vector<36x64xf32>
    %561 = tpu.matmul %558, %560, %cst_520 {dimension_numbers = #tpu.dot_dimension_numbers<[1], [0], [0], [1], [0, 0, 1, 1], [], []>} : vector<36x32xbf16>, vector<32x64xbf16>, vector<36x64xf32> -> vector<36x64xf32>
    %562 = arith.addf %556, %561 : vector<36x64xf32>
    %c3_521 = arith.constant 3 : index
    %c0_522 = arith.constant 0 : index
    %563 = vector.load %arg24[%c3_521, %c0_522] : memref<52x64xf32, #tpu.memory_space<vmem>>, vector<36x32xf32>
    %564 = arith.truncf %563 : vector<36x32xf32> to vector<36x32xbf16>
    %c2_523 = arith.constant 2 : index
    %c0_524 = arith.constant 0 : index
    %c0_525 = arith.constant 0 : index
    %565 = vector.load %arg19[%c2_523, %c0_524, %c0_525] : memref<9x32x64xbf16, #tpu.memory_space<vmem>>, vector<1x32x64xbf16>
    %566 = vector.shape_cast %565 : vector<1x32x64xbf16> to vector<32x64xbf16>
    %cst_526 = arith.constant dense<0.000000e+00> : vector<36x64xf32>
    %567 = tpu.matmul %564, %566, %cst_526 {dimension_numbers = #tpu.dot_dimension_numbers<[1], [0], [0], [1], [0, 0, 1, 1], [], []>} : vector<36x32xbf16>, vector<32x64xbf16>, vector<36x64xf32> -> vector<36x64xf32>
    %568 = arith.addf %562, %567 : vector<36x64xf32>
    %c7_527 = arith.constant 7 : index
    %c0_528 = arith.constant 0 : index
    %569 = vector.load %arg24[%c7_527, %c0_528] : memref<52x64xf32, #tpu.memory_space<vmem>>, vector<36x32xf32>
    %570 = arith.truncf %569 : vector<36x32xf32> to vector<36x32xbf16>
    %c3_529 = arith.constant 3 : index
    %c0_530 = arith.constant 0 : index
    %c0_531 = arith.constant 0 : index
    %571 = vector.load %arg19[%c3_529, %c0_530, %c0_531] : memref<9x32x64xbf16, #tpu.memory_space<vmem>>, vector<1x32x64xbf16>
    %572 = vector.shape_cast %571 : vector<1x32x64xbf16> to vector<32x64xbf16>
    %cst_532 = arith.constant dense<0.000000e+00> : vector<36x64xf32>
    %573 = tpu.matmul %570, %572, %cst_532 {dimension_numbers = #tpu.dot_dimension_numbers<[1], [0], [0], [1], [0, 0, 1, 1], [], []>} : vector<36x32xbf16>, vector<32x64xbf16>, vector<36x64xf32> -> vector<36x64xf32>
    %574 = arith.addf %568, %573 : vector<36x64xf32>
    %c8_533 = arith.constant 8 : index
    %c0_534 = arith.constant 0 : index
    %575 = vector.load %arg24[%c8_533, %c0_534] : memref<52x64xf32, #tpu.memory_space<vmem>>, vector<36x32xf32>
    %576 = arith.truncf %575 : vector<36x32xf32> to vector<36x32xbf16>
    %c4_535 = arith.constant 4 : index
    %c0_536 = arith.constant 0 : index
    %c0_537 = arith.constant 0 : index
    %577 = vector.load %arg19[%c4_535, %c0_536, %c0_537] : memref<9x32x64xbf16, #tpu.memory_space<vmem>>, vector<1x32x64xbf16>
    %578 = vector.shape_cast %577 : vector<1x32x64xbf16> to vector<32x64xbf16>
    %cst_538 = arith.constant dense<0.000000e+00> : vector<36x64xf32>
    %579 = tpu.matmul %576, %578, %cst_538 {dimension_numbers = #tpu.dot_dimension_numbers<[1], [0], [0], [1], [0, 0, 1, 1], [], []>} : vector<36x32xbf16>, vector<32x64xbf16>, vector<36x64xf32> -> vector<36x64xf32>
    %580 = arith.addf %574, %579 : vector<36x64xf32>
    %c9_539 = arith.constant 9 : index
    %c0_540 = arith.constant 0 : index
    %581 = vector.load %arg24[%c9_539, %c0_540] : memref<52x64xf32, #tpu.memory_space<vmem>>, vector<36x32xf32>
    %582 = arith.truncf %581 : vector<36x32xf32> to vector<36x32xbf16>
    %c5_541 = arith.constant 5 : index
    %c0_542 = arith.constant 0 : index
    %c0_543 = arith.constant 0 : index
    %583 = vector.load %arg19[%c5_541, %c0_542, %c0_543] : memref<9x32x64xbf16, #tpu.memory_space<vmem>>, vector<1x32x64xbf16>
    %584 = vector.shape_cast %583 : vector<1x32x64xbf16> to vector<32x64xbf16>
    %cst_544 = arith.constant dense<0.000000e+00> : vector<36x64xf32>
    %585 = tpu.matmul %582, %584, %cst_544 {dimension_numbers = #tpu.dot_dimension_numbers<[1], [0], [0], [1], [0, 0, 1, 1], [], []>} : vector<36x32xbf16>, vector<32x64xbf16>, vector<36x64xf32> -> vector<36x64xf32>
    %586 = arith.addf %580, %585 : vector<36x64xf32>
    %c13_545 = arith.constant 13 : index
    %c0_546 = arith.constant 0 : index
    %587 = vector.load %arg24[%c13_545, %c0_546] : memref<52x64xf32, #tpu.memory_space<vmem>>, vector<36x32xf32>
    %588 = arith.truncf %587 : vector<36x32xf32> to vector<36x32xbf16>
    %c6_547 = arith.constant 6 : index
    %c0_548 = arith.constant 0 : index
    %c0_549 = arith.constant 0 : index
    %589 = vector.load %arg19[%c6_547, %c0_548, %c0_549] : memref<9x32x64xbf16, #tpu.memory_space<vmem>>, vector<1x32x64xbf16>
    %590 = vector.shape_cast %589 : vector<1x32x64xbf16> to vector<32x64xbf16>
    %cst_550 = arith.constant dense<0.000000e+00> : vector<36x64xf32>
    %591 = tpu.matmul %588, %590, %cst_550 {dimension_numbers = #tpu.dot_dimension_numbers<[1], [0], [0], [1], [0, 0, 1, 1], [], []>} : vector<36x32xbf16>, vector<32x64xbf16>, vector<36x64xf32> -> vector<36x64xf32>
    %592 = arith.addf %586, %591 : vector<36x64xf32>
    %c14_551 = arith.constant 14 : index
    %c0_552 = arith.constant 0 : index
    %593 = vector.load %arg24[%c14_551, %c0_552] : memref<52x64xf32, #tpu.memory_space<vmem>>, vector<36x32xf32>
    %594 = arith.truncf %593 : vector<36x32xf32> to vector<36x32xbf16>
    %c7_553 = arith.constant 7 : index
    %c0_554 = arith.constant 0 : index
    %c0_555 = arith.constant 0 : index
    %595 = vector.load %arg19[%c7_553, %c0_554, %c0_555] : memref<9x32x64xbf16, #tpu.memory_space<vmem>>, vector<1x32x64xbf16>
    %596 = vector.shape_cast %595 : vector<1x32x64xbf16> to vector<32x64xbf16>
    %cst_556 = arith.constant dense<0.000000e+00> : vector<36x64xf32>
    %597 = tpu.matmul %594, %596, %cst_556 {dimension_numbers = #tpu.dot_dimension_numbers<[1], [0], [0], [1], [0, 0, 1, 1], [], []>} : vector<36x32xbf16>, vector<32x64xbf16>, vector<36x64xf32> -> vector<36x64xf32>
    %598 = arith.addf %592, %597 : vector<36x64xf32>
    %c15_557 = arith.constant 15 : index
    %c0_558 = arith.constant 0 : index
    %599 = vector.load %arg24[%c15_557, %c0_558] : memref<52x64xf32, #tpu.memory_space<vmem>>, vector<36x32xf32>
    %600 = arith.truncf %599 : vector<36x32xf32> to vector<36x32xbf16>
    %c8_559 = arith.constant 8 : index
    %c0_560 = arith.constant 0 : index
    %c0_561 = arith.constant 0 : index
    %601 = vector.load %arg19[%c8_559, %c0_560, %c0_561] : memref<9x32x64xbf16, #tpu.memory_space<vmem>>, vector<1x32x64xbf16>
    %602 = vector.shape_cast %601 : vector<1x32x64xbf16> to vector<32x64xbf16>
    %cst_562 = arith.constant dense<0.000000e+00> : vector<36x64xf32>
    %603 = tpu.matmul %600, %602, %cst_562 {dimension_numbers = #tpu.dot_dimension_numbers<[1], [0], [0], [1], [0, 0, 1, 1], [], []>} : vector<36x32xbf16>, vector<32x64xbf16>, vector<36x64xf32> -> vector<36x64xf32>
    %604 = arith.addf %598, %603 : vector<36x64xf32>
    %c0_563 = arith.constant 0 : index
    %c0_564 = arith.constant 0 : index
    %605 = vector.load %arg20[%c0_563, %c0_564] : memref<1x64xf32, #tpu.memory_space<vmem>>, vector<1x64xf32>
    %606 = vector.broadcast %605 : vector<1x64xf32> to vector<36x64xf32>
    %607 = arith.addf %604, %606 : vector<36x64xf32>
    %608 = vector.broadcast %0 : vector<36x1xf32> to vector<36x64xf32>
    %609 = arith.mulf %607, %608 : vector<36x64xf32>
    %cst_565 = arith.constant 0.000000e+00 : f32
    %610 = vector.broadcast %cst_565 : f32 to vector<36x64xf32>
    %611 = arith.maximumf %609, %610 : vector<36x64xf32>
    %c8_566 = arith.constant 8 : index
    %c0_567 = arith.constant 0 : index
    %612 = vector.load %arg24[%c8_566, %c0_567] : memref<52x64xf32, #tpu.memory_space<vmem>>, vector<36x64xf32>
    tpu.vector_store %arg24[%c8_566, %c0_567], %611 {strides = array<i32>} : memref<52x64xf32, #tpu.memory_space<vmem>>, vector<36x64xf32>,
    %cst_568 = arith.constant 0.000000e+00 : f32
    %613 = vector.broadcast %cst_568 : f32 to vector<36x48xf32>
    %c1_569 = arith.constant 1 : index
    %c0_570 = arith.constant 0 : index
    %614 = vector.load %arg24[%c1_569, %c0_570] : memref<52x64xf32, #tpu.memory_space<vmem>>, vector<36x64xf32>
    %615 = arith.truncf %614 : vector<36x64xf32> to vector<36x64xbf16>
    %c0_571 = arith.constant 0 : index
    %c0_572 = arith.constant 0 : index
    %c0_573 = arith.constant 0 : index
    %616 = vector.load %arg21[%c0_571, %c0_572, %c0_573] : memref<9x64x48xbf16, #tpu.memory_space<vmem>>, vector<1x64x48xbf16>
    %617 = vector.shape_cast %616 : vector<1x64x48xbf16> to vector<64x48xbf16>
    %cst_574 = arith.constant dense<0.000000e+00> : vector<36x48xf32>
    %618 = tpu.matmul %615, %617, %cst_574 {dimension_numbers = #tpu.dot_dimension_numbers<[1], [0], [0], [1], [0, 0, 1, 1], [], []>} : vector<36x64xbf16>, vector<64x48xbf16>, vector<36x48xf32> -> vector<36x48xf32>
    %619 = arith.addf %613, %618 : vector<36x48xf32>
    %c2_575 = arith.constant 2 : index
    %c0_576 = arith.constant 0 : index
    %620 = vector.load %arg24[%c2_575, %c0_576] : memref<52x64xf32, #tpu.memory_space<vmem>>, vector<36x64xf32>
    %621 = arith.truncf %620 : vector<36x64xf32> to vector<36x64xbf16>
    %c1_577 = arith.constant 1 : index
    %c0_578 = arith.constant 0 : index
    %c0_579 = arith.constant 0 : index
    %622 = vector.load %arg21[%c1_577, %c0_578, %c0_579] : memref<9x64x48xbf16, #tpu.memory_space<vmem>>, vector<1x64x48xbf16>
    %623 = vector.shape_cast %622 : vector<1x64x48xbf16> to vector<64x48xbf16>
    %cst_580 = arith.constant dense<0.000000e+00> : vector<36x48xf32>
    %624 = tpu.matmul %621, %623, %cst_580 {dimension_numbers = #tpu.dot_dimension_numbers<[1], [0], [0], [1], [0, 0, 1, 1], [], []>} : vector<36x64xbf16>, vector<64x48xbf16>, vector<36x48xf32> -> vector<36x48xf32>
    %625 = arith.addf %619, %624 : vector<36x48xf32>
    %c3_581 = arith.constant 3 : index
    %c0_582 = arith.constant 0 : index
    %626 = vector.load %arg24[%c3_581, %c0_582] : memref<52x64xf32, #tpu.memory_space<vmem>>, vector<36x64xf32>
    %627 = arith.truncf %626 : vector<36x64xf32> to vector<36x64xbf16>
    %c2_583 = arith.constant 2 : index
    %c0_584 = arith.constant 0 : index
    %c0_585 = arith.constant 0 : index
    %628 = vector.load %arg21[%c2_583, %c0_584, %c0_585] : memref<9x64x48xbf16, #tpu.memory_space<vmem>>, vector<1x64x48xbf16>
    %629 = vector.shape_cast %628 : vector<1x64x48xbf16> to vector<64x48xbf16>
    %cst_586 = arith.constant dense<0.000000e+00> : vector<36x48xf32>
    %630 = tpu.matmul %627, %629, %cst_586 {dimension_numbers = #tpu.dot_dimension_numbers<[1], [0], [0], [1], [0, 0, 1, 1], [], []>} : vector<36x64xbf16>, vector<64x48xbf16>, vector<36x48xf32> -> vector<36x48xf32>
    %631 = arith.addf %625, %630 : vector<36x48xf32>
    %c7_587 = arith.constant 7 : index
    %c0_588 = arith.constant 0 : index
    %632 = vector.load %arg24[%c7_587, %c0_588] : memref<52x64xf32, #tpu.memory_space<vmem>>, vector<36x64xf32>
    %633 = arith.truncf %632 : vector<36x64xf32> to vector<36x64xbf16>
    %c3_589 = arith.constant 3 : index
    %c0_590 = arith.constant 0 : index
    %c0_591 = arith.constant 0 : index
    %634 = vector.load %arg21[%c3_589, %c0_590, %c0_591] : memref<9x64x48xbf16, #tpu.memory_space<vmem>>, vector<1x64x48xbf16>
    %635 = vector.shape_cast %634 : vector<1x64x48xbf16> to vector<64x48xbf16>
    %cst_592 = arith.constant dense<0.000000e+00> : vector<36x48xf32>
    %636 = tpu.matmul %633, %635, %cst_592 {dimension_numbers = #tpu.dot_dimension_numbers<[1], [0], [0], [1], [0, 0, 1, 1], [], []>} : vector<36x64xbf16>, vector<64x48xbf16>, vector<36x48xf32> -> vector<36x48xf32>
    %637 = arith.addf %631, %636 : vector<36x48xf32>
    %c8_593 = arith.constant 8 : index
    %c0_594 = arith.constant 0 : index
    %638 = vector.load %arg24[%c8_593, %c0_594] : memref<52x64xf32, #tpu.memory_space<vmem>>, vector<36x64xf32>
    %639 = arith.truncf %638 : vector<36x64xf32> to vector<36x64xbf16>
    %c4_595 = arith.constant 4 : index
    %c0_596 = arith.constant 0 : index
    %c0_597 = arith.constant 0 : index
    %640 = vector.load %arg21[%c4_595, %c0_596, %c0_597] : memref<9x64x48xbf16, #tpu.memory_space<vmem>>, vector<1x64x48xbf16>
    %641 = vector.shape_cast %640 : vector<1x64x48xbf16> to vector<64x48xbf16>
    %cst_598 = arith.constant dense<0.000000e+00> : vector<36x48xf32>
    %642 = tpu.matmul %639, %641, %cst_598 {dimension_numbers = #tpu.dot_dimension_numbers<[1], [0], [0], [1], [0, 0, 1, 1], [], []>} : vector<36x64xbf16>, vector<64x48xbf16>, vector<36x48xf32> -> vector<36x48xf32>
    %643 = arith.addf %637, %642 : vector<36x48xf32>
    %c9_599 = arith.constant 9 : index
    %c0_600 = arith.constant 0 : index
    %644 = vector.load %arg24[%c9_599, %c0_600] : memref<52x64xf32, #tpu.memory_space<vmem>>, vector<36x64xf32>
    %645 = arith.truncf %644 : vector<36x64xf32> to vector<36x64xbf16>
    %c5_601 = arith.constant 5 : index
    %c0_602 = arith.constant 0 : index
    %c0_603 = arith.constant 0 : index
    %646 = vector.load %arg21[%c5_601, %c0_602, %c0_603] : memref<9x64x48xbf16, #tpu.memory_space<vmem>>, vector<1x64x48xbf16>
    %647 = vector.shape_cast %646 : vector<1x64x48xbf16> to vector<64x48xbf16>
    %cst_604 = arith.constant dense<0.000000e+00> : vector<36x48xf32>
    %648 = tpu.matmul %645, %647, %cst_604 {dimension_numbers = #tpu.dot_dimension_numbers<[1], [0], [0], [1], [0, 0, 1, 1], [], []>} : vector<36x64xbf16>, vector<64x48xbf16>, vector<36x48xf32> -> vector<36x48xf32>
    %649 = arith.addf %643, %648 : vector<36x48xf32>
    %c13_605 = arith.constant 13 : index
    %c0_606 = arith.constant 0 : index
    %650 = vector.load %arg24[%c13_605, %c0_606] : memref<52x64xf32, #tpu.memory_space<vmem>>, vector<36x64xf32>
    %651 = arith.truncf %650 : vector<36x64xf32> to vector<36x64xbf16>
    %c6_607 = arith.constant 6 : index
    %c0_608 = arith.constant 0 : index
    %c0_609 = arith.constant 0 : index
    %652 = vector.load %arg21[%c6_607, %c0_608, %c0_609] : memref<9x64x48xbf16, #tpu.memory_space<vmem>>, vector<1x64x48xbf16>
    %653 = vector.shape_cast %652 : vector<1x64x48xbf16> to vector<64x48xbf16>
    %cst_610 = arith.constant dense<0.000000e+00> : vector<36x48xf32>
    %654 = tpu.matmul %651, %653, %cst_610 {dimension_numbers = #tpu.dot_dimension_numbers<[1], [0], [0], [1], [0, 0, 1, 1], [], []>} : vector<36x64xbf16>, vector<64x48xbf16>, vector<36x48xf32> -> vector<36x48xf32>
    %655 = arith.addf %649, %654 : vector<36x48xf32>
    %c14_611 = arith.constant 14 : index
    %c0_612 = arith.constant 0 : index
    %656 = vector.load %arg24[%c14_611, %c0_612] : memref<52x64xf32, #tpu.memory_space<vmem>>, vector<36x64xf32>
    %657 = arith.truncf %656 : vector<36x64xf32> to vector<36x64xbf16>
    %c7_613 = arith.constant 7 : index
    %c0_614 = arith.constant 0 : index
    %c0_615 = arith.constant 0 : index
    %658 = vector.load %arg21[%c7_613, %c0_614, %c0_615] : memref<9x64x48xbf16, #tpu.memory_space<vmem>>, vector<1x64x48xbf16>
    %659 = vector.shape_cast %658 : vector<1x64x48xbf16> to vector<64x48xbf16>
    %cst_616 = arith.constant dense<0.000000e+00> : vector<36x48xf32>
    %660 = tpu.matmul %657, %659, %cst_616 {dimension_numbers = #tpu.dot_dimension_numbers<[1], [0], [0], [1], [0, 0, 1, 1], [], []>} : vector<36x64xbf16>, vector<64x48xbf16>, vector<36x48xf32> -> vector<36x48xf32>
    %661 = arith.addf %655, %660 : vector<36x48xf32>
    %c15_617 = arith.constant 15 : index
    %c0_618 = arith.constant 0 : index
    %662 = vector.load %arg24[%c15_617, %c0_618] : memref<52x64xf32, #tpu.memory_space<vmem>>, vector<36x64xf32>
    %663 = arith.truncf %662 : vector<36x64xf32> to vector<36x64xbf16>
    %c8_619 = arith.constant 8 : index
    %c0_620 = arith.constant 0 : index
    %c0_621 = arith.constant 0 : index
    %664 = vector.load %arg21[%c8_619, %c0_620, %c0_621] : memref<9x64x48xbf16, #tpu.memory_space<vmem>>, vector<1x64x48xbf16>
    %665 = vector.shape_cast %664 : vector<1x64x48xbf16> to vector<64x48xbf16>
    %cst_622 = arith.constant dense<0.000000e+00> : vector<36x48xf32>
    %666 = tpu.matmul %663, %665, %cst_622 {dimension_numbers = #tpu.dot_dimension_numbers<[1], [0], [0], [1], [0, 0, 1, 1], [], []>} : vector<36x64xbf16>, vector<64x48xbf16>, vector<36x48xf32> -> vector<36x48xf32>
    %667 = arith.addf %661, %666 : vector<36x48xf32>
    %c0_623 = arith.constant 0 : index
    %c0_624 = arith.constant 0 : index
    %668 = vector.load %arg22[%c0_623, %c0_624] : memref<1x48xf32, #tpu.memory_space<vmem>>, vector<1x48xf32>
    %669 = vector.broadcast %668 : vector<1x48xf32> to vector<36x48xf32>
    %670 = arith.addf %667, %669 : vector<36x48xf32>
    %671 = vector.broadcast %0 : vector<36x1xf32> to vector<36x48xf32>
    %672 = arith.mulf %670, %671 : vector<36x48xf32>
    %c0_625 = arith.constant 0 : index
    %c0_626 = arith.constant 0 : index
    %c0_627 = arith.constant 0 : index
    %673 = vector.load %arg23[%c0_625, %c0_626, %c0_627] : memref<1x36x48xf32, #tpu.memory_space<vmem>>, vector<1x36x48xf32>
    %674 = vector.shape_cast %673 : vector<1x36x48xf32> to vector<36x48xf32>
    %675 = vector.shape_cast %672 : vector<36x48xf32> to vector<1x36x48xf32>
    tpu.vector_store %arg23[%c0_625, %c0_626, %c0_627], %675 {strides = array<i32>} : memref<1x36x48xf32, #tpu.memory_space<vmem>>, vector<1x36x48xf32>,
    return
  }
  func.func @transform_0(%arg0: i32) -> (i32, i32, i32) {
    %c0_i32 = arith.constant 0 : i32
    %c0_i32_0 = arith.constant 0 : i32
    %c0_i32_1 = arith.constant 0 : i32
    return %arg0, %c0_i32, %c0_i32_0 : i32, i32, i32
  }
  func.func @transform_1(%arg0: i32) -> (i32, i32) {
    %c0_i32 = arith.constant 0 : i32
    %c0_i32_0 = arith.constant 0 : i32
    %c0_i32_1 = arith.constant 0 : i32
    return %c0_i32, %c0_i32_0 : i32, i32
  }
  func.func @transform_2(%arg0: i32) -> (i32, i32, i32) {
    %c0_i32 = arith.constant 0 : i32
    %c0_i32_0 = arith.constant 0 : i32
    %c0_i32_1 = arith.constant 0 : i32
    %c0_i32_2 = arith.constant 0 : i32
    return %c0_i32, %c0_i32_0, %c0_i32_1 : i32, i32, i32
  }
  func.func @transform_3(%arg0: i32) -> (i32, i32) {
    %c0_i32 = arith.constant 0 : i32
    %c0_i32_0 = arith.constant 0 : i32
    %c0_i32_1 = arith.constant 0 : i32
    return %c0_i32, %c0_i32_0 : i32, i32
  }
  func.func @transform_4(%arg0: i32) -> (i32, i32, i32) {
    %c0_i32 = arith.constant 0 : i32
    %c0_i32_0 = arith.constant 0 : i32
    %c0_i32_1 = arith.constant 0 : i32
    %c0_i32_2 = arith.constant 0 : i32
    return %c0_i32, %c0_i32_0, %c0_i32_1 : i32, i32, i32
  }
  func.func @transform_5(%arg0: i32) -> (i32, i32) {
    %c0_i32 = arith.constant 0 : i32
    %c0_i32_0 = arith.constant 0 : i32
    %c0_i32_1 = arith.constant 0 : i32
    return %c0_i32, %c0_i32_0 : i32, i32
  }
  func.func @transform_6(%arg0: i32) -> (i32, i32, i32) {
    %c0_i32 = arith.constant 0 : i32
    %c0_i32_0 = arith.constant 0 : i32
    %c0_i32_1 = arith.constant 0 : i32
    %c0_i32_2 = arith.constant 0 : i32
    return %c0_i32, %c0_i32_0, %c0_i32_1 : i32, i32, i32
  }
  func.func @transform_7(%arg0: i32) -> (i32, i32) {
    %c0_i32 = arith.constant 0 : i32
    %c0_i32_0 = arith.constant 0 : i32
    %c0_i32_1 = arith.constant 0 : i32
    return %c0_i32, %c0_i32_0 : i32, i32
  }
  func.func @transform_8(%arg0: i32) -> (i32, i32, i32) {
    %c0_i32 = arith.constant 0 : i32
    %c0_i32_0 = arith.constant 0 : i32
    %c0_i32_1 = arith.constant 0 : i32
    %c0_i32_2 = arith.constant 0 : i32
    return %c0_i32, %c0_i32_0, %c0_i32_1 : i32, i32, i32
  }
  func.func @transform_9(%arg0: i32) -> (i32, i32, i32) {
    %c0_i32 = arith.constant 0 : i32
    %c0_i32_0 = arith.constant 0 : i32
    %c0_i32_1 = arith.constant 0 : i32
    %c0_i32_2 = arith.constant 0 : i32
    return %c0_i32, %c0_i32_0, %c0_i32_1 : i32, i32, i32
  }
  func.func @transform_10(%arg0: i32) -> (i32, i32, i32) {
    %c0_i32 = arith.constant 0 : i32
    %c0_i32_0 = arith.constant 0 : i32
    %c0_i32_1 = arith.constant 0 : i32
    %c0_i32_2 = arith.constant 0 : i32
    return %c0_i32, %c0_i32_0, %c0_i32_1 : i32, i32, i32
  }
  func.func @transform_11(%arg0: i32) -> (i32, i32, i32) {
    %c0_i32 = arith.constant 0 : i32
    %c0_i32_0 = arith.constant 0 : i32
    %c0_i32_1 = arith.constant 0 : i32
    %c0_i32_2 = arith.constant 0 : i32
    return %c0_i32, %c0_i32_0, %c0_i32_1 : i32, i32, i32
  }
  func.func @transform_12(%arg0: i32) -> (i32, i32, i32) {
    %c0_i32 = arith.constant 0 : i32
    %c0_i32_0 = arith.constant 0 : i32
    %c0_i32_1 = arith.constant 0 : i32
    %c0_i32_2 = arith.constant 0 : i32
    return %c0_i32, %c0_i32_0, %c0_i32_1 : i32, i32, i32
  }
  func.func @transform_13(%arg0: i32) -> (i32, i32) {
    %c0_i32 = arith.constant 0 : i32
    %c0_i32_0 = arith.constant 0 : i32
    %c0_i32_1 = arith.constant 0 : i32
    return %c0_i32, %c0_i32_0 : i32, i32
  }
  func.func @transform_14(%arg0: i32) -> (i32, i32, i32) {
    %c0_i32 = arith.constant 0 : i32
    %c0_i32_0 = arith.constant 0 : i32
    %c0_i32_1 = arith.constant 0 : i32
    %c0_i32_2 = arith.constant 0 : i32
    return %c0_i32, %c0_i32_0, %c0_i32_1 : i32, i32, i32
  }
  func.func @transform_15(%arg0: i32) -> (i32, i32, i32) {
    %c0_i32 = arith.constant 0 : i32
    %c0_i32_0 = arith.constant 0 : i32
    %c0_i32_1 = arith.constant 0 : i32
    %c0_i32_2 = arith.constant 0 : i32
    return %c0_i32, %c0_i32_0, %c0_i32_1 : i32, i32, i32
  }
  func.func @transform_16(%arg0: i32) -> (i32, i32, i32) {
    %c0_i32 = arith.constant 0 : i32
    %c0_i32_0 = arith.constant 0 : i32
    %c0_i32_1 = arith.constant 0 : i32
    %c0_i32_2 = arith.constant 0 : i32
    return %c0_i32, %c0_i32_0, %c0_i32_1 : i32, i32, i32
  }
  func.func @transform_17(%arg0: i32) -> (i32, i32, i32) {
    %c0_i32 = arith.constant 0 : i32
    %c0_i32_0 = arith.constant 0 : i32
    %c0_i32_1 = arith.constant 0 : i32
    %c0_i32_2 = arith.constant 0 : i32
    return %c0_i32, %c0_i32_0, %c0_i32_1 : i32, i32, i32
  }
  func.func @transform_18(%arg0: i32) -> (i32, i32, i32) {
    %c0_i32 = arith.constant 0 : i32
    %c0_i32_0 = arith.constant 0 : i32
    %c0_i32_1 = arith.constant 0 : i32
    %c0_i32_2 = arith.constant 0 : i32
    return %c0_i32, %c0_i32_0, %c0_i32_1 : i32, i32, i32
  }
  func.func @transform_19(%arg0: i32) -> (i32, i32) {
    %c0_i32 = arith.constant 0 : i32
    %c0_i32_0 = arith.constant 0 : i32
    %c0_i32_1 = arith.constant 0 : i32
    return %c0_i32, %c0_i32_0 : i32, i32
  }
  func.func @transform_20(%arg0: i32) -> (i32, i32, i32) {
    %c0_i32 = arith.constant 0 : i32
    %c0_i32_0 = arith.constant 0 : i32
    %c0_i32_1 = arith.constant 0 : i32
    %c0_i32_2 = arith.constant 0 : i32
    return %c0_i32, %c0_i32_0, %c0_i32_1 : i32, i32, i32
  }
  func.func @transform_21(%arg0: i32) -> (i32, i32) {
    %c0_i32 = arith.constant 0 : i32
    %c0_i32_0 = arith.constant 0 : i32
    %c0_i32_1 = arith.constant 0 : i32
    return %c0_i32, %c0_i32_0 : i32, i32
  }
  func.func @transform_22(%arg0: i32) -> (i32, i32, i32) {
    %c0_i32 = arith.constant 0 : i32
    %c0_i32_0 = arith.constant 0 : i32
    %c0_i32_1 = arith.constant 0 : i32
    return %arg0, %c0_i32, %c0_i32_0 : i32, i32, i32
  }
}

</mosaic_0001>

<llo_original>
// kernel: forward.1
$region0: #{forward.1}
  #allocation0 [shape = 'u32[]', space=smem, size = 0x4, offset = 0x4, fixed_abs, tag = 'smem constant byte address 0x4 - core index']
  #allocation1 [shape = 'u32[72,128]{1,0:T(1,128)}', space=vmem, size = 0x9000, scoped, tag = 'internal scratch']
  #allocation2 [shape = 'f32[52,64]{1,0:T(8,128)}', space=vmem, size = 0x7000, scoped, tag = 'scratch operand']
  %s0 = inlined_call_operand.vmem [shape: f32[2,36,48], index: 0, kind: input, shape index: {}]
  %s1 = inlined_call_operand.vmem [shape: f32[36,1], index: 1, kind: input, shape index: {}]
  %s2 = inlined_call_operand.vmem [shape: bf16[9,48,64], index: 2, kind: input, shape index: {}]
  %s3 = inlined_call_operand.vmem [shape: f32[1,64], index: 3, kind: input, shape index: {}]
  %s4 = inlined_call_operand.vmem [shape: bf16[9,64,32], index: 4, kind: input, shape index: {}]
  %s5 = inlined_call_operand.vmem [shape: f32[1,32], index: 5, kind: input, shape index: {}]
  %s6 = inlined_call_operand.vmem [shape: bf16[9,32,32], index: 6, kind: input, shape index: {}]
  %s7 = inlined_call_operand.vmem [shape: f32[1,32], index: 7, kind: input, shape index: {}]
  %s8 = inlined_call_operand.vmem [shape: bf16[9,32,8], index: 8, kind: input, shape index: {}]
  %s9 = inlined_call_operand.vmem [shape: bf16[1,8,32], index: 9, kind: input, shape index: {}]
  %s10 = inlined_call_operand.vmem [shape: bf16[9,32,8], index: 10, kind: input, shape index: {}]
  %s11 = inlined_call_operand.vmem [shape: bf16[1,8,32], index: 11, kind: input, shape index: {}]
  %s12 = inlined_call_operand.vmem [shape: bf16[9,32,32], index: 12, kind: input, shape index: {}]
  %s13 = inlined_call_operand.vmem [shape: f32[1,32], index: 13, kind: input, shape index: {}]
  %s14 = inlined_call_operand.vmem [shape: bf16[9,32,8], index: 14, kind: input, shape index: {}]
  %s15 = inlined_call_operand.vmem [shape: bf16[1,8,32], index: 15, kind: input, shape index: {}]
  %s16 = inlined_call_operand.vmem [shape: bf16[9,32,8], index: 16, kind: input, shape index: {}]
  %s17 = inlined_call_operand.vmem [shape: bf16[1,8,32], index: 17, kind: input, shape index: {}]
  %s18 = inlined_call_operand.vmem [shape: bf16[9,32,64], index: 18, kind: input, shape index: {}]
  %s19 = inlined_call_operand.vmem [shape: f32[1,64], index: 19, kind: input, shape index: {}]
  %s20 = inlined_call_operand.vmem [shape: bf16[9,64,48], index: 20, kind: input, shape index: {}]
  %s21 = inlined_call_operand.vmem [shape: f32[1,48], index: 21, kind: input, shape index: {}]
  %s22 = inlined_call_operand.vmem [shape: f32[2,36,48], index: 22, kind: output, shape index: {}]
  %s23 = sld [smem:[#allocation0]]
  $region121: #{forward.1} parent=0
    _
  %s25 = ssub.s32 1, %s23
  %s26 = scalar_select 0, %s25, %s23
  loop: start=0, step=1, limit=4
  $region2: #{forward.1} parent=0 // loop_pre_header
    _
  $region3: #{forward.1} parent=0 // loop_header
    %s28 = sphi 0, %s32
    %p29 = scmp.ge.s32.totalorder %s28, 4
    %s38 = sphi 0, %s40
    %s41 = sphi 0, %s38
    %s42 = sphi 0, %s41
    %s58 = sphi 0, %s42
    %s62 = sphi 0, %s62
    %s64 = sphi 0, %s62
    %s65 = sphi 0, %s64
    %s79 = sphi 0, %s65
    %s83 = sphi 0, %s83
    %s85 = sphi 0, %s83
    %s86 = sphi 0, %s85
    %s100 = sphi 0, %s86
    %s104 = sphi 0, %s104
    %s106 = sphi 0, %s104
    %s107 = sphi 0, %s106
    %s121 = sphi 0, %s107
    %s125 = sphi 0, %s125
    %s127 = sphi 0, %s125
    %s128 = sphi 0, %s127
    %s142 = sphi 0, %s128
    %s146 = sphi 0, %s146
    %s148 = sphi 0, %s146
    %s149 = sphi 0, %s148
    %s163 = sphi 0, %s149
    %s167 = sphi 0, %s167
    %s169 = sphi 0, %s167
    %s170 = sphi 0, %s169
    %s184 = sphi 0, %s170
    %s188 = sphi 0, %s188
    %s190 = sphi 0, %s188
    %s191 = sphi 0, %s190
    %s205 = sphi 0, %s191
    %s209 = sphi 0, %s209
    %s211 = sphi 0, %s209
    %s212 = sphi 0, %s211
    %s226 = sphi 0, %s212
    %s230 = sphi 0, %s230
    %s232 = sphi 0, %s230
    %s233 = sphi 0, %s232
    %s247 = sphi 0, %s233
    %s251 = sphi 0, %s251
    %s253 = sphi 0, %s251
    %s254 = sphi 0, %s253
    %s268 = sphi 0, %s254
    %s272 = sphi 0, %s272
    %s274 = sphi 0, %s272
    %s275 = sphi 0, %s274
    %s289 = sphi 0, %s275
    %s293 = sphi 0, %s293
    %s295 = sphi 0, %s293
    %s296 = sphi 0, %s295
    %s310 = sphi 0, %s296
    %s314 = sphi 0, %s314
    %s316 = sphi 0, %s314
    %s317 = sphi 0, %s316
    %s331 = sphi 0, %s317
    %s335 = sphi 0, %s335
    %s337 = sphi 0, %s335
    %s338 = sphi 0, %s337
    %s352 = sphi 0, %s338
    %s356 = sphi 0, %s356
    %s358 = sphi 0, %s356
    %s359 = sphi 0, %s358
    %s373 = sphi 0, %s359
    %s377 = sphi 0, %s377
    %s379 = sphi 0, %s377
    %s380 = sphi 0, %s379
    %s394 = sphi 0, %s380
    %s398 = sphi 0, %s398
    %s400 = sphi 0, %s398
    %s401 = sphi 0, %s400
    %s415 = sphi 0, %s401
    %s419 = sphi 0, %s419
    %s421 = sphi 0, %s419
    %s422 = sphi 0, %s421
    %s436 = sphi 0, %s422
    %s440 = sphi 0, %s440
    %s442 = sphi 0, %s440
    %s443 = sphi 0, %s442
    %s457 = sphi 0, %s443
    %s461 = sphi 0, %s461
    %s463 = sphi 0, %s461
    %s464 = sphi 0, %s463
    %s478 = sphi 0, %s464
    %s482 = sphi 0, %s482
    %s484 = sphi 0, %s482
    %s485 = sphi 0, %s484
    %s499 = sphi 0, %s485
    %s505 = sphi 0, %s507
    %s508 = sphi 0, %s505
    %s509 = sphi 0, %s508
    %s525 = sphi 0, %s509
  $region4: #{forward.1} parent=0 // loop_header_branch
    %31 = sbr.rel (%p29) target = $region8
  $region5: #{forward.1} parent=0 // loop_body
    %s33 = ssub.s32 %s28, 1
    %s34 = ssub.s32 %s28, 2
    %s35 = sadd.s32 %s28, 1
    %s36 = ssub.s32 %s28, %s35
    %p37 = scmp.eq.s32.totalorder %s36, 0
    %s39 = sadd.s32 %s38, 1
    %s40 = scalar_select %p37, %s38, %s39
    %p43 = pneg %p37
    %p44 = scmp.eq.s32.totalorder %s28, 1
    %p45 = por %p43, %p44
    %p46 = scmp.ne.s32.totalorder %s38, %s41
    %p47 = scmp.eq.s32.totalorder %s28, 0
    %p48 = por %p46, %p47
    %p49 = scmp.ne.s32.totalorder %s38, %s41
    %p50 = scmp.eq.s32.totalorder %s33, 1
    %p51 = por %p49, %p50
    %p52 = scmp.ne.s32.totalorder %s41, %s42
    %p53 = scmp.eq.s32.totalorder %s33, 0
    %p54 = por %p52, %p53
    %p55 = scmp.ne.s32.totalorder %s41, %s42
    %p56 = scmp.eq.s32.totalorder %s34, 1
    %p57 = por %p55, %p56
    %p59 = scmp.ne.s32.totalorder %s42, %s58
    %p60 = scmp.eq.s32.totalorder %s34, 0
    %p61 = por %p59, %p60
    %s63 = sadd.s32 %s62, 1
    %p66 = scmp.eq.s32.totalorder %s28, 1
    %p67 = scmp.ne.s32.totalorder %s62, %s64
    %p68 = scmp.eq.s32.totalorder %s28, 0
    %p69 = por %p67, %p68
    %p70 = scmp.ne.s32.totalorder %s62, %s64
    %p71 = scmp.eq.s32.totalorder %s33, 1
    %p72 = por %p70, %p71
    %p73 = scmp.ne.s32.totalorder %s64, %s65
    %p74 = scmp.eq.s32.totalorder %s33, 0
    %p75 = por %p73, %p74
    %p76 = scmp.ne.s32.totalorder %s64, %s65
    %p77 = scmp.eq.s32.totalorder %s34, 1
    %p78 = por %p76, %p77
    %p80 = scmp.ne.s32.totalorder %s65, %s79
    %p81 = scmp.eq.s32.totalorder %s34, 0
    %p82 = por %p80, %p81
    %s84 = sadd.s32 %s83, 1
    %p87 = scmp.eq.s32.totalorder %s28, 1
    %p88 = scmp.ne.s32.totalorder %s83, %s85
    %p89 = scmp.eq.s32.totalorder %s28, 0
    %p90 = por %p88, %p89
    %p91 = scmp.ne.s32.totalorder %s83, %s85
    %p92 = scmp.eq.s32.totalorder %s33, 1
    %p93 = por %p91, %p92
    %p94 = scmp.ne.s32.totalorder %s85, %s86
    %p95 = scmp.eq.s32.totalorder %s33, 0
    %p96 = por %p94, %p95
    %p97 = scmp.ne.s32.totalorder %s85, %s86
    %p98 = scmp.eq.s32.totalorder %s34, 1
    %p99 = por %p97, %p98
    %p101 = scmp.ne.s32.totalorder %s86, %s100
    %p102 = scmp.eq.s32.totalorder %s34, 0
    %p103 = por %p101, %p102
    %s105 = sadd.s32 %s104, 1
    %p108 = scmp.eq.s32.totalorder %s28, 1
    %p109 = scmp.ne.s32.totalorder %s104, %s106
    %p110 = scmp.eq.s32.totalorder %s28, 0
    %p111 = por %p109, %p110
    %p112 = scmp.ne.s32.totalorder %s104, %s106
    %p113 = scmp.eq.s32.totalorder %s33, 1
    %p114 = por %p112, %p113
    %p115 = scmp.ne.s32.totalorder %s106, %s107
    %p116 = scmp.eq.s32.totalorder %s33, 0
    %p117 = por %p115, %p116
    %p118 = scmp.ne.s32.totalorder %s106, %s107
    %p119 = scmp.eq.s32.totalorder %s34, 1
    %p120 = por %p118, %p119
    %p122 = scmp.ne.s32.totalorder %s107, %s121
    %p123 = scmp.eq.s32.totalorder %s34, 0
    %p124 = por %p122, %p123
    %s126 = sadd.s32 %s125, 1
    %p129 = scmp.eq.s32.totalorder %s28, 1
    %p130 = scmp.ne.s32.totalorder %s125, %s127
    %p131 = scmp.eq.s32.totalorder %s28, 0
    %p132 = por %p130, %p131
    %p133 = scmp.ne.s32.totalorder %s125, %s127
    %p134 = scmp.eq.s32.totalorder %s33, 1
    %p135 = por %p133, %p134
    %p136 = scmp.ne.s32.totalorder %s127, %s128
    %p137 = scmp.eq.s32.totalorder %s33, 0
    %p138 = por %p136, %p137
    %p139 = scmp.ne.s32.totalorder %s127, %s128
    %p140 = scmp.eq.s32.totalorder %s34, 1
    %p141 = por %p139, %p140
    %p143 = scmp.ne.s32.totalorder %s128, %s142
    %p144 = scmp.eq.s32.totalorder %s34, 0
    %p145 = por %p143, %p144
    %s147 = sadd.s32 %s146, 1
    %p150 = scmp.eq.s32.totalorder %s28, 1
    %p151 = scmp.ne.s32.totalorder %s146, %s148
    %p152 = scmp.eq.s32.totalorder %s28, 0
    %p153 = por %p151, %p152
    %p154 = scmp.ne.s32.totalorder %s146, %s148
    %p155 = scmp.eq.s32.totalorder %s33, 1
    %p156 = por %p154, %p155
    %p157 = scmp.ne.s32.totalorder %s148, %s149
    %p158 = scmp.eq.s32.totalorder %s33, 0
    %p159 = por %p157, %p158
    %p160 = scmp.ne.s32.totalorder %s148, %s149
    %p161 = scmp.eq.s32.totalorder %s34, 1
    %p162 = por %p160, %p161
    %p164 = scmp.ne.s32.totalorder %s149, %s163
    %p165 = scmp.eq.s32.totalorder %s34, 0
    %p166 = por %p164, %p165
    %s168 = sadd.s32 %s167, 1
    %p171 = scmp.eq.s32.totalorder %s28, 1
    %p172 = scmp.ne.s32.totalorder %s167, %s169
    %p173 = scmp.eq.s32.totalorder %s28, 0
    %p174 = por %p172, %p173
    %p175 = scmp.ne.s32.totalorder %s167, %s169
    %p176 = scmp.eq.s32.totalorder %s33, 1
    %p177 = por %p175, %p176
    %p178 = scmp.ne.s32.totalorder %s169, %s170
    %p179 = scmp.eq.s32.totalorder %s33, 0
    %p180 = por %p178, %p179
    %p181 = scmp.ne.s32.totalorder %s169, %s170
    %p182 = scmp.eq.s32.totalorder %s34, 1
    %p183 = por %p181, %p182
    %p185 = scmp.ne.s32.totalorder %s170, %s184
    %p186 = scmp.eq.s32.totalorder %s34, 0
    %p187 = por %p185, %p186
    %s189 = sadd.s32 %s188, 1
    %p192 = scmp.eq.s32.totalorder %s28, 1
    %p193 = scmp.ne.s32.totalorder %s188, %s190
    %p194 = scmp.eq.s32.totalorder %s28, 0
    %p195 = por %p193, %p194
    %p196 = scmp.ne.s32.totalorder %s188, %s190
    %p197 = scmp.eq.s32.totalorder %s33, 1
    %p198 = por %p196, %p197
    %p199 = scmp.ne.s32.totalorder %s190, %s191
    %p200 = scmp.eq.s32.totalorder %s33, 0
    %p201 = por %p199, %p200
    %p202 = scmp.ne.s32.totalorder %s190, %s191
    %p203 = scmp.eq.s32.totalorder %s34, 1
    %p204 = por %p202, %p203
    %p206 = scmp.ne.s32.totalorder %s191, %s205
    %p207 = scmp.eq.s32.totalorder %s34, 0
    %p208 = por %p206, %p207
    %s210 = sadd.s32 %s209, 1
    %p213 = scmp.eq.s32.totalorder %s28, 1
    %p214 = scmp.ne.s32.totalorder %s209, %s211
    %p215 = scmp.eq.s32.totalorder %s28, 0
    %p216 = por %p214, %p215
    %p217 = scmp.ne.s32.totalorder %s209, %s211
    %p218 = scmp.eq.s32.totalorder %s33, 1
    %p219 = por %p217, %p218
    %p220 = scmp.ne.s32.totalorder %s211, %s212
    %p221 = scmp.eq.s32.totalorder %s33, 0
    %p222 = por %p220, %p221
    %p223 = scmp.ne.s32.totalorder %s211, %s212
    %p224 = scmp.eq.s32.totalorder %s34, 1
    %p225 = por %p223, %p224
    %p227 = scmp.ne.s32.totalorder %s212, %s226
    %p228 = scmp.eq.s32.totalorder %s34, 0
    %p229 = por %p227, %p228
    %s231 = sadd.s32 %s230, 1
    %p234 = scmp.eq.s32.totalorder %s28, 1
    %p235 = scmp.ne.s32.totalorder %s230, %s232
    %p236 = scmp.eq.s32.totalorder %s28, 0
    %p237 = por %p235, %p236
    %p238 = scmp.ne.s32.totalorder %s230, %s232
    %p239 = scmp.eq.s32.totalorder %s33, 1
    %p240 = por %p238, %p239
    %p241 = scmp.ne.s32.totalorder %s232, %s233
    %p242 = scmp.eq.s32.totalorder %s33, 0
    %p243 = por %p241, %p242
    %p244 = scmp.ne.s32.totalorder %s232, %s233
    %p245 = scmp.eq.s32.totalorder %s34, 1
    %p246 = por %p244, %p245
    %p248 = scmp.ne.s32.totalorder %s233, %s247
    %p249 = scmp.eq.s32.totalorder %s34, 0
    %p250 = por %p248, %p249
    %s252 = sadd.s32 %s251, 1
    %p255 = scmp.eq.s32.totalorder %s28, 1
    %p256 = scmp.ne.s32.totalorder %s251, %s253
    %p257 = scmp.eq.s32.totalorder %s28, 0
    %p258 = por %p256, %p257
    %p259 = scmp.ne.s32.totalorder %s251, %s253
    %p260 = scmp.eq.s32.totalorder %s33, 1
    %p261 = por %p259, %p260
    %p262 = scmp.ne.s32.totalorder %s253, %s254
    %p263 = scmp.eq.s32.totalorder %s33, 0
    %p264 = por %p262, %p263
    %p265 = scmp.ne.s32.totalorder %s253, %s254
    %p266 = scmp.eq.s32.totalorder %s34, 1
    %p267 = por %p265, %p266
    %p269 = scmp.ne.s32.totalorder %s254, %s268
    %p270 = scmp.eq.s32.totalorder %s34, 0
    %p271 = por %p269, %p270
    %s273 = sadd.s32 %s272, 1
    %p276 = scmp.eq.s32.totalorder %s28, 1
    %p277 = scmp.ne.s32.totalorder %s272, %s274
    %p278 = scmp.eq.s32.totalorder %s28, 0
    %p279 = por %p277, %p278
    %p280 = scmp.ne.s32.totalorder %s272, %s274
    %p281 = scmp.eq.s32.totalorder %s33, 1
    %p282 = por %p280, %p281
    %p283 = scmp.ne.s32.totalorder %s274, %s275
    %p284 = scmp.eq.s32.totalorder %s33, 0
    %p285 = por %p283, %p284
    %p286 = scmp.ne.s32.totalorder %s274, %s275
    %p287 = scmp.eq.s32.totalorder %s34, 1
    %p288 = por %p286, %p287
    %p290 = scmp.ne.s32.totalorder %s275, %s289
    %p291 = scmp.eq.s32.totalorder %s34, 0
    %p292 = por %p290, %p291
    %s294 = sadd.s32 %s293, 1
    %p297 = scmp.eq.s32.totalorder %s28, 1
    %p298 = scmp.ne.s32.totalorder %s293, %s295
    %p299 = scmp.eq.s32.totalorder %s28, 0
    %p300 = por %p298, %p299
    %p301 = scmp.ne.s32.totalorder %s293, %s295
    %p302 = scmp.eq.s32.totalorder %s33, 1
    %p303 = por %p301, %p302
    %p304 = scmp.ne.s32.totalorder %s295, %s296
    %p305 = scmp.eq.s32.totalorder %s33, 0
    %p306 = por %p304, %p305
    %p307 = scmp.ne.s32.totalorder %s295, %s296
    %p308 = scmp.eq.s32.totalorder %s34, 1
    %p309 = por %p307, %p308
    %p311 = scmp.ne.s32.totalorder %s296, %s310
    %p312 = scmp.eq.s32.totalorder %s34, 0
    %p313 = por %p311, %p312
    %s315 = sadd.s32 %s314, 1
    %p318 = scmp.eq.s32.totalorder %s28, 1
    %p319 = scmp.ne.s32.totalorder %s314, %s316
    %p320 = scmp.eq.s32.totalorder %s28, 0
    %p321 = por %p319, %p320
    %p322 = scmp.ne.s32.totalorder %s314, %s316
    %p323 = scmp.eq.s32.totalorder %s33, 1
    %p324 = por %p322, %p323
    %p325 = scmp.ne.s32.totalorder %s316, %s317
    %p326 = scmp.eq.s32.totalorder %s33, 0
    %p327 = por %p325, %p326
    %p328 = scmp.ne.s32.totalorder %s316, %s317
    %p329 = scmp.eq.s32.totalorder %s34, 1
    %p330 = por %p328, %p329
    %p332 = scmp.ne.s32.totalorder %s317, %s331
    %p333 = scmp.eq.s32.totalorder %s34, 0
    %p334 = por %p332, %p333
    %s336 = sadd.s32 %s335, 1
    %p339 = scmp.eq.s32.totalorder %s28, 1
    %p340 = scmp.ne.s32.totalorder %s335, %s337
    %p341 = scmp.eq.s32.totalorder %s28, 0
    %p342 = por %p340, %p341
    %p343 = scmp.ne.s32.totalorder %s335, %s337
    %p344 = scmp.eq.s32.totalorder %s33, 1
    %p345 = por %p343, %p344
    %p346 = scmp.ne.s32.totalorder %s337, %s338
    %p347 = scmp.eq.s32.totalorder %s33, 0
    %p348 = por %p346, %p347
    %p349 = scmp.ne.s32.totalorder %s337, %s338
    %p350 = scmp.eq.s32.totalorder %s34, 1
    %p351 = por %p349, %p350
    %p353 = scmp.ne.s32.totalorder %s338, %s352
    %p354 = scmp.eq.s32.totalorder %s34, 0
    %p355 = por %p353, %p354
    %s357 = sadd.s32 %s356, 1
    %p360 = scmp.eq.s32.totalorder %s28, 1
    %p361 = scmp.ne.s32.totalorder %s356, %s358
    %p362 = scmp.eq.s32.totalorder %s28, 0
    %p363 = por %p361, %p362
    %p364 = scmp.ne.s32.totalorder %s356, %s358
    %p365 = scmp.eq.s32.totalorder %s33, 1
    %p366 = por %p364, %p365
    %p367 = scmp.ne.s32.totalorder %s358, %s359
    %p368 = scmp.eq.s32.totalorder %s33, 0
    %p369 = por %p367, %p368
    %p370 = scmp.ne.s32.totalorder %s358, %s359
    %p371 = scmp.eq.s32.totalorder %s34, 1
    %p372 = por %p370, %p371
    %p374 = scmp.ne.s32.totalorder %s359, %s373
    %p375 = scmp.eq.s32.totalorder %s34, 0
    %p376 = por %p374, %p375
    %s378 = sadd.s32 %s377, 1
    %p381 = scmp.eq.s32.totalorder %s28, 1
    %p382 = scmp.ne.s32.totalorder %s377, %s379
    %p383 = scmp.eq.s32.totalorder %s28, 0
    %p384 = por %p382, %p383
    %p385 = scmp.ne.s32.totalorder %s377, %s379
    %p386 = scmp.eq.s32.totalorder %s33, 1
    %p387 = por %p385, %p386
    %p388 = scmp.ne.s32.totalorder %s379, %s380
    %p389 = scmp.eq.s32.totalorder %s33, 0
    %p390 = por %p388, %p389
    %p391 = scmp.ne.s32.totalorder %s379, %s380
    %p392 = scmp.eq.s32.totalorder %s34, 1
    %p393 = por %p391, %p392
    %p395 = scmp.ne.s32.totalorder %s380, %s394
    %p396 = scmp.eq.s32.totalorder %s34, 0
    %p397 = por %p395, %p396
    %s399 = sadd.s32 %s398, 1
    %p402 = scmp.eq.s32.totalorder %s28, 1
    %p403 = scmp.ne.s32.totalorder %s398, %s400
    %p404 = scmp.eq.s32.totalorder %s28, 0
    %p405 = por %p403, %p404
    %p406 = scmp.ne.s32.totalorder %s398, %s400
    %p407 = scmp.eq.s32.totalorder %s33, 1
    %p408 = por %p406, %p407
    %p409 = scmp.ne.s32.totalorder %s400, %s401
    %p410 = scmp.eq.s32.totalorder %s33, 0
    %p411 = por %p409, %p410
    %p412 = scmp.ne.s32.totalorder %s400, %s401
    %p413 = scmp.eq.s32.totalorder %s34, 1
    %p414 = por %p412, %p413
    %p416 = scmp.ne.s32.totalorder %s401, %s415
    %p417 = scmp.eq.s32.totalorder %s34, 0
    %p418 = por %p416, %p417
    %s420 = sadd.s32 %s419, 1
    %p423 = scmp.eq.s32.totalorder %s28, 1
    %p424 = scmp.ne.s32.totalorder %s419, %s421
    %p425 = scmp.eq.s32.totalorder %s28, 0
    %p426 = por %p424, %p425
    %p427 = scmp.ne.s32.totalorder %s419, %s421
    %p428 = scmp.eq.s32.totalorder %s33, 1
    %p429 = por %p427, %p428
    %p430 = scmp.ne.s32.totalorder %s421, %s422
    %p431 = scmp.eq.s32.totalorder %s33, 0
    %p432 = por %p430, %p431
    %p433 = scmp.ne.s32.totalorder %s421, %s422
    %p434 = scmp.eq.s32.totalorder %s34, 1
    %p435 = por %p433, %p434
    %p437 = scmp.ne.s32.totalorder %s422, %s436
    %p438 = scmp.eq.s32.totalorder %s34, 0
    %p439 = por %p437, %p438
    %s441 = sadd.s32 %s440, 1
    %p444 = scmp.eq.s32.totalorder %s28, 1
    %p445 = scmp.ne.s32.totalorder %s440, %s442
    %p446 = scmp.eq.s32.totalorder %s28, 0
    %p447 = por %p445, %p446
    %p448 = scmp.ne.s32.totalorder %s440, %s442
    %p449 = scmp.eq.s32.totalorder %s33, 1
    %p450 = por %p448, %p449
    %p451 = scmp.ne.s32.totalorder %s442, %s443
    %p452 = scmp.eq.s32.totalorder %s33, 0
    %p453 = por %p451, %p452
    %p454 = scmp.ne.s32.totalorder %s442, %s443
    %p455 = scmp.eq.s32.totalorder %s34, 1
    %p456 = por %p454, %p455
    %p458 = scmp.ne.s32.totalorder %s443, %s457
    %p459 = scmp.eq.s32.totalorder %s34, 0
    %p460 = por %p458, %p459
    %s462 = sadd.s32 %s461, 1
    %p465 = scmp.eq.s32.totalorder %s28, 1
    %p466 = scmp.ne.s32.totalorder %s461, %s463
    %p467 = scmp.eq.s32.totalorder %s28, 0
    %p468 = por %p466, %p467
    %p469 = scmp.ne.s32.totalorder %s461, %s463
    %p470 = scmp.eq.s32.totalorder %s33, 1
    %p471 = por %p469, %p470
    %p472 = scmp.ne.s32.totalorder %s463, %s464
    %p473 = scmp.eq.s32.totalorder %s33, 0
    %p474 = por %p472, %p473
    %p475 = scmp.ne.s32.totalorder %s463, %s464
    %p476 = scmp.eq.s32.totalorder %s34, 1
    %p477 = por %p475, %p476
    %p479 = scmp.ne.s32.totalorder %s464, %s478
    %p480 = scmp.eq.s32.totalorder %s34, 0
    %p481 = por %p479, %p480
    %s483 = sadd.s32 %s482, 1
    %p486 = scmp.eq.s32.totalorder %s28, 1
    %p487 = scmp.ne.s32.totalorder %s482, %s484
    %p488 = scmp.eq.s32.totalorder %s28, 0
    %p489 = por %p487, %p488
    %p490 = scmp.ne.s32.totalorder %s482, %s484
    %p491 = scmp.eq.s32.totalorder %s33, 1
    %p492 = por %p490, %p491
    %p493 = scmp.ne.s32.totalorder %s484, %s485
    %p494 = scmp.eq.s32.totalorder %s33, 0
    %p495 = por %p493, %p494
    %p496 = scmp.ne.s32.totalorder %s484, %s485
    %p497 = scmp.eq.s32.totalorder %s34, 1
    %p498 = por %p496, %p497
    %p500 = scmp.ne.s32.totalorder %s485, %s499
    %p501 = scmp.eq.s32.totalorder %s34, 0
    %p502 = por %p500, %p501
    %s503 = ssub.s32 %s28, %s35
    %p504 = scmp.eq.s32.totalorder %s503, 0
    %s506 = sadd.s32 %s505, 1
    %s507 = scalar_select %p504, %s505, %s506
    %p510 = pneg %p504
    %p511 = scmp.eq.s32.totalorder %s28, 1
    %p512 = por %p510, %p511
    %p513 = scmp.ne.s32.totalorder %s505, %s508
    %p514 = scmp.eq.s32.totalorder %s28, 0
    %p515 = por %p513, %p514
    %p516 = scmp.ne.s32.totalorder %s505, %s508
    %p517 = scmp.eq.s32.totalorder %s33, 1
    %p518 = por %p516, %p517
    %p519 = scmp.ne.s32.totalorder %s508, %s509
    %p520 = scmp.eq.s32.totalorder %s33, 0
    %p521 = por %p519, %p520
    %p522 = scmp.ne.s32.totalorder %s508, %s509
    %p523 = scmp.eq.s32.totalorder %s34, 1
    %p524 = por %p522, %p523
    %p526 = scmp.ne.s32.totalorder %s509, %s525
    %p527 = scmp.eq.s32.totalorder %s34, 0
    %p528 = por %p526, %p527
    %p529 = scmp.le.s32.totalorder 1, %s28
    %p530 = scmp.lt.s32.totalorder %s28, 3
    %p531 = pnand %p529, %p530
    %p532 = pneg %p531
    // Predicated region
    $region9: #{forward.1} parent=5 // pred_check
      _
    $region10: #{forward.1} parent=5 // pred_check_branch
      %534 = sbr.rel (%p531) target = $region12
    $region11: #{forward.1} parent=5 // pred_region
      %s535 = ssub.s32 %s28, 1
      // Predicated region
      $region13: #{forward.1} parent=11 // pred_check
        %p536 = pneg %p75
      $region14: #{forward.1} parent=11 // pred_check_branch
        %538 = sbr.rel (%p536) target = $region16
      $region15: #{forward.1} parent=11 // pred_region
        _
      $region16: #{forward.1} parent=11 // pred_fallthru
        _
      // Predicated region
      $region17: #{forward.1} parent=11 // pred_check
        %p539 = pneg %p96
      $region18: #{forward.1} parent=11 // pred_check_branch
        %541 = sbr.rel (%p539) target = $region20
      $region19: #{forward.1} parent=11 // pred_region
        _
      $region20: #{forward.1} parent=11 // pred_fallthru
        _
      // Predicated region
      $region21: #{forward.1} parent=11 // pred_check
        %p542 = pneg %p117
      $region22: #{forward.1} parent=11 // pred_check_branch
        %544 = sbr.rel (%p542) target = $region24
      $region23: #{forward.1} parent=11 // pred_region
        _
      $region24: #{forward.1} parent=11 // pred_fallthru
        _
      // Predicated region
      $region25: #{forward.1} parent=11 // pred_check
        %p545 = pneg %p138
      $region26: #{forward.1} parent=11 // pred_check_branch
        %547 = sbr.rel (%p545) target = $region28
      $region27: #{forward.1} parent=11 // pred_region
        _
      $region28: #{forward.1} parent=11 // pred_fallthru
        _
      // Predicated region
      $region29: #{forward.1} parent=11 // pred_check
        %p548 = pneg %p159
      $region30: #{forward.1} parent=11 // pred_check_branch
        %550 = sbr.rel (%p548) target = $region32
      $region31: #{forward.1} parent=11 // pred_region
        _
      $region32: #{forward.1} parent=11 // pred_fallthru
        _
      // Predicated region
      $region33: #{forward.1} parent=11 // pred_check
        %p551 = pneg %p180
      $region34: #{forward.1} parent=11 // pred_check_branch
        %553 = sbr.rel (%p551) target = $region36
      $region35: #{forward.1} parent=11 // pred_region
        _
      $region36: #{forward.1} parent=11 // pred_fallthru
        _
      // Predicated region
      $region37: #{forward.1} parent=11 // pred_check
        %p554 = pneg %p201
      $region38: #{forward.1} parent=11 // pred_check_branch
        %556 = sbr.rel (%p554) target = $region40
      $region39: #{forward.1} parent=11 // pred_region
        _
      $region40: #{forward.1} parent=11 // pred_fallthru
        _
      // Predicated region
      $region41: #{forward.1} parent=11 // pred_check
        %p557 = pneg %p222
      $region42: #{forward.1} parent=11 // pred_check_branch
        %559 = sbr.rel (%p557) target = $region44
      $region43: #{forward.1} parent=11 // pred_region
        _
      $region44: #{forward.1} parent=11 // pred_fallthru
        _
      // Predicated region
      $region45: #{forward.1} parent=11 // pred_check
        %p560 = pneg %p243
      $region46: #{forward.1} parent=11 // pred_check_branch
        %562 = sbr.rel (%p560) target = $region48
      $region47: #{forward.1} parent=11 // pred_region
        _
      $region48: #{forward.1} parent=11 // pred_fallthru
        _
      // Predicated region
      $region49: #{forward.1} parent=11 // pred_check
        %p563 = pneg %p264
      $region50: #{forward.1} parent=11 // pred_check_branch
        %565 = sbr.rel (%p563) target = $region52
      $region51: #{forward.1} parent=11 // pred_region
        _
      $region52: #{forward.1} parent=11 // pred_fallthru
        _
      // Predicated region
      $region53: #{forward.1} parent=11 // pred_check
        %p566 = pneg %p285
      $region54: #{forward.1} parent=11 // pred_check_branch
        %568 = sbr.rel (%p566) target = $region56
      $region55: #{forward.1} parent=11 // pred_region
        _
      $region56: #{forward.1} parent=11 // pred_fallthru
        _
      // Predicated region
      $region57: #{forward.1} parent=11 // pred_check
        %p569 = pneg %p306
      $region58: #{forward.1} parent=11 // pred_check_branch
        %571 = sbr.rel (%p569) target = $region60
      $region59: #{forward.1} parent=11 // pred_region
        _
      $region60: #{forward.1} parent=11 // pred_fallthru
        _
      // Predicated region
      $region61: #{forward.1} parent=11 // pred_check
        %p572 = pneg %p327
      $region62: #{forward.1} parent=11 // pred_check_branch
        %574 = sbr.rel (%p572) target = $region64
      $region63: #{forward.1} parent=11 // pred_region
        _
      $region64: #{forward.1} parent=11 // pred_fallthru
        _
      // Predicated region
      $region65: #{forward.1} parent=11 // pred_check
        %p575 = pneg %p348
      $region66: #{forward.1} parent=11 // pred_check_branch
        %577 = sbr.rel (%p575) target = $region68
      $region67: #{forward.1} parent=11 // pred_region
        _
      $region68: #{forward.1} parent=11 // pred_fallthru
        _
      // Predicated region
      $region69: #{forward.1} parent=11 // pred_check
        %p578 = pneg %p369
      $region70: #{forward.1} parent=11 // pred_check_branch
        %580 = sbr.rel (%p578) target = $region72
      $region71: #{forward.1} parent=11 // pred_region
        _
      $region72: #{forward.1} parent=11 // pred_fallthru
        _
      // Predicated region
      $region73: #{forward.1} parent=11 // pred_check
        %p581 = pneg %p390
      $region74: #{forward.1} parent=11 // pred_check_branch
        %583 = sbr.rel (%p581) target = $region76
      $region75: #{forward.1} parent=11 // pred_region
        _
      $region76: #{forward.1} parent=11 // pred_fallthru
        _
      // Predicated region
      $region77: #{forward.1} parent=11 // pred_check
        %p584 = pneg %p411
      $region78: #{forward.1} parent=11 // pred_check_branch
        %586 = sbr.rel (%p584) target = $region80
      $region79: #{forward.1} parent=11 // pred_region
        _
      $region80: #{forward.1} parent=11 // pred_fallthru
        _
      // Predicated region
      $region81: #{forward.1} parent=11 // pred_check
        %p587 = pneg %p432
      $region82: #{forward.1} parent=11 // pred_check_branch
        %589 = sbr.rel (%p587) target = $region84
      $region83: #{forward.1} parent=11 // pred_region
        _
      $region84: #{forward.1} parent=11 // pred_fallthru
        _
      // Predicated region
      $region85: #{forward.1} parent=11 // pred_check
        %p590 = pneg %p453
      $region86: #{forward.1} parent=11 // pred_check_branch
        %592 = sbr.rel (%p590) target = $region88
      $region87: #{forward.1} parent=11 // pred_region
        _
      $region88: #{forward.1} parent=11 // pred_fallthru
        _
      // Predicated region
      $region89: #{forward.1} parent=11 // pred_check
        %p593 = pneg %p474
      $region90: #{forward.1} parent=11 // pred_check_branch
        %595 = sbr.rel (%p593) target = $region92
      $region91: #{forward.1} parent=11 // pred_region
        _
      $region92: #{forward.1} parent=11 // pred_fallthru
        _
      // Predicated region
      $region93: #{forward.1} parent=11 // pred_check
        %p596 = pneg %p495
      $region94: #{forward.1} parent=11 // pred_check_branch
        %598 = sbr.rel (%p596) target = $region96
      $region95: #{forward.1} parent=11 // pred_region
        _
      $region96: #{forward.1} parent=11 // pred_fallthru
        _
    $region12: #{forward.1} parent=5 // pred_fallthru
      _
    %p599 = scmp.lt.s32.totalorder %s28, 2
    // Predicated region
    $region97: #{forward.1} parent=5 // pred_check
      %p600 = pneg %p599
    $region98: #{forward.1} parent=5 // pred_check_branch
      %602 = sbr.rel (%p600) target = $region100
    $region99: #{forward.1} parent=5 // pred_region
      // Predicated region
      $region101: #{forward.1} parent=99 // pred_check
        %p603 = pneg %p48
      $region102: #{forward.1} parent=99 // pred_check_branch
        %605 = sbr.rel (%p603) target = $region104
      $region103: #{forward.1} parent=99 // pred_region
        %p606 = scmp.lt.s32.totalorder %s28, 1
        %s607 = scalar_select %p606, %s28, 1
        %s608 = smul.addr %s607, 5
        %s609 = smul.addr %s608, 8
        %s610 = scalar_lea.vmem %s0, %s609
      $region104: #{forward.1} parent=99 // pred_fallthru
        _
    $region100: #{forward.1} parent=5 // pred_fallthru
      _
    %p611 = scmp.le.s32.totalorder 1, %s28
    %p612 = scmp.lt.s32.totalorder %s28, 3
    %p613 = pnand %p611, %p612
    %p614 = pneg %p613
    // Predicated region
    $region105: #{forward.1} parent=5 // pred_check
      _
    $region106: #{forward.1} parent=5 // pred_check_branch
      %616 = sbr.rel (%p613) target = $region108
    $region107: #{forward.1} parent=5 // pred_region
      %s617 = ssub.s32 %s28, 1
      %p618 = scmp.lt.s32.totalorder %s33, 1
      %s619 = scalar_select %p618, %s33, 1
      %s620 = smul.addr %s619, 5
      %s621 = smul.addr %s620, 8
      %s622 = scalar_lea.vmem %s0, %s621
      %p623 = pneg %p54
      %p624 = pneg %p51
      %p625 = pneg %p75
      %p626 = pneg %p72
      %p627 = pneg %p96
      %p628 = pneg %p93
      %p629 = pneg %p117
      %p630 = pneg %p114
      %p631 = pneg %p138
      %p632 = pneg %p135
      %p633 = pneg %p159
      %p634 = pneg %p156
      %p635 = pneg %p180
      %p636 = pneg %p177
      %p637 = pneg %p201
      %p638 = pneg %p198
      %p639 = pneg %p222
      %p640 = pneg %p219
      %p641 = pneg %p243
      %p642 = pneg %p240
      %p643 = pneg %p264
      %p644 = pneg %p261
      %p645 = pneg %p285
      %p646 = pneg %p282
      %p647 = pneg %p306
      %p648 = pneg %p303
      %p649 = pneg %p327
      %p650 = pneg %p324
      %p651 = pneg %p348
      %p652 = pneg %p345
      %p653 = pneg %p369
      %p654 = pneg %p366
      %p655 = pneg %p390
      %p656 = pneg %p387
      %p657 = pneg %p411
      %p658 = pneg %p408
      %p659 = pneg %p432
      %p660 = pneg %p429
      %p661 = pneg %p453
      %p662 = pneg %p450
      %p663 = pneg %p474
      %p664 = pneg %p471
      %p665 = pneg %p495
      %p666 = pneg %p492
      %p667 = pneg %p521
      %p668 = pneg %p518
      %p669 = scmp.lt.s32.totalorder %s33, 1
      %s670 = scalar_select %p669, %s33, 1
      %s671 = smul.addr %s670, 5
      %s672 = smul.addr %s671, 8
      %s673 = scalar_lea.vmem %s22, %s672
      %p674 = scmp.lt.s32.totalorder %s33, 1
      %s675 = scalar_select %p674, %s33, 1
      %s676 = smul.addr %s675, 5
      %s677 = smul.addr %s676, 8
      %s678 = scalar_lea.vmem %s0, %s677
      %p679 = scmp.lt.s32.totalorder %s33, 1
      %s680 = scalar_select %p679, %s33, 1
      %s681 = smul.addr %s680, 5
      %s682 = smul.addr %s681, 8
      %s683 = scalar_lea.vmem %s22, %s682
      %v685 = vld [vmem:[%s1] sm:$0xff]
      %v686 = vld [vmem:[%s1 + $0x8] sm:$0xff]
      %v687 = vld [vmem:[%s1 + $0x10] sm:$0xff]
      %v688 = vld [vmem:[%s1 + $0x18] sm:$0xff]
      %v689 = vld [vmem:[%s1 + $0x20] sm:$0xf]
      %vm690 = vcmask 523264
      %691 = vst.msk [vmem:[#allocation2] sm:$0xff] %vm690, 0.0
      %692 = vst.msk [vmem:[#allocation2 + $0x8] sm:$0xff] %vm690, 0.0
      %693 = vst.msk [vmem:[#allocation2 + $0x10] sm:$0xff] %vm690, 0.0
      %694 = vst.msk [vmem:[#allocation2 + $0x18] sm:$0xff] %vm690, 0.0
      %695 = vst.msk [vmem:[#allocation2 + $0x20] sm:$0xff] %vm690, 0.0
      %696 = vst.msk [vmem:[#allocation2 + $0x28] sm:$0xff] %vm690, 0.0
      %vm697 = vcmask 519168
      %698 = vst.msk [vmem:[#allocation2 + $0x30] sm:$0xf] %vm697, 0.0
      %v699 = vld [vmem:[%s678] sm:$0xff]
      %v700 = vld [vmem:[%s678 + $0x8] sm:$0xff]
      %v701 = vld [vmem:[%s678 + $0x10] sm:$0xff]
      %v702 = vld [vmem:[%s678 + $0x18] sm:$0xff]
      %v703 = vld [vmem:[%s678 + $0x20] sm:$0xf]
      %vm704 = vcmask 392192
      %705 = vst.msk [vmem:[#allocation2 + $0x8] sm:$0xff] %vm704, %v699
      %706 = vst.msk [vmem:[#allocation2 + $0x10] sm:$0xff] %vm704, %v700
      %707 = vst.msk [vmem:[#allocation2 + $0x18] sm:$0xff] %vm704, %v701
      %708 = vst.msk [vmem:[#allocation2 + $0x20] sm:$0xff] %vm704, %v702
      %vm709 = vcmask 388096
      %710 = vst.msk [vmem:[#allocation2 + $0x28] sm:$0xf] %vm709, %v703
      %v711 = vld [vmem:[#allocation2 + $0x1] sm:$0xff]
      %v712 = vld [vmem:[#allocation2 + $0x9] sm:$0xff]
      %v713 = vld [vmem:[#allocation2 + $0x11] sm:$0xff]
      %v714 = vld [vmem:[#allocation2 + $0x19] sm:$0xff]
      %v715 = vld [vmem:[#allocation2 + $0x21] sm:$0xf]
      %v716 = vpack.c.bf16 %v712, %v711
      %v717 = vpack.c.bf16 %v714, %v713
      %v718 = vpack.c.bf16 %v715, %v715
      %v719 = vld [vmem:[%s2] sm:$0xf]
      %v720 = vld [vmem:[%s2 + $0x4] sm:$0xf]
      %v721 = vld [vmem:[%s2 + $0x8] sm:$0xf]
      %v722 = vld [vmem:[%s2 + $0xc] sm:$0xf]
      %v723 = vld [vmem:[%s2 + $0x10] sm:$0xf]
      %v724 = vld [vmem:[%s2 + $0x14] sm:$0xf]
      %v725 = vld [vmem:[#allocation2 + $0x2] sm:$0xff]
      %v726 = vld [vmem:[#allocation2 + $0xa] sm:$0xff]
      %v727 = vld [vmem:[#allocation2 + $0x12] sm:$0xff]
      %v728 = vld [vmem:[#allocation2 + $0x1a] sm:$0xff]
      %v729 = vld [vmem:[#allocation2 + $0x22] sm:$0xf]
      %v730 = vpack.c.bf16 %v726, %v725
      %v731 = vpack.c.bf16 %v728, %v727
      %v732 = vpack.c.bf16 %v729, %v729
      %s733 = scalar_lea.vmem %s2, 24
      %v734 = vld [vmem:[%s733] sm:$0xf]
      %v735 = vld [vmem:[%s733 + $0x4] sm:$0xf]
      %v736 = vld [vmem:[%s733 + $0x8] sm:$0xf]
      %v737 = vld [vmem:[%s733 + $0xc] sm:$0xf]
      %v738 = vld [vmem:[%s733 + $0x10] sm:$0xf]
      %v739 = vld [vmem:[%s733 + $0x14] sm:$0xf]
      %v746 = vunpack.c.l.b16 %v734
      %v747 = vunpack.c.l.b16 %v735
      %v748 = vunpack.c.l.b16 %v736
      %v749 = vunpack.c.l.b16 %v737
      %v750 = vunpack.c.l.b16 %v738
      %v751 = vunpack.c.l.b16 %v739
      %v752 = vpack.c.b16 %v747, %v746
      %v753 = vpack.c.b16 %v749, %v748
      %v754 = vpack.c.b16 %v751, %v750
      %v759 = vsel %vm704, %v730, 0
      %v762 = vsel %vm704, %v731, 0
      %v765 = vsel %vm704, %v732, 0
      %767 = vmatpush.bf16.msra.mxu0 0
      %768 = vmatpush.bf16.msra.mxu0 0
      %769 = vmatpush.bf16.msra.mxu0 0
      %770 = vmatpush.bf16.msra.mxu0 0
      %771 = vmatpush.bf16.msra.mxu0 0
      %772 = vmatpush.bf16.msra.mxu0 %v754
      %773 = vmatpush.bf16.msra.mxu0 %v753
      %774 = vmatpush.bf16.msra.mxu0 %v752
      %775 = vmatmul.bf16.gmra.mxu0 %v759
      %v776 = vpop.f32.mrf.mxu0
      %v777 = vadd.f32 0.0, %v776
      %v778 = vpop.f32.mrf.mxu0
      %v779 = vadd.f32 0.0, %v778
      %780 = vmatmul.bf16.gmra.mxu0 %v762
      %v781 = vpop.f32.mrf.mxu0
      %v782 = vadd.f32 0.0, %v781
      %v783 = vpop.f32.mrf.mxu0
      %v784 = vadd.f32 0.0, %v783
      %785 = vmatmul.bf16.gmra.mxu0 %v765
      %v786 = vpop.f32.mrf.mxu0
      %v787 = vadd.f32 0.0, %v786
      %v788 = vpop.f32.mrf.mxu0
      %789 = vdwg.mxu0
      %v796 = vunpack.c.l.b16 %v719
      %v797 = vunpack.c.l.b16 %v720
      %v798 = vunpack.c.l.b16 %v721
      %v799 = vunpack.c.l.b16 %v722
      %v800 = vunpack.c.l.b16 %v723
      %v801 = vunpack.c.l.b16 %v724
      %v802 = vpack.c.b16 %v797, %v796
      %v803 = vpack.c.b16 %v799, %v798
      %v804 = vpack.c.b16 %v801, %v800
      %v809 = vsel %vm704, %v716, 0
      %v812 = vsel %vm704, %v717, 0
      %v815 = vsel %vm704, %v718, 0
      %817 = vmatpush.bf16.msra.mxu0 0
      %818 = vmatpush.bf16.msra.mxu0 0
      %819 = vmatpush.bf16.msra.mxu0 0
      %820 = vmatpush.bf16.msra.mxu0 0
      %821 = vmatpush.bf16.msra.mxu0 0
      %822 = vmatpush.bf16.msra.mxu0 %v804
      %823 = vmatpush.bf16.msra.mxu0 %v803
      %824 = vmatpush.bf16.msra.mxu0 %v802
      %825 = vmatmul.bf16.gmra.mxu0 %v809
      %v826 = vpop.f32.mrf.mxu0
      %v827 = vadd.f32 %v777, %v826
      %v828 = vpop.f32.mrf.mxu0
      %v829 = vadd.f32 %v779, %v828
      %830 = vmatmul.bf16.gmra.mxu0 %v812
      %v831 = vpop.f32.mrf.mxu0
      %v832 = vadd.f32 %v782, %v831
      %v833 = vpop.f32.mrf.mxu0
      %v834 = vadd.f32 %v784, %v833
      %835 = vmatmul.bf16.gmra.mxu0 %v815
      %v836 = vpop.f32.mrf.mxu0
      %v837 = vadd.f32 %v787, %v836
      %v838 = vpop.f32.mrf.mxu0
      %839 = vdwg.mxu0
      %v840 = vld [vmem:[#allocation2 + $0x3] sm:$0xff]
      %v841 = vld [vmem:[#allocation2 + $0xb] sm:$0xff]
      %v842 = vld [vmem:[#allocation2 + $0x13] sm:$0xff]
      %v843 = vld [vmem:[#allocation2 + $0x1b] sm:$0xff]
      %v844 = vld [vmem:[#allocation2 + $0x23] sm:$0xf]
      %v845 = vpack.c.bf16 %v841, %v840
      %v846 = vpack.c.bf16 %v843, %v842
      %v847 = vpack.c.bf16 %v844, %v844
      %s848 = scalar_lea.vmem %s2, 48
      %v849 = vld [vmem:[%s848] sm:$0xf]
      %v850 = vld [vmem:[%s848 + $0x4] sm:$0xf]
      %v851 = vld [vmem:[%s848 + $0x8] sm:$0xf]
      %v852 = vld [vmem:[%s848 + $0xc] sm:$0xf]
      %v853 = vld [vmem:[%s848 + $0x10] sm:$0xf]
      %v854 = vld [vmem:[%s848 + $0x14] sm:$0xf]
      %v861 = vunpack.c.l.b16 %v849
      %v862 = vunpack.c.l.b16 %v850
      %v863 = vunpack.c.l.b16 %v851
      %v864 = vunpack.c.l.b16 %v852
      %v865 = vunpack.c.l.b16 %v853
      %v866 = vunpack.c.l.b16 %v854
      %v867 = vpack.c.b16 %v862, %v861
      %v868 = vpack.c.b16 %v864, %v863
      %v869 = vpack.c.b16 %v866, %v865
      %v874 = vsel %vm704, %v845, 0
      %v877 = vsel %vm704, %v846, 0
      %v880 = vsel %vm704, %v847, 0
      %882 = vmatpush.bf16.msra.mxu0 0
      %883 = vmatpush.bf16.msra.mxu0 0
      %884 = vmatpush.bf16.msra.mxu0 0
      %885 = vmatpush.bf16.msra.mxu0 0
      %886 = vmatpush.bf16.msra.mxu0 0
      %887 = vmatpush.bf16.msra.mxu0 %v869
      %888 = vmatpush.bf16.msra.mxu0 %v868
      %889 = vmatpush.bf16.msra.mxu0 %v867
      %890 = vmatmul.bf16.gmra.mxu0 %v874
      %v891 = vpop.f32.mrf.mxu0
      %v892 = vadd.f32 0.0, %v891
      %v893 = vpop.f32.mrf.mxu0
      %v894 = vadd.f32 0.0, %v893
      %895 = vmatmul.bf16.gmra.mxu0 %v877
      %v896 = vpop.f32.mrf.mxu0
      %v897 = vadd.f32 0.0, %v896
      %v898 = vpop.f32.mrf.mxu0
      %v899 = vadd.f32 0.0, %v898
      %900 = vmatmul.bf16.gmra.mxu0 %v880
      %v901 = vpop.f32.mrf.mxu0
      %v902 = vadd.f32 0.0, %v901
      %v903 = vpop.f32.mrf.mxu0
      %904 = vdwg.mxu0
      %v905 = vadd.f32 %v827, %v892
      %v906 = vadd.f32 %v829, %v894
      %v907 = vadd.f32 %v832, %v897
      %v908 = vadd.f32 %v834, %v899
      %v909 = vadd.f32 %v837, %v902
      %v910 = vld [vmem:[#allocation2 + $0x7] sm:$0xff]
      %v911 = vld [vmem:[#allocation2 + $0xf] sm:$0xff]
      %v912 = vld [vmem:[#allocation2 + $0x17] sm:$0xff]
      %v913 = vld [vmem:[#allocation2 + $0x1f] sm:$0xff]
      %v914 = vld [vmem:[#allocation2 + $0x27] sm:$0xf]
      %v915 = vpack.c.bf16 %v911, %v910
      %v916 = vpack.c.bf16 %v913, %v912
      %v917 = vpack.c.bf16 %v914, %v914
      %s918 = scalar_lea.vmem %s2, 72
      %v919 = vld [vmem:[%s918] sm:$0xf]
      %v920 = vld [vmem:[%s918 + $0x4] sm:$0xf]
      %v921 = vld [vmem:[%s918 + $0x8] sm:$0xf]
      %v922 = vld [vmem:[%s918 + $0xc] sm:$0xf]
      %v923 = vld [vmem:[%s918 + $0x10] sm:$0xf]
      %v924 = vld [vmem:[%s918 + $0x14] sm:$0xf]
      %v931 = vunpack.c.l.b16 %v919
      %v932 = vunpack.c.l.b16 %v920
      %v933 = vunpack.c.l.b16 %v921
      %v934 = vunpack.c.l.b16 %v922
      %v935 = vunpack.c.l.b16 %v923
      %v936 = vunpack.c.l.b16 %v924
      %v937 = vpack.c.b16 %v932, %v931
      %v938 = vpack.c.b16 %v934, %v933
      %v939 = vpack.c.b16 %v936, %v935
      %v944 = vsel %vm704, %v915, 0
      %v947 = vsel %vm704, %v916, 0
      %v950 = vsel %vm704, %v917, 0
      %952 = vmatpush.bf16.msra.mxu0 0
      %953 = vmatpush.bf16.msra.mxu0 0
      %954 = vmatpush.bf16.msra.mxu0 0
      %955 = vmatpush.bf16.msra.mxu0 0
      %956 = vmatpush.bf16.msra.mxu0 0
      %957 = vmatpush.bf16.msra.mxu0 %v939
      %958 = vmatpush.bf16.msra.mxu0 %v938
      %959 = vmatpush.bf16.msra.mxu0 %v937
      %960 = vmatmul.bf16.gmra.mxu0 %v944
      %v961 = vpop.f32.mrf.mxu0
      %v962 = vadd.f32 0.0, %v961
      %v963 = vpop.f32.mrf.mxu0
      %v964 = vadd.f32 0.0, %v963
      %965 = vmatmul.bf16.gmra.mxu0 %v947
      %v966 = vpop.f32.mrf.mxu0
      %v967 = vadd.f32 0.0, %v966
      %v968 = vpop.f32.mrf.mxu0
      %v969 = vadd.f32 0.0, %v968
      %970 = vmatmul.bf16.gmra.mxu0 %v950
      %v971 = vpop.f32.mrf.mxu0
      %v972 = vadd.f32 0.0, %v971
      %v973 = vpop.f32.mrf.mxu0
      %974 = vdwg.mxu0
      %v975 = vadd.f32 %v905, %v962
      %v976 = vadd.f32 %v906, %v964
      %v977 = vadd.f32 %v907, %v967
      %v978 = vadd.f32 %v908, %v969
      %v979 = vadd.f32 %v909, %v972
      %v980 = vld [vmem:[#allocation2 + $0x8] sm:$0xff]
      %v981 = vld [vmem:[#allocation2 + $0x10] sm:$0xff]
      %v982 = vld [vmem:[#allocation2 + $0x18] sm:$0xff]
      %v983 = vld [vmem:[#allocation2 + $0x20] sm:$0xff]
      %v984 = vld [vmem:[#allocation2 + $0x28] sm:$0xf]
      %v985 = vpack.c.bf16 %v981, %v980
      %v986 = vpack.c.bf16 %v983, %v982
      %v987 = vpack.c.bf16 %v984, %v984
      %s988 = scalar_lea.vmem %s2, 96
      %v989 = vld [vmem:[%s988] sm:$0xf]
      %v990 = vld [vmem:[%s988 + $0x4] sm:$0xf]
      %v991 = vld [vmem:[%s988 + $0x8] sm:$0xf]
      %v992 = vld [vmem:[%s988 + $0xc] sm:$0xf]
      %v993 = vld [vmem:[%s988 + $0x10] sm:$0xf]
      %v994 = vld [vmem:[%s988 + $0x14] sm:$0xf]
      %v1001 = vunpack.c.l.b16 %v989
      %v1002 = vunpack.c.l.b16 %v990
      %v1003 = vunpack.c.l.b16 %v991
      %v1004 = vunpack.c.l.b16 %v992
      %v1005 = vunpack.c.l.b16 %v993
      %v1006 = vunpack.c.l.b16 %v994
      %v1007 = vpack.c.b16 %v1002, %v1001
      %v1008 = vpack.c.b16 %v1004, %v1003
      %v1009 = vpack.c.b16 %v1006, %v1005
      %v1014 = vsel %vm704, %v985, 0
      %v1017 = vsel %vm704, %v986, 0
      %v1020 = vsel %vm704, %v987, 0
      %1022 = vmatpush.bf16.msra.mxu0 0
      %1023 = vmatpush.bf16.msra.mxu0 0
      %1024 = vmatpush.bf16.msra.mxu0 0
      %1025 = vmatpush.bf16.msra.mxu0 0
      %1026 = vmatpush.bf16.msra.mxu0 0
      %1027 = vmatpush.bf16.msra.mxu0 %v1009
      %1028 = vmatpush.bf16.msra.mxu0 %v1008
      %1029 = vmatpush.bf16.msra.mxu0 %v1007
      %1030 = vmatmul.bf16.gmra.mxu0 %v1014
      %v1031 = vpop.f32.mrf.mxu0
      %v1032 = vadd.f32 0.0, %v1031
      %v1033 = vpop.f32.mrf.mxu0
      %v1034 = vadd.f32 0.0, %v1033
      %1035 = vmatmul.bf16.gmra.mxu0 %v1017
      %v1036 = vpop.f32.mrf.mxu0
      %v1037 = vadd.f32 0.0, %v1036
      %v1038 = vpop.f32.mrf.mxu0
      %v1039 = vadd.f32 0.0, %v1038
      %1040 = vmatmul.bf16.gmra.mxu0 %v1020
      %v1041 = vpop.f32.mrf.mxu0
      %v1042 = vadd.f32 0.0, %v1041
      %v1043 = vpop.f32.mrf.mxu0
      %1044 = vdwg.mxu0
      %v1045 = vadd.f32 %v975, %v1032
      %v1046 = vadd.f32 %v976, %v1034
      %v1047 = vadd.f32 %v977, %v1037
      %v1048 = vadd.f32 %v978, %v1039
      %v1049 = vadd.f32 %v979, %v1042
      %v1050 = vld [vmem:[#allocation2 + $0x9] sm:$0xff]
      %v1051 = vld [vmem:[#allocation2 + $0x11] sm:$0xff]
      %v1052 = vld [vmem:[#allocation2 + $0x19] sm:$0xff]
      %v1053 = vld [vmem:[#allocation2 + $0x21] sm:$0xff]
      %v1054 = vld [vmem:[#allocation2 + $0x29] sm:$0xf]
      %v1055 = vpack.c.bf16 %v1051, %v1050
      %v1056 = vpack.c.bf16 %v1053, %v1052
      %v1057 = vpack.c.bf16 %v1054, %v1054
      %s1058 = scalar_lea.vmem %s2, 120
      %v1059 = vld [vmem:[%s1058] sm:$0xf]
      %v1060 = vld [vmem:[%s1058 + $0x4] sm:$0xf]
      %v1061 = vld [vmem:[%s1058 + $0x8] sm:$0xf]
      %v1062 = vld [vmem:[%s1058 + $0xc] sm:$0xf]
      %v1063 = vld [vmem:[%s1058 + $0x10] sm:$0xf]
      %v1064 = vld [vmem:[%s1058 + $0x14] sm:$0xf]
      %v1071 = vunpack.c.l.b16 %v1059
      %v1072 = vunpack.c.l.b16 %v1060
      %v1073 = vunpack.c.l.b16 %v1061
      %v1074 = vunpack.c.l.b16 %v1062
      %v1075 = vunpack.c.l.b16 %v1063
      %v1076 = vunpack.c.l.b16 %v1064
      %v1077 = vpack.c.b16 %v1072, %v1071
      %v1078 = vpack.c.b16 %v1074, %v1073
      %v1079 = vpack.c.b16 %v1076, %v1075
      %v1084 = vsel %vm704, %v1055, 0
      %v1087 = vsel %vm704, %v1056, 0
      %v1090 = vsel %vm704, %v1057, 0
      %1092 = vmatpush.bf16.msra.mxu0 0
      %1093 = vmatpush.bf16.msra.mxu0 0
      %1094 = vmatpush.bf16.msra.mxu0 0
      %1095 = vmatpush.bf16.msra.mxu0 0
      %1096 = vmatpush.bf16.msra.mxu0 0
      %1097 = vmatpush.bf16.msra.mxu0 %v1079
      %1098 = vmatpush.bf16.msra.mxu0 %v1078
      %1099 = vmatpush.bf16.msra.mxu0 %v1077
      %1100 = vmatmul.bf16.gmra.mxu0 %v1084
      %v1101 = vpop.f32.mrf.mxu0
      %v1102 = vadd.f32 0.0, %v1101
      %v1103 = vpop.f32.mrf.mxu0
      %v1104 = vadd.f32 0.0, %v1103
      %1105 = vmatmul.bf16.gmra.mxu0 %v1087
      %v1106 = vpop.f32.mrf.mxu0
      %v1107 = vadd.f32 0.0, %v1106
      %v1108 = vpop.f32.mrf.mxu0
      %v1109 = vadd.f32 0.0, %v1108
      %1110 = vmatmul.bf16.gmra.mxu0 %v1090
      %v1111 = vpop.f32.mrf.mxu0
      %v1112 = vadd.f32 0.0, %v1111
      %v1113 = vpop.f32.mrf.mxu0
      %1114 = vdwg.mxu0
      %v1115 = vadd.f32 %v1045, %v1102
      %v1116 = vadd.f32 %v1046, %v1104
      %v1117 = vadd.f32 %v1047, %v1107
      %v1118 = vadd.f32 %v1048, %v1109
      %v1119 = vadd.f32 %v1049, %v1112
      %v1120 = vld [vmem:[#allocation2 + $0xd] sm:$0xff]
      %v1121 = vld [vmem:[#allocation2 + $0x15] sm:$0xff]
      %v1122 = vld [vmem:[#allocation2 + $0x1d] sm:$0xff]
      %v1123 = vld [vmem:[#allocation2 + $0x25] sm:$0xff]
      %v1124 = vld [vmem:[#allocation2 + $0x2d] sm:$0xf]
      %v1125 = vpack.c.bf16 %v1121, %v1120
      %v1126 = vpack.c.bf16 %v1123, %v1122
      %v1127 = vpack.c.bf16 %v1124, %v1124
      %s1128 = scalar_lea.vmem %s2, 144
      %v1129 = vld [vmem:[%s1128] sm:$0xf]
      %v1130 = vld [vmem:[%s1128 + $0x4] sm:$0xf]
      %v1131 = vld [vmem:[%s1128 + $0x8] sm:$0xf]
      %v1132 = vld [vmem:[%s1128 + $0xc] sm:$0xf]
      %v1133 = vld [vmem:[%s1128 + $0x10] sm:$0xf]
      %v1134 = vld [vmem:[%s1128 + $0x14] sm:$0xf]
      %v1141 = vunpack.c.l.b16 %v1129
      %v1142 = vunpack.c.l.b16 %v1130
      %v1143 = vunpack.c.l.b16 %v1131
      %v1144 = vunpack.c.l.b16 %v1132
      %v1145 = vunpack.c.l.b16 %v1133
      %v1146 = vunpack.c.l.b16 %v1134
      %v1147 = vpack.c.b16 %v1142, %v1141
      %v1148 = vpack.c.b16 %v1144, %v1143
      %v1149 = vpack.c.b16 %v1146, %v1145
      %v1154 = vsel %vm704, %v1125, 0
      %v1157 = vsel %vm704, %v1126, 0
      %v1160 = vsel %vm704, %v1127, 0
      %1162 = vmatpush.bf16.msra.mxu0 0
      %1163 = vmatpush.bf16.msra.mxu0 0
      %1164 = vmatpush.bf16.msra.mxu0 0
      %1165 = vmatpush.bf16.msra.mxu0 0
      %1166 = vmatpush.bf16.msra.mxu0 0
      %1167 = vmatpush.bf16.msra.mxu0 %v1149
      %1168 = vmatpush.bf16.msra.mxu0 %v1148
      %1169 = vmatpush.bf16.msra.mxu0 %v1147
      %1170 = vmatmul.bf16.gmra.mxu0 %v1154
      %v1171 = vpop.f32.mrf.mxu0
      %v1172 = vadd.f32 0.0, %v1171
      %v1173 = vpop.f32.mrf.mxu0
      %v1174 = vadd.f32 0.0, %v1173
      %1175 = vmatmul.bf16.gmra.mxu0 %v1157
      %v1176 = vpop.f32.mrf.mxu0
      %v1177 = vadd.f32 0.0, %v1176
      %v1178 = vpop.f32.mrf.mxu0
      %v1179 = vadd.f32 0.0, %v1178
      %1180 = vmatmul.bf16.gmra.mxu0 %v1160
      %v1181 = vpop.f32.mrf.mxu0
      %v1182 = vadd.f32 0.0, %v1181
      %v1183 = vpop.f32.mrf.mxu0
      %1184 = vdwg.mxu0
      %v1185 = vadd.f32 %v1115, %v1172
      %v1186 = vadd.f32 %v1116, %v1174
      %v1187 = vadd.f32 %v1117, %v1177
      %v1188 = vadd.f32 %v1118, %v1179
      %v1189 = vadd.f32 %v1119, %v1182
      %v1190 = vld [vmem:[#allocation2 + $0xe] sm:$0xff]
      %v1191 = vld [vmem:[#allocation2 + $0x16] sm:$0xff]
      %v1192 = vld [vmem:[#allocation2 + $0x1e] sm:$0xff]
      %v1193 = vld [vmem:[#allocation2 + $0x26] sm:$0xff]
      %v1194 = vld [vmem:[#allocation2 + $0x2e] sm:$0xf]
      %v1195 = vpack.c.bf16 %v1191, %v1190
      %v1196 = vpack.c.bf16 %v1193, %v1192
      %v1197 = vpack.c.bf16 %v1194, %v1194
      %s1198 = scalar_lea.vmem %s2, 168
      %v1199 = vld [vmem:[%s1198] sm:$0xf]
      %v1200 = vld [vmem:[%s1198 + $0x4] sm:$0xf]
      %v1201 = vld [vmem:[%s1198 + $0x8] sm:$0xf]
      %v1202 = vld [vmem:[%s1198 + $0xc] sm:$0xf]
      %v1203 = vld [vmem:[%s1198 + $0x10] sm:$0xf]
      %v1204 = vld [vmem:[%s1198 + $0x14] sm:$0xf]
      %v1211 = vunpack.c.l.b16 %v1199
      %v1212 = vunpack.c.l.b16 %v1200
      %v1213 = vunpack.c.l.b16 %v1201
      %v1214 = vunpack.c.l.b16 %v1202
      %v1215 = vunpack.c.l.b16 %v1203
      %v1216 = vunpack.c.l.b16 %v1204
      %v1217 = vpack.c.b16 %v1212, %v1211
      %v1218 = vpack.c.b16 %v1214, %v1213
      %v1219 = vpack.c.b16 %v1216, %v1215
      %v1224 = vsel %vm704, %v1195, 0
      %v1227 = vsel %vm704, %v1196, 0
      %v1230 = vsel %vm704, %v1197, 0
      %1232 = vmatpush.bf16.msra.mxu0 0
      %1233 = vmatpush.bf16.msra.mxu0 0
      %1234 = vmatpush.bf16.msra.mxu0 0
      %1235 = vmatpush.bf16.msra.mxu0 0
      %1236 = vmatpush.bf16.msra.mxu0 0
      %1237 = vmatpush.bf16.msra.mxu0 %v1219
      %1238 = vmatpush.bf16.msra.mxu0 %v1218
      %1239 = vmatpush.bf16.msra.mxu0 %v1217
      %1240 = vmatmul.bf16.gmra.mxu0 %v1224
      %v1241 = vpop.f32.mrf.mxu0
      %v1242 = vadd.f32 0.0, %v1241
      %v1243 = vpop.f32.mrf.mxu0
      %v1244 = vadd.f32 0.0, %v1243
      %1245 = vmatmul.bf16.gmra.mxu0 %v1227
      %v1246 = vpop.f32.mrf.mxu0
      %v1247 = vadd.f32 0.0, %v1246
      %v1248 = vpop.f32.mrf.mxu0
      %v1249 = vadd.f32 0.0, %v1248
      %1250 = vmatmul.bf16.gmra.mxu0 %v1230
      %v1251 = vpop.f32.mrf.mxu0
      %v1252 = vadd.f32 0.0, %v1251
      %v1253 = vpop.f32.mrf.mxu0
      %1254 = vdwg.mxu0
      %v1255 = vadd.f32 %v1185, %v1242
      %v1256 = vadd.f32 %v1186, %v1244
      %v1257 = vadd.f32 %v1187, %v1247
      %v1258 = vadd.f32 %v1188, %v1249
      %v1259 = vadd.f32 %v1189, %v1252
      %v1260 = vld [vmem:[#allocation2 + $0xf] sm:$0xff]
      %v1261 = vld [vmem:[#allocation2 + $0x17] sm:$0xff]
      %v1262 = vld [vmem:[#allocation2 + $0x1f] sm:$0xff]
      %v1263 = vld [vmem:[#allocation2 + $0x27] sm:$0xff]
      %v1264 = vld [vmem:[#allocation2 + $0x2f] sm:$0xf]
      %v1265 = vpack.c.bf16 %v1261, %v1260
      %v1266 = vpack.c.bf16 %v1263, %v1262
      %v1267 = vpack.c.bf16 %v1264, %v1264
      %s1268 = scalar_lea.vmem %s2, 192
      %v1269 = vld [vmem:[%s1268] sm:$0xf]
      %v1270 = vld [vmem:[%s1268 + $0x4] sm:$0xf]
      %v1271 = vld [vmem:[%s1268 + $0x8] sm:$0xf]
      %v1272 = vld [vmem:[%s1268 + $0xc] sm:$0xf]
      %v1273 = vld [vmem:[%s1268 + $0x10] sm:$0xf]
      %v1274 = vld [vmem:[%s1268 + $0x14] sm:$0xf]
      %v1281 = vunpack.c.l.b16 %v1269
      %v1282 = vunpack.c.l.b16 %v1270
      %v1283 = vunpack.c.l.b16 %v1271
      %v1284 = vunpack.c.l.b16 %v1272
      %v1285 = vunpack.c.l.b16 %v1273
      %v1286 = vunpack.c.l.b16 %v1274
      %v1287 = vpack.c.b16 %v1282, %v1281
      %v1288 = vpack.c.b16 %v1284, %v1283
      %v1289 = vpack.c.b16 %v1286, %v1285
      %v1294 = vsel %vm704, %v1265, 0
      %v1297 = vsel %vm704, %v1266, 0
      %v1300 = vsel %vm704, %v1267, 0
      %1302 = vmatpush.bf16.msra.mxu0 0
      %1303 = vmatpush.bf16.msra.mxu0 0
      %1304 = vmatpush.bf16.msra.mxu0 0
      %1305 = vmatpush.bf16.msra.mxu0 0
      %1306 = vmatpush.bf16.msra.mxu0 0
      %1307 = vmatpush.bf16.msra.mxu0 %v1289
      %1308 = vmatpush.bf16.msra.mxu0 %v1288
      %1309 = vmatpush.bf16.msra.mxu0 %v1287
      %1310 = vmatmul.bf16.gmra.mxu0 %v1294
      %v1311 = vpop.f32.mrf.mxu0
      %v1312 = vadd.f32 0.0, %v1311
      %v1313 = vpop.f32.mrf.mxu0
      %v1314 = vadd.f32 0.0, %v1313
      %1315 = vmatmul.bf16.gmra.mxu0 %v1297
      %v1316 = vpop.f32.mrf.mxu0
      %v1317 = vadd.f32 0.0, %v1316
      %v1318 = vpop.f32.mrf.mxu0
      %v1319 = vadd.f32 0.0, %v1318
      %1320 = vmatmul.bf16.gmra.mxu0 %v1300
      %v1321 = vpop.f32.mrf.mxu0
      %v1322 = vadd.f32 0.0, %v1321
      %v1323 = vpop.f32.mrf.mxu0
      %1324 = vdwg.mxu0
      %v1325 = vadd.f32 %v1255, %v1312
      %v1326 = vadd.f32 %v1256, %v1314
      %v1327 = vadd.f32 %v1257, %v1317
      %v1328 = vadd.f32 %v1258, %v1319
      %v1329 = vadd.f32 %v1259, %v1322
      %v1330 = vld [vmem:[%s3] sm:$0x1]
      %v1332 = vperm.slane %v1330, 0
      %v1334 = vadd.f32 %v1325, %v1332
      %v1335 = vadd.f32 %v1326, %v1332
      %v1336 = vadd.f32 %v1327, %v1332
      %v1337 = vadd.f32 %v1328, %v1332
      %v1338 = vadd.f32 %v1329, %v1332
      %1340 = vset.pattern.permute.xlu0 0
      %1341 = vperm.xlu0 %1340, %v685
      %v1342 = vpop.permute.xlu0 %1341
      %1345 = vset.pattern.permute.xlu0 0
      %1346 = vperm.xlu0 %1345, %v686
      %v1347 = vpop.permute.xlu0 %1346
      %1350 = vset.pattern.permute.xlu0 0
      %1351 = vperm.xlu0 %1350, %v687
      %v1352 = vpop.permute.xlu0 %1351
      %1355 = vset.pattern.permute.xlu0 0
      %1356 = vperm.xlu0 %1355, %v688
      %v1357 = vpop.permute.xlu0 %1356
      %1360 = vset.pattern.permute.xlu0 0
      %1361 = vperm.xlu0 %1360, %v689
      %v1362 = vpop.permute.xlu0 %1361
      %v1364 = vmul.f32 %v1334, %v1342
      %v1365 = vmul.f32 %v1335, %v1347
      %v1366 = vmul.f32 %v1336, %v1352
      %v1367 = vmul.f32 %v1337, %v1357
      %v1368 = vmul.f32 %v1338, %v1362
      %v1369 = vmax.f32 %v1364, 0.0
      %v1370 = vmax.f32 %v1365, 0.0
      %v1371 = vmax.f32 %v1366, 0.0
      %v1372 = vmax.f32 %v1367, 0.0
      %v1373 = vmax.f32 %v1368, 0.0
      %1374 = vst.msk [vmem:[#allocation2 + $0x8] sm:$0xff] %vm690, %v1369
      %1375 = vst.msk [vmem:[#allocation2 + $0x10] sm:$0xff] %vm690, %v1370
      %1376 = vst.msk [vmem:[#allocation2 + $0x18] sm:$0xff] %vm690, %v1371
      %1377 = vst.msk [vmem:[#allocation2 + $0x20] sm:$0xff] %vm690, %v1372
      %1378 = vst.msk [vmem:[#allocation2 + $0x28] sm:$0xf] %vm697, %v1373
      %v1379 = vld [vmem:[#allocation2 + $0x1] sm:$0xff]
      %v1380 = vld [vmem:[#allocation2 + $0x9] sm:$0xff]
      %v1381 = vld [vmem:[#allocation2 + $0x11] sm:$0xff]
      %v1382 = vld [vmem:[#allocation2 + $0x19] sm:$0xff]
      %v1383 = vld [vmem:[#allocation2 + $0x21] sm:$0xf]
      %v1384 = vpack.c.bf16 %v1380, %v1379
      %v1385 = vpack.c.bf16 %v1382, %v1381
      %v1386 = vpack.c.bf16 %v1383, %v1383
      %v1387 = vld [vmem:[%s4] sm:$0xf]
      %v1388 = vld [vmem:[%s4 + $0x4] sm:$0xf]
      %v1389 = vld [vmem:[%s4 + $0x8] sm:$0xf]
      %v1390 = vld [vmem:[%s4 + $0xc] sm:$0xf]
      %v1391 = vld [vmem:[%s4 + $0x10] sm:$0xf]
      %v1392 = vld [vmem:[%s4 + $0x14] sm:$0xf]
      %v1393 = vld [vmem:[%s4 + $0x18] sm:$0xf]
      %v1394 = vld [vmem:[%s4 + $0x1c] sm:$0xf]
      %v1395 = vld [vmem:[#allocation2 + $0x2] sm:$0xff]
      %v1396 = vld [vmem:[#allocation2 + $0xa] sm:$0xff]
      %v1397 = vld [vmem:[#allocation2 + $0x12] sm:$0xff]
      %v1398 = vld [vmem:[#allocation2 + $0x1a] sm:$0xff]
      %v1399 = vld [vmem:[#allocation2 + $0x22] sm:$0xf]
      %v1400 = vpack.c.bf16 %v1396, %v1395
      %v1401 = vpack.c.bf16 %v1398, %v1397
      %v1402 = vpack.c.bf16 %v1399, %v1399
      %s1403 = scalar_lea.vmem %s4, 32
      %v1404 = vld [vmem:[%s1403] sm:$0xf]
      %v1405 = vld [vmem:[%s1403 + $0x4] sm:$0xf]
      %v1406 = vld [vmem:[%s1403 + $0x8] sm:$0xf]
      %v1407 = vld [vmem:[%s1403 + $0xc] sm:$0xf]
      %v1408 = vld [vmem:[%s1403 + $0x10] sm:$0xf]
      %v1409 = vld [vmem:[%s1403 + $0x14] sm:$0xf]
      %v1410 = vld [vmem:[%s1403 + $0x18] sm:$0xf]
      %v1411 = vld [vmem:[%s1403 + $0x1c] sm:$0xf]
      %v1420 = vunpack.c.l.b16 %v1404
      %v1421 = vunpack.c.l.b16 %v1405
      %v1422 = vunpack.c.l.b16 %v1406
      %v1423 = vunpack.c.l.b16 %v1407
      %v1424 = vunpack.c.l.b16 %v1408
      %v1425 = vunpack.c.l.b16 %v1409
      %v1426 = vunpack.c.l.b16 %v1410
      %v1427 = vunpack.c.l.b16 %v1411
      %v1428 = vpack.c.b16 %v1421, %v1420
      %v1429 = vpack.c.b16 %v1423, %v1422
      %v1430 = vpack.c.b16 %v1425, %v1424
      %v1431 = vpack.c.b16 %v1427, %v1426
      %v1437 = vsel %vm690, %v1400, 0
      %v1440 = vsel %vm690, %v1401, 0
      %v1443 = vsel %vm690, %v1402, 0
      %1445 = vmatpush.bf16.msra.mxu0 0
      %1446 = vmatpush.bf16.msra.mxu0 0
      %1447 = vmatpush.bf16.msra.mxu0 0
      %1448 = vmatpush.bf16.msra.mxu0 0
      %1449 = vmatpush.bf16.msra.mxu0 %v1431
      %1450 = vmatpush.bf16.msra.mxu0 %v1430
      %1451 = vmatpush.bf16.msra.mxu0 %v1429
      %1452 = vmatpush.bf16.msra.mxu0 %v1428
      %1453 = vmatmul.bf16.gmra.mxu0 %v1437
      %v1454 = vpop.f32.mrf.mxu0
      %v1455 = vadd.f32 0.0, %v1454
      %v1456 = vpop.f32.mrf.mxu0
      %v1457 = vadd.f32 0.0, %v1456
      %1458 = vmatmul.bf16.gmra.mxu0 %v1440
      %v1459 = vpop.f32.mrf.mxu0
      %v1460 = vadd.f32 0.0, %v1459
      %v1461 = vpop.f32.mrf.mxu0
      %v1462 = vadd.f32 0.0, %v1461
      %1463 = vmatmul.bf16.gmra.mxu0 %v1443
      %v1464 = vpop.f32.mrf.mxu0
      %v1465 = vadd.f32 0.0, %v1464
      %v1466 = vpop.f32.mrf.mxu0
      %1467 = vdwg.mxu0
      %v1476 = vunpack.c.l.b16 %v1387
      %v1477 = vunpack.c.l.b16 %v1388
      %v1478 = vunpack.c.l.b16 %v1389
      %v1479 = vunpack.c.l.b16 %v1390
      %v1480 = vunpack.c.l.b16 %v1391
      %v1481 = vunpack.c.l.b16 %v1392
      %v1482 = vunpack.c.l.b16 %v1393
      %v1483 = vunpack.c.l.b16 %v1394
      %v1484 = vpack.c.b16 %v1477, %v1476
      %v1485 = vpack.c.b16 %v1479, %v1478
      %v1486 = vpack.c.b16 %v1481, %v1480
      %v1487 = vpack.c.b16 %v1483, %v1482
      %v1493 = vsel %vm690, %v1384, 0
      %v1496 = vsel %vm690, %v1385, 0
      %v1499 = vsel %vm690, %v1386, 0
      %1501 = vmatpush.bf16.msra.mxu0 0
      %1502 = vmatpush.bf16.msra.mxu0 0
      %1503 = vmatpush.bf16.msra.mxu0 0
      %1504 = vmatpush.bf16.msra.mxu0 0
      %1505 = vmatpush.bf16.msra.mxu0 %v1487
      %1506 = vmatpush.bf16.msra.mxu0 %v1486
      %1507 = vmatpush.bf16.msra.mxu0 %v1485
      %1508 = vmatpush.bf16.msra.mxu0 %v1484
      %1509 = vmatmul.bf16.gmra.mxu0 %v1493
      %v1510 = vpop.f32.mrf.mxu0
      %v1511 = vadd.f32 %v1455, %v1510
      %v1512 = vpop.f32.mrf.mxu0
      %v1513 = vadd.f32 %v1457, %v1512
      %1514 = vmatmul.bf16.gmra.mxu0 %v1496
      %v1515 = vpop.f32.mrf.mxu0
      %v1516 = vadd.f32 %v1460, %v1515
      %v1517 = vpop.f32.mrf.mxu0
      %v1518 = vadd.f32 %v1462, %v1517
      %1519 = vmatmul.bf16.gmra.mxu0 %v1499
      %v1520 = vpop.f32.mrf.mxu0
      %v1521 = vadd.f32 %v1465, %v1520
      %v1522 = vpop.f32.mrf.mxu0
      %1523 = vdwg.mxu0
      %v1524 = vld [vmem:[#allocation2 + $0x3] sm:$0xff]
      %v1525 = vld [vmem:[#allocation2 + $0xb] sm:$0xff]
      %v1526 = vld [vmem:[#allocation2 + $0x13] sm:$0xff]
      %v1527 = vld [vmem:[#allocation2 + $0x1b] sm:$0xff]
      %v1528 = vld [vmem:[#allocation2 + $0x23] sm:$0xf]
      %v1529 = vpack.c.bf16 %v1525, %v1524
      %v1530 = vpack.c.bf16 %v1527, %v1526
      %v1531 = vpack.c.bf16 %v1528, %v1528
      %s1532 = scalar_lea.vmem %s4, 64
      %v1533 = vld [vmem:[%s1532] sm:$0xf]
      %v1534 = vld [vmem:[%s1532 + $0x4] sm:$0xf]
      %v1535 = vld [vmem:[%s1532 + $0x8] sm:$0xf]
      %v1536 = vld [vmem:[%s1532 + $0xc] sm:$0xf]
      %v1537 = vld [vmem:[%s1532 + $0x10] sm:$0xf]
      %v1538 = vld [vmem:[%s1532 + $0x14] sm:$0xf]
      %v1539 = vld [vmem:[%s1532 + $0x18] sm:$0xf]
      %v1540 = vld [vmem:[%s1532 + $0x1c] sm:$0xf]
      %v1549 = vunpack.c.l.b16 %v1533
      %v1550 = vunpack.c.l.b16 %v1534
      %v1551 = vunpack.c.l.b16 %v1535
      %v1552 = vunpack.c.l.b16 %v1536
      %v1553 = vunpack.c.l.b16 %v1537
      %v1554 = vunpack.c.l.b16 %v1538
      %v1555 = vunpack.c.l.b16 %v1539
      %v1556 = vunpack.c.l.b16 %v1540
      %v1557 = vpack.c.b16 %v1550, %v1549
      %v1558 = vpack.c.b16 %v1552, %v1551
      %v1559 = vpack.c.b16 %v1554, %v1553
      %v1560 = vpack.c.b16 %v1556, %v1555
      %v1566 = vsel %vm690, %v1529, 0
      %v1569 = vsel %vm690, %v1530, 0
      %v1572 = vsel %vm690, %v1531, 0
      %1574 = vmatpush.bf16.msra.mxu0 0
      %1575 = vmatpush.bf16.msra.mxu0 0
      %1576 = vmatpush.bf16.msra.mxu0 0
      %1577 = vmatpush.bf16.msra.mxu0 0
      %1578 = vmatpush.bf16.msra.mxu0 %v1560
      %1579 = vmatpush.bf16.msra.mxu0 %v1559
      %1580 = vmatpush.bf16.msra.mxu0 %v1558
      %1581 = vmatpush.bf16.msra.mxu0 %v1557
      %1582 = vmatmul.bf16.gmra.mxu0 %v1566
      %v1583 = vpop.f32.mrf.mxu0
      %v1584 = vadd.f32 0.0, %v1583
      %v1585 = vpop.f32.mrf.mxu0
      %v1586 = vadd.f32 0.0, %v1585
      %1587 = vmatmul.bf16.gmra.mxu0 %v1569
      %v1588 = vpop.f32.mrf.mxu0
      %v1589 = vadd.f32 0.0, %v1588
      %v1590 = vpop.f32.mrf.mxu0
      %v1591 = vadd.f32 0.0, %v1590
      %1592 = vmatmul.bf16.gmra.mxu0 %v1572
      %v1593 = vpop.f32.mrf.mxu0
      %v1594 = vadd.f32 0.0, %v1593
      %v1595 = vpop.f32.mrf.mxu0
      %1596 = vdwg.mxu0
      %v1597 = vadd.f32 %v1511, %v1584
      %v1598 = vadd.f32 %v1513, %v1586
      %v1599 = vadd.f32 %v1516, %v1589
      %v1600 = vadd.f32 %v1518, %v1591
      %v1601 = vadd.f32 %v1521, %v1594
      %v1602 = vld [vmem:[#allocation2 + $0x7] sm:$0xff]
      %v1603 = vld [vmem:[#allocation2 + $0xf] sm:$0xff]
      %v1604 = vld [vmem:[#allocation2 + $0x17] sm:$0xff]
      %v1605 = vld [vmem:[#allocation2 + $0x1f] sm:$0xff]
      %v1606 = vld [vmem:[#allocation2 + $0x27] sm:$0xf]
      %v1607 = vpack.c.bf16 %v1603, %v1602
      %v1608 = vpack.c.bf16 %v1605, %v1604
      %v1609 = vpack.c.bf16 %v1606, %v1606
      %s1610 = scalar_lea.vmem %s4, 96
      %v1611 = vld [vmem:[%s1610] sm:$0xf]
      %v1612 = vld [vmem:[%s1610 + $0x4] sm:$0xf]
      %v1613 = vld [vmem:[%s1610 + $0x8] sm:$0xf]
      %v1614 = vld [vmem:[%s1610 + $0xc] sm:$0xf]
      %v1615 = vld [vmem:[%s1610 + $0x10] sm:$0xf]
      %v1616 = vld [vmem:[%s1610 + $0x14] sm:$0xf]
      %v1617 = vld [vmem:[%s1610 + $0x18] sm:$0xf]
      %v1618 = vld [vmem:[%s1610 + $0x1c] sm:$0xf]
      %v1627 = vunpack.c.l.b16 %v1611
      %v1628 = vunpack.c.l.b16 %v1612
      %v1629 = vunpack.c.l.b16 %v1613
      %v1630 = vunpack.c.l.b16 %v1614
      %v1631 = vunpack.c.l.b16 %v1615
      %v1632 = vunpack.c.l.b16 %v1616
      %v1633 = vunpack.c.l.b16 %v1617
      %v1634 = vunpack.c.l.b16 %v1618
      %v1635 = vpack.c.b16 %v1628, %v1627
      %v1636 = vpack.c.b16 %v1630, %v1629
      %v1637 = vpack.c.b16 %v1632, %v1631
      %v1638 = vpack.c.b16 %v1634, %v1633
      %v1644 = vsel %vm690, %v1607, 0
      %v1647 = vsel %vm690, %v1608, 0
      %v1650 = vsel %vm690, %v1609, 0
      %1652 = vmatpush.bf16.msra.mxu0 0
      %1653 = vmatpush.bf16.msra.mxu0 0
      %1654 = vmatpush.bf16.msra.mxu0 0
      %1655 = vmatpush.bf16.msra.mxu0 0
      %1656 = vmatpush.bf16.msra.mxu0 %v1638
      %1657 = vmatpush.bf16.msra.mxu0 %v1637
      %1658 = vmatpush.bf16.msra.mxu0 %v1636
      %1659 = vmatpush.bf16.msra.mxu0 %v1635
      %1660 = vmatmul.bf16.gmra.mxu0 %v1644
      %v1661 = vpop.f32.mrf.mxu0
      %v1662 = vadd.f32 0.0, %v1661
      %v1663 = vpop.f32.mrf.mxu0
      %v1664 = vadd.f32 0.0, %v1663
      %1665 = vmatmul.bf16.gmra.mxu0 %v1647
      %v1666 = vpop.f32.mrf.mxu0
      %v1667 = vadd.f32 0.0, %v1666
      %v1668 = vpop.f32.mrf.mxu0
      %v1669 = vadd.f32 0.0, %v1668
      %1670 = vmatmul.bf16.gmra.mxu0 %v1650
      %v1671 = vpop.f32.mrf.mxu0
      %v1672 = vadd.f32 0.0, %v1671
      %v1673 = vpop.f32.mrf.mxu0
      %1674 = vdwg.mxu0
      %v1675 = vadd.f32 %v1597, %v1662
      %v1676 = vadd.f32 %v1598, %v1664
      %v1677 = vadd.f32 %v1599, %v1667
      %v1678 = vadd.f32 %v1600, %v1669
      %v1679 = vadd.f32 %v1601, %v1672
      %v1680 = vld [vmem:[#allocation2 + $0x8] sm:$0xff]
      %v1681 = vld [vmem:[#allocation2 + $0x10] sm:$0xff]
      %v1682 = vld [vmem:[#allocation2 + $0x18] sm:$0xff]
      %v1683 = vld [vmem:[#allocation2 + $0x20] sm:$0xff]
      %v1684 = vld [vmem:[#allocation2 + $0x28] sm:$0xf]
      %v1685 = vpack.c.bf16 %v1681, %v1680
      %v1686 = vpack.c.bf16 %v1683, %v1682
      %v1687 = vpack.c.bf16 %v1684, %v1684
      %s1688 = scalar_lea.vmem %s4, 128
      %v1689 = vld [vmem:[%s1688] sm:$0xf]
      %v1690 = vld [vmem:[%s1688 + $0x4] sm:$0xf]
      %v1691 = vld [vmem:[%s1688 + $0x8] sm:$0xf]
      %v1692 = vld [vmem:[%s1688 + $0xc] sm:$0xf]
      %v1693 = vld [vmem:[%s1688 + $0x10] sm:$0xf]
      %v1694 = vld [vmem:[%s1688 + $0x14] sm:$0xf]
      %v1695 = vld [vmem:[%s1688 + $0x18] sm:$0xf]
      %v1696 = vld [vmem:[%s1688 + $0x1c] sm:$0xf]
      %v1705 = vunpack.c.l.b16 %v1689
      %v1706 = vunpack.c.l.b16 %v1690
      %v1707 = vunpack.c.l.b16 %v1691
      %v1708 = vunpack.c.l.b16 %v1692
      %v1709 = vunpack.c.l.b16 %v1693
      %v1710 = vunpack.c.l.b16 %v1694
      %v1711 = vunpack.c.l.b16 %v1695
      %v1712 = vunpack.c.l.b16 %v1696
      %v1713 = vpack.c.b16 %v1706, %v1705
      %v1714 = vpack.c.b16 %v1708, %v1707
      %v1715 = vpack.c.b16 %v1710, %v1709
      %v1716 = vpack.c.b16 %v1712, %v1711
      %v1722 = vsel %vm690, %v1685, 0
      %v1725 = vsel %vm690, %v1686, 0
      %v1728 = vsel %vm690, %v1687, 0
      %1730 = vmatpush.bf16.msra.mxu0 0
      %1731 = vmatpush.bf16.msra.mxu0 0
      %1732 = vmatpush.bf16.msra.mxu0 0
      %1733 = vmatpush.bf16.msra.mxu0 0
      %1734 = vmatpush.bf16.msra.mxu0 %v1716
      %1735 = vmatpush.bf16.msra.mxu0 %v1715
      %1736 = vmatpush.bf16.msra.mxu0 %v1714
      %1737 = vmatpush.bf16.msra.mxu0 %v1713
      %1738 = vmatmul.bf16.gmra.mxu0 %v1722
      %v1739 = vpop.f32.mrf.mxu0
      %v1740 = vadd.f32 0.0, %v1739
      %v1741 = vpop.f32.mrf.mxu0
      %v1742 = vadd.f32 0.0, %v1741
      %1743 = vmatmul.bf16.gmra.mxu0 %v1725
      %v1744 = vpop.f32.mrf.mxu0
      %v1745 = vadd.f32 0.0, %v1744
      %v1746 = vpop.f32.mrf.mxu0
      %v1747 = vadd.f32 0.0, %v1746
      %1748 = vmatmul.bf16.gmra.mxu0 %v1728
      %v1749 = vpop.f32.mrf.mxu0
      %v1750 = vadd.f32 0.0, %v1749
      %v1751 = vpop.f32.mrf.mxu0
      %1752 = vdwg.mxu0
      %v1753 = vadd.f32 %v1675, %v1740
      %v1754 = vadd.f32 %v1676, %v1742
      %v1755 = vadd.f32 %v1677, %v1745
      %v1756 = vadd.f32 %v1678, %v1747
      %v1757 = vadd.f32 %v1679, %v1750
      %v1758 = vld [vmem:[#allocation2 + $0x9] sm:$0xff]
      %v1759 = vld [vmem:[#allocation2 + $0x11] sm:$0xff]
      %v1760 = vld [vmem:[#allocation2 + $0x19] sm:$0xff]
      %v1761 = vld [vmem:[#allocation2 + $0x21] sm:$0xff]
      %v1762 = vld [vmem:[#allocation2 + $0x29] sm:$0xf]
      %v1763 = vpack.c.bf16 %v1759, %v1758
      %v1764 = vpack.c.bf16 %v1761, %v1760
      %v1765 = vpack.c.bf16 %v1762, %v1762
      %s1766 = scalar_lea.vmem %s4, 160
      %v1767 = vld [vmem:[%s1766] sm:$0xf]
      %v1768 = vld [vmem:[%s1766 + $0x4] sm:$0xf]
      %v1769 = vld [vmem:[%s1766 + $0x8] sm:$0xf]
      %v1770 = vld [vmem:[%s1766 + $0xc] sm:$0xf]
      %v1771 = vld [vmem:[%s1766 + $0x10] sm:$0xf]
      %v1772 = vld [vmem:[%s1766 + $0x14] sm:$0xf]
      %v1773 = vld [vmem:[%s1766 + $0x18] sm:$0xf]
      %v1774 = vld [vmem:[%s1766 + $0x1c] sm:$0xf]
      %v1783 = vunpack.c.l.b16 %v1767
      %v1784 = vunpack.c.l.b16 %v1768
      %v1785 = vunpack.c.l.b16 %v1769
      %v1786 = vunpack.c.l.b16 %v1770
      %v1787 = vunpack.c.l.b16 %v1771
      %v1788 = vunpack.c.l.b16 %v1772
      %v1789 = vunpack.c.l.b16 %v1773
      %v1790 = vunpack.c.l.b16 %v1774
      %v1791 = vpack.c.b16 %v1784, %v1783
      %v1792 = vpack.c.b16 %v1786, %v1785
      %v1793 = vpack.c.b16 %v1788, %v1787
      %v1794 = vpack.c.b16 %v1790, %v1789
      %v1800 = vsel %vm690, %v1763, 0
      %v1803 = vsel %vm690, %v1764, 0
      %v1806 = vsel %vm690, %v1765, 0
      %1808 = vmatpush.bf16.msra.mxu0 0
      %1809 = vmatpush.bf16.msra.mxu0 0
      %1810 = vmatpush.bf16.msra.mxu0 0
      %1811 = vmatpush.bf16.msra.mxu0 0
      %1812 = vmatpush.bf16.msra.mxu0 %v1794
      %1813 = vmatpush.bf16.msra.mxu0 %v1793
      %1814 = vmatpush.bf16.msra.mxu0 %v1792
      %1815 = vmatpush.bf16.msra.mxu0 %v1791
      %1816 = vmatmul.bf16.gmra.mxu0 %v1800
      %v1817 = vpop.f32.mrf.mxu0
      %v1818 = vadd.f32 0.0, %v1817
      %v1819 = vpop.f32.mrf.mxu0
      %v1820 = vadd.f32 0.0, %v1819
      %1821 = vmatmul.bf16.gmra.mxu0 %v1803
      %v1822 = vpop.f32.mrf.mxu0
      %v1823 = vadd.f32 0.0, %v1822
      %v1824 = vpop.f32.mrf.mxu0
      %v1825 = vadd.f32 0.0, %v1824
      %1826 = vmatmul.bf16.gmra.mxu0 %v1806
      %v1827 = vpop.f32.mrf.mxu0
      %v1828 = vadd.f32 0.0, %v1827
      %v1829 = vpop.f32.mrf.mxu0
      %1830 = vdwg.mxu0
      %v1831 = vadd.f32 %v1753, %v1818
      %v1832 = vadd.f32 %v1754, %v1820
      %v1833 = vadd.f32 %v1755, %v1823
      %v1834 = vadd.f32 %v1756, %v1825
      %v1835 = vadd.f32 %v1757, %v1828
      %v1836 = vld [vmem:[#allocation2 + $0xd] sm:$0xff]
      %v1837 = vld [vmem:[#allocation2 + $0x15] sm:$0xff]
      %v1838 = vld [vmem:[#allocation2 + $0x1d] sm:$0xff]
      %v1839 = vld [vmem:[#allocation2 + $0x25] sm:$0xff]
      %v1840 = vld [vmem:[#allocation2 + $0x2d] sm:$0xf]
      %v1841 = vpack.c.bf16 %v1837, %v1836
      %v1842 = vpack.c.bf16 %v1839, %v1838
      %v1843 = vpack.c.bf16 %v1840, %v1840
      %s1844 = scalar_lea.vmem %s4, 192
      %v1845 = vld [vmem:[%s1844] sm:$0xf]
      %v1846 = vld [vmem:[%s1844 + $0x4] sm:$0xf]
      %v1847 = vld [vmem:[%s1844 + $0x8] sm:$0xf]
      %v1848 = vld [vmem:[%s1844 + $0xc] sm:$0xf]
      %v1849 = vld [vmem:[%s1844 + $0x10] sm:$0xf]
      %v1850 = vld [vmem:[%s1844 + $0x14] sm:$0xf]
      %v1851 = vld [vmem:[%s1844 + $0x18] sm:$0xf]
      %v1852 = vld [vmem:[%s1844 + $0x1c] sm:$0xf]
      %v1861 = vunpack.c.l.b16 %v1845
      %v1862 = vunpack.c.l.b16 %v1846
      %v1863 = vunpack.c.l.b16 %v1847
      %v1864 = vunpack.c.l.b16 %v1848
      %v1865 = vunpack.c.l.b16 %v1849
      %v1866 = vunpack.c.l.b16 %v1850
      %v1867 = vunpack.c.l.b16 %v1851
      %v1868 = vunpack.c.l.b16 %v1852
      %v1869 = vpack.c.b16 %v1862, %v1861
      %v1870 = vpack.c.b16 %v1864, %v1863
      %v1871 = vpack.c.b16 %v1866, %v1865
      %v1872 = vpack.c.b16 %v1868, %v1867
      %v1878 = vsel %vm690, %v1841, 0
      %v1881 = vsel %vm690, %v1842, 0
      %v1884 = vsel %vm690, %v1843, 0
      %1886 = vmatpush.bf16.msra.mxu0 0
      %1887 = vmatpush.bf16.msra.mxu0 0
      %1888 = vmatpush.bf16.msra.mxu0 0
      %1889 = vmatpush.bf16.msra.mxu0 0
      %1890 = vmatpush.bf16.msra.mxu0 %v1872
      %1891 = vmatpush.bf16.msra.mxu0 %v1871
      %1892 = vmatpush.bf16.msra.mxu0 %v1870
      %1893 = vmatpush.bf16.msra.mxu0 %v1869
      %1894 = vmatmul.bf16.gmra.mxu0 %v1878
      %v1895 = vpop.f32.mrf.mxu0
      %v1896 = vadd.f32 0.0, %v1895
      %v1897 = vpop.f32.mrf.mxu0
      %v1898 = vadd.f32 0.0, %v1897
      %1899 = vmatmul.bf16.gmra.mxu0 %v1881
      %v1900 = vpop.f32.mrf.mxu0
      %v1901 = vadd.f32 0.0, %v1900
      %v1902 = vpop.f32.mrf.mxu0
      %v1903 = vadd.f32 0.0, %v1902
      %1904 = vmatmul.bf16.gmra.mxu0 %v1884
      %v1905 = vpop.f32.mrf.mxu0
      %v1906 = vadd.f32 0.0, %v1905
      %v1907 = vpop.f32.mrf.mxu0
      %1908 = vdwg.mxu0
      %v1909 = vadd.f32 %v1831, %v1896
      %v1910 = vadd.f32 %v1832, %v1898
      %v1911 = vadd.f32 %v1833, %v1901
      %v1912 = vadd.f32 %v1834, %v1903
      %v1913 = vadd.f32 %v1835, %v1906
      %v1914 = vld [vmem:[#allocation2 + $0xe] sm:$0xff]
      %v1915 = vld [vmem:[#allocation2 + $0x16] sm:$0xff]
      %v1916 = vld [vmem:[#allocation2 + $0x1e] sm:$0xff]
      %v1917 = vld [vmem:[#allocation2 + $0x26] sm:$0xff]
      %v1918 = vld [vmem:[#allocation2 + $0x2e] sm:$0xf]
      %v1919 = vpack.c.bf16 %v1915, %v1914
      %v1920 = vpack.c.bf16 %v1917, %v1916
      %v1921 = vpack.c.bf16 %v1918, %v1918
      %s1922 = scalar_lea.vmem %s4, 224
      %v1923 = vld [vmem:[%s1922] sm:$0xf]
      %v1924 = vld [vmem:[%s1922 + $0x4] sm:$0xf]
      %v1925 = vld [vmem:[%s1922 + $0x8] sm:$0xf]
      %v1926 = vld [vmem:[%s1922 + $0xc] sm:$0xf]
      %v1927 = vld [vmem:[%s1922 + $0x10] sm:$0xf]
      %v1928 = vld [vmem:[%s1922 + $0x14] sm:$0xf]
      %v1929 = vld [vmem:[%s1922 + $0x18] sm:$0xf]
      %v1930 = vld [vmem:[%s1922 + $0x1c] sm:$0xf]
      %v1939 = vunpack.c.l.b16 %v1923
      %v1940 = vunpack.c.l.b16 %v1924
      %v1941 = vunpack.c.l.b16 %v1925
      %v1942 = vunpack.c.l.b16 %v1926
      %v1943 = vunpack.c.l.b16 %v1927
      %v1944 = vunpack.c.l.b16 %v1928
      %v1945 = vunpack.c.l.b16 %v1929
      %v1946 = vunpack.c.l.b16 %v1930
      %v1947 = vpack.c.b16 %v1940, %v1939
      %v1948 = vpack.c.b16 %v1942, %v1941
      %v1949 = vpack.c.b16 %v1944, %v1943
      %v1950 = vpack.c.b16 %v1946, %v1945
      %v1956 = vsel %vm690, %v1919, 0
      %v1959 = vsel %vm690, %v1920, 0
      %v1962 = vsel %vm690, %v1921, 0
      %1964 = vmatpush.bf16.msra.mxu0 0
      %1965 = vmatpush.bf16.msra.mxu0 0
      %1966 = vmatpush.bf16.msra.mxu0 0
      %1967 = vmatpush.bf16.msra.mxu0 0
      %1968 = vmatpush.bf16.msra.mxu0 %v1950
      %1969 = vmatpush.bf16.msra.mxu0 %v1949
      %1970 = vmatpush.bf16.msra.mxu0 %v1948
      %1971 = vmatpush.bf16.msra.mxu0 %v1947
      %1972 = vmatmul.bf16.gmra.mxu0 %v1956
      %v1973 = vpop.f32.mrf.mxu0
      %v1974 = vadd.f32 0.0, %v1973
      %v1975 = vpop.f32.mrf.mxu0
      %v1976 = vadd.f32 0.0, %v1975
      %1977 = vmatmul.bf16.gmra.mxu0 %v1959
      %v1978 = vpop.f32.mrf.mxu0
      %v1979 = vadd.f32 0.0, %v1978
      %v1980 = vpop.f32.mrf.mxu0
      %v1981 = vadd.f32 0.0, %v1980
      %1982 = vmatmul.bf16.gmra.mxu0 %v1962
      %v1983 = vpop.f32.mrf.mxu0
      %v1984 = vadd.f32 0.0, %v1983
      %v1985 = vpop.f32.mrf.mxu0
      %1986 = vdwg.mxu0
      %v1987 = vadd.f32 %v1909, %v1974
      %v1988 = vadd.f32 %v1910, %v1976
      %v1989 = vadd.f32 %v1911, %v1979
      %v1990 = vadd.f32 %v1912, %v1981
      %v1991 = vadd.f32 %v1913, %v1984
      %v1992 = vld [vmem:[#allocation2 + $0xf] sm:$0xff]
      %v1993 = vld [vmem:[#allocation2 + $0x17] sm:$0xff]
      %v1994 = vld [vmem:[#allocation2 + $0x1f] sm:$0xff]
      %v1995 = vld [vmem:[#allocation2 + $0x27] sm:$0xff]
      %v1996 = vld [vmem:[#allocation2 + $0x2f] sm:$0xf]
      %v1997 = vpack.c.bf16 %v1993, %v1992
      %v1998 = vpack.c.bf16 %v1995, %v1994
      %v1999 = vpack.c.bf16 %v1996, %v1996
      %s2000 = scalar_lea.vmem %s4, 256
      %v2001 = vld [vmem:[%s2000] sm:$0xf]
      %v2002 = vld [vmem:[%s2000 + $0x4] sm:$0xf]
      %v2003 = vld [vmem:[%s2000 + $0x8] sm:$0xf]
      %v2004 = vld [vmem:[%s2000 + $0xc] sm:$0xf]
      %v2005 = vld [vmem:[%s2000 + $0x10] sm:$0xf]
      %v2006 = vld [vmem:[%s2000 + $0x14] sm:$0xf]
      %v2007 = vld [vmem:[%s2000 + $0x18] sm:$0xf]
      %v2008 = vld [vmem:[%s2000 + $0x1c] sm:$0xf]
      %v2017 = vunpack.c.l.b16 %v2001
      %v2018 = vunpack.c.l.b16 %v2002
      %v2019 = vunpack.c.l.b16 %v2003
      %v2020 = vunpack.c.l.b16 %v2004
      %v2021 = vunpack.c.l.b16 %v2005
      %v2022 = vunpack.c.l.b16 %v2006
      %v2023 = vunpack.c.l.b16 %v2007
      %v2024 = vunpack.c.l.b16 %v2008
      %v2025 = vpack.c.b16 %v2018, %v2017
      %v2026 = vpack.c.b16 %v2020, %v2019
      %v2027 = vpack.c.b16 %v2022, %v2021
      %v2028 = vpack.c.b16 %v2024, %v2023
      %v2034 = vsel %vm690, %v1997, 0
      %v2037 = vsel %vm690, %v1998, 0
      %v2040 = vsel %vm690, %v1999, 0
      %2042 = vmatpush.bf16.msra.mxu0 0
      %2043 = vmatpush.bf16.msra.mxu0 0
      %2044 = vmatpush.bf16.msra.mxu0 0
      %2045 = vmatpush.bf16.msra.mxu0 0
      %2046 = vmatpush.bf16.msra.mxu0 %v2028
      %2047 = vmatpush.bf16.msra.mxu0 %v2027
      %2048 = vmatpush.bf16.msra.mxu0 %v2026
      %2049 = vmatpush.bf16.msra.mxu0 %v2025
      %2050 = vmatmul.bf16.gmra.mxu0 %v2034
      %v2051 = vpop.f32.mrf.mxu0
      %v2052 = vadd.f32 0.0, %v2051
      %v2053 = vpop.f32.mrf.mxu0
      %v2054 = vadd.f32 0.0, %v2053
      %2055 = vmatmul.bf16.gmra.mxu0 %v2037
      %v2056 = vpop.f32.mrf.mxu0
      %v2057 = vadd.f32 0.0, %v2056
      %v2058 = vpop.f32.mrf.mxu0
      %v2059 = vadd.f32 0.0, %v2058
      %2060 = vmatmul.bf16.gmra.mxu0 %v2040
      %v2061 = vpop.f32.mrf.mxu0
      %v2062 = vadd.f32 0.0, %v2061
      %v2063 = vpop.f32.mrf.mxu0
      %2064 = vdwg.mxu0
      %v2065 = vadd.f32 %v1987, %v2052
      %v2066 = vadd.f32 %v1988, %v2054
      %v2067 = vadd.f32 %v1989, %v2057
      %v2068 = vadd.f32 %v1990, %v2059
      %v2069 = vadd.f32 %v1991, %v2062
      %v2070 = vld [vmem:[%s5] sm:$0x1]
      %v2072 = vperm.slane %v2070, 0
      %v2074 = vadd.f32 %v2065, %v2072
      %v2075 = vadd.f32 %v2066, %v2072
      %v2076 = vadd.f32 %v2067, %v2072
      %v2077 = vadd.f32 %v2068, %v2072
      %v2078 = vadd.f32 %v2069, %v2072
      %v2079 = vmul.f32 %v2074, %v1342
      %v2080 = vmul.f32 %v2075, %v1347
      %v2081 = vmul.f32 %v2076, %v1352
      %v2082 = vmul.f32 %v2077, %v1357
      %v2083 = vmul.f32 %v2078, %v1362
      %v2084 = vmax.f32 %v2079, 0.0
      %v2085 = vmax.f32 %v2080, 0.0
      %v2086 = vmax.f32 %v2081, 0.0
      %v2087 = vmax.f32 %v2082, 0.0
      %v2088 = vmax.f32 %v2083, 0.0
      %vm2089 = vcmask 261120
      %2090 = vst.msk [vmem:[#allocation2 + $0x8] sm:$0xff] %vm2089, %v2084
      %2091 = vst.msk [vmem:[#allocation2 + $0x10] sm:$0xff] %vm2089, %v2085
      %2092 = vst.msk [vmem:[#allocation2 + $0x18] sm:$0xff] %vm2089, %v2086
      %2093 = vst.msk [vmem:[#allocation2 + $0x20] sm:$0xff] %vm2089, %v2087
      %vm2094 = vcmask 257024
      %2095 = vst.msk [vmem:[#allocation2 + $0x28] sm:$0xf] %vm2094, %v2088
      %v2096 = vld [vmem:[#allocation2 + $0x1] sm:$0xff]
      %v2097 = vld [vmem:[#allocation2 + $0x9] sm:$0xff]
      %v2098 = vld [vmem:[#allocation2 + $0x11] sm:$0xff]
      %v2099 = vld [vmem:[#allocation2 + $0x19] sm:$0xff]
      %v2100 = vld [vmem:[#allocation2 + $0x21] sm:$0xf]
      %v2101 = vpack.c.bf16 %v2097, %v2096
      %v2102 = vpack.c.bf16 %v2099, %v2098
      %v2103 = vpack.c.bf16 %v2100, %v2100
      %v2104 = vld [vmem:[%s6] sm:$0xf]
      %v2105 = vld [vmem:[%s6 + $0x4] sm:$0xf]
      %v2106 = vld [vmem:[%s6 + $0x8] sm:$0xf]
      %v2107 = vld [vmem:[%s6 + $0xc] sm:$0xf]
      %v2108 = vld [vmem:[#allocation2 + $0x2] sm:$0xff]
      %v2109 = vld [vmem:[#allocation2 + $0xa] sm:$0xff]
      %v2110 = vld [vmem:[#allocation2 + $0x12] sm:$0xff]
      %v2111 = vld [vmem:[#allocation2 + $0x1a] sm:$0xff]
      %v2112 = vld [vmem:[#allocation2 + $0x22] sm:$0xf]
      %v2113 = vpack.c.bf16 %v2109, %v2108
      %v2114 = vpack.c.bf16 %v2111, %v2110
      %v2115 = vpack.c.bf16 %v2112, %v2112
      %s2116 = scalar_lea.vmem %s6, 16
      %v2117 = vld [vmem:[%s2116] sm:$0xf]
      %v2118 = vld [vmem:[%s2116 + $0x4] sm:$0xf]
      %v2119 = vld [vmem:[%s2116 + $0x8] sm:$0xf]
      %v2120 = vld [vmem:[%s2116 + $0xc] sm:$0xf]
      %v2125 = vunpack.c.l.b16 %v2117
      %v2126 = vunpack.c.l.b16 %v2118
      %v2127 = vunpack.c.l.b16 %v2119
      %v2128 = vunpack.c.l.b16 %v2120
      %v2129 = vpack.c.b16 %v2126, %v2125
      %v2130 = vpack.c.b16 %v2128, %v2127
      %v2134 = vsel %vm2089, %v2113, 0
      %v2137 = vsel %vm2089, %v2114, 0
      %v2140 = vsel %vm2089, %v2115, 0
      %2142 = vmatpush.bf16.msra.mxu0 0
      %2143 = vmatpush.bf16.msra.mxu0 0
      %2144 = vmatpush.bf16.msra.mxu0 0
      %2145 = vmatpush.bf16.msra.mxu0 0
      %2146 = vmatpush.bf16.msra.mxu0 0
      %2147 = vmatpush.bf16.msra.mxu0 0
      %2148 = vmatpush.bf16.msra.mxu0 %v2130
      %2149 = vmatpush.bf16.msra.mxu0 %v2129
      %2150 = vmatmul.bf16.gmra.mxu0 %v2134
      %v2151 = vpop.f32.mrf.mxu0
      %v2152 = vadd.f32 0.0, %v2151
      %v2153 = vpop.f32.mrf.mxu0
      %v2154 = vadd.f32 0.0, %v2153
      %2155 = vmatmul.bf16.gmra.mxu0 %v2137
      %v2156 = vpop.f32.mrf.mxu0
      %v2157 = vadd.f32 0.0, %v2156
      %v2158 = vpop.f32.mrf.mxu0
      %v2159 = vadd.f32 0.0, %v2158
      %2160 = vmatmul.bf16.gmra.mxu0 %v2140
      %v2161 = vpop.f32.mrf.mxu0
      %v2162 = vadd.f32 0.0, %v2161
      %v2163 = vpop.f32.mrf.mxu0
      %2164 = vdwg.mxu0
      %v2169 = vunpack.c.l.b16 %v2104
      %v2170 = vunpack.c.l.b16 %v2105
      %v2171 = vunpack.c.l.b16 %v2106
      %v2172 = vunpack.c.l.b16 %v2107
      %v2173 = vpack.c.b16 %v2170, %v2169
      %v2174 = vpack.c.b16 %v2172, %v2171
      %v2178 = vsel %vm2089, %v2101, 0
      %v2181 = vsel %vm2089, %v2102, 0
      %v2184 = vsel %vm2089, %v2103, 0
      %2186 = vmatpush.bf16.msra.mxu0 0
      %2187 = vmatpush.bf16.msra.mxu0 0
      %2188 = vmatpush.bf16.msra.mxu0 0
      %2189 = vmatpush.bf16.msra.mxu0 0
      %2190 = vmatpush.bf16.msra.mxu0 0
      %2191 = vmatpush.bf16.msra.mxu0 0
      %2192 = vmatpush.bf16.msra.mxu0 %v2174
      %2193 = vmatpush.bf16.msra.mxu0 %v2173
      %2194 = vmatmul.bf16.gmra.mxu0 %v2178
      %v2195 = vpop.f32.mrf.mxu0
      %v2196 = vadd.f32 %v2152, %v2195
      %v2197 = vpop.f32.mrf.mxu0
      %v2198 = vadd.f32 %v2154, %v2197
      %2199 = vmatmul.bf16.gmra.mxu0 %v2181
      %v2200 = vpop.f32.mrf.mxu0
      %v2201 = vadd.f32 %v2157, %v2200
      %v2202 = vpop.f32.mrf.mxu0
      %v2203 = vadd.f32 %v2159, %v2202
      %2204 = vmatmul.bf16.gmra.mxu0 %v2184
      %v2205 = vpop.f32.mrf.mxu0
      %v2206 = vadd.f32 %v2162, %v2205
      %v2207 = vpop.f32.mrf.mxu0
      %2208 = vdwg.mxu0
      %v2209 = vld [vmem:[#allocation2 + $0x3] sm:$0xff]
      %v2210 = vld [vmem:[#allocation2 + $0xb] sm:$0xff]
      %v2211 = vld [vmem:[#allocation2 + $0x13] sm:$0xff]
      %v2212 = vld [vmem:[#allocation2 + $0x1b] sm:$0xff]
      %v2213 = vld [vmem:[#allocation2 + $0x23] sm:$0xf]
      %v2214 = vpack.c.bf16 %v2210, %v2209
      %v2215 = vpack.c.bf16 %v2212, %v2211
      %v2216 = vpack.c.bf16 %v2213, %v2213
      %s2217 = scalar_lea.vmem %s6, 32
      %v2218 = vld [vmem:[%s2217] sm:$0xf]
      %v2219 = vld [vmem:[%s2217 + $0x4] sm:$0xf]
      %v2220 = vld [vmem:[%s2217 + $0x8] sm:$0xf]
      %v2221 = vld [vmem:[%s2217 + $0xc] sm:$0xf]
      %v2226 = vunpack.c.l.b16 %v2218
      %v2227 = vunpack.c.l.b16 %v2219
      %v2228 = vunpack.c.l.b16 %v2220
      %v2229 = vunpack.c.l.b16 %v2221
      %v2230 = vpack.c.b16 %v2227, %v2226
      %v2231 = vpack.c.b16 %v2229, %v2228
      %v2235 = vsel %vm2089, %v2214, 0
      %v2238 = vsel %vm2089, %v2215, 0
      %v2241 = vsel %vm2089, %v2216, 0
      %2243 = vmatpush.bf16.msra.mxu0 0
      %2244 = vmatpush.bf16.msra.mxu0 0
      %2245 = vmatpush.bf16.msra.mxu0 0
      %2246 = vmatpush.bf16.msra.mxu0 0
      %2247 = vmatpush.bf16.msra.mxu0 0
      %2248 = vmatpush.bf16.msra.mxu0 0
      %2249 = vmatpush.bf16.msra.mxu0 %v2231
      %2250 = vmatpush.bf16.msra.mxu0 %v2230
      %2251 = vmatmul.bf16.gmra.mxu0 %v2235
      %v2252 = vpop.f32.mrf.mxu0
      %v2253 = vadd.f32 0.0, %v2252
      %v2254 = vpop.f32.mrf.mxu0
      %v2255 = vadd.f32 0.0, %v2254
      %2256 = vmatmul.bf16.gmra.mxu0 %v2238
      %v2257 = vpop.f32.mrf.mxu0
      %v2258 = vadd.f32 0.0, %v2257
      %v2259 = vpop.f32.mrf.mxu0
      %v2260 = vadd.f32 0.0, %v2259
      %2261 = vmatmul.bf16.gmra.mxu0 %v2241
      %v2262 = vpop.f32.mrf.mxu0
      %v2263 = vadd.f32 0.0, %v2262
      %v2264 = vpop.f32.mrf.mxu0
      %2265 = vdwg.mxu0
      %v2266 = vadd.f32 %v2196, %v2253
      %v2267 = vadd.f32 %v2198, %v2255
      %v2268 = vadd.f32 %v2201, %v2258
      %v2269 = vadd.f32 %v2203, %v2260
      %v2270 = vadd.f32 %v2206, %v2263
      %v2271 = vld [vmem:[#allocation2 + $0x7] sm:$0xff]
      %v2272 = vld [vmem:[#allocation2 + $0xf] sm:$0xff]
      %v2273 = vld [vmem:[#allocation2 + $0x17] sm:$0xff]
      %v2274 = vld [vmem:[#allocation2 + $0x1f] sm:$0xff]
      %v2275 = vld [vmem:[#allocation2 + $0x27] sm:$0xf]
      %v2276 = vpack.c.bf16 %v2272, %v2271
      %v2277 = vpack.c.bf16 %v2274, %v2273
      %v2278 = vpack.c.bf16 %v2275, %v2275
      %s2279 = scalar_lea.vmem %s6, 48
      %v2280 = vld [vmem:[%s2279] sm:$0xf]
      %v2281 = vld [vmem:[%s2279 + $0x4] sm:$0xf]
      %v2282 = vld [vmem:[%s2279 + $0x8] sm:$0xf]
      %v2283 = vld [vmem:[%s2279 + $0xc] sm:$0xf]
      %v2288 = vunpack.c.l.b16 %v2280
      %v2289 = vunpack.c.l.b16 %v2281
      %v2290 = vunpack.c.l.b16 %v2282
      %v2291 = vunpack.c.l.b16 %v2283
      %v2292 = vpack.c.b16 %v2289, %v2288
      %v2293 = vpack.c.b16 %v2291, %v2290
      %v2297 = vsel %vm2089, %v2276, 0
      %v2300 = vsel %vm2089, %v2277, 0
      %v2303 = vsel %vm2089, %v2278, 0
      %2305 = vmatpush.bf16.msra.mxu0 0
      %2306 = vmatpush.bf16.msra.mxu0 0
      %2307 = vmatpush.bf16.msra.mxu0 0
      %2308 = vmatpush.bf16.msra.mxu0 0
      %2309 = vmatpush.bf16.msra.mxu0 0
      %2310 = vmatpush.bf16.msra.mxu0 0
      %2311 = vmatpush.bf16.msra.mxu0 %v2293
      %2312 = vmatpush.bf16.msra.mxu0 %v2292
      %2313 = vmatmul.bf16.gmra.mxu0 %v2297
      %v2314 = vpop.f32.mrf.mxu0
      %v2315 = vadd.f32 0.0, %v2314
      %v2316 = vpop.f32.mrf.mxu0
      %v2317 = vadd.f32 0.0, %v2316
      %2318 = vmatmul.bf16.gmra.mxu0 %v2300
      %v2319 = vpop.f32.mrf.mxu0
      %v2320 = vadd.f32 0.0, %v2319
      %v2321 = vpop.f32.mrf.mxu0
      %v2322 = vadd.f32 0.0, %v2321
      %2323 = vmatmul.bf16.gmra.mxu0 %v2303
      %v2324 = vpop.f32.mrf.mxu0
      %v2325 = vadd.f32 0.0, %v2324
      %v2326 = vpop.f32.mrf.mxu0
      %2327 = vdwg.mxu0
      %v2328 = vadd.f32 %v2266, %v2315
      %v2329 = vadd.f32 %v2267, %v2317
      %v2330 = vadd.f32 %v2268, %v2320
      %v2331 = vadd.f32 %v2269, %v2322
      %v2332 = vadd.f32 %v2270, %v2325
      %v2333 = vld [vmem:[#allocation2 + $0x8] sm:$0xff]
      %v2334 = vld [vmem:[#allocation2 + $0x10] sm:$0xff]
      %v2335 = vld [vmem:[#allocation2 + $0x18] sm:$0xff]
      %v2336 = vld [vmem:[#allocation2 + $0x20] sm:$0xff]
      %v2337 = vld [vmem:[#allocation2 + $0x28] sm:$0xf]
      %v2338 = vpack.c.bf16 %v2334, %v2333
      %v2339 = vpack.c.bf16 %v2336, %v2335
      %v2340 = vpack.c.bf16 %v2337, %v2337
      %s2341 = scalar_lea.vmem %s6, 64
      %v2342 = vld [vmem:[%s2341] sm:$0xf]
      %v2343 = vld [vmem:[%s2341 + $0x4] sm:$0xf]
      %v2344 = vld [vmem:[%s2341 + $0x8] sm:$0xf]
      %v2345 = vld [vmem:[%s2341 + $0xc] sm:$0xf]
      %v2350 = vunpack.c.l.b16 %v2342
      %v2351 = vunpack.c.l.b16 %v2343
      %v2352 = vunpack.c.l.b16 %v2344
      %v2353 = vunpack.c.l.b16 %v2345
      %v2354 = vpack.c.b16 %v2351, %v2350
      %v2355 = vpack.c.b16 %v2353, %v2352
      %v2359 = vsel %vm2089, %v2338, 0
      %v2362 = vsel %vm2089, %v2339, 0
      %v2365 = vsel %vm2089, %v2340, 0
      %2367 = vmatpush.bf16.msra.mxu0 0
      %2368 = vmatpush.bf16.msra.mxu0 0
      %2369 = vmatpush.bf16.msra.mxu0 0
      %2370 = vmatpush.bf16.msra.mxu0 0
      %2371 = vmatpush.bf16.msra.mxu0 0
      %2372 = vmatpush.bf16.msra.mxu0 0
      %2373 = vmatpush.bf16.msra.mxu0 %v2355
      %2374 = vmatpush.bf16.msra.mxu0 %v2354
      %2375 = vmatmul.bf16.gmra.mxu0 %v2359
      %v2376 = vpop.f32.mrf.mxu0
      %v2377 = vadd.f32 0.0, %v2376
      %v2378 = vpop.f32.mrf.mxu0
      %v2379 = vadd.f32 0.0, %v2378
      %2380 = vmatmul.bf16.gmra.mxu0 %v2362
      %v2381 = vpop.f32.mrf.mxu0
      %v2382 = vadd.f32 0.0, %v2381
      %v2383 = vpop.f32.mrf.mxu0
      %v2384 = vadd.f32 0.0, %v2383
      %2385 = vmatmul.bf16.gmra.mxu0 %v2365
      %v2386 = vpop.f32.mrf.mxu0
      %v2387 = vadd.f32 0.0, %v2386
      %v2388 = vpop.f32.mrf.mxu0
      %2389 = vdwg.mxu0
      %v2390 = vadd.f32 %v2328, %v2377
      %v2391 = vadd.f32 %v2329, %v2379
      %v2392 = vadd.f32 %v2330, %v2382
      %v2393 = vadd.f32 %v2331, %v2384
      %v2394 = vadd.f32 %v2332, %v2387
      %v2395 = vld [vmem:[#allocation2 + $0x9] sm:$0xff]
      %v2396 = vld [vmem:[#allocation2 + $0x11] sm:$0xff]
      %v2397 = vld [vmem:[#allocation2 + $0x19] sm:$0xff]
      %v2398 = vld [vmem:[#allocation2 + $0x21] sm:$0xff]
      %v2399 = vld [vmem:[#allocation2 + $0x29] sm:$0xf]
      %v2400 = vpack.c.bf16 %v2396, %v2395
      %v2401 = vpack.c.bf16 %v2398, %v2397
      %v2402 = vpack.c.bf16 %v2399, %v2399
      %s2403 = scalar_lea.vmem %s6, 80
      %v2404 = vld [vmem:[%s2403] sm:$0xf]
      %v2405 = vld [vmem:[%s2403 + $0x4] sm:$0xf]
      %v2406 = vld [vmem:[%s2403 + $0x8] sm:$0xf]
      %v2407 = vld [vmem:[%s2403 + $0xc] sm:$0xf]
      %v2412 = vunpack.c.l.b16 %v2404
      %v2413 = vunpack.c.l.b16 %v2405
      %v2414 = vunpack.c.l.b16 %v2406
      %v2415 = vunpack.c.l.b16 %v2407
      %v2416 = vpack.c.b16 %v2413, %v2412
      %v2417 = vpack.c.b16 %v2415, %v2414
      %v2421 = vsel %vm2089, %v2400, 0
      %v2424 = vsel %vm2089, %v2401, 0
      %v2427 = vsel %vm2089, %v2402, 0
      %2429 = vmatpush.bf16.msra.mxu0 0
      %2430 = vmatpush.bf16.msra.mxu0 0
      %2431 = vmatpush.bf16.msra.mxu0 0
      %2432 = vmatpush.bf16.msra.mxu0 0
      %2433 = vmatpush.bf16.msra.mxu0 0
      %2434 = vmatpush.bf16.msra.mxu0 0
      %2435 = vmatpush.bf16.msra.mxu0 %v2417
      %2436 = vmatpush.bf16.msra.mxu0 %v2416
      %2437 = vmatmul.bf16.gmra.mxu0 %v2421
      %v2438 = vpop.f32.mrf.mxu0
      %v2439 = vadd.f32 0.0, %v2438
      %v2440 = vpop.f32.mrf.mxu0
      %v2441 = vadd.f32 0.0, %v2440
      %2442 = vmatmul.bf16.gmra.mxu0 %v2424
      %v2443 = vpop.f32.mrf.mxu0
      %v2444 = vadd.f32 0.0, %v2443
      %v2445 = vpop.f32.mrf.mxu0
      %v2446 = vadd.f32 0.0, %v2445
      %2447 = vmatmul.bf16.gmra.mxu0 %v2427
      %v2448 = vpop.f32.mrf.mxu0
      %v2449 = vadd.f32 0.0, %v2448
      %v2450 = vpop.f32.mrf.mxu0
      %2451 = vdwg.mxu0
      %v2452 = vadd.f32 %v2390, %v2439
      %v2453 = vadd.f32 %v2391, %v2441
      %v2454 = vadd.f32 %v2392, %v2444
      %v2455 = vadd.f32 %v2393, %v2446
      %v2456 = vadd.f32 %v2394, %v2449
      %v2457 = vld [vmem:[#allocation2 + $0xd] sm:$0xff]
      %v2458 = vld [vmem:[#allocation2 + $0x15] sm:$0xff]
      %v2459 = vld [vmem:[#allocation2 + $0x1d] sm:$0xff]
      %v2460 = vld [vmem:[#allocation2 + $0x25] sm:$0xff]
      %v2461 = vld [vmem:[#allocation2 + $0x2d] sm:$0xf]
      %v2462 = vpack.c.bf16 %v2458, %v2457
      %v2463 = vpack.c.bf16 %v2460, %v2459
      %v2464 = vpack.c.bf16 %v2461, %v2461
      %s2465 = scalar_lea.vmem %s6, 96
      %v2466 = vld [vmem:[%s2465] sm:$0xf]
      %v2467 = vld [vmem:[%s2465 + $0x4] sm:$0xf]
      %v2468 = vld [vmem:[%s2465 + $0x8] sm:$0xf]
      %v2469 = vld [vmem:[%s2465 + $0xc] sm:$0xf]
      %v2474 = vunpack.c.l.b16 %v2466
      %v2475 = vunpack.c.l.b16 %v2467
      %v2476 = vunpack.c.l.b16 %v2468
      %v2477 = vunpack.c.l.b16 %v2469
      %v2478 = vpack.c.b16 %v2475, %v2474
      %v2479 = vpack.c.b16 %v2477, %v2476
      %v2483 = vsel %vm2089, %v2462, 0
      %v2486 = vsel %vm2089, %v2463, 0
      %v2489 = vsel %vm2089, %v2464, 0
      %2491 = vmatpush.bf16.msra.mxu0 0
      %2492 = vmatpush.bf16.msra.mxu0 0
      %2493 = vmatpush.bf16.msra.mxu0 0
      %2494 = vmatpush.bf16.msra.mxu0 0
      %2495 = vmatpush.bf16.msra.mxu0 0
      %2496 = vmatpush.bf16.msra.mxu0 0
      %2497 = vmatpush.bf16.msra.mxu0 %v2479
      %2498 = vmatpush.bf16.msra.mxu0 %v2478
      %2499 = vmatmul.bf16.gmra.mxu0 %v2483
      %v2500 = vpop.f32.mrf.mxu0
      %v2501 = vadd.f32 0.0, %v2500
      %v2502 = vpop.f32.mrf.mxu0
      %v2503 = vadd.f32 0.0, %v2502
      %2504 = vmatmul.bf16.gmra.mxu0 %v2486
      %v2505 = vpop.f32.mrf.mxu0
      %v2506 = vadd.f32 0.0, %v2505
      %v2507 = vpop.f32.mrf.mxu0
      %v2508 = vadd.f32 0.0, %v2507
      %2509 = vmatmul.bf16.gmra.mxu0 %v2489
      %v2510 = vpop.f32.mrf.mxu0
      %v2511 = vadd.f32 0.0, %v2510
      %v2512 = vpop.f32.mrf.mxu0
      %2513 = vdwg.mxu0
      %v2514 = vadd.f32 %v2452, %v2501
      %v2515 = vadd.f32 %v2453, %v2503
      %v2516 = vadd.f32 %v2454, %v2506
      %v2517 = vadd.f32 %v2455, %v2508
      %v2518 = vadd.f32 %v2456, %v2511
      %v2519 = vld [vmem:[#allocation2 + $0xe] sm:$0xff]
      %v2520 = vld [vmem:[#allocation2 + $0x16] sm:$0xff]
      %v2521 = vld [vmem:[#allocation2 + $0x1e] sm:$0xff]
      %v2522 = vld [vmem:[#allocation2 + $0x26] sm:$0xff]
      %v2523 = vld [vmem:[#allocation2 + $0x2e] sm:$0xf]
      %v2524 = vpack.c.bf16 %v2520, %v2519
      %v2525 = vpack.c.bf16 %v2522, %v2521
      %v2526 = vpack.c.bf16 %v2523, %v2523
      %s2527 = scalar_lea.vmem %s6, 112
      %v2528 = vld [vmem:[%s2527] sm:$0xf]
      %v2529 = vld [vmem:[%s2527 + $0x4] sm:$0xf]
      %v2530 = vld [vmem:[%s2527 + $0x8] sm:$0xf]
      %v2531 = vld [vmem:[%s2527 + $0xc] sm:$0xf]
      %v2536 = vunpack.c.l.b16 %v2528
      %v2537 = vunpack.c.l.b16 %v2529
      %v2538 = vunpack.c.l.b16 %v2530
      %v2539 = vunpack.c.l.b16 %v2531
      %v2540 = vpack.c.b16 %v2537, %v2536
      %v2541 = vpack.c.b16 %v2539, %v2538
      %v2545 = vsel %vm2089, %v2524, 0
      %v2548 = vsel %vm2089, %v2525, 0
      %v2551 = vsel %vm2089, %v2526, 0
      %2553 = vmatpush.bf16.msra.mxu0 0
      %2554 = vmatpush.bf16.msra.mxu0 0
      %2555 = vmatpush.bf16.msra.mxu0 0
      %2556 = vmatpush.bf16.msra.mxu0 0
      %2557 = vmatpush.bf16.msra.mxu0 0
      %2558 = vmatpush.bf16.msra.mxu0 0
      %2559 = vmatpush.bf16.msra.mxu0 %v2541
      %2560 = vmatpush.bf16.msra.mxu0 %v2540
      %2561 = vmatmul.bf16.gmra.mxu0 %v2545
      %v2562 = vpop.f32.mrf.mxu0
      %v2563 = vadd.f32 0.0, %v2562
      %v2564 = vpop.f32.mrf.mxu0
      %v2565 = vadd.f32 0.0, %v2564
      %2566 = vmatmul.bf16.gmra.mxu0 %v2548
      %v2567 = vpop.f32.mrf.mxu0
      %v2568 = vadd.f32 0.0, %v2567
      %v2569 = vpop.f32.mrf.mxu0
      %v2570 = vadd.f32 0.0, %v2569
      %2571 = vmatmul.bf16.gmra.mxu0 %v2551
      %v2572 = vpop.f32.mrf.mxu0
      %v2573 = vadd.f32 0.0, %v2572
      %v2574 = vpop.f32.mrf.mxu0
      %2575 = vdwg.mxu0
      %v2576 = vadd.f32 %v2514, %v2563
      %v2577 = vadd.f32 %v2515, %v2565
      %v2578 = vadd.f32 %v2516, %v2568
      %v2579 = vadd.f32 %v2517, %v2570
      %v2580 = vadd.f32 %v2518, %v2573
      %v2581 = vld [vmem:[#allocation2 + $0xf] sm:$0xff]
      %v2582 = vld [vmem:[#allocation2 + $0x17] sm:$0xff]
      %v2583 = vld [vmem:[#allocation2 + $0x1f] sm:$0xff]
      %v2584 = vld [vmem:[#allocation2 + $0x27] sm:$0xff]
      %v2585 = vld [vmem:[#allocation2 + $0x2f] sm:$0xf]
      %v2586 = vpack.c.bf16 %v2582, %v2581
      %v2587 = vpack.c.bf16 %v2584, %v2583
      %v2588 = vpack.c.bf16 %v2585, %v2585
      %s2589 = scalar_lea.vmem %s6, 128
      %v2590 = vld [vmem:[%s2589] sm:$0xf]
      %v2591 = vld [vmem:[%s2589 + $0x4] sm:$0xf]
      %v2592 = vld [vmem:[%s2589 + $0x8] sm:$0xf]
      %v2593 = vld [vmem:[%s2589 + $0xc] sm:$0xf]
      %v2598 = vunpack.c.l.b16 %v2590
      %v2599 = vunpack.c.l.b16 %v2591
      %v2600 = vunpack.c.l.b16 %v2592
      %v2601 = vunpack.c.l.b16 %v2593
      %v2602 = vpack.c.b16 %v2599, %v2598
      %v2603 = vpack.c.b16 %v2601, %v2600
      %v2607 = vsel %vm2089, %v2586, 0
      %v2610 = vsel %vm2089, %v2587, 0
      %v2613 = vsel %vm2089, %v2588, 0
      %2615 = vmatpush.bf16.msra.mxu0 0
      %2616 = vmatpush.bf16.msra.mxu0 0
      %2617 = vmatpush.bf16.msra.mxu0 0
      %2618 = vmatpush.bf16.msra.mxu0 0
      %2619 = vmatpush.bf16.msra.mxu0 0
      %2620 = vmatpush.bf16.msra.mxu0 0
      %2621 = vmatpush.bf16.msra.mxu0 %v2603
      %2622 = vmatpush.bf16.msra.mxu0 %v2602
      %2623 = vmatmul.bf16.gmra.mxu0 %v2607
      %v2624 = vpop.f32.mrf.mxu0
      %v2625 = vadd.f32 0.0, %v2624
      %v2626 = vpop.f32.mrf.mxu0
      %v2627 = vadd.f32 0.0, %v2626
      %2628 = vmatmul.bf16.gmra.mxu0 %v2610
      %v2629 = vpop.f32.mrf.mxu0
      %v2630 = vadd.f32 0.0, %v2629
      %v2631 = vpop.f32.mrf.mxu0
      %v2632 = vadd.f32 0.0, %v2631
      %2633 = vmatmul.bf16.gmra.mxu0 %v2613
      %v2634 = vpop.f32.mrf.mxu0
      %v2635 = vadd.f32 0.0, %v2634
      %v2636 = vpop.f32.mrf.mxu0
      %2637 = vdwg.mxu0
      %v2638 = vadd.f32 %v2576, %v2625
      %v2639 = vadd.f32 %v2577, %v2627
      %v2640 = vadd.f32 %v2578, %v2630
      %v2641 = vadd.f32 %v2579, %v2632
      %v2642 = vadd.f32 %v2580, %v2635
      %v2643 = vld [vmem:[%s7] sm:$0x1]
      %v2645 = vperm.slane %v2643, 0
      %v2647 = vadd.f32 %v2638, %v2645
      %v2648 = vadd.f32 %v2639, %v2645
      %v2649 = vadd.f32 %v2640, %v2645
      %v2650 = vadd.f32 %v2641, %v2645
      %v2651 = vadd.f32 %v2642, %v2645
      %v2652 = vmul.f32 %v2647, %v1342
      %v2653 = vmul.f32 %v2648, %v1347
      %v2654 = vmul.f32 %v2649, %v1352
      %v2655 = vmul.f32 %v2650, %v1357
      %v2656 = vmul.f32 %v2651, %v1362
      %v2657 = vmax.f32 %v2652, 0.0
      %v2658 = vmax.f32 %v2653, 0.0
      %v2659 = vmax.f32 %v2654, 0.0
      %v2660 = vmax.f32 %v2655, 0.0
      %v2661 = vmax.f32 %v2656, 0.0
      %2662 = vst.msk [vmem:[#allocation2 + $0x8] sm:$0xff] %vm2089, %v2657
      %2663 = vst.msk [vmem:[#allocation2 + $0x10] sm:$0xff] %vm2089, %v2658
      %2664 = vst.msk [vmem:[#allocation2 + $0x18] sm:$0xff] %vm2089, %v2659
      %2665 = vst.msk [vmem:[#allocation2 + $0x20] sm:$0xff] %vm2089, %v2660
      %2666 = vst.msk [vmem:[#allocation2 + $0x28] sm:$0xf] %vm2094, %v2661
      %v2667 = vld [vmem:[#allocation2 + $0x1] sm:$0xff]
      %v2668 = vld [vmem:[#allocation2 + $0x9] sm:$0xff]
      %v2669 = vld [vmem:[#allocation2 + $0x11] sm:$0xff]
      %v2670 = vld [vmem:[#allocation2 + $0x19] sm:$0xff]
      %v2671 = vld [vmem:[#allocation2 + $0x21] sm:$0xf]
      %v2672 = vpack.c.bf16 %v2668, %v2667
      %v2673 = vpack.c.bf16 %v2670, %v2669
      %v2674 = vpack.c.bf16 %v2671, %v2671
      %v2675 = vld [vmem:[%s8] sm:$0xf]
      %v2676 = vld [vmem:[%s8 + $0x4] sm:$0xf]
      %v2677 = vld [vmem:[%s8 + $0x8] sm:$0xf]
      %v2678 = vld [vmem:[%s8 + $0xc] sm:$0xf]
      %v2679 = vld [vmem:[#allocation2 + $0x2] sm:$0xff]
      %v2680 = vld [vmem:[#allocation2 + $0xa] sm:$0xff]
      %v2681 = vld [vmem:[#allocation2 + $0x12] sm:$0xff]
      %v2682 = vld [vmem:[#allocation2 + $0x1a] sm:$0xff]
      %v2683 = vld [vmem:[#allocation2 + $0x22] sm:$0xf]
      %v2684 = vpack.c.bf16 %v2680, %v2679
      %v2685 = vpack.c.bf16 %v2682, %v2681
      %v2686 = vpack.c.bf16 %v2683, %v2683
      %s2687 = scalar_lea.vmem %s8, 16
      %v2688 = vld [vmem:[%s2687] sm:$0xf]
      %v2689 = vld [vmem:[%s2687 + $0x4] sm:$0xf]
      %v2690 = vld [vmem:[%s2687 + $0x8] sm:$0xf]
      %v2691 = vld [vmem:[%s2687 + $0xc] sm:$0xf]
      %v2696 = vunpack.c.l.b16 %v2688
      %v2697 = vunpack.c.l.b16 %v2689
      %v2698 = vunpack.c.l.b16 %v2690
      %v2699 = vunpack.c.l.b16 %v2691
      %v2700 = vpack.c.b16 %v2697, %v2696
      %v2701 = vpack.c.b16 %v2699, %v2698
      %v2705 = vsel %vm2089, %v2684, 0
      %v2708 = vsel %vm2089, %v2685, 0
      %v2711 = vsel %vm2089, %v2686, 0
      %2713 = vmatpush.bf16.msra.mxu0 0
      %2714 = vmatpush.bf16.msra.mxu0 0
      %2715 = vmatpush.bf16.msra.mxu0 0
      %2716 = vmatpush.bf16.msra.mxu0 0
      %2717 = vmatpush.bf16.msra.mxu0 0
      %2718 = vmatpush.bf16.msra.mxu0 0
      %2719 = vmatpush.bf16.msra.mxu0 %v2701
      %2720 = vmatpush.bf16.msra.mxu0 %v2700
      %2721 = vmatmul.bf16.gmra.mxu0 %v2705
      %v2722 = vpop.f32.mrf.mxu0
      %v2723 = vadd.f32 0.0, %v2722
      %v2724 = vpop.f32.mrf.mxu0
      %v2725 = vadd.f32 0.0, %v2724
      %2726 = vmatmul.bf16.gmra.mxu0 %v2708
      %v2727 = vpop.f32.mrf.mxu0
      %v2728 = vadd.f32 0.0, %v2727
      %v2729 = vpop.f32.mrf.mxu0
      %v2730 = vadd.f32 0.0, %v2729
      %2731 = vmatmul.bf16.gmra.mxu0 %v2711
      %v2732 = vpop.f32.mrf.mxu0
      %v2733 = vadd.f32 0.0, %v2732
      %v2734 = vpop.f32.mrf.mxu0
      %2735 = vdwg.mxu0
      %v2740 = vunpack.c.l.b16 %v2675
      %v2741 = vunpack.c.l.b16 %v2676
      %v2742 = vunpack.c.l.b16 %v2677
      %v2743 = vunpack.c.l.b16 %v2678
      %v2744 = vpack.c.b16 %v2741, %v2740
      %v2745 = vpack.c.b16 %v2743, %v2742
      %v2749 = vsel %vm2089, %v2672, 0
      %v2752 = vsel %vm2089, %v2673, 0
      %v2755 = vsel %vm2089, %v2674, 0
      %2757 = vmatpush.bf16.msra.mxu0 0
      %2758 = vmatpush.bf16.msra.mxu0 0
      %2759 = vmatpush.bf16.msra.mxu0 0
      %2760 = vmatpush.bf16.msra.mxu0 0
      %2761 = vmatpush.bf16.msra.mxu0 0
      %2762 = vmatpush.bf16.msra.mxu0 0
      %2763 = vmatpush.bf16.msra.mxu0 %v2745
      %2764 = vmatpush.bf16.msra.mxu0 %v2744
      %2765 = vmatmul.bf16.gmra.mxu0 %v2749
      %v2766 = vpop.f32.mrf.mxu0
      %v2767 = vadd.f32 %v2723, %v2766
      %v2768 = vpop.f32.mrf.mxu0
      %v2769 = vadd.f32 %v2725, %v2768
      %2770 = vmatmul.bf16.gmra.mxu0 %v2752
      %v2771 = vpop.f32.mrf.mxu0
      %v2772 = vadd.f32 %v2728, %v2771
      %v2773 = vpop.f32.mrf.mxu0
      %v2774 = vadd.f32 %v2730, %v2773
      %2775 = vmatmul.bf16.gmra.mxu0 %v2755
      %v2776 = vpop.f32.mrf.mxu0
      %v2777 = vadd.f32 %v2733, %v2776
      %v2778 = vpop.f32.mrf.mxu0
      %2779 = vdwg.mxu0
      %v2780 = vld [vmem:[#allocation2 + $0x3] sm:$0xff]
      %v2781 = vld [vmem:[#allocation2 + $0xb] sm:$0xff]
      %v2782 = vld [vmem:[#allocation2 + $0x13] sm:$0xff]
      %v2783 = vld [vmem:[#allocation2 + $0x1b] sm:$0xff]
      %v2784 = vld [vmem:[#allocation2 + $0x23] sm:$0xf]
      %v2785 = vpack.c.bf16 %v2781, %v2780
      %v2786 = vpack.c.bf16 %v2783, %v2782
      %v2787 = vpack.c.bf16 %v2784, %v2784
      %s2788 = scalar_lea.vmem %s8, 32
      %v2789 = vld [vmem:[%s2788] sm:$0xf]
      %v2790 = vld [vmem:[%s2788 + $0x4] sm:$0xf]
      %v2791 = vld [vmem:[%s2788 + $0x8] sm:$0xf]
      %v2792 = vld [vmem:[%s2788 + $0xc] sm:$0xf]
      %v2797 = vunpack.c.l.b16 %v2789
      %v2798 = vunpack.c.l.b16 %v2790
      %v2799 = vunpack.c.l.b16 %v2791
      %v2800 = vunpack.c.l.b16 %v2792
      %v2801 = vpack.c.b16 %v2798, %v2797
      %v2802 = vpack.c.b16 %v2800, %v2799
      %v2806 = vsel %vm2089, %v2785, 0
      %v2809 = vsel %vm2089, %v2786, 0
      %v2812 = vsel %vm2089, %v2787, 0
      %2814 = vmatpush.bf16.msra.mxu0 0
      %2815 = vmatpush.bf16.msra.mxu0 0
      %2816 = vmatpush.bf16.msra.mxu0 0
      %2817 = vmatpush.bf16.msra.mxu0 0
      %2818 = vmatpush.bf16.msra.mxu0 0
      %2819 = vmatpush.bf16.msra.mxu0 0
      %2820 = vmatpush.bf16.msra.mxu0 %v2802
      %2821 = vmatpush.bf16.msra.mxu0 %v2801
      %2822 = vmatmul.bf16.gmra.mxu0 %v2806
      %v2823 = vpop.f32.mrf.mxu0
      %v2824 = vadd.f32 0.0, %v2823
      %v2825 = vpop.f32.mrf.mxu0
      %v2826 = vadd.f32 0.0, %v2825
      %2827 = vmatmul.bf16.gmra.mxu0 %v2809
      %v2828 = vpop.f32.mrf.mxu0
      %v2829 = vadd.f32 0.0, %v2828
      %v2830 = vpop.f32.mrf.mxu0
      %v2831 = vadd.f32 0.0, %v2830
      %2832 = vmatmul.bf16.gmra.mxu0 %v2812
      %v2833 = vpop.f32.mrf.mxu0
      %v2834 = vadd.f32 0.0, %v2833
      %v2835 = vpop.f32.mrf.mxu0
      %2836 = vdwg.mxu0
      %v2837 = vadd.f32 %v2767, %v2824
      %v2838 = vadd.f32 %v2769, %v2826
      %v2839 = vadd.f32 %v2772, %v2829
      %v2840 = vadd.f32 %v2774, %v2831
      %v2841 = vadd.f32 %v2777, %v2834
      %v2842 = vld [vmem:[#allocation2 + $0x7] sm:$0xff]
      %v2843 = vld [vmem:[#allocation2 + $0xf] sm:$0xff]
      %v2844 = vld [vmem:[#allocation2 + $0x17] sm:$0xff]
      %v2845 = vld [vmem:[#allocation2 + $0x1f] sm:$0xff]
      %v2846 = vld [vmem:[#allocation2 + $0x27] sm:$0xf]
      %v2847 = vpack.c.bf16 %v2843, %v2842
      %v2848 = vpack.c.bf16 %v2845, %v2844
      %v2849 = vpack.c.bf16 %v2846, %v2846
      %s2850 = scalar_lea.vmem %s8, 48
      %v2851 = vld [vmem:[%s2850] sm:$0xf]
      %v2852 = vld [vmem:[%s2850 + $0x4] sm:$0xf]
      %v2853 = vld [vmem:[%s2850 + $0x8] sm:$0xf]
      %v2854 = vld [vmem:[%s2850 + $0xc] sm:$0xf]
      %v2859 = vunpack.c.l.b16 %v2851
      %v2860 = vunpack.c.l.b16 %v2852
      %v2861 = vunpack.c.l.b16 %v2853
      %v2862 = vunpack.c.l.b16 %v2854
      %v2863 = vpack.c.b16 %v2860, %v2859
      %v2864 = vpack.c.b16 %v2862, %v2861
      %v2868 = vsel %vm2089, %v2847, 0
      %v2871 = vsel %vm2089, %v2848, 0
      %v2874 = vsel %vm2089, %v2849, 0
      %2876 = vmatpush.bf16.msra.mxu0 0
      %2877 = vmatpush.bf16.msra.mxu0 0
      %2878 = vmatpush.bf16.msra.mxu0 0
      %2879 = vmatpush.bf16.msra.mxu0 0
      %2880 = vmatpush.bf16.msra.mxu0 0
      %2881 = vmatpush.bf16.msra.mxu0 0
      %2882 = vmatpush.bf16.msra.mxu0 %v2864
      %2883 = vmatpush.bf16.msra.mxu0 %v2863
      %2884 = vmatmul.bf16.gmra.mxu0 %v2868
      %v2885 = vpop.f32.mrf.mxu0
      %v2886 = vadd.f32 0.0, %v2885
      %v2887 = vpop.f32.mrf.mxu0
      %v2888 = vadd.f32 0.0, %v2887
      %2889 = vmatmul.bf16.gmra.mxu0 %v2871
      %v2890 = vpop.f32.mrf.mxu0
      %v2891 = vadd.f32 0.0, %v2890
      %v2892 = vpop.f32.mrf.mxu0
      %v2893 = vadd.f32 0.0, %v2892
      %2894 = vmatmul.bf16.gmra.mxu0 %v2874
      %v2895 = vpop.f32.mrf.mxu0
      %v2896 = vadd.f32 0.0, %v2895
      %v2897 = vpop.f32.mrf.mxu0
      %2898 = vdwg.mxu0
      %v2899 = vadd.f32 %v2837, %v2886
      %v2900 = vadd.f32 %v2838, %v2888
      %v2901 = vadd.f32 %v2839, %v2891
      %v2902 = vadd.f32 %v2840, %v2893
      %v2903 = vadd.f32 %v2841, %v2896
      %v2904 = vld [vmem:[#allocation2 + $0x8] sm:$0xff]
      %v2905 = vld [vmem:[#allocation2 + $0x10] sm:$0xff]
      %v2906 = vld [vmem:[#allocation2 + $0x18] sm:$0xff]
      %v2907 = vld [vmem:[#allocation2 + $0x20] sm:$0xff]
      %v2908 = vld [vmem:[#allocation2 + $0x28] sm:$0xf]
      %v2909 = vpack.c.bf16 %v2905, %v2904
      %v2910 = vpack.c.bf16 %v2907, %v2906
      %v2911 = vpack.c.bf16 %v2908, %v2908
      %s2912 = scalar_lea.vmem %s8, 64
      %v2913 = vld [vmem:[%s2912] sm:$0xf]
      %v2914 = vld [vmem:[%s2912 + $0x4] sm:$0xf]
      %v2915 = vld [vmem:[%s2912 + $0x8] sm:$0xf]
      %v2916 = vld [vmem:[%s2912 + $0xc] sm:$0xf]
      %v2921 = vunpack.c.l.b16 %v2913
      %v2922 = vunpack.c.l.b16 %v2914
      %v2923 = vunpack.c.l.b16 %v2915
      %v2924 = vunpack.c.l.b16 %v2916
      %v2925 = vpack.c.b16 %v2922, %v2921
      %v2926 = vpack.c.b16 %v2924, %v2923
      %v2930 = vsel %vm2089, %v2909, 0
      %v2933 = vsel %vm2089, %v2910, 0
      %v2936 = vsel %vm2089, %v2911, 0
      %2938 = vmatpush.bf16.msra.mxu0 0
      %2939 = vmatpush.bf16.msra.mxu0 0
      %2940 = vmatpush.bf16.msra.mxu0 0
      %2941 = vmatpush.bf16.msra.mxu0 0
      %2942 = vmatpush.bf16.msra.mxu0 0
      %2943 = vmatpush.bf16.msra.mxu0 0
      %2944 = vmatpush.bf16.msra.mxu0 %v2926
      %2945 = vmatpush.bf16.msra.mxu0 %v2925
      %2946 = vmatmul.bf16.gmra.mxu0 %v2930
      %v2947 = vpop.f32.mrf.mxu0
      %v2948 = vadd.f32 0.0, %v2947
      %v2949 = vpop.f32.mrf.mxu0
      %v2950 = vadd.f32 0.0, %v2949
      %2951 = vmatmul.bf16.gmra.mxu0 %v2933
      %v2952 = vpop.f32.mrf.mxu0
      %v2953 = vadd.f32 0.0, %v2952
      %v2954 = vpop.f32.mrf.mxu0
      %v2955 = vadd.f32 0.0, %v2954
      %2956 = vmatmul.bf16.gmra.mxu0 %v2936
      %v2957 = vpop.f32.mrf.mxu0
      %v2958 = vadd.f32 0.0, %v2957
      %v2959 = vpop.f32.mrf.mxu0
      %2960 = vdwg.mxu0
      %v2961 = vadd.f32 %v2899, %v2948
      %v2962 = vadd.f32 %v2900, %v2950
      %v2963 = vadd.f32 %v2901, %v2953
      %v2964 = vadd.f32 %v2902, %v2955
      %v2965 = vadd.f32 %v2903, %v2958
      %v2966 = vld [vmem:[#allocation2 + $0x9] sm:$0xff]
      %v2967 = vld [vmem:[#allocation2 + $0x11] sm:$0xff]
      %v2968 = vld [vmem:[#allocation2 + $0x19] sm:$0xff]
      %v2969 = vld [vmem:[#allocation2 + $0x21] sm:$0xff]
      %v2970 = vld [vmem:[#allocation2 + $0x29] sm:$0xf]
      %v2971 = vpack.c.bf16 %v2967, %v2966
      %v2972 = vpack.c.bf16 %v2969, %v2968
      %v2973 = vpack.c.bf16 %v2970, %v2970
      %s2974 = scalar_lea.vmem %s8, 80
      %v2975 = vld [vmem:[%s2974] sm:$0xf]
      %v2976 = vld [vmem:[%s2974 + $0x4] sm:$0xf]
      %v2977 = vld [vmem:[%s2974 + $0x8] sm:$0xf]
      %v2978 = vld [vmem:[%s2974 + $0xc] sm:$0xf]
      %v2983 = vunpack.c.l.b16 %v2975
      %v2984 = vunpack.c.l.b16 %v2976
      %v2985 = vunpack.c.l.b16 %v2977
      %v2986 = vunpack.c.l.b16 %v2978
      %v2987 = vpack.c.b16 %v2984, %v2983
      %v2988 = vpack.c.b16 %v2986, %v2985
      %v2992 = vsel %vm2089, %v2971, 0
      %v2995 = vsel %vm2089, %v2972, 0
      %v2998 = vsel %vm2089, %v2973, 0
      %3000 = vmatpush.bf16.msra.mxu0 0
      %3001 = vmatpush.bf16.msra.mxu0 0
      %3002 = vmatpush.bf16.msra.mxu0 0
      %3003 = vmatpush.bf16.msra.mxu0 0
      %3004 = vmatpush.bf16.msra.mxu0 0
      %3005 = vmatpush.bf16.msra.mxu0 0
      %3006 = vmatpush.bf16.msra.mxu0 %v2988
      %3007 = vmatpush.bf16.msra.mxu0 %v2987
      %3008 = vmatmul.bf16.gmra.mxu0 %v2992
      %v3009 = vpop.f32.mrf.mxu0
      %v3010 = vadd.f32 0.0, %v3009
      %v3011 = vpop.f32.mrf.mxu0
      %v3012 = vadd.f32 0.0, %v3011
      %3013 = vmatmul.bf16.gmra.mxu0 %v2995
      %v3014 = vpop.f32.mrf.mxu0
      %v3015 = vadd.f32 0.0, %v3014
      %v3016 = vpop.f32.mrf.mxu0
      %v3017 = vadd.f32 0.0, %v3016
      %3018 = vmatmul.bf16.gmra.mxu0 %v2998
      %v3019 = vpop.f32.mrf.mxu0
      %v3020 = vadd.f32 0.0, %v3019
      %v3021 = vpop.f32.mrf.mxu0
      %3022 = vdwg.mxu0
      %v3023 = vadd.f32 %v2961, %v3010
      %v3024 = vadd.f32 %v2962, %v3012
      %v3025 = vadd.f32 %v2963, %v3015
      %v3026 = vadd.f32 %v2964, %v3017
      %v3027 = vadd.f32 %v2965, %v3020
      %v3028 = vld [vmem:[#allocation2 + $0xd] sm:$0xff]
      %v3029 = vld [vmem:[#allocation2 + $0x15] sm:$0xff]
      %v3030 = vld [vmem:[#allocation2 + $0x1d] sm:$0xff]
      %v3031 = vld [vmem:[#allocation2 + $0x25] sm:$0xff]
      %v3032 = vld [vmem:[#allocation2 + $0x2d] sm:$0xf]
      %v3033 = vpack.c.bf16 %v3029, %v3028
      %v3034 = vpack.c.bf16 %v3031, %v3030
      %v3035 = vpack.c.bf16 %v3032, %v3032
      %s3036 = scalar_lea.vmem %s8, 96
      %v3037 = vld [vmem:[%s3036] sm:$0xf]
      %v3038 = vld [vmem:[%s3036 + $0x4] sm:$0xf]
      %v3039 = vld [vmem:[%s3036 + $0x8] sm:$0xf]
      %v3040 = vld [vmem:[%s3036 + $0xc] sm:$0xf]
      %v3045 = vunpack.c.l.b16 %v3037
      %v3046 = vunpack.c.l.b16 %v3038
      %v3047 = vunpack.c.l.b16 %v3039
      %v3048 = vunpack.c.l.b16 %v3040
      %v3049 = vpack.c.b16 %v3046, %v3045
      %v3050 = vpack.c.b16 %v3048, %v3047
      %v3054 = vsel %vm2089, %v3033, 0
      %v3057 = vsel %vm2089, %v3034, 0
      %v3060 = vsel %vm2089, %v3035, 0
      %3062 = vmatpush.bf16.msra.mxu0 0
      %3063 = vmatpush.bf16.msra.mxu0 0
      %3064 = vmatpush.bf16.msra.mxu0 0
      %3065 = vmatpush.bf16.msra.mxu0 0
      %3066 = vmatpush.bf16.msra.mxu0 0
      %3067 = vmatpush.bf16.msra.mxu0 0
      %3068 = vmatpush.bf16.msra.mxu0 %v3050
      %3069 = vmatpush.bf16.msra.mxu0 %v3049
      %3070 = vmatmul.bf16.gmra.mxu0 %v3054
      %v3071 = vpop.f32.mrf.mxu0
      %v3072 = vadd.f32 0.0, %v3071
      %v3073 = vpop.f32.mrf.mxu0
      %v3074 = vadd.f32 0.0, %v3073
      %3075 = vmatmul.bf16.gmra.mxu0 %v3057
      %v3076 = vpop.f32.mrf.mxu0
      %v3077 = vadd.f32 0.0, %v3076
      %v3078 = vpop.f32.mrf.mxu0
      %v3079 = vadd.f32 0.0, %v3078
      %3080 = vmatmul.bf16.gmra.mxu0 %v3060
      %v3081 = vpop.f32.mrf.mxu0
      %v3082 = vadd.f32 0.0, %v3081
      %v3083 = vpop.f32.mrf.mxu0
      %3084 = vdwg.mxu0
      %v3085 = vadd.f32 %v3023, %v3072
      %v3086 = vadd.f32 %v3024, %v3074
      %v3087 = vadd.f32 %v3025, %v3077
      %v3088 = vadd.f32 %v3026, %v3079
      %v3089 = vadd.f32 %v3027, %v3082
      %v3090 = vld [vmem:[#allocation2 + $0xe] sm:$0xff]
      %v3091 = vld [vmem:[#allocation2 + $0x16] sm:$0xff]
      %v3092 = vld [vmem:[#allocation2 + $0x1e] sm:$0xff]
      %v3093 = vld [vmem:[#allocation2 + $0x26] sm:$0xff]
      %v3094 = vld [vmem:[#allocation2 + $0x2e] sm:$0xf]
      %v3095 = vpack.c.bf16 %v3091, %v3090
      %v3096 = vpack.c.bf16 %v3093, %v3092
      %v3097 = vpack.c.bf16 %v3094, %v3094
      %s3098 = scalar_lea.vmem %s8, 112
      %v3099 = vld [vmem:[%s3098] sm:$0xf]
      %v3100 = vld [vmem:[%s3098 + $0x4] sm:$0xf]
      %v3101 = vld [vmem:[%s3098 + $0x8] sm:$0xf]
      %v3102 = vld [vmem:[%s3098 + $0xc] sm:$0xf]
      %v3107 = vunpack.c.l.b16 %v3099
      %v3108 = vunpack.c.l.b16 %v3100
      %v3109 = vunpack.c.l.b16 %v3101
      %v3110 = vunpack.c.l.b16 %v3102
      %v3111 = vpack.c.b16 %v3108, %v3107
      %v3112 = vpack.c.b16 %v3110, %v3109
      %v3116 = vsel %vm2089, %v3095, 0
      %v3119 = vsel %vm2089, %v3096, 0
      %v3122 = vsel %vm2089, %v3097, 0
      %3124 = vmatpush.bf16.msra.mxu0 0
      %3125 = vmatpush.bf16.msra.mxu0 0
      %3126 = vmatpush.bf16.msra.mxu0 0
      %3127 = vmatpush.bf16.msra.mxu0 0
      %3128 = vmatpush.bf16.msra.mxu0 0
      %3129 = vmatpush.bf16.msra.mxu0 0
      %3130 = vmatpush.bf16.msra.mxu0 %v3112
      %3131 = vmatpush.bf16.msra.mxu0 %v3111
      %3132 = vmatmul.bf16.gmra.mxu0 %v3116
      %v3133 = vpop.f32.mrf.mxu0
      %v3134 = vadd.f32 0.0, %v3133
      %v3135 = vpop.f32.mrf.mxu0
      %v3136 = vadd.f32 0.0, %v3135
      %3137 = vmatmul.bf16.gmra.mxu0 %v3119
      %v3138 = vpop.f32.mrf.mxu0
      %v3139 = vadd.f32 0.0, %v3138
      %v3140 = vpop.f32.mrf.mxu0
      %v3141 = vadd.f32 0.0, %v3140
      %3142 = vmatmul.bf16.gmra.mxu0 %v3122
      %v3143 = vpop.f32.mrf.mxu0
      %v3144 = vadd.f32 0.0, %v3143
      %v3145 = vpop.f32.mrf.mxu0
      %3146 = vdwg.mxu0
      %v3147 = vadd.f32 %v3085, %v3134
      %v3148 = vadd.f32 %v3086, %v3136
      %v3149 = vadd.f32 %v3087, %v3139
      %v3150 = vadd.f32 %v3088, %v3141
      %v3151 = vadd.f32 %v3089, %v3144
      %v3152 = vld [vmem:[#allocation2 + $0xf] sm:$0xff]
      %v3153 = vld [vmem:[#allocation2 + $0x17] sm:$0xff]
      %v3154 = vld [vmem:[#allocation2 + $0x1f] sm:$0xff]
      %v3155 = vld [vmem:[#allocation2 + $0x27] sm:$0xff]
      %v3156 = vld [vmem:[#allocation2 + $0x2f] sm:$0xf]
      %v3157 = vpack.c.bf16 %v3153, %v3152
      %v3158 = vpack.c.bf16 %v3155, %v3154
      %v3159 = vpack.c.bf16 %v3156, %v3156
      %s3160 = scalar_lea.vmem %s8, 128
      %v3161 = vld [vmem:[%s3160] sm:$0xf]
      %v3162 = vld [vmem:[%s3160 + $0x4] sm:$0xf]
      %v3163 = vld [vmem:[%s3160 + $0x8] sm:$0xf]
      %v3164 = vld [vmem:[%s3160 + $0xc] sm:$0xf]
      %v3169 = vunpack.c.l.b16 %v3161
      %v3170 = vunpack.c.l.b16 %v3162
      %v3171 = vunpack.c.l.b16 %v3163
      %v3172 = vunpack.c.l.b16 %v3164
      %v3173 = vpack.c.b16 %v3170, %v3169
      %v3174 = vpack.c.b16 %v3172, %v3171
      %v3178 = vsel %vm2089, %v3157, 0
      %v3181 = vsel %vm2089, %v3158, 0
      %v3184 = vsel %vm2089, %v3159, 0
      %3186 = vmatpush.bf16.msra.mxu0 0
      %3187 = vmatpush.bf16.msra.mxu0 0
      %3188 = vmatpush.bf16.msra.mxu0 0
      %3189 = vmatpush.bf16.msra.mxu0 0
      %3190 = vmatpush.bf16.msra.mxu0 0
      %3191 = vmatpush.bf16.msra.mxu0 0
      %3192 = vmatpush.bf16.msra.mxu0 %v3174
      %3193 = vmatpush.bf16.msra.mxu0 %v3173
      %3194 = vmatmul.bf16.gmra.mxu0 %v3178
      %v3195 = vpop.f32.mrf.mxu0
      %v3196 = vadd.f32 0.0, %v3195
      %v3197 = vpop.f32.mrf.mxu0
      %v3198 = vadd.f32 0.0, %v3197
      %3199 = vmatmul.bf16.gmra.mxu0 %v3181
      %v3200 = vpop.f32.mrf.mxu0
      %v3201 = vadd.f32 0.0, %v3200
      %v3202 = vpop.f32.mrf.mxu0
      %v3203 = vadd.f32 0.0, %v3202
      %3204 = vmatmul.bf16.gmra.mxu0 %v3184
      %v3205 = vpop.f32.mrf.mxu0
      %v3206 = vadd.f32 0.0, %v3205
      %v3207 = vpop.f32.mrf.mxu0
      %3208 = vdwg.mxu0
      %v3209 = vadd.f32 %v3147, %v3196
      %v3210 = vadd.f32 %v3148, %v3198
      %v3211 = vadd.f32 %v3149, %v3201
      %v3212 = vadd.f32 %v3150, %v3203
      %v3213 = vadd.f32 %v3151, %v3206
      %v3214 = vmul.f32 %v3209, %v1342
      %v3215 = vmul.f32 %v3210, %v1347
      %v3216 = vmul.f32 %v3211, %v1352
      %v3217 = vmul.f32 %v3212, %v1357
      %v3218 = vmul.f32 %v3213, %v1362
      %v3219 = vmax.f32 %v3214, 0.0
      %v3220 = vmax.f32 %v3215, 0.0
      %v3221 = vmax.f32 %v3216, 0.0
      %v3222 = vmax.f32 %v3217, 0.0
      %v3223 = vmax.f32 %v3218, 0.0
      %vm3224 = vcmask 64512
      %3225 = vst.msk [vmem:[#allocation2 + $0x8] sm:$0xff] %vm3224, %v3219
      %3226 = vst.msk [vmem:[#allocation2 + $0x10] sm:$0xff] %vm3224, %v3220
      %3227 = vst.msk [vmem:[#allocation2 + $0x18] sm:$0xff] %vm3224, %v3221
      %3228 = vst.msk [vmem:[#allocation2 + $0x20] sm:$0xff] %vm3224, %v3222
      %vm3229 = vcmask 60416
      %3230 = vst.msk [vmem:[#allocation2 + $0x28] sm:$0xf] %vm3229, %v3223
      %v3231 = vld [vmem:[#allocation2 + $0x8] sm:$0xff]
      %v3232 = vld [vmem:[#allocation2 + $0x10] sm:$0xff]
      %v3233 = vld [vmem:[#allocation2 + $0x18] sm:$0xff]
      %v3234 = vld [vmem:[#allocation2 + $0x20] sm:$0xff]
      %v3235 = vld [vmem:[#allocation2 + $0x28] sm:$0xf]
      %v3236 = vpack.c.bf16 %v3232, %v3231
      %v3237 = vpack.c.bf16 %v3234, %v3233
      %v3238 = vpack.c.bf16 %v3235, %v3235
      %v3239 = vld [vmem:[%s9] sm:$0xf]
      %v3241 = vsel %vm3224, %v3236, 0
      %v3244 = vsel %vm3224, %v3237, 0
      %v3247 = vsel %vm3224, %v3238, 0
      %vm3249 = vcmask 1043456
      %v3251 = vsel %vm3249, %v3239, 0
      %3253 = vmatpush.bf16.msra.mxu0 0
      %3254 = vmatpush.bf16.msra.mxu0 0
      %3255 = vmatpush.bf16.msra.mxu0 0
      %3256 = vmatpush.bf16.msra.mxu0 0
      %3257 = vmatpush.bf16.msra.mxu0 0
      %3258 = vmatpush.bf16.msra.mxu0 0
      %3259 = vmatpush.bf16.msra.mxu0 0
      %3260 = vmatpush.bf16.msra.mxu0 %v3251
      %3261 = vmatmul.bf16.gmra.mxu0 %v3241
      %v3262 = vpop.f32.mrf.mxu0
      %v3263 = vadd.f32 0.0, %v3262
      %v3264 = vpop.f32.mrf.mxu0
      %v3265 = vadd.f32 0.0, %v3264
      %3266 = vmatmul.bf16.gmra.mxu0 %v3244
      %v3267 = vpop.f32.mrf.mxu0
      %v3268 = vadd.f32 0.0, %v3267
      %v3269 = vpop.f32.mrf.mxu0
      %v3270 = vadd.f32 0.0, %v3269
      %3271 = vmatmul.bf16.gmra.mxu0 %v3247
      %v3272 = vpop.f32.mrf.mxu0
      %v3273 = vadd.f32 0.0, %v3272
      %v3274 = vpop.f32.mrf.mxu0
      %3275 = vdwg.mxu0
      %v3276 = vmul.f32 %v3263, %v1342
      %v3277 = vmul.f32 %v3265, %v1347
      %v3278 = vmul.f32 %v3268, %v1352
      %v3279 = vmul.f32 %v3270, %v1357
      %v3280 = vmul.f32 %v3273, %v1362
      %v3281 = vadd.f32 %v2652, %v3276
      %v3282 = vadd.f32 %v2653, %v3277
      %v3283 = vadd.f32 %v2654, %v3278
      %v3284 = vadd.f32 %v2655, %v3279
      %v3285 = vadd.f32 %v2656, %v3280
      %v3286 = vmax.f32 %v3281, 0.0
      %v3287 = vmax.f32 %v3282, 0.0
      %v3288 = vmax.f32 %v3283, 0.0
      %v3289 = vmax.f32 %v3284, 0.0
      %v3290 = vmax.f32 %v3285, 0.0
      %3291 = vst.msk [vmem:[#allocation2 + $0x8] sm:$0xff] %vm2089, %v3286
      %3292 = vst.msk [vmem:[#allocation2 + $0x10] sm:$0xff] %vm2089, %v3287
      %3293 = vst.msk [vmem:[#allocation2 + $0x18] sm:$0xff] %vm2089, %v3288
      %3294 = vst.msk [vmem:[#allocation2 + $0x20] sm:$0xff] %vm2089, %v3289
      %3295 = vst.msk [vmem:[#allocation2 + $0x28] sm:$0xf] %vm2094, %v3290
      %v3296 = vld [vmem:[#allocation2 + $0x1] sm:$0xff]
      %v3297 = vld [vmem:[#allocation2 + $0x9] sm:$0xff]
      %v3298 = vld [vmem:[#allocation2 + $0x11] sm:$0xff]
      %v3299 = vld [vmem:[#allocation2 + $0x19] sm:$0xff]
      %v3300 = vld [vmem:[#allocation2 + $0x21] sm:$0xf]
      %v3301 = vpack.c.bf16 %v3297, %v3296
      %v3302 = vpack.c.bf16 %v3299, %v3298
      %v3303 = vpack.c.bf16 %v3300, %v3300
      %v3304 = vld [vmem:[%s10] sm:$0xf]
      %v3305 = vld [vmem:[%s10 + $0x4] sm:$0xf]
      %v3306 = vld [vmem:[%s10 + $0x8] sm:$0xf]
      %v3307 = vld [vmem:[%s10 + $0xc] sm:$0xf]
      %v3308 = vld [vmem:[#allocation2 + $0x2] sm:$0xff]
      %v3309 = vld [vmem:[#allocation2 + $0xa] sm:$0xff]
      %v3310 = vld [vmem:[#allocation2 + $0x12] sm:$0xff]
      %v3311 = vld [vmem:[#allocation2 + $0x1a] sm:$0xff]
      %v3312 = vld [vmem:[#allocation2 + $0x22] sm:$0xf]
      %v3313 = vpack.c.bf16 %v3309, %v3308
      %v3314 = vpack.c.bf16 %v3311, %v3310
      %v3315 = vpack.c.bf16 %v3312, %v3312
      %s3316 = scalar_lea.vmem %s10, 16
      %v3317 = vld [vmem:[%s3316] sm:$0xf]
      %v3318 = vld [vmem:[%s3316 + $0x4] sm:$0xf]
      %v3319 = vld [vmem:[%s3316 + $0x8] sm:$0xf]
      %v3320 = vld [vmem:[%s3316 + $0xc] sm:$0xf]
      %v3325 = vunpack.c.l.b16 %v3317
      %v3326 = vunpack.c.l.b16 %v3318
      %v3327 = vunpack.c.l.b16 %v3319
      %v3328 = vunpack.c.l.b16 %v3320
      %v3329 = vpack.c.b16 %v3326, %v3325
      %v3330 = vpack.c.b16 %v3328, %v3327
      %v3334 = vsel %vm2089, %v3313, 0
      %v3337 = vsel %vm2089, %v3314, 0
      %v3340 = vsel %vm2089, %v3315, 0
      %3342 = vmatpush.bf16.msra.mxu0 0
      %3343 = vmatpush.bf16.msra.mxu0 0
      %3344 = vmatpush.bf16.msra.mxu0 0
      %3345 = vmatpush.bf16.msra.mxu0 0
      %3346 = vmatpush.bf16.msra.mxu0 0
      %3347 = vmatpush.bf16.msra.mxu0 0
      %3348 = vmatpush.bf16.msra.mxu0 %v3330
      %3349 = vmatpush.bf16.msra.mxu0 %v3329
      %3350 = vmatmul.bf16.gmra.mxu0 %v3334
      %v3351 = vpop.f32.mrf.mxu0
      %v3352 = vadd.f32 0.0, %v3351
      %v3353 = vpop.f32.mrf.mxu0
      %v3354 = vadd.f32 0.0, %v3353
      %3355 = vmatmul.bf16.gmra.mxu0 %v3337
      %v3356 = vpop.f32.mrf.mxu0
      %v3357 = vadd.f32 0.0, %v3356
      %v3358 = vpop.f32.mrf.mxu0
      %v3359 = vadd.f32 0.0, %v3358
      %3360 = vmatmul.bf16.gmra.mxu0 %v3340
      %v3361 = vpop.f32.mrf.mxu0
      %v3362 = vadd.f32 0.0, %v3361
      %v3363 = vpop.f32.mrf.mxu0
      %3364 = vdwg.mxu0
      %v3369 = vunpack.c.l.b16 %v3304
      %v3370 = vunpack.c.l.b16 %v3305
      %v3371 = vunpack.c.l.b16 %v3306
      %v3372 = vunpack.c.l.b16 %v3307
      %v3373 = vpack.c.b16 %v3370, %v3369
      %v3374 = vpack.c.b16 %v3372, %v3371
      %v3378 = vsel %vm2089, %v3301, 0
      %v3381 = vsel %vm2089, %v3302, 0
      %v3384 = vsel %vm2089, %v3303, 0
      %3386 = vmatpush.bf16.msra.mxu0 0
      %3387 = vmatpush.bf16.msra.mxu0 0
      %3388 = vmatpush.bf16.msra.mxu0 0
      %3389 = vmatpush.bf16.msra.mxu0 0
      %3390 = vmatpush.bf16.msra.mxu0 0
      %3391 = vmatpush.bf16.msra.mxu0 0
      %3392 = vmatpush.bf16.msra.mxu0 %v3374
      %3393 = vmatpush.bf16.msra.mxu0 %v3373
      %3394 = vmatmul.bf16.gmra.mxu0 %v3378
      %v3395 = vpop.f32.mrf.mxu0
      %v3396 = vadd.f32 %v3352, %v3395
      %v3397 = vpop.f32.mrf.mxu0
      %v3398 = vadd.f32 %v3354, %v3397
      %3399 = vmatmul.bf16.gmra.mxu0 %v3381
      %v3400 = vpop.f32.mrf.mxu0
      %v3401 = vadd.f32 %v3357, %v3400
      %v3402 = vpop.f32.mrf.mxu0
      %v3403 = vadd.f32 %v3359, %v3402
      %3404 = vmatmul.bf16.gmra.mxu0 %v3384
      %v3405 = vpop.f32.mrf.mxu0
      %v3406 = vadd.f32 %v3362, %v3405
      %v3407 = vpop.f32.mrf.mxu0
      %3408 = vdwg.mxu0
      %v3409 = vld [vmem:[#allocation2 + $0x3] sm:$0xff]
      %v3410 = vld [vmem:[#allocation2 + $0xb] sm:$0xff]
      %v3411 = vld [vmem:[#allocation2 + $0x13] sm:$0xff]
      %v3412 = vld [vmem:[#allocation2 + $0x1b] sm:$0xff]
      %v3413 = vld [vmem:[#allocation2 + $0x23] sm:$0xf]
      %v3414 = vpack.c.bf16 %v3410, %v3409
      %v3415 = vpack.c.bf16 %v3412, %v3411
      %v3416 = vpack.c.bf16 %v3413, %v3413
      %s3417 = scalar_lea.vmem %s10, 32
      %v3418 = vld [vmem:[%s3417] sm:$0xf]
      %v3419 = vld [vmem:[%s3417 + $0x4] sm:$0xf]
      %v3420 = vld [vmem:[%s3417 + $0x8] sm:$0xf]
      %v3421 = vld [vmem:[%s3417 + $0xc] sm:$0xf]
      %v3426 = vunpack.c.l.b16 %v3418
      %v3427 = vunpack.c.l.b16 %v3419
      %v3428 = vunpack.c.l.b16 %v3420
      %v3429 = vunpack.c.l.b16 %v3421
      %v3430 = vpack.c.b16 %v3427, %v3426
      %v3431 = vpack.c.b16 %v3429, %v3428
      %v3435 = vsel %vm2089, %v3414, 0
      %v3438 = vsel %vm2089, %v3415, 0
      %v3441 = vsel %vm2089, %v3416, 0
      %3443 = vmatpush.bf16.msra.mxu0 0
      %3444 = vmatpush.bf16.msra.mxu0 0
      %3445 = vmatpush.bf16.msra.mxu0 0
      %3446 = vmatpush.bf16.msra.mxu0 0
      %3447 = vmatpush.bf16.msra.mxu0 0
      %3448 = vmatpush.bf16.msra.mxu0 0
      %3449 = vmatpush.bf16.msra.mxu0 %v3431
      %3450 = vmatpush.bf16.msra.mxu0 %v3430
      %3451 = vmatmul.bf16.gmra.mxu0 %v3435
      %v3452 = vpop.f32.mrf.mxu0
      %v3453 = vadd.f32 0.0, %v3452
      %v3454 = vpop.f32.mrf.mxu0
      %v3455 = vadd.f32 0.0, %v3454
      %3456 = vmatmul.bf16.gmra.mxu0 %v3438
      %v3457 = vpop.f32.mrf.mxu0
      %v3458 = vadd.f32 0.0, %v3457
      %v3459 = vpop.f32.mrf.mxu0
      %v3460 = vadd.f32 0.0, %v3459
      %3461 = vmatmul.bf16.gmra.mxu0 %v3441
      %v3462 = vpop.f32.mrf.mxu0
      %v3463 = vadd.f32 0.0, %v3462
      %v3464 = vpop.f32.mrf.mxu0
      %3465 = vdwg.mxu0
      %v3466 = vadd.f32 %v3396, %v3453
      %v3467 = vadd.f32 %v3398, %v3455
      %v3468 = vadd.f32 %v3401, %v3458
      %v3469 = vadd.f32 %v3403, %v3460
      %v3470 = vadd.f32 %v3406, %v3463
      %v3471 = vld [vmem:[#allocation2 + $0x7] sm:$0xff]
      %v3472 = vld [vmem:[#allocation2 + $0xf] sm:$0xff]
      %v3473 = vld [vmem:[#allocation2 + $0x17] sm:$0xff]
      %v3474 = vld [vmem:[#allocation2 + $0x1f] sm:$0xff]
      %v3475 = vld [vmem:[#allocation2 + $0x27] sm:$0xf]
      %v3476 = vpack.c.bf16 %v3472, %v3471
      %v3477 = vpack.c.bf16 %v3474, %v3473
      %v3478 = vpack.c.bf16 %v3475, %v3475
      %s3479 = scalar_lea.vmem %s10, 48
      %v3480 = vld [vmem:[%s3479] sm:$0xf]
      %v3481 = vld [vmem:[%s3479 + $0x4] sm:$0xf]
      %v3482 = vld [vmem:[%s3479 + $0x8] sm:$0xf]
      %v3483 = vld [vmem:[%s3479 + $0xc] sm:$0xf]
      %v3488 = vunpack.c.l.b16 %v3480
      %v3489 = vunpack.c.l.b16 %v3481
      %v3490 = vunpack.c.l.b16 %v3482
      %v3491 = vunpack.c.l.b16 %v3483
      %v3492 = vpack.c.b16 %v3489, %v3488
      %v3493 = vpack.c.b16 %v3491, %v3490
      %v3497 = vsel %vm2089, %v3476, 0
      %v3500 = vsel %vm2089, %v3477, 0
      %v3503 = vsel %vm2089, %v3478, 0
      %3505 = vmatpush.bf16.msra.mxu0 0
      %3506 = vmatpush.bf16.msra.mxu0 0
      %3507 = vmatpush.bf16.msra.mxu0 0
      %3508 = vmatpush.bf16.msra.mxu0 0
      %3509 = vmatpush.bf16.msra.mxu0 0
      %3510 = vmatpush.bf16.msra.mxu0 0
      %3511 = vmatpush.bf16.msra.mxu0 %v3493
      %3512 = vmatpush.bf16.msra.mxu0 %v3492
      %3513 = vmatmul.bf16.gmra.mxu0 %v3497
      %v3514 = vpop.f32.mrf.mxu0
      %v3515 = vadd.f32 0.0, %v3514
      %v3516 = vpop.f32.mrf.mxu0
      %v3517 = vadd.f32 0.0, %v3516
      %3518 = vmatmul.bf16.gmra.mxu0 %v3500
      %v3519 = vpop.f32.mrf.mxu0
      %v3520 = vadd.f32 0.0, %v3519
      %v3521 = vpop.f32.mrf.mxu0
      %v3522 = vadd.f32 0.0, %v3521
      %3523 = vmatmul.bf16.gmra.mxu0 %v3503
      %v3524 = vpop.f32.mrf.mxu0
      %v3525 = vadd.f32 0.0, %v3524
      %v3526 = vpop.f32.mrf.mxu0
      %3527 = vdwg.mxu0
      %v3528 = vadd.f32 %v3466, %v3515
      %v3529 = vadd.f32 %v3467, %v3517
      %v3530 = vadd.f32 %v3468, %v3520
      %v3531 = vadd.f32 %v3469, %v3522
      %v3532 = vadd.f32 %v3470, %v3525
      %v3533 = vld [vmem:[#allocation2 + $0x8] sm:$0xff]
      %v3534 = vld [vmem:[#allocation2 + $0x10] sm:$0xff]
      %v3535 = vld [vmem:[#allocation2 + $0x18] sm:$0xff]
      %v3536 = vld [vmem:[#allocation2 + $0x20] sm:$0xff]
      %v3537 = vld [vmem:[#allocation2 + $0x28] sm:$0xf]
      %v3538 = vpack.c.bf16 %v3534, %v3533
      %v3539 = vpack.c.bf16 %v3536, %v3535
      %v3540 = vpack.c.bf16 %v3537, %v3537
      %s3541 = scalar_lea.vmem %s10, 64
      %v3542 = vld [vmem:[%s3541] sm:$0xf]
      %v3543 = vld [vmem:[%s3541 + $0x4] sm:$0xf]
      %v3544 = vld [vmem:[%s3541 + $0x8] sm:$0xf]
      %v3545 = vld [vmem:[%s3541 + $0xc] sm:$0xf]
      %v3550 = vunpack.c.l.b16 %v3542
      %v3551 = vunpack.c.l.b16 %v3543
      %v3552 = vunpack.c.l.b16 %v3544
      %v3553 = vunpack.c.l.b16 %v3545
      %v3554 = vpack.c.b16 %v3551, %v3550
      %v3555 = vpack.c.b16 %v3553, %v3552
      %v3559 = vsel %vm2089, %v3538, 0
      %v3562 = vsel %vm2089, %v3539, 0
      %v3565 = vsel %vm2089, %v3540, 0
      %3567 = vmatpush.bf16.msra.mxu0 0
      %3568 = vmatpush.bf16.msra.mxu0 0
      %3569 = vmatpush.bf16.msra.mxu0 0
      %3570 = vmatpush.bf16.msra.mxu0 0
      %3571 = vmatpush.bf16.msra.mxu0 0
      %3572 = vmatpush.bf16.msra.mxu0 0
      %3573 = vmatpush.bf16.msra.mxu0 %v3555
      %3574 = vmatpush.bf16.msra.mxu0 %v3554
      %3575 = vmatmul.bf16.gmra.mxu0 %v3559
      %v3576 = vpop.f32.mrf.mxu0
      %v3577 = vadd.f32 0.0, %v3576
      %v3578 = vpop.f32.mrf.mxu0
      %v3579 = vadd.f32 0.0, %v3578
      %3580 = vmatmul.bf16.gmra.mxu0 %v3562
      %v3581 = vpop.f32.mrf.mxu0
      %v3582 = vadd.f32 0.0, %v3581
      %v3583 = vpop.f32.mrf.mxu0
      %v3584 = vadd.f32 0.0, %v3583
      %3585 = vmatmul.bf16.gmra.mxu0 %v3565
      %v3586 = vpop.f32.mrf.mxu0
      %v3587 = vadd.f32 0.0, %v3586
      %v3588 = vpop.f32.mrf.mxu0
      %3589 = vdwg.mxu0
      %v3590 = vadd.f32 %v3528, %v3577
      %v3591 = vadd.f32 %v3529, %v3579
      %v3592 = vadd.f32 %v3530, %v3582
      %v3593 = vadd.f32 %v3531, %v3584
      %v3594 = vadd.f32 %v3532, %v3587
      %v3595 = vld [vmem:[#allocation2 + $0x9] sm:$0xff]
      %v3596 = vld [vmem:[#allocation2 + $0x11] sm:$0xff]
      %v3597 = vld [vmem:[#allocation2 + $0x19] sm:$0xff]
      %v3598 = vld [vmem:[#allocation2 + $0x21] sm:$0xff]
      %v3599 = vld [vmem:[#allocation2 + $0x29] sm:$0xf]
      %v3600 = vpack.c.bf16 %v3596, %v3595
      %v3601 = vpack.c.bf16 %v3598, %v3597
      %v3602 = vpack.c.bf16 %v3599, %v3599
      %s3603 = scalar_lea.vmem %s10, 80
      %v3604 = vld [vmem:[%s3603] sm:$0xf]
      %v3605 = vld [vmem:[%s3603 + $0x4] sm:$0xf]
      %v3606 = vld [vmem:[%s3603 + $0x8] sm:$0xf]
      %v3607 = vld [vmem:[%s3603 + $0xc] sm:$0xf]
      %v3612 = vunpack.c.l.b16 %v3604
      %v3613 = vunpack.c.l.b16 %v3605
      %v3614 = vunpack.c.l.b16 %v3606
      %v3615 = vunpack.c.l.b16 %v3607
      %v3616 = vpack.c.b16 %v3613, %v3612
      %v3617 = vpack.c.b16 %v3615, %v3614
      %v3621 = vsel %vm2089, %v3600, 0
      %v3624 = vsel %vm2089, %v3601, 0
      %v3627 = vsel %vm2089, %v3602, 0
      %3629 = vmatpush.bf16.msra.mxu0 0
      %3630 = vmatpush.bf16.msra.mxu0 0
      %3631 = vmatpush.bf16.msra.mxu0 0
      %3632 = vmatpush.bf16.msra.mxu0 0
      %3633 = vmatpush.bf16.msra.mxu0 0
      %3634 = vmatpush.bf16.msra.mxu0 0
      %3635 = vmatpush.bf16.msra.mxu0 %v3617
      %3636 = vmatpush.bf16.msra.mxu0 %v3616
      %3637 = vmatmul.bf16.gmra.mxu0 %v3621
      %v3638 = vpop.f32.mrf.mxu0
      %v3639 = vadd.f32 0.0, %v3638
      %v3640 = vpop.f32.mrf.mxu0
      %v3641 = vadd.f32 0.0, %v3640
      %3642 = vmatmul.bf16.gmra.mxu0 %v3624
      %v3643 = vpop.f32.mrf.mxu0
      %v3644 = vadd.f32 0.0, %v3643
      %v3645 = vpop.f32.mrf.mxu0
      %v3646 = vadd.f32 0.0, %v3645
      %3647 = vmatmul.bf16.gmra.mxu0 %v3627
      %v3648 = vpop.f32.mrf.mxu0
      %v3649 = vadd.f32 0.0, %v3648
      %v3650 = vpop.f32.mrf.mxu0
      %3651 = vdwg.mxu0
      %v3652 = vadd.f32 %v3590, %v3639
      %v3653 = vadd.f32 %v3591, %v3641
      %v3654 = vadd.f32 %v3592, %v3644
      %v3655 = vadd.f32 %v3593, %v3646
      %v3656 = vadd.f32 %v3594, %v3649
      %v3657 = vld [vmem:[#allocation2 + $0xd] sm:$0xff]
      %v3658 = vld [vmem:[#allocation2 + $0x15] sm:$0xff]
      %v3659 = vld [vmem:[#allocation2 + $0x1d] sm:$0xff]
      %v3660 = vld [vmem:[#allocation2 + $0x25] sm:$0xff]
      %v3661 = vld [vmem:[#allocation2 + $0x2d] sm:$0xf]
      %v3662 = vpack.c.bf16 %v3658, %v3657
      %v3663 = vpack.c.bf16 %v3660, %v3659
      %v3664 = vpack.c.bf16 %v3661, %v3661
      %s3665 = scalar_lea.vmem %s10, 96
      %v3666 = vld [vmem:[%s3665] sm:$0xf]
      %v3667 = vld [vmem:[%s3665 + $0x4] sm:$0xf]
      %v3668 = vld [vmem:[%s3665 + $0x8] sm:$0xf]
      %v3669 = vld [vmem:[%s3665 + $0xc] sm:$0xf]
      %v3674 = vunpack.c.l.b16 %v3666
      %v3675 = vunpack.c.l.b16 %v3667
      %v3676 = vunpack.c.l.b16 %v3668
      %v3677 = vunpack.c.l.b16 %v3669
      %v3678 = vpack.c.b16 %v3675, %v3674
      %v3679 = vpack.c.b16 %v3677, %v3676
      %v3683 = vsel %vm2089, %v3662, 0
      %v3686 = vsel %vm2089, %v3663, 0
      %v3689 = vsel %vm2089, %v3664, 0
      %3691 = vmatpush.bf16.msra.mxu0 0
      %3692 = vmatpush.bf16.msra.mxu0 0
      %3693 = vmatpush.bf16.msra.mxu0 0
      %3694 = vmatpush.bf16.msra.mxu0 0
      %3695 = vmatpush.bf16.msra.mxu0 0
      %3696 = vmatpush.bf16.msra.mxu0 0
      %3697 = vmatpush.bf16.msra.mxu0 %v3679
      %3698 = vmatpush.bf16.msra.mxu0 %v3678
      %3699 = vmatmul.bf16.gmra.mxu0 %v3683
      %v3700 = vpop.f32.mrf.mxu0
      %v3701 = vadd.f32 0.0, %v3700
      %v3702 = vpop.f32.mrf.mxu0
      %v3703 = vadd.f32 0.0, %v3702
      %3704 = vmatmul.bf16.gmra.mxu0 %v3686
      %v3705 = vpop.f32.mrf.mxu0
      %v3706 = vadd.f32 0.0, %v3705
      %v3707 = vpop.f32.mrf.mxu0
      %v3708 = vadd.f32 0.0, %v3707
      %3709 = vmatmul.bf16.gmra.mxu0 %v3689
      %v3710 = vpop.f32.mrf.mxu0
      %v3711 = vadd.f32 0.0, %v3710
      %v3712 = vpop.f32.mrf.mxu0
      %3713 = vdwg.mxu0
      %v3714 = vadd.f32 %v3652, %v3701
      %v3715 = vadd.f32 %v3653, %v3703
      %v3716 = vadd.f32 %v3654, %v3706
      %v3717 = vadd.f32 %v3655, %v3708
      %v3718 = vadd.f32 %v3656, %v3711
      %v3719 = vld [vmem:[#allocation2 + $0xe] sm:$0xff]
      %v3720 = vld [vmem:[#allocation2 + $0x16] sm:$0xff]
      %v3721 = vld [vmem:[#allocation2 + $0x1e] sm:$0xff]
      %v3722 = vld [vmem:[#allocation2 + $0x26] sm:$0xff]
      %v3723 = vld [vmem:[#allocation2 + $0x2e] sm:$0xf]
      %v3724 = vpack.c.bf16 %v3720, %v3719
      %v3725 = vpack.c.bf16 %v3722, %v3721
      %v3726 = vpack.c.bf16 %v3723, %v3723
      %s3727 = scalar_lea.vmem %s10, 112
      %v3728 = vld [vmem:[%s3727] sm:$0xf]
      %v3729 = vld [vmem:[%s3727 + $0x4] sm:$0xf]
      %v3730 = vld [vmem:[%s3727 + $0x8] sm:$0xf]
      %v3731 = vld [vmem:[%s3727 + $0xc] sm:$0xf]
      %v3736 = vunpack.c.l.b16 %v3728
      %v3737 = vunpack.c.l.b16 %v3729
      %v3738 = vunpack.c.l.b16 %v3730
      %v3739 = vunpack.c.l.b16 %v3731
      %v3740 = vpack.c.b16 %v3737, %v3736
      %v3741 = vpack.c.b16 %v3739, %v3738
      %v3745 = vsel %vm2089, %v3724, 0
      %v3748 = vsel %vm2089, %v3725, 0
      %v3751 = vsel %vm2089, %v3726, 0
      %3753 = vmatpush.bf16.msra.mxu0 0
      %3754 = vmatpush.bf16.msra.mxu0 0
      %3755 = vmatpush.bf16.msra.mxu0 0
      %3756 = vmatpush.bf16.msra.mxu0 0
      %3757 = vmatpush.bf16.msra.mxu0 0
      %3758 = vmatpush.bf16.msra.mxu0 0
      %3759 = vmatpush.bf16.msra.mxu0 %v3741
      %3760 = vmatpush.bf16.msra.mxu0 %v3740
      %3761 = vmatmul.bf16.gmra.mxu0 %v3745
      %v3762 = vpop.f32.mrf.mxu0
      %v3763 = vadd.f32 0.0, %v3762
      %v3764 = vpop.f32.mrf.mxu0
      %v3765 = vadd.f32 0.0, %v3764
      %3766 = vmatmul.bf16.gmra.mxu0 %v3748
      %v3767 = vpop.f32.mrf.mxu0
      %v3768 = vadd.f32 0.0, %v3767
      %v3769 = vpop.f32.mrf.mxu0
      %v3770 = vadd.f32 0.0, %v3769
      %3771 = vmatmul.bf16.gmra.mxu0 %v3751
      %v3772 = vpop.f32.mrf.mxu0
      %v3773 = vadd.f32 0.0, %v3772
      %v3774 = vpop.f32.mrf.mxu0
      %3775 = vdwg.mxu0
      %v3776 = vadd.f32 %v3714, %v3763
      %v3777 = vadd.f32 %v3715, %v3765
      %v3778 = vadd.f32 %v3716, %v3768
      %v3779 = vadd.f32 %v3717, %v3770
      %v3780 = vadd.f32 %v3718, %v3773
      %v3781 = vld [vmem:[#allocation2 + $0xf] sm:$0xff]
      %v3782 = vld [vmem:[#allocation2 + $0x17] sm:$0xff]
      %v3783 = vld [vmem:[#allocation2 + $0x1f] sm:$0xff]
      %v3784 = vld [vmem:[#allocation2 + $0x27] sm:$0xff]
      %v3785 = vld [vmem:[#allocation2 + $0x2f] sm:$0xf]
      %v3786 = vpack.c.bf16 %v3782, %v3781
      %v3787 = vpack.c.bf16 %v3784, %v3783
      %v3788 = vpack.c.bf16 %v3785, %v3785
      %s3789 = scalar_lea.vmem %s10, 128
      %v3790 = vld [vmem:[%s3789] sm:$0xf]
      %v3791 = vld [vmem:[%s3789 + $0x4] sm:$0xf]
      %v3792 = vld [vmem:[%s3789 + $0x8] sm:$0xf]
      %v3793 = vld [vmem:[%s3789 + $0xc] sm:$0xf]
      %v3798 = vunpack.c.l.b16 %v3790
      %v3799 = vunpack.c.l.b16 %v3791
      %v3800 = vunpack.c.l.b16 %v3792
      %v3801 = vunpack.c.l.b16 %v3793
      %v3802 = vpack.c.b16 %v3799, %v3798
      %v3803 = vpack.c.b16 %v3801, %v3800
      %v3807 = vsel %vm2089, %v3786, 0
      %v3810 = vsel %vm2089, %v3787, 0
      %v3813 = vsel %vm2089, %v3788, 0
      %3815 = vmatpush.bf16.msra.mxu0 0
      %3816 = vmatpush.bf16.msra.mxu0 0
      %3817 = vmatpush.bf16.msra.mxu0 0
      %3818 = vmatpush.bf16.msra.mxu0 0
      %3819 = vmatpush.bf16.msra.mxu0 0
      %3820 = vmatpush.bf16.msra.mxu0 0
      %3821 = vmatpush.bf16.msra.mxu0 %v3803
      %3822 = vmatpush.bf16.msra.mxu0 %v3802
      %3823 = vmatmul.bf16.gmra.mxu0 %v3807
      %v3824 = vpop.f32.mrf.mxu0
      %v3825 = vadd.f32 0.0, %v3824
      %v3826 = vpop.f32.mrf.mxu0
      %v3827 = vadd.f32 0.0, %v3826
      %3828 = vmatmul.bf16.gmra.mxu0 %v3810
      %v3829 = vpop.f32.mrf.mxu0
      %v3830 = vadd.f32 0.0, %v3829
      %v3831 = vpop.f32.mrf.mxu0
      %v3832 = vadd.f32 0.0, %v3831
      %3833 = vmatmul.bf16.gmra.mxu0 %v3813
      %v3834 = vpop.f32.mrf.mxu0
      %v3835 = vadd.f32 0.0, %v3834
      %v3836 = vpop.f32.mrf.mxu0
      %3837 = vdwg.mxu0
      %v3838 = vadd.f32 %v3776, %v3825
      %v3839 = vadd.f32 %v3777, %v3827
      %v3840 = vadd.f32 %v3778, %v3830
      %v3841 = vadd.f32 %v3779, %v3832
      %v3842 = vadd.f32 %v3780, %v3835
      %v3843 = vmul.f32 %v3838, %v1342
      %v3844 = vmul.f32 %v3839, %v1347
      %v3845 = vmul.f32 %v3840, %v1352
      %v3846 = vmul.f32 %v3841, %v1357
      %v3847 = vmul.f32 %v3842, %v1362
      %v3848 = vmax.f32 %v3843, 0.0
      %v3849 = vmax.f32 %v3844, 0.0
      %v3850 = vmax.f32 %v3845, 0.0
      %v3851 = vmax.f32 %v3846, 0.0
      %v3852 = vmax.f32 %v3847, 0.0
      %3853 = vst.msk [vmem:[#allocation2 + $0x8] sm:$0xff] %vm3224, %v3848
      %3854 = vst.msk [vmem:[#allocation2 + $0x10] sm:$0xff] %vm3224, %v3849
      %3855 = vst.msk [vmem:[#allocation2 + $0x18] sm:$0xff] %vm3224, %v3850
      %3856 = vst.msk [vmem:[#allocation2 + $0x20] sm:$0xff] %vm3224, %v3851
      %3857 = vst.msk [vmem:[#allocation2 + $0x28] sm:$0xf] %vm3229, %v3852
      %v3858 = vld [vmem:[#allocation2 + $0x8] sm:$0xff]
      %v3859 = vld [vmem:[#allocation2 + $0x10] sm:$0xff]
      %v3860 = vld [vmem:[#allocation2 + $0x18] sm:$0xff]
      %v3861 = vld [vmem:[#allocation2 + $0x20] sm:$0xff]
      %v3862 = vld [vmem:[#allocation2 + $0x28] sm:$0xf]
      %v3863 = vpack.c.bf16 %v3859, %v3858
      %v3864 = vpack.c.bf16 %v3861, %v3860
      %v3865 = vpack.c.bf16 %v3862, %v3862
      %v3866 = vld [vmem:[%s11] sm:$0xf]
      %v3868 = vsel %vm3224, %v3863, 0
      %v3871 = vsel %vm3224, %v3864, 0
      %v3874 = vsel %vm3224, %v3865, 0
      %v3877 = vsel %vm3249, %v3866, 0
      %3879 = vmatpush.bf16.msra.mxu0 0
      %3880 = vmatpush.bf16.msra.mxu0 0
      %3881 = vmatpush.bf16.msra.mxu0 0
      %3882 = vmatpush.bf16.msra.mxu0 0
      %3883 = vmatpush.bf16.msra.mxu0 0
      %3884 = vmatpush.bf16.msra.mxu0 0
      %3885 = vmatpush.bf16.msra.mxu0 0
      %3886 = vmatpush.bf16.msra.mxu0 %v3877
      %3887 = vmatmul.bf16.gmra.mxu0 %v3868
      %v3888 = vpop.f32.mrf.mxu0
      %v3889 = vadd.f32 0.0, %v3888
      %v3890 = vpop.f32.mrf.mxu0
      %v3891 = vadd.f32 0.0, %v3890
      %3892 = vmatmul.bf16.gmra.mxu0 %v3871
      %v3893 = vpop.f32.mrf.mxu0
      %v3894 = vadd.f32 0.0, %v3893
      %v3895 = vpop.f32.mrf.mxu0
      %v3896 = vadd.f32 0.0, %v3895
      %3897 = vmatmul.bf16.gmra.mxu0 %v3874
      %v3898 = vpop.f32.mrf.mxu0
      %v3899 = vadd.f32 0.0, %v3898
      %v3900 = vpop.f32.mrf.mxu0
      %3901 = vdwg.mxu0
      %v3902 = vmul.f32 %v3889, %v1342
      %v3903 = vmul.f32 %v3891, %v1347
      %v3904 = vmul.f32 %v3894, %v1352
      %v3905 = vmul.f32 %v3896, %v1357
      %v3906 = vmul.f32 %v3899, %v1362
      %v3907 = vadd.f32 %v3281, %v3902
      %v3908 = vadd.f32 %v3282, %v3903
      %v3909 = vadd.f32 %v3283, %v3904
      %v3910 = vadd.f32 %v3284, %v3905
      %v3911 = vadd.f32 %v3285, %v3906
      %v3912 = vmax.f32 %v3907, 0.0
      %v3913 = vmax.f32 %v3908, 0.0
      %v3914 = vmax.f32 %v3909, 0.0
      %v3915 = vmax.f32 %v3910, 0.0
      %v3916 = vmax.f32 %v3911, 0.0
      %3917 = vst.msk [vmem:[#allocation2 + $0x8] sm:$0xff] %vm2089, %v3912
      %3918 = vst.msk [vmem:[#allocation2 + $0x10] sm:$0xff] %vm2089, %v3913
      %3919 = vst.msk [vmem:[#allocation2 + $0x18] sm:$0xff] %vm2089, %v3914
      %3920 = vst.msk [vmem:[#allocation2 + $0x20] sm:$0xff] %vm2089, %v3915
      %3921 = vst.msk [vmem:[#allocation2 + $0x28] sm:$0xf] %vm2094, %v3916
      %v3922 = vld [vmem:[#allocation2 + $0x1] sm:$0xff]
      %v3923 = vld [vmem:[#allocation2 + $0x9] sm:$0xff]
      %v3924 = vld [vmem:[#allocation2 + $0x11] sm:$0xff]
      %v3925 = vld [vmem:[#allocation2 + $0x19] sm:$0xff]
      %v3926 = vld [vmem:[#allocation2 + $0x21] sm:$0xf]
      %v3927 = vpack.c.bf16 %v3923, %v3922
      %v3928 = vpack.c.bf16 %v3925, %v3924
      %v3929 = vpack.c.bf16 %v3926, %v3926
      %v3930 = vld [vmem:[%s12] sm:$0xf]
      %v3931 = vld [vmem:[%s12 + $0x4] sm:$0xf]
      %v3932 = vld [vmem:[%s12 + $0x8] sm:$0xf]
      %v3933 = vld [vmem:[%s12 + $0xc] sm:$0xf]
      %v3934 = vld [vmem:[#allocation2 + $0x2] sm:$0xff]
      %v3935 = vld [vmem:[#allocation2 + $0xa] sm:$0xff]
      %v3936 = vld [vmem:[#allocation2 + $0x12] sm:$0xff]
      %v3937 = vld [vmem:[#allocation2 + $0x1a] sm:$0xff]
      %v3938 = vld [vmem:[#allocation2 + $0x22] sm:$0xf]
      %v3939 = vpack.c.bf16 %v3935, %v3934
      %v3940 = vpack.c.bf16 %v3937, %v3936
      %v3941 = vpack.c.bf16 %v3938, %v3938
      %s3942 = scalar_lea.vmem %s12, 16
      %v3943 = vld [vmem:[%s3942] sm:$0xf]
      %v3944 = vld [vmem:[%s3942 + $0x4] sm:$0xf]
      %v3945 = vld [vmem:[%s3942 + $0x8] sm:$0xf]
      %v3946 = vld [vmem:[%s3942 + $0xc] sm:$0xf]
      %v3951 = vunpack.c.l.b16 %v3943
      %v3952 = vunpack.c.l.b16 %v3944
      %v3953 = vunpack.c.l.b16 %v3945
      %v3954 = vunpack.c.l.b16 %v3946
      %v3955 = vpack.c.b16 %v3952, %v3951
      %v3956 = vpack.c.b16 %v3954, %v3953
      %v3960 = vsel %vm2089, %v3939, 0
      %v3963 = vsel %vm2089, %v3940, 0
      %v3966 = vsel %vm2089, %v3941, 0
      %3968 = vmatpush.bf16.msra.mxu0 0
      %3969 = vmatpush.bf16.msra.mxu0 0
      %3970 = vmatpush.bf16.msra.mxu0 0
      %3971 = vmatpush.bf16.msra.mxu0 0
      %3972 = vmatpush.bf16.msra.mxu0 0
      %3973 = vmatpush.bf16.msra.mxu0 0
      %3974 = vmatpush.bf16.msra.mxu0 %v3956
      %3975 = vmatpush.bf16.msra.mxu0 %v3955
      %3976 = vmatmul.bf16.gmra.mxu0 %v3960
      %v3977 = vpop.f32.mrf.mxu0
      %v3978 = vadd.f32 0.0, %v3977
      %v3979 = vpop.f32.mrf.mxu0
      %v3980 = vadd.f32 0.0, %v3979
      %3981 = vmatmul.bf16.gmra.mxu0 %v3963
      %v3982 = vpop.f32.mrf.mxu0
      %v3983 = vadd.f32 0.0, %v3982
      %v3984 = vpop.f32.mrf.mxu0
      %v3985 = vadd.f32 0.0, %v3984
      %3986 = vmatmul.bf16.gmra.mxu0 %v3966
      %v3987 = vpop.f32.mrf.mxu0
      %v3988 = vadd.f32 0.0, %v3987
      %v3989 = vpop.f32.mrf.mxu0
      %3990 = vdwg.mxu0
      %v3995 = vunpack.c.l.b16 %v3930
      %v3996 = vunpack.c.l.b16 %v3931
      %v3997 = vunpack.c.l.b16 %v3932
      %v3998 = vunpack.c.l.b16 %v3933
      %v3999 = vpack.c.b16 %v3996, %v3995
      %v4000 = vpack.c.b16 %v3998, %v3997
      %v4004 = vsel %vm2089, %v3927, 0
      %v4007 = vsel %vm2089, %v3928, 0
      %v4010 = vsel %vm2089, %v3929, 0
      %4012 = vmatpush.bf16.msra.mxu0 0
      %4013 = vmatpush.bf16.msra.mxu0 0
      %4014 = vmatpush.bf16.msra.mxu0 0
      %4015 = vmatpush.bf16.msra.mxu0 0
      %4016 = vmatpush.bf16.msra.mxu0 0
      %4017 = vmatpush.bf16.msra.mxu0 0
      %4018 = vmatpush.bf16.msra.mxu0 %v4000
      %4019 = vmatpush.bf16.msra.mxu0 %v3999
      %4020 = vmatmul.bf16.gmra.mxu0 %v4004
      %v4021 = vpop.f32.mrf.mxu0
      %v4022 = vadd.f32 %v3978, %v4021
      %v4023 = vpop.f32.mrf.mxu0
      %v4024 = vadd.f32 %v3980, %v4023
      %4025 = vmatmul.bf16.gmra.mxu0 %v4007
      %v4026 = vpop.f32.mrf.mxu0
      %v4027 = vadd.f32 %v3983, %v4026
      %v4028 = vpop.f32.mrf.mxu0
      %v4029 = vadd.f32 %v3985, %v4028
      %4030 = vmatmul.bf16.gmra.mxu0 %v4010
      %v4031 = vpop.f32.mrf.mxu0
      %v4032 = vadd.f32 %v3988, %v4031
      %v4033 = vpop.f32.mrf.mxu0
      %4034 = vdwg.mxu0
      %v4035 = vld [vmem:[#allocation2 + $0x3] sm:$0xff]
      %v4036 = vld [vmem:[#allocation2 + $0xb] sm:$0xff]
      %v4037 = vld [vmem:[#allocation2 + $0x13] sm:$0xff]
      %v4038 = vld [vmem:[#allocation2 + $0x1b] sm:$0xff]
      %v4039 = vld [vmem:[#allocation2 + $0x23] sm:$0xf]
      %v4040 = vpack.c.bf16 %v4036, %v4035
      %v4041 = vpack.c.bf16 %v4038, %v4037
      %v4042 = vpack.c.bf16 %v4039, %v4039
      %s4043 = scalar_lea.vmem %s12, 32
      %v4044 = vld [vmem:[%s4043] sm:$0xf]
      %v4045 = vld [vmem:[%s4043 + $0x4] sm:$0xf]
      %v4046 = vld [vmem:[%s4043 + $0x8] sm:$0xf]
      %v4047 = vld [vmem:[%s4043 + $0xc] sm:$0xf]
      %v4052 = vunpack.c.l.b16 %v4044
      %v4053 = vunpack.c.l.b16 %v4045
      %v4054 = vunpack.c.l.b16 %v4046
      %v4055 = vunpack.c.l.b16 %v4047
      %v4056 = vpack.c.b16 %v4053, %v4052
      %v4057 = vpack.c.b16 %v4055, %v4054
      %v4061 = vsel %vm2089, %v4040, 0
      %v4064 = vsel %vm2089, %v4041, 0
      %v4067 = vsel %vm2089, %v4042, 0
      %4069 = vmatpush.bf16.msra.mxu0 0
      %4070 = vmatpush.bf16.msra.mxu0 0
      %4071 = vmatpush.bf16.msra.mxu0 0
      %4072 = vmatpush.bf16.msra.mxu0 0
      %4073 = vmatpush.bf16.msra.mxu0 0
      %4074 = vmatpush.bf16.msra.mxu0 0
      %4075 = vmatpush.bf16.msra.mxu0 %v4057
      %4076 = vmatpush.bf16.msra.mxu0 %v4056
      %4077 = vmatmul.bf16.gmra.mxu0 %v4061
      %v4078 = vpop.f32.mrf.mxu0
      %v4079 = vadd.f32 0.0, %v4078
      %v4080 = vpop.f32.mrf.mxu0
      %v4081 = vadd.f32 0.0, %v4080
      %4082 = vmatmul.bf16.gmra.mxu0 %v4064
      %v4083 = vpop.f32.mrf.mxu0
      %v4084 = vadd.f32 0.0, %v4083
      %v4085 = vpop.f32.mrf.mxu0
      %v4086 = vadd.f32 0.0, %v4085
      %4087 = vmatmul.bf16.gmra.mxu0 %v4067
      %v4088 = vpop.f32.mrf.mxu0
      %v4089 = vadd.f32 0.0, %v4088
      %v4090 = vpop.f32.mrf.mxu0
      %4091 = vdwg.mxu0
      %v4092 = vadd.f32 %v4022, %v4079
      %v4093 = vadd.f32 %v4024, %v4081
      %v4094 = vadd.f32 %v4027, %v4084
      %v4095 = vadd.f32 %v4029, %v4086
      %v4096 = vadd.f32 %v4032, %v4089
      %v4097 = vld [vmem:[#allocation2 + $0x7] sm:$0xff]
      %v4098 = vld [vmem:[#allocation2 + $0xf] sm:$0xff]
      %v4099 = vld [vmem:[#allocation2 + $0x17] sm:$0xff]
      %v4100 = vld [vmem:[#allocation2 + $0x1f] sm:$0xff]
      %v4101 = vld [vmem:[#allocation2 + $0x27] sm:$0xf]
      %v4102 = vpack.c.bf16 %v4098, %v4097
      %v4103 = vpack.c.bf16 %v4100, %v4099
      %v4104 = vpack.c.bf16 %v4101, %v4101
      %s4105 = scalar_lea.vmem %s12, 48
      %v4106 = vld [vmem:[%s4105] sm:$0xf]
      %v4107 = vld [vmem:[%s4105 + $0x4] sm:$0xf]
      %v4108 = vld [vmem:[%s4105 + $0x8] sm:$0xf]
      %v4109 = vld [vmem:[%s4105 + $0xc] sm:$0xf]
      %v4114 = vunpack.c.l.b16 %v4106
      %v4115 = vunpack.c.l.b16 %v4107
      %v4116 = vunpack.c.l.b16 %v4108
      %v4117 = vunpack.c.l.b16 %v4109
      %v4118 = vpack.c.b16 %v4115, %v4114
      %v4119 = vpack.c.b16 %v4117, %v4116
      %v4123 = vsel %vm2089, %v4102, 0
      %v4126 = vsel %vm2089, %v4103, 0
      %v4129 = vsel %vm2089, %v4104, 0
      %4131 = vmatpush.bf16.msra.mxu0 0
      %4132 = vmatpush.bf16.msra.mxu0 0
      %4133 = vmatpush.bf16.msra.mxu0 0
      %4134 = vmatpush.bf16.msra.mxu0 0
      %4135 = vmatpush.bf16.msra.mxu0 0
      %4136 = vmatpush.bf16.msra.mxu0 0
      %4137 = vmatpush.bf16.msra.mxu0 %v4119
      %4138 = vmatpush.bf16.msra.mxu0 %v4118
      %4139 = vmatmul.bf16.gmra.mxu0 %v4123
      %v4140 = vpop.f32.mrf.mxu0
      %v4141 = vadd.f32 0.0, %v4140
      %v4142 = vpop.f32.mrf.mxu0
      %v4143 = vadd.f32 0.0, %v4142
      %4144 = vmatmul.bf16.gmra.mxu0 %v4126
      %v4145 = vpop.f32.mrf.mxu0
      %v4146 = vadd.f32 0.0, %v4145
      %v4147 = vpop.f32.mrf.mxu0
      %v4148 = vadd.f32 0.0, %v4147
      %4149 = vmatmul.bf16.gmra.mxu0 %v4129
      %v4150 = vpop.f32.mrf.mxu0
      %v4151 = vadd.f32 0.0, %v4150
      %v4152 = vpop.f32.mrf.mxu0
      %4153 = vdwg.mxu0
      %v4154 = vadd.f32 %v4092, %v4141
      %v4155 = vadd.f32 %v4093, %v4143
      %v4156 = vadd.f32 %v4094, %v4146
      %v4157 = vadd.f32 %v4095, %v4148
      %v4158 = vadd.f32 %v4096, %v4151
      %v4159 = vld [vmem:[#allocation2 + $0x8] sm:$0xff]
      %v4160 = vld [vmem:[#allocation2 + $0x10] sm:$0xff]
      %v4161 = vld [vmem:[#allocation2 + $0x18] sm:$0xff]
      %v4162 = vld [vmem:[#allocation2 + $0x20] sm:$0xff]
      %v4163 = vld [vmem:[#allocation2 + $0x28] sm:$0xf]
      %v4164 = vpack.c.bf16 %v4160, %v4159
      %v4165 = vpack.c.bf16 %v4162, %v4161
      %v4166 = vpack.c.bf16 %v4163, %v4163
      %s4167 = scalar_lea.vmem %s12, 64
      %v4168 = vld [vmem:[%s4167] sm:$0xf]
      %v4169 = vld [vmem:[%s4167 + $0x4] sm:$0xf]
      %v4170 = vld [vmem:[%s4167 + $0x8] sm:$0xf]
      %v4171 = vld [vmem:[%s4167 + $0xc] sm:$0xf]
      %v4176 = vunpack.c.l.b16 %v4168
      %v4177 = vunpack.c.l.b16 %v4169
      %v4178 = vunpack.c.l.b16 %v4170
      %v4179 = vunpack.c.l.b16 %v4171
      %v4180 = vpack.c.b16 %v4177, %v4176
      %v4181 = vpack.c.b16 %v4179, %v4178
      %v4185 = vsel %vm2089, %v4164, 0
      %v4188 = vsel %vm2089, %v4165, 0
      %v4191 = vsel %vm2089, %v4166, 0
      %4193 = vmatpush.bf16.msra.mxu0 0
      %4194 = vmatpush.bf16.msra.mxu0 0
      %4195 = vmatpush.bf16.msra.mxu0 0
      %4196 = vmatpush.bf16.msra.mxu0 0
      %4197 = vmatpush.bf16.msra.mxu0 0
      %4198 = vmatpush.bf16.msra.mxu0 0
      %4199 = vmatpush.bf16.msra.mxu0 %v4181
      %4200 = vmatpush.bf16.msra.mxu0 %v4180
      %4201 = vmatmul.bf16.gmra.mxu0 %v4185
      %v4202 = vpop.f32.mrf.mxu0
      %v4203 = vadd.f32 0.0, %v4202
      %v4204 = vpop.f32.mrf.mxu0
      %v4205 = vadd.f32 0.0, %v4204
      %4206 = vmatmul.bf16.gmra.mxu0 %v4188
      %v4207 = vpop.f32.mrf.mxu0
      %v4208 = vadd.f32 0.0, %v4207
      %v4209 = vpop.f32.mrf.mxu0
      %v4210 = vadd.f32 0.0, %v4209
      %4211 = vmatmul.bf16.gmra.mxu0 %v4191
      %v4212 = vpop.f32.mrf.mxu0
      %v4213 = vadd.f32 0.0, %v4212
      %v4214 = vpop.f32.mrf.mxu0
      %4215 = vdwg.mxu0
      %v4216 = vadd.f32 %v4154, %v4203
      %v4217 = vadd.f32 %v4155, %v4205
      %v4218 = vadd.f32 %v4156, %v4208
      %v4219 = vadd.f32 %v4157, %v4210
      %v4220 = vadd.f32 %v4158, %v4213
      %v4221 = vld [vmem:[#allocation2 + $0x9] sm:$0xff]
      %v4222 = vld [vmem:[#allocation2 + $0x11] sm:$0xff]
      %v4223 = vld [vmem:[#allocation2 + $0x19] sm:$0xff]
      %v4224 = vld [vmem:[#allocation2 + $0x21] sm:$0xff]
      %v4225 = vld [vmem:[#allocation2 + $0x29] sm:$0xf]
      %v4226 = vpack.c.bf16 %v4222, %v4221
      %v4227 = vpack.c.bf16 %v4224, %v4223
      %v4228 = vpack.c.bf16 %v4225, %v4225
      %s4229 = scalar_lea.vmem %s12, 80
      %v4230 = vld [vmem:[%s4229] sm:$0xf]
      %v4231 = vld [vmem:[%s4229 + $0x4] sm:$0xf]
      %v4232 = vld [vmem:[%s4229 + $0x8] sm:$0xf]
      %v4233 = vld [vmem:[%s4229 + $0xc] sm:$0xf]
      %v4238 = vunpack.c.l.b16 %v4230
      %v4239 = vunpack.c.l.b16 %v4231
      %v4240 = vunpack.c.l.b16 %v4232
      %v4241 = vunpack.c.l.b16 %v4233
      %v4242 = vpack.c.b16 %v4239, %v4238
      %v4243 = vpack.c.b16 %v4241, %v4240
      %v4247 = vsel %vm2089, %v4226, 0
      %v4250 = vsel %vm2089, %v4227, 0
      %v4253 = vsel %vm2089, %v4228, 0
      %4255 = vmatpush.bf16.msra.mxu0 0
      %4256 = vmatpush.bf16.msra.mxu0 0
      %4257 = vmatpush.bf16.msra.mxu0 0
      %4258 = vmatpush.bf16.msra.mxu0 0
      %4259 = vmatpush.bf16.msra.mxu0 0
      %4260 = vmatpush.bf16.msra.mxu0 0
      %4261 = vmatpush.bf16.msra.mxu0 %v4243
      %4262 = vmatpush.bf16.msra.mxu0 %v4242
      %4263 = vmatmul.bf16.gmra.mxu0 %v4247
      %v4264 = vpop.f32.mrf.mxu0
      %v4265 = vadd.f32 0.0, %v4264
      %v4266 = vpop.f32.mrf.mxu0
      %v4267 = vadd.f32 0.0, %v4266
      %4268 = vmatmul.bf16.gmra.mxu0 %v4250
      %v4269 = vpop.f32.mrf.mxu0
      %v4270 = vadd.f32 0.0, %v4269
      %v4271 = vpop.f32.mrf.mxu0
      %v4272 = vadd.f32 0.0, %v4271
      %4273 = vmatmul.bf16.gmra.mxu0 %v4253
      %v4274 = vpop.f32.mrf.mxu0
      %v4275 = vadd.f32 0.0, %v4274
      %v4276 = vpop.f32.mrf.mxu0
      %4277 = vdwg.mxu0
      %v4278 = vadd.f32 %v4216, %v4265
      %v4279 = vadd.f32 %v4217, %v4267
      %v4280 = vadd.f32 %v4218, %v4270
      %v4281 = vadd.f32 %v4219, %v4272
      %v4282 = vadd.f32 %v4220, %v4275
      %v4283 = vld [vmem:[#allocation2 + $0xd] sm:$0xff]
      %v4284 = vld [vmem:[#allocation2 + $0x15] sm:$0xff]
      %v4285 = vld [vmem:[#allocation2 + $0x1d] sm:$0xff]
      %v4286 = vld [vmem:[#allocation2 + $0x25] sm:$0xff]
      %v4287 = vld [vmem:[#allocation2 + $0x2d] sm:$0xf]
      %v4288 = vpack.c.bf16 %v4284, %v4283
      %v4289 = vpack.c.bf16 %v4286, %v4285
      %v4290 = vpack.c.bf16 %v4287, %v4287
      %s4291 = scalar_lea.vmem %s12, 96
      %v4292 = vld [vmem:[%s4291] sm:$0xf]
      %v4293 = vld [vmem:[%s4291 + $0x4] sm:$0xf]
      %v4294 = vld [vmem:[%s4291 + $0x8] sm:$0xf]
      %v4295 = vld [vmem:[%s4291 + $0xc] sm:$0xf]
      %v4300 = vunpack.c.l.b16 %v4292
      %v4301 = vunpack.c.l.b16 %v4293
      %v4302 = vunpack.c.l.b16 %v4294
      %v4303 = vunpack.c.l.b16 %v4295
      %v4304 = vpack.c.b16 %v4301, %v4300
      %v4305 = vpack.c.b16 %v4303, %v4302
      %v4309 = vsel %vm2089, %v4288, 0
      %v4312 = vsel %vm2089, %v4289, 0
      %v4315 = vsel %vm2089, %v4290, 0
      %4317 = vmatpush.bf16.msra.mxu0 0
      %4318 = vmatpush.bf16.msra.mxu0 0
      %4319 = vmatpush.bf16.msra.mxu0 0
      %4320 = vmatpush.bf16.msra.mxu0 0
      %4321 = vmatpush.bf16.msra.mxu0 0
      %4322 = vmatpush.bf16.msra.mxu0 0
      %4323 = vmatpush.bf16.msra.mxu0 %v4305
      %4324 = vmatpush.bf16.msra.mxu0 %v4304
      %4325 = vmatmul.bf16.gmra.mxu0 %v4309
      %v4326 = vpop.f32.mrf.mxu0
      %v4327 = vadd.f32 0.0, %v4326
      %v4328 = vpop.f32.mrf.mxu0
      %v4329 = vadd.f32 0.0, %v4328
      %4330 = vmatmul.bf16.gmra.mxu0 %v4312
      %v4331 = vpop.f32.mrf.mxu0
      %v4332 = vadd.f32 0.0, %v4331
      %v4333 = vpop.f32.mrf.mxu0
      %v4334 = vadd.f32 0.0, %v4333
      %4335 = vmatmul.bf16.gmra.mxu0 %v4315
      %v4336 = vpop.f32.mrf.mxu0
      %v4337 = vadd.f32 0.0, %v4336
      %v4338 = vpop.f32.mrf.mxu0
      %4339 = vdwg.mxu0
      %v4340 = vadd.f32 %v4278, %v4327
      %v4341 = vadd.f32 %v4279, %v4329
      %v4342 = vadd.f32 %v4280, %v4332
      %v4343 = vadd.f32 %v4281, %v4334
      %v4344 = vadd.f32 %v4282, %v4337
      %v4345 = vld [vmem:[#allocation2 + $0xe] sm:$0xff]
      %v4346 = vld [vmem:[#allocation2 + $0x16] sm:$0xff]
      %v4347 = vld [vmem:[#allocation2 + $0x1e] sm:$0xff]
      %v4348 = vld [vmem:[#allocation2 + $0x26] sm:$0xff]
      %v4349 = vld [vmem:[#allocation2 + $0x2e] sm:$0xf]
      %v4350 = vpack.c.bf16 %v4346, %v4345
      %v4351 = vpack.c.bf16 %v4348, %v4347
      %v4352 = vpack.c.bf16 %v4349, %v4349
      %s4353 = scalar_lea.vmem %s12, 112
      %v4354 = vld [vmem:[%s4353] sm:$0xf]
      %v4355 = vld [vmem:[%s4353 + $0x4] sm:$0xf]
      %v4356 = vld [vmem:[%s4353 + $0x8] sm:$0xf]
      %v4357 = vld [vmem:[%s4353 + $0xc] sm:$0xf]
      %v4362 = vunpack.c.l.b16 %v4354
      %v4363 = vunpack.c.l.b16 %v4355
      %v4364 = vunpack.c.l.b16 %v4356
      %v4365 = vunpack.c.l.b16 %v4357
      %v4366 = vpack.c.b16 %v4363, %v4362
      %v4367 = vpack.c.b16 %v4365, %v4364
      %v4371 = vsel %vm2089, %v4350, 0
      %v4374 = vsel %vm2089, %v4351, 0
      %v4377 = vsel %vm2089, %v4352, 0
      %4379 = vmatpush.bf16.msra.mxu0 0
      %4380 = vmatpush.bf16.msra.mxu0 0
      %4381 = vmatpush.bf16.msra.mxu0 0
      %4382 = vmatpush.bf16.msra.mxu0 0
      %4383 = vmatpush.bf16.msra.mxu0 0
      %4384 = vmatpush.bf16.msra.mxu0 0
      %4385 = vmatpush.bf16.msra.mxu0 %v4367
      %4386 = vmatpush.bf16.msra.mxu0 %v4366
      %4387 = vmatmul.bf16.gmra.mxu0 %v4371
      %v4388 = vpop.f32.mrf.mxu0
      %v4389 = vadd.f32 0.0, %v4388
      %v4390 = vpop.f32.mrf.mxu0
      %v4391 = vadd.f32 0.0, %v4390
      %4392 = vmatmul.bf16.gmra.mxu0 %v4374
      %v4393 = vpop.f32.mrf.mxu0
      %v4394 = vadd.f32 0.0, %v4393
      %v4395 = vpop.f32.mrf.mxu0
      %v4396 = vadd.f32 0.0, %v4395
      %4397 = vmatmul.bf16.gmra.mxu0 %v4377
      %v4398 = vpop.f32.mrf.mxu0
      %v4399 = vadd.f32 0.0, %v4398
      %v4400 = vpop.f32.mrf.mxu0
      %4401 = vdwg.mxu0
      %v4402 = vadd.f32 %v4340, %v4389
      %v4403 = vadd.f32 %v4341, %v4391
      %v4404 = vadd.f32 %v4342, %v4394
      %v4405 = vadd.f32 %v4343, %v4396
      %v4406 = vadd.f32 %v4344, %v4399
      %v4407 = vld [vmem:[#allocation2 + $0xf] sm:$0xff]
      %v4408 = vld [vmem:[#allocation2 + $0x17] sm:$0xff]
      %v4409 = vld [vmem:[#allocation2 + $0x1f] sm:$0xff]
      %v4410 = vld [vmem:[#allocation2 + $0x27] sm:$0xff]
      %v4411 = vld [vmem:[#allocation2 + $0x2f] sm:$0xf]
      %v4412 = vpack.c.bf16 %v4408, %v4407
      %v4413 = vpack.c.bf16 %v4410, %v4409
      %v4414 = vpack.c.bf16 %v4411, %v4411
      %s4415 = scalar_lea.vmem %s12, 128
      %v4416 = vld [vmem:[%s4415] sm:$0xf]
      %v4417 = vld [vmem:[%s4415 + $0x4] sm:$0xf]
      %v4418 = vld [vmem:[%s4415 + $0x8] sm:$0xf]
      %v4419 = vld [vmem:[%s4415 + $0xc] sm:$0xf]
      %v4424 = vunpack.c.l.b16 %v4416
      %v4425 = vunpack.c.l.b16 %v4417
      %v4426 = vunpack.c.l.b16 %v4418
      %v4427 = vunpack.c.l.b16 %v4419
      %v4428 = vpack.c.b16 %v4425, %v4424
      %v4429 = vpack.c.b16 %v4427, %v4426
      %v4433 = vsel %vm2089, %v4412, 0
      %v4436 = vsel %vm2089, %v4413, 0
      %v4439 = vsel %vm2089, %v4414, 0
      %4441 = vmatpush.bf16.msra.mxu0 0
      %4442 = vmatpush.bf16.msra.mxu0 0
      %4443 = vmatpush.bf16.msra.mxu0 0
      %4444 = vmatpush.bf16.msra.mxu0 0
      %4445 = vmatpush.bf16.msra.mxu0 0
      %4446 = vmatpush.bf16.msra.mxu0 0
      %4447 = vmatpush.bf16.msra.mxu0 %v4429
      %4448 = vmatpush.bf16.msra.mxu0 %v4428
      %4449 = vmatmul.bf16.gmra.mxu0 %v4433
      %v4450 = vpop.f32.mrf.mxu0
      %v4451 = vadd.f32 0.0, %v4450
      %v4452 = vpop.f32.mrf.mxu0
      %v4453 = vadd.f32 0.0, %v4452
      %4454 = vmatmul.bf16.gmra.mxu0 %v4436
      %v4455 = vpop.f32.mrf.mxu0
      %v4456 = vadd.f32 0.0, %v4455
      %v4457 = vpop.f32.mrf.mxu0
      %v4458 = vadd.f32 0.0, %v4457
      %4459 = vmatmul.bf16.gmra.mxu0 %v4439
      %v4460 = vpop.f32.mrf.mxu0
      %v4461 = vadd.f32 0.0, %v4460
      %v4462 = vpop.f32.mrf.mxu0
      %4463 = vdwg.mxu0
      %v4464 = vadd.f32 %v4402, %v4451
      %v4465 = vadd.f32 %v4403, %v4453
      %v4466 = vadd.f32 %v4404, %v4456
      %v4467 = vadd.f32 %v4405, %v4458
      %v4468 = vadd.f32 %v4406, %v4461
      %v4469 = vld [vmem:[%s13] sm:$0x1]
      %v4471 = vperm.slane %v4469, 0
      %v4473 = vadd.f32 %v4464, %v4471
      %v4474 = vadd.f32 %v4465, %v4471
      %v4475 = vadd.f32 %v4466, %v4471
      %v4476 = vadd.f32 %v4467, %v4471
      %v4477 = vadd.f32 %v4468, %v4471
      %v4478 = vmul.f32 %v4473, %v1342
      %v4479 = vmul.f32 %v4474, %v1347
      %v4480 = vmul.f32 %v4475, %v1352
      %v4481 = vmul.f32 %v4476, %v1357
      %v4482 = vmul.f32 %v4477, %v1362
      %v4483 = vmax.f32 %v4478, 0.0
      %v4484 = vmax.f32 %v4479, 0.0
      %v4485 = vmax.f32 %v4480, 0.0
      %v4486 = vmax.f32 %v4481, 0.0
      %v4487 = vmax.f32 %v4482, 0.0
      %4488 = vst.msk [vmem:[#allocation2 + $0x8] sm:$0xff] %vm2089, %v4483
      %4489 = vst.msk [vmem:[#allocation2 + $0x10] sm:$0xff] %vm2089, %v4484
      %4490 = vst.msk [vmem:[#allocation2 + $0x18] sm:$0xff] %vm2089, %v4485
      %4491 = vst.msk [vmem:[#allocation2 + $0x20] sm:$0xff] %vm2089, %v4486
      %4492 = vst.msk [vmem:[#allocation2 + $0x28] sm:$0xf] %vm2094, %v4487
      %v4493 = vld [vmem:[#allocation2 + $0x1] sm:$0xff]
      %v4494 = vld [vmem:[#allocation2 + $0x9] sm:$0xff]
      %v4495 = vld [vmem:[#allocation2 + $0x11] sm:$0xff]
      %v4496 = vld [vmem:[#allocation2 + $0x19] sm:$0xff]
      %v4497 = vld [vmem:[#allocation2 + $0x21] sm:$0xf]
      %v4498 = vpack.c.bf16 %v4494, %v4493
      %v4499 = vpack.c.bf16 %v4496, %v4495
      %v4500 = vpack.c.bf16 %v4497, %v4497
      %v4501 = vld [vmem:[%s14] sm:$0xf]
      %v4502 = vld [vmem:[%s14 + $0x4] sm:$0xf]
      %v4503 = vld [vmem:[%s14 + $0x8] sm:$0xf]
      %v4504 = vld [vmem:[%s14 + $0xc] sm:$0xf]
      %v4505 = vld [vmem:[#allocation2 + $0x2] sm:$0xff]
      %v4506 = vld [vmem:[#allocation2 + $0xa] sm:$0xff]
      %v4507 = vld [vmem:[#allocation2 + $0x12] sm:$0xff]
      %v4508 = vld [vmem:[#allocation2 + $0x1a] sm:$0xff]
      %v4509 = vld [vmem:[#allocation2 + $0x22] sm:$0xf]
      %v4510 = vpack.c.bf16 %v4506, %v4505
      %v4511 = vpack.c.bf16 %v4508, %v4507
      %v4512 = vpack.c.bf16 %v4509, %v4509
      %s4513 = scalar_lea.vmem %s14, 16
      %v4514 = vld [vmem:[%s4513] sm:$0xf]
      %v4515 = vld [vmem:[%s4513 + $0x4] sm:$0xf]
      %v4516 = vld [vmem:[%s4513 + $0x8] sm:$0xf]
      %v4517 = vld [vmem:[%s4513 + $0xc] sm:$0xf]
      %v4522 = vunpack.c.l.b16 %v4514
      %v4523 = vunpack.c.l.b16 %v4515
      %v4524 = vunpack.c.l.b16 %v4516
      %v4525 = vunpack.c.l.b16 %v4517
      %v4526 = vpack.c.b16 %v4523, %v4522
      %v4527 = vpack.c.b16 %v4525, %v4524
      %v4531 = vsel %vm2089, %v4510, 0
      %v4534 = vsel %vm2089, %v4511, 0
      %v4537 = vsel %vm2089, %v4512, 0
      %4539 = vmatpush.bf16.msra.mxu0 0
      %4540 = vmatpush.bf16.msra.mxu0 0
      %4541 = vmatpush.bf16.msra.mxu0 0
      %4542 = vmatpush.bf16.msra.mxu0 0
      %4543 = vmatpush.bf16.msra.mxu0 0
      %4544 = vmatpush.bf16.msra.mxu0 0
      %4545 = vmatpush.bf16.msra.mxu0 %v4527
      %4546 = vmatpush.bf16.msra.mxu0 %v4526
      %4547 = vmatmul.bf16.gmra.mxu0 %v4531
      %v4548 = vpop.f32.mrf.mxu0
      %v4549 = vadd.f32 0.0, %v4548
      %v4550 = vpop.f32.mrf.mxu0
      %v4551 = vadd.f32 0.0, %v4550
      %4552 = vmatmul.bf16.gmra.mxu0 %v4534
      %v4553 = vpop.f32.mrf.mxu0
      %v4554 = vadd.f32 0.0, %v4553
      %v4555 = vpop.f32.mrf.mxu0
      %v4556 = vadd.f32 0.0, %v4555
      %4557 = vmatmul.bf16.gmra.mxu0 %v4537
      %v4558 = vpop.f32.mrf.mxu0
      %v4559 = vadd.f32 0.0, %v4558
      %v4560 = vpop.f32.mrf.mxu0
      %4561 = vdwg.mxu0
      %v4566 = vunpack.c.l.b16 %v4501
      %v4567 = vunpack.c.l.b16 %v4502
      %v4568 = vunpack.c.l.b16 %v4503
      %v4569 = vunpack.c.l.b16 %v4504
      %v4570 = vpack.c.b16 %v4567, %v4566
      %v4571 = vpack.c.b16 %v4569, %v4568
      %v4575 = vsel %vm2089, %v4498, 0
      %v4578 = vsel %vm2089, %v4499, 0
      %v4581 = vsel %vm2089, %v4500, 0
      %4583 = vmatpush.bf16.msra.mxu0 0
      %4584 = vmatpush.bf16.msra.mxu0 0
      %4585 = vmatpush.bf16.msra.mxu0 0
      %4586 = vmatpush.bf16.msra.mxu0 0
      %4587 = vmatpush.bf16.msra.mxu0 0
      %4588 = vmatpush.bf16.msra.mxu0 0
      %4589 = vmatpush.bf16.msra.mxu0 %v4571
      %4590 = vmatpush.bf16.msra.mxu0 %v4570
      %4591 = vmatmul.bf16.gmra.mxu0 %v4575
      %v4592 = vpop.f32.mrf.mxu0
      %v4593 = vadd.f32 %v4549, %v4592
      %v4594 = vpop.f32.mrf.mxu0
      %v4595 = vadd.f32 %v4551, %v4594
      %4596 = vmatmul.bf16.gmra.mxu0 %v4578
      %v4597 = vpop.f32.mrf.mxu0
      %v4598 = vadd.f32 %v4554, %v4597
      %v4599 = vpop.f32.mrf.mxu0
      %v4600 = vadd.f32 %v4556, %v4599
      %4601 = vmatmul.bf16.gmra.mxu0 %v4581
      %v4602 = vpop.f32.mrf.mxu0
      %v4603 = vadd.f32 %v4559, %v4602
      %v4604 = vpop.f32.mrf.mxu0
      %4605 = vdwg.mxu0
      %v4606 = vld [vmem:[#allocation2 + $0x3] sm:$0xff]
      %v4607 = vld [vmem:[#allocation2 + $0xb] sm:$0xff]
      %v4608 = vld [vmem:[#allocation2 + $0x13] sm:$0xff]
      %v4609 = vld [vmem:[#allocation2 + $0x1b] sm:$0xff]
      %v4610 = vld [vmem:[#allocation2 + $0x23] sm:$0xf]
      %v4611 = vpack.c.bf16 %v4607, %v4606
      %v4612 = vpack.c.bf16 %v4609, %v4608
      %v4613 = vpack.c.bf16 %v4610, %v4610
      %s4614 = scalar_lea.vmem %s14, 32
      %v4615 = vld [vmem:[%s4614] sm:$0xf]
      %v4616 = vld [vmem:[%s4614 + $0x4] sm:$0xf]
      %v4617 = vld [vmem:[%s4614 + $0x8] sm:$0xf]
      %v4618 = vld [vmem:[%s4614 + $0xc] sm:$0xf]
      %v4623 = vunpack.c.l.b16 %v4615
      %v4624 = vunpack.c.l.b16 %v4616
      %v4625 = vunpack.c.l.b16 %v4617
      %v4626 = vunpack.c.l.b16 %v4618
      %v4627 = vpack.c.b16 %v4624, %v4623
      %v4628 = vpack.c.b16 %v4626, %v4625
      %v4632 = vsel %vm2089, %v4611, 0
      %v4635 = vsel %vm2089, %v4612, 0
      %v4638 = vsel %vm2089, %v4613, 0
      %4640 = vmatpush.bf16.msra.mxu0 0
      %4641 = vmatpush.bf16.msra.mxu0 0
      %4642 = vmatpush.bf16.msra.mxu0 0
      %4643 = vmatpush.bf16.msra.mxu0 0
      %4644 = vmatpush.bf16.msra.mxu0 0
      %4645 = vmatpush.bf16.msra.mxu0 0
      %4646 = vmatpush.bf16.msra.mxu0 %v4628
      %4647 = vmatpush.bf16.msra.mxu0 %v4627
      %4648 = vmatmul.bf16.gmra.mxu0 %v4632
      %v4649 = vpop.f32.mrf.mxu0
      %v4650 = vadd.f32 0.0, %v4649
      %v4651 = vpop.f32.mrf.mxu0
      %v4652 = vadd.f32 0.0, %v4651
      %4653 = vmatmul.bf16.gmra.mxu0 %v4635
      %v4654 = vpop.f32.mrf.mxu0
      %v4655 = vadd.f32 0.0, %v4654
      %v4656 = vpop.f32.mrf.mxu0
      %v4657 = vadd.f32 0.0, %v4656
      %4658 = vmatmul.bf16.gmra.mxu0 %v4638
      %v4659 = vpop.f32.mrf.mxu0
      %v4660 = vadd.f32 0.0, %v4659
      %v4661 = vpop.f32.mrf.mxu0
      %4662 = vdwg.mxu0
      %v4663 = vadd.f32 %v4593, %v4650
      %v4664 = vadd.f32 %v4595, %v4652
      %v4665 = vadd.f32 %v4598, %v4655
      %v4666 = vadd.f32 %v4600, %v4657
      %v4667 = vadd.f32 %v4603, %v4660
      %v4668 = vld [vmem:[#allocation2 + $0x7] sm:$0xff]
      %v4669 = vld [vmem:[#allocation2 + $0xf] sm:$0xff]
      %v4670 = vld [vmem:[#allocation2 + $0x17] sm:$0xff]
      %v4671 = vld [vmem:[#allocation2 + $0x1f] sm:$0xff]
      %v4672 = vld [vmem:[#allocation2 + $0x27] sm:$0xf]
      %v4673 = vpack.c.bf16 %v4669, %v4668
      %v4674 = vpack.c.bf16 %v4671, %v4670
      %v4675 = vpack.c.bf16 %v4672, %v4672
      %s4676 = scalar_lea.vmem %s14, 48
      %v4677 = vld [vmem:[%s4676] sm:$0xf]
      %v4678 = vld [vmem:[%s4676 + $0x4] sm:$0xf]
      %v4679 = vld [vmem:[%s4676 + $0x8] sm:$0xf]
      %v4680 = vld [vmem:[%s4676 + $0xc] sm:$0xf]
      %v4685 = vunpack.c.l.b16 %v4677
      %v4686 = vunpack.c.l.b16 %v4678
      %v4687 = vunpack.c.l.b16 %v4679
      %v4688 = vunpack.c.l.b16 %v4680
      %v4689 = vpack.c.b16 %v4686, %v4685
      %v4690 = vpack.c.b16 %v4688, %v4687
      %v4694 = vsel %vm2089, %v4673, 0
      %v4697 = vsel %vm2089, %v4674, 0
      %v4700 = vsel %vm2089, %v4675, 0
      %4702 = vmatpush.bf16.msra.mxu0 0
      %4703 = vmatpush.bf16.msra.mxu0 0
      %4704 = vmatpush.bf16.msra.mxu0 0
      %4705 = vmatpush.bf16.msra.mxu0 0
      %4706 = vmatpush.bf16.msra.mxu0 0
      %4707 = vmatpush.bf16.msra.mxu0 0
      %4708 = vmatpush.bf16.msra.mxu0 %v4690
      %4709 = vmatpush.bf16.msra.mxu0 %v4689
      %4710 = vmatmul.bf16.gmra.mxu0 %v4694
      %v4711 = vpop.f32.mrf.mxu0
      %v4712 = vadd.f32 0.0, %v4711
      %v4713 = vpop.f32.mrf.mxu0
      %v4714 = vadd.f32 0.0, %v4713
      %4715 = vmatmul.bf16.gmra.mxu0 %v4697
      %v4716 = vpop.f32.mrf.mxu0
      %v4717 = vadd.f32 0.0, %v4716
      %v4718 = vpop.f32.mrf.mxu0
      %v4719 = vadd.f32 0.0, %v4718
      %4720 = vmatmul.bf16.gmra.mxu0 %v4700
      %v4721 = vpop.f32.mrf.mxu0
      %v4722 = vadd.f32 0.0, %v4721
      %v4723 = vpop.f32.mrf.mxu0
      %4724 = vdwg.mxu0
      %v4725 = vadd.f32 %v4663, %v4712
      %v4726 = vadd.f32 %v4664, %v4714
      %v4727 = vadd.f32 %v4665, %v4717
      %v4728 = vadd.f32 %v4666, %v4719
      %v4729 = vadd.f32 %v4667, %v4722
      %v4730 = vld [vmem:[#allocation2 + $0x8] sm:$0xff]
      %v4731 = vld [vmem:[#allocation2 + $0x10] sm:$0xff]
      %v4732 = vld [vmem:[#allocation2 + $0x18] sm:$0xff]
      %v4733 = vld [vmem:[#allocation2 + $0x20] sm:$0xff]
      %v4734 = vld [vmem:[#allocation2 + $0x28] sm:$0xf]
      %v4735 = vpack.c.bf16 %v4731, %v4730
      %v4736 = vpack.c.bf16 %v4733, %v4732
      %v4737 = vpack.c.bf16 %v4734, %v4734
      %s4738 = scalar_lea.vmem %s14, 64
      %v4739 = vld [vmem:[%s4738] sm:$0xf]
      %v4740 = vld [vmem:[%s4738 + $0x4] sm:$0xf]
      %v4741 = vld [vmem:[%s4738 + $0x8] sm:$0xf]
      %v4742 = vld [vmem:[%s4738 + $0xc] sm:$0xf]
      %v4747 = vunpack.c.l.b16 %v4739
      %v4748 = vunpack.c.l.b16 %v4740
      %v4749 = vunpack.c.l.b16 %v4741
      %v4750 = vunpack.c.l.b16 %v4742
      %v4751 = vpack.c.b16 %v4748, %v4747
      %v4752 = vpack.c.b16 %v4750, %v4749
      %v4756 = vsel %vm2089, %v4735, 0
      %v4759 = vsel %vm2089, %v4736, 0
      %v4762 = vsel %vm2089, %v4737, 0
      %4764 = vmatpush.bf16.msra.mxu0 0
      %4765 = vmatpush.bf16.msra.mxu0 0
      %4766 = vmatpush.bf16.msra.mxu0 0
      %4767 = vmatpush.bf16.msra.mxu0 0
      %4768 = vmatpush.bf16.msra.mxu0 0
      %4769 = vmatpush.bf16.msra.mxu0 0
      %4770 = vmatpush.bf16.msra.mxu0 %v4752
      %4771 = vmatpush.bf16.msra.mxu0 %v4751
      %4772 = vmatmul.bf16.gmra.mxu0 %v4756
      %v4773 = vpop.f32.mrf.mxu0
      %v4774 = vadd.f32 0.0, %v4773
      %v4775 = vpop.f32.mrf.mxu0
      %v4776 = vadd.f32 0.0, %v4775
      %4777 = vmatmul.bf16.gmra.mxu0 %v4759
      %v4778 = vpop.f32.mrf.mxu0
      %v4779 = vadd.f32 0.0, %v4778
      %v4780 = vpop.f32.mrf.mxu0
      %v4781 = vadd.f32 0.0, %v4780
      %4782 = vmatmul.bf16.gmra.mxu0 %v4762
      %v4783 = vpop.f32.mrf.mxu0
      %v4784 = vadd.f32 0.0, %v4783
      %v4785 = vpop.f32.mrf.mxu0
      %4786 = vdwg.mxu0
      %v4787 = vadd.f32 %v4725, %v4774
      %v4788 = vadd.f32 %v4726, %v4776
      %v4789 = vadd.f32 %v4727, %v4779
      %v4790 = vadd.f32 %v4728, %v4781
      %v4791 = vadd.f32 %v4729, %v4784
      %v4792 = vld [vmem:[#allocation2 + $0x9] sm:$0xff]
      %v4793 = vld [vmem:[#allocation2 + $0x11] sm:$0xff]
      %v4794 = vld [vmem:[#allocation2 + $0x19] sm:$0xff]
      %v4795 = vld [vmem:[#allocation2 + $0x21] sm:$0xff]
      %v4796 = vld [vmem:[#allocation2 + $0x29] sm:$0xf]
      %v4797 = vpack.c.bf16 %v4793, %v4792
      %v4798 = vpack.c.bf16 %v4795, %v4794
      %v4799 = vpack.c.bf16 %v4796, %v4796
      %s4800 = scalar_lea.vmem %s14, 80
      %v4801 = vld [vmem:[%s4800] sm:$0xf]
      %v4802 = vld [vmem:[%s4800 + $0x4] sm:$0xf]
      %v4803 = vld [vmem:[%s4800 + $0x8] sm:$0xf]
      %v4804 = vld [vmem:[%s4800 + $0xc] sm:$0xf]
      %v4809 = vunpack.c.l.b16 %v4801
      %v4810 = vunpack.c.l.b16 %v4802
      %v4811 = vunpack.c.l.b16 %v4803
      %v4812 = vunpack.c.l.b16 %v4804
      %v4813 = vpack.c.b16 %v4810, %v4809
      %v4814 = vpack.c.b16 %v4812, %v4811
      %v4818 = vsel %vm2089, %v4797, 0
      %v4821 = vsel %vm2089, %v4798, 0
      %v4824 = vsel %vm2089, %v4799, 0
      %4826 = vmatpush.bf16.msra.mxu0 0
      %4827 = vmatpush.bf16.msra.mxu0 0
      %4828 = vmatpush.bf16.msra.mxu0 0
      %4829 = vmatpush.bf16.msra.mxu0 0
      %4830 = vmatpush.bf16.msra.mxu0 0
      %4831 = vmatpush.bf16.msra.mxu0 0
      %4832 = vmatpush.bf16.msra.mxu0 %v4814
      %4833 = vmatpush.bf16.msra.mxu0 %v4813
      %4834 = vmatmul.bf16.gmra.mxu0 %v4818
      %v4835 = vpop.f32.mrf.mxu0
      %v4836 = vadd.f32 0.0, %v4835
      %v4837 = vpop.f32.mrf.mxu0
      %v4838 = vadd.f32 0.0, %v4837
      %4839 = vmatmul.bf16.gmra.mxu0 %v4821
      %v4840 = vpop.f32.mrf.mxu0
      %v4841 = vadd.f32 0.0, %v4840
      %v4842 = vpop.f32.mrf.mxu0
      %v4843 = vadd.f32 0.0, %v4842
      %4844 = vmatmul.bf16.gmra.mxu0 %v4824
      %v4845 = vpop.f32.mrf.mxu0
      %v4846 = vadd.f32 0.0, %v4845
      %v4847 = vpop.f32.mrf.mxu0
      %4848 = vdwg.mxu0
      %v4849 = vadd.f32 %v4787, %v4836
      %v4850 = vadd.f32 %v4788, %v4838
      %v4851 = vadd.f32 %v4789, %v4841
      %v4852 = vadd.f32 %v4790, %v4843
      %v4853 = vadd.f32 %v4791, %v4846
      %v4854 = vld [vmem:[#allocation2 + $0xd] sm:$0xff]
      %v4855 = vld [vmem:[#allocation2 + $0x15] sm:$0xff]
      %v4856 = vld [vmem:[#allocation2 + $0x1d] sm:$0xff]
      %v4857 = vld [vmem:[#allocation2 + $0x25] sm:$0xff]
      %v4858 = vld [vmem:[#allocation2 + $0x2d] sm:$0xf]
      %v4859 = vpack.c.bf16 %v4855, %v4854
      %v4860 = vpack.c.bf16 %v4857, %v4856
      %v4861 = vpack.c.bf16 %v4858, %v4858
      %s4862 = scalar_lea.vmem %s14, 96
      %v4863 = vld [vmem:[%s4862] sm:$0xf]
      %v4864 = vld [vmem:[%s4862 + $0x4] sm:$0xf]
      %v4865 = vld [vmem:[%s4862 + $0x8] sm:$0xf]
      %v4866 = vld [vmem:[%s4862 + $0xc] sm:$0xf]
      %v4871 = vunpack.c.l.b16 %v4863
      %v4872 = vunpack.c.l.b16 %v4864
      %v4873 = vunpack.c.l.b16 %v4865
      %v4874 = vunpack.c.l.b16 %v4866
      %v4875 = vpack.c.b16 %v4872, %v4871
      %v4876 = vpack.c.b16 %v4874, %v4873
      %v4880 = vsel %vm2089, %v4859, 0
      %v4883 = vsel %vm2089, %v4860, 0
      %v4886 = vsel %vm2089, %v4861, 0
      %4888 = vmatpush.bf16.msra.mxu0 0
      %4889 = vmatpush.bf16.msra.mxu0 0
      %4890 = vmatpush.bf16.msra.mxu0 0
      %4891 = vmatpush.bf16.msra.mxu0 0
      %4892 = vmatpush.bf16.msra.mxu0 0
      %4893 = vmatpush.bf16.msra.mxu0 0
      %4894 = vmatpush.bf16.msra.mxu0 %v4876
      %4895 = vmatpush.bf16.msra.mxu0 %v4875
      %4896 = vmatmul.bf16.gmra.mxu0 %v4880
      %v4897 = vpop.f32.mrf.mxu0
      %v4898 = vadd.f32 0.0, %v4897
      %v4899 = vpop.f32.mrf.mxu0
      %v4900 = vadd.f32 0.0, %v4899
      %4901 = vmatmul.bf16.gmra.mxu0 %v4883
      %v4902 = vpop.f32.mrf.mxu0
      %v4903 = vadd.f32 0.0, %v4902
      %v4904 = vpop.f32.mrf.mxu0
      %v4905 = vadd.f32 0.0, %v4904
      %4906 = vmatmul.bf16.gmra.mxu0 %v4886
      %v4907 = vpop.f32.mrf.mxu0
      %v4908 = vadd.f32 0.0, %v4907
      %v4909 = vpop.f32.mrf.mxu0
      %4910 = vdwg.mxu0
      %v4911 = vadd.f32 %v4849, %v4898
      %v4912 = vadd.f32 %v4850, %v4900
      %v4913 = vadd.f32 %v4851, %v4903
      %v4914 = vadd.f32 %v4852, %v4905
      %v4915 = vadd.f32 %v4853, %v4908
      %v4916 = vld [vmem:[#allocation2 + $0xe] sm:$0xff]
      %v4917 = vld [vmem:[#allocation2 + $0x16] sm:$0xff]
      %v4918 = vld [vmem:[#allocation2 + $0x1e] sm:$0xff]
      %v4919 = vld [vmem:[#allocation2 + $0x26] sm:$0xff]
      %v4920 = vld [vmem:[#allocation2 + $0x2e] sm:$0xf]
      %v4921 = vpack.c.bf16 %v4917, %v4916
      %v4922 = vpack.c.bf16 %v4919, %v4918
      %v4923 = vpack.c.bf16 %v4920, %v4920
      %s4924 = scalar_lea.vmem %s14, 112
      %v4925 = vld [vmem:[%s4924] sm:$0xf]
      %v4926 = vld [vmem:[%s4924 + $0x4] sm:$0xf]
      %v4927 = vld [vmem:[%s4924 + $0x8] sm:$0xf]
      %v4928 = vld [vmem:[%s4924 + $0xc] sm:$0xf]
      %v4933 = vunpack.c.l.b16 %v4925
      %v4934 = vunpack.c.l.b16 %v4926
      %v4935 = vunpack.c.l.b16 %v4927
      %v4936 = vunpack.c.l.b16 %v4928
      %v4937 = vpack.c.b16 %v4934, %v4933
      %v4938 = vpack.c.b16 %v4936, %v4935
      %v4942 = vsel %vm2089, %v4921, 0
      %v4945 = vsel %vm2089, %v4922, 0
      %v4948 = vsel %vm2089, %v4923, 0
      %4950 = vmatpush.bf16.msra.mxu0 0
      %4951 = vmatpush.bf16.msra.mxu0 0
      %4952 = vmatpush.bf16.msra.mxu0 0
      %4953 = vmatpush.bf16.msra.mxu0 0
      %4954 = vmatpush.bf16.msra.mxu0 0
      %4955 = vmatpush.bf16.msra.mxu0 0
      %4956 = vmatpush.bf16.msra.mxu0 %v4938
      %4957 = vmatpush.bf16.msra.mxu0 %v4937
      %4958 = vmatmul.bf16.gmra.mxu0 %v4942
      %v4959 = vpop.f32.mrf.mxu0
      %v4960 = vadd.f32 0.0, %v4959
      %v4961 = vpop.f32.mrf.mxu0
      %v4962 = vadd.f32 0.0, %v4961
      %4963 = vmatmul.bf16.gmra.mxu0 %v4945
      %v4964 = vpop.f32.mrf.mxu0
      %v4965 = vadd.f32 0.0, %v4964
      %v4966 = vpop.f32.mrf.mxu0
      %v4967 = vadd.f32 0.0, %v4966
      %4968 = vmatmul.bf16.gmra.mxu0 %v4948
      %v4969 = vpop.f32.mrf.mxu0
      %v4970 = vadd.f32 0.0, %v4969
      %v4971 = vpop.f32.mrf.mxu0
      %4972 = vdwg.mxu0
      %v4973 = vadd.f32 %v4911, %v4960
      %v4974 = vadd.f32 %v4912, %v4962
      %v4975 = vadd.f32 %v4913, %v4965
      %v4976 = vadd.f32 %v4914, %v4967
      %v4977 = vadd.f32 %v4915, %v4970
      %v4978 = vld [vmem:[#allocation2 + $0xf] sm:$0xff]
      %v4979 = vld [vmem:[#allocation2 + $0x17] sm:$0xff]
      %v4980 = vld [vmem:[#allocation2 + $0x1f] sm:$0xff]
      %v4981 = vld [vmem:[#allocation2 + $0x27] sm:$0xff]
      %v4982 = vld [vmem:[#allocation2 + $0x2f] sm:$0xf]
      %v4983 = vpack.c.bf16 %v4979, %v4978
      %v4984 = vpack.c.bf16 %v4981, %v4980
      %v4985 = vpack.c.bf16 %v4982, %v4982
      %s4986 = scalar_lea.vmem %s14, 128
      %v4987 = vld [vmem:[%s4986] sm:$0xf]
      %v4988 = vld [vmem:[%s4986 + $0x4] sm:$0xf]
      %v4989 = vld [vmem:[%s4986 + $0x8] sm:$0xf]
      %v4990 = vld [vmem:[%s4986 + $0xc] sm:$0xf]
      %v4995 = vunpack.c.l.b16 %v4987
      %v4996 = vunpack.c.l.b16 %v4988
      %v4997 = vunpack.c.l.b16 %v4989
      %v4998 = vunpack.c.l.b16 %v4990
      %v4999 = vpack.c.b16 %v4996, %v4995
      %v5000 = vpack.c.b16 %v4998, %v4997
      %v5004 = vsel %vm2089, %v4983, 0
      %v5007 = vsel %vm2089, %v4984, 0
      %v5010 = vsel %vm2089, %v4985, 0
      %5012 = vmatpush.bf16.msra.mxu0 0
      %5013 = vmatpush.bf16.msra.mxu0 0
      %5014 = vmatpush.bf16.msra.mxu0 0
      %5015 = vmatpush.bf16.msra.mxu0 0
      %5016 = vmatpush.bf16.msra.mxu0 0
      %5017 = vmatpush.bf16.msra.mxu0 0
      %5018 = vmatpush.bf16.msra.mxu0 %v5000
      %5019 = vmatpush.bf16.msra.mxu0 %v4999
      %5020 = vmatmul.bf16.gmra.mxu0 %v5004
      %v5021 = vpop.f32.mrf.mxu0
      %v5022 = vadd.f32 0.0, %v5021
      %v5023 = vpop.f32.mrf.mxu0
      %v5024 = vadd.f32 0.0, %v5023
      %5025 = vmatmul.bf16.gmra.mxu0 %v5007
      %v5026 = vpop.f32.mrf.mxu0
      %v5027 = vadd.f32 0.0, %v5026
      %v5028 = vpop.f32.mrf.mxu0
      %v5029 = vadd.f32 0.0, %v5028
      %5030 = vmatmul.bf16.gmra.mxu0 %v5010
      %v5031 = vpop.f32.mrf.mxu0
      %v5032 = vadd.f32 0.0, %v5031
      %v5033 = vpop.f32.mrf.mxu0
      %5034 = vdwg.mxu0
      %v5035 = vadd.f32 %v4973, %v5022
      %v5036 = vadd.f32 %v4974, %v5024
      %v5037 = vadd.f32 %v4975, %v5027
      %v5038 = vadd.f32 %v4976, %v5029
      %v5039 = vadd.f32 %v4977, %v5032
      %v5040 = vmul.f32 %v5035, %v1342
      %v5041 = vmul.f32 %v5036, %v1347
      %v5042 = vmul.f32 %v5037, %v1352
      %v5043 = vmul.f32 %v5038, %v1357
      %v5044 = vmul.f32 %v5039, %v1362
      %v5045 = vmax.f32 %v5040, 0.0
      %v5046 = vmax.f32 %v5041, 0.0
      %v5047 = vmax.f32 %v5042, 0.0
      %v5048 = vmax.f32 %v5043, 0.0
      %v5049 = vmax.f32 %v5044, 0.0
      %5050 = vst.msk [vmem:[#allocation2 + $0x8] sm:$0xff] %vm3224, %v5045
      %5051 = vst.msk [vmem:[#allocation2 + $0x10] sm:$0xff] %vm3224, %v5046
      %5052 = vst.msk [vmem:[#allocation2 + $0x18] sm:$0xff] %vm3224, %v5047
      %5053 = vst.msk [vmem:[#allocation2 + $0x20] sm:$0xff] %vm3224, %v5048
      %5054 = vst.msk [vmem:[#allocation2 + $0x28] sm:$0xf] %vm3229, %v5049
      %v5055 = vld [vmem:[#allocation2 + $0x8] sm:$0xff]
      %v5056 = vld [vmem:[#allocation2 + $0x10] sm:$0xff]
      %v5057 = vld [vmem:[#allocation2 + $0x18] sm:$0xff]
      %v5058 = vld [vmem:[#allocation2 + $0x20] sm:$0xff]
      %v5059 = vld [vmem:[#allocation2 + $0x28] sm:$0xf]
      %v5060 = vpack.c.bf16 %v5056, %v5055
      %v5061 = vpack.c.bf16 %v5058, %v5057
      %v5062 = vpack.c.bf16 %v5059, %v5059
      %v5063 = vld [vmem:[%s15] sm:$0xf]
      %v5065 = vsel %vm3224, %v5060, 0
      %v5068 = vsel %vm3224, %v5061, 0
      %v5071 = vsel %vm3224, %v5062, 0
      %v5074 = vsel %vm3249, %v5063, 0
      %5076 = vmatpush.bf16.msra.mxu0 0
      %5077 = vmatpush.bf16.msra.mxu0 0
      %5078 = vmatpush.bf16.msra.mxu0 0
      %5079 = vmatpush.bf16.msra.mxu0 0
      %5080 = vmatpush.bf16.msra.mxu0 0
      %5081 = vmatpush.bf16.msra.mxu0 0
      %5082 = vmatpush.bf16.msra.mxu0 0
      %5083 = vmatpush.bf16.msra.mxu0 %v5074
      %5084 = vmatmul.bf16.gmra.mxu0 %v5065
      %v5085 = vpop.f32.mrf.mxu0
      %v5086 = vadd.f32 0.0, %v5085
      %v5087 = vpop.f32.mrf.mxu0
      %v5088 = vadd.f32 0.0, %v5087
      %5089 = vmatmul.bf16.gmra.mxu0 %v5068
      %v5090 = vpop.f32.mrf.mxu0
      %v5091 = vadd.f32 0.0, %v5090
      %v5092 = vpop.f32.mrf.mxu0
      %v5093 = vadd.f32 0.0, %v5092
      %5094 = vmatmul.bf16.gmra.mxu0 %v5071
      %v5095 = vpop.f32.mrf.mxu0
      %v5096 = vadd.f32 0.0, %v5095
      %v5097 = vpop.f32.mrf.mxu0
      %5098 = vdwg.mxu0
      %v5099 = vmul.f32 %v5086, %v1342
      %v5100 = vmul.f32 %v5088, %v1347
      %v5101 = vmul.f32 %v5091, %v1352
      %v5102 = vmul.f32 %v5093, %v1357
      %v5103 = vmul.f32 %v5096, %v1362
      %v5104 = vadd.f32 %v4478, %v5099
      %v5105 = vadd.f32 %v4479, %v5100
      %v5106 = vadd.f32 %v4480, %v5101
      %v5107 = vadd.f32 %v4481, %v5102
      %v5108 = vadd.f32 %v4482, %v5103
      %v5109 = vmax.f32 %v5104, 0.0
      %v5110 = vmax.f32 %v5105, 0.0
      %v5111 = vmax.f32 %v5106, 0.0
      %v5112 = vmax.f32 %v5107, 0.0
      %v5113 = vmax.f32 %v5108, 0.0
      %5114 = vst.msk [vmem:[#allocation2 + $0x8] sm:$0xff] %vm2089, %v5109
      %5115 = vst.msk [vmem:[#allocation2 + $0x10] sm:$0xff] %vm2089, %v5110
      %5116 = vst.msk [vmem:[#allocation2 + $0x18] sm:$0xff] %vm2089, %v5111
      %5117 = vst.msk [vmem:[#allocation2 + $0x20] sm:$0xff] %vm2089, %v5112
      %5118 = vst.msk [vmem:[#allocation2 + $0x28] sm:$0xf] %vm2094, %v5113
      %v5119 = vld [vmem:[#allocation2 + $0x1] sm:$0xff]
      %v5120 = vld [vmem:[#allocation2 + $0x9] sm:$0xff]
      %v5121 = vld [vmem:[#allocation2 + $0x11] sm:$0xff]
      %v5122 = vld [vmem:[#allocation2 + $0x19] sm:$0xff]
      %v5123 = vld [vmem:[#allocation2 + $0x21] sm:$0xf]
      %v5124 = vpack.c.bf16 %v5120, %v5119
      %v5125 = vpack.c.bf16 %v5122, %v5121
      %v5126 = vpack.c.bf16 %v5123, %v5123
      %v5127 = vld [vmem:[%s16] sm:$0xf]
      %v5128 = vld [vmem:[%s16 + $0x4] sm:$0xf]
      %v5129 = vld [vmem:[%s16 + $0x8] sm:$0xf]
      %v5130 = vld [vmem:[%s16 + $0xc] sm:$0xf]
      %v5131 = vld [vmem:[#allocation2 + $0x2] sm:$0xff]
      %v5132 = vld [vmem:[#allocation2 + $0xa] sm:$0xff]
      %v5133 = vld [vmem:[#allocation2 + $0x12] sm:$0xff]
      %v5134 = vld [vmem:[#allocation2 + $0x1a] sm:$0xff]
      %v5135 = vld [vmem:[#allocation2 + $0x22] sm:$0xf]
      %v5136 = vpack.c.bf16 %v5132, %v5131
      %v5137 = vpack.c.bf16 %v5134, %v5133
      %v5138 = vpack.c.bf16 %v5135, %v5135
      %s5139 = scalar_lea.vmem %s16, 16
      %v5140 = vld [vmem:[%s5139] sm:$0xf]
      %v5141 = vld [vmem:[%s5139 + $0x4] sm:$0xf]
      %v5142 = vld [vmem:[%s5139 + $0x8] sm:$0xf]
      %v5143 = vld [vmem:[%s5139 + $0xc] sm:$0xf]
      %v5148 = vunpack.c.l.b16 %v5140
      %v5149 = vunpack.c.l.b16 %v5141
      %v5150 = vunpack.c.l.b16 %v5142
      %v5151 = vunpack.c.l.b16 %v5143
      %v5152 = vpack.c.b16 %v5149, %v5148
      %v5153 = vpack.c.b16 %v5151, %v5150
      %v5157 = vsel %vm2089, %v5136, 0
      %v5160 = vsel %vm2089, %v5137, 0
      %v5163 = vsel %vm2089, %v5138, 0
      %5165 = vmatpush.bf16.msra.mxu0 0
      %5166 = vmatpush.bf16.msra.mxu0 0
      %5167 = vmatpush.bf16.msra.mxu0 0
      %5168 = vmatpush.bf16.msra.mxu0 0
      %5169 = vmatpush.bf16.msra.mxu0 0
      %5170 = vmatpush.bf16.msra.mxu0 0
      %5171 = vmatpush.bf16.msra.mxu0 %v5153
      %5172 = vmatpush.bf16.msra.mxu0 %v5152
      %5173 = vmatmul.bf16.gmra.mxu0 %v5157
      %v5174 = vpop.f32.mrf.mxu0
      %v5175 = vadd.f32 0.0, %v5174
      %v5176 = vpop.f32.mrf.mxu0
      %v5177 = vadd.f32 0.0, %v5176
      %5178 = vmatmul.bf16.gmra.mxu0 %v5160
      %v5179 = vpop.f32.mrf.mxu0
      %v5180 = vadd.f32 0.0, %v5179
      %v5181 = vpop.f32.mrf.mxu0
      %v5182 = vadd.f32 0.0, %v5181
      %5183 = vmatmul.bf16.gmra.mxu0 %v5163
      %v5184 = vpop.f32.mrf.mxu0
      %v5185 = vadd.f32 0.0, %v5184
      %v5186 = vpop.f32.mrf.mxu0
      %5187 = vdwg.mxu0
      %v5192 = vunpack.c.l.b16 %v5127
      %v5193 = vunpack.c.l.b16 %v5128
      %v5194 = vunpack.c.l.b16 %v5129
      %v5195 = vunpack.c.l.b16 %v5130
      %v5196 = vpack.c.b16 %v5193, %v5192
      %v5197 = vpack.c.b16 %v5195, %v5194
      %v5201 = vsel %vm2089, %v5124, 0
      %v5204 = vsel %vm2089, %v5125, 0
      %v5207 = vsel %vm2089, %v5126, 0
      %5209 = vmatpush.bf16.msra.mxu0 0
      %5210 = vmatpush.bf16.msra.mxu0 0
      %5211 = vmatpush.bf16.msra.mxu0 0
      %5212 = vmatpush.bf16.msra.mxu0 0
      %5213 = vmatpush.bf16.msra.mxu0 0
      %5214 = vmatpush.bf16.msra.mxu0 0
      %5215 = vmatpush.bf16.msra.mxu0 %v5197
      %5216 = vmatpush.bf16.msra.mxu0 %v5196
      %5217 = vmatmul.bf16.gmra.mxu0 %v5201
      %v5218 = vpop.f32.mrf.mxu0
      %v5219 = vadd.f32 %v5175, %v5218
      %v5220 = vpop.f32.mrf.mxu0
      %v5221 = vadd.f32 %v5177, %v5220
      %5222 = vmatmul.bf16.gmra.mxu0 %v5204
      %v5223 = vpop.f32.mrf.mxu0
      %v5224 = vadd.f32 %v5180, %v5223
      %v5225 = vpop.f32.mrf.mxu0
      %v5226 = vadd.f32 %v5182, %v5225
      %5227 = vmatmul.bf16.gmra.mxu0 %v5207
      %v5228 = vpop.f32.mrf.mxu0
      %v5229 = vadd.f32 %v5185, %v5228
      %v5230 = vpop.f32.mrf.mxu0
      %5231 = vdwg.mxu0
      %v5232 = vld [vmem:[#allocation2 + $0x3] sm:$0xff]
      %v5233 = vld [vmem:[#allocation2 + $0xb] sm:$0xff]
      %v5234 = vld [vmem:[#allocation2 + $0x13] sm:$0xff]
      %v5235 = vld [vmem:[#allocation2 + $0x1b] sm:$0xff]
      %v5236 = vld [vmem:[#allocation2 + $0x23] sm:$0xf]
      %v5237 = vpack.c.bf16 %v5233, %v5232
      %v5238 = vpack.c.bf16 %v5235, %v5234
      %v5239 = vpack.c.bf16 %v5236, %v5236
      %s5240 = scalar_lea.vmem %s16, 32
      %v5241 = vld [vmem:[%s5240] sm:$0xf]
      %v5242 = vld [vmem:[%s5240 + $0x4] sm:$0xf]
      %v5243 = vld [vmem:[%s5240 + $0x8] sm:$0xf]
      %v5244 = vld [vmem:[%s5240 + $0xc] sm:$0xf]
      %v5249 = vunpack.c.l.b16 %v5241
      %v5250 = vunpack.c.l.b16 %v5242
      %v5251 = vunpack.c.l.b16 %v5243
      %v5252 = vunpack.c.l.b16 %v5244
      %v5253 = vpack.c.b16 %v5250, %v5249
      %v5254 = vpack.c.b16 %v5252, %v5251
      %v5258 = vsel %vm2089, %v5237, 0
      %v5261 = vsel %vm2089, %v5238, 0
      %v5264 = vsel %vm2089, %v5239, 0
      %5266 = vmatpush.bf16.msra.mxu0 0
      %5267 = vmatpush.bf16.msra.mxu0 0
      %5268 = vmatpush.bf16.msra.mxu0 0
      %5269 = vmatpush.bf16.msra.mxu0 0
      %5270 = vmatpush.bf16.msra.mxu0 0
      %5271 = vmatpush.bf16.msra.mxu0 0
      %5272 = vmatpush.bf16.msra.mxu0 %v5254
      %5273 = vmatpush.bf16.msra.mxu0 %v5253
      %5274 = vmatmul.bf16.gmra.mxu0 %v5258
      %v5275 = vpop.f32.mrf.mxu0
      %v5276 = vadd.f32 0.0, %v5275
      %v5277 = vpop.f32.mrf.mxu0
      %v5278 = vadd.f32 0.0, %v5277
      %5279 = vmatmul.bf16.gmra.mxu0 %v5261
      %v5280 = vpop.f32.mrf.mxu0
      %v5281 = vadd.f32 0.0, %v5280
      %v5282 = vpop.f32.mrf.mxu0
      %v5283 = vadd.f32 0.0, %v5282
      %5284 = vmatmul.bf16.gmra.mxu0 %v5264
      %v5285 = vpop.f32.mrf.mxu0
      %v5286 = vadd.f32 0.0, %v5285
      %v5287 = vpop.f32.mrf.mxu0
      %5288 = vdwg.mxu0
      %v5289 = vadd.f32 %v5219, %v5276
      %v5290 = vadd.f32 %v5221, %v5278
      %v5291 = vadd.f32 %v5224, %v5281
      %v5292 = vadd.f32 %v5226, %v5283
      %v5293 = vadd.f32 %v5229, %v5286
      %v5294 = vld [vmem:[#allocation2 + $0x7] sm:$0xff]
      %v5295 = vld [vmem:[#allocation2 + $0xf] sm:$0xff]
      %v5296 = vld [vmem:[#allocation2 + $0x17] sm:$0xff]
      %v5297 = vld [vmem:[#allocation2 + $0x1f] sm:$0xff]
      %v5298 = vld [vmem:[#allocation2 + $0x27] sm:$0xf]
      %v5299 = vpack.c.bf16 %v5295, %v5294
      %v5300 = vpack.c.bf16 %v5297, %v5296
      %v5301 = vpack.c.bf16 %v5298, %v5298
      %s5302 = scalar_lea.vmem %s16, 48
      %v5303 = vld [vmem:[%s5302] sm:$0xf]
      %v5304 = vld [vmem:[%s5302 + $0x4] sm:$0xf]
      %v5305 = vld [vmem:[%s5302 + $0x8] sm:$0xf]
      %v5306 = vld [vmem:[%s5302 + $0xc] sm:$0xf]
      %v5311 = vunpack.c.l.b16 %v5303
      %v5312 = vunpack.c.l.b16 %v5304
      %v5313 = vunpack.c.l.b16 %v5305
      %v5314 = vunpack.c.l.b16 %v5306
      %v5315 = vpack.c.b16 %v5312, %v5311
      %v5316 = vpack.c.b16 %v5314, %v5313
      %v5320 = vsel %vm2089, %v5299, 0
      %v5323 = vsel %vm2089, %v5300, 0
      %v5326 = vsel %vm2089, %v5301, 0
      %5328 = vmatpush.bf16.msra.mxu0 0
      %5329 = vmatpush.bf16.msra.mxu0 0
      %5330 = vmatpush.bf16.msra.mxu0 0
      %5331 = vmatpush.bf16.msra.mxu0 0
      %5332 = vmatpush.bf16.msra.mxu0 0
      %5333 = vmatpush.bf16.msra.mxu0 0
      %5334 = vmatpush.bf16.msra.mxu0 %v5316
      %5335 = vmatpush.bf16.msra.mxu0 %v5315
      %5336 = vmatmul.bf16.gmra.mxu0 %v5320
      %v5337 = vpop.f32.mrf.mxu0
      %v5338 = vadd.f32 0.0, %v5337
      %v5339 = vpop.f32.mrf.mxu0
      %v5340 = vadd.f32 0.0, %v5339
      %5341 = vmatmul.bf16.gmra.mxu0 %v5323
      %v5342 = vpop.f32.mrf.mxu0
      %v5343 = vadd.f32 0.0, %v5342
      %v5344 = vpop.f32.mrf.mxu0
      %v5345 = vadd.f32 0.0, %v5344
      %5346 = vmatmul.bf16.gmra.mxu0 %v5326
      %v5347 = vpop.f32.mrf.mxu0
      %v5348 = vadd.f32 0.0, %v5347
      %v5349 = vpop.f32.mrf.mxu0
      %5350 = vdwg.mxu0
      %v5351 = vadd.f32 %v5289, %v5338
      %v5352 = vadd.f32 %v5290, %v5340
      %v5353 = vadd.f32 %v5291, %v5343
      %v5354 = vadd.f32 %v5292, %v5345
      %v5355 = vadd.f32 %v5293, %v5348
      %v5356 = vld [vmem:[#allocation2 + $0x8] sm:$0xff]
      %v5357 = vld [vmem:[#allocation2 + $0x10] sm:$0xff]
      %v5358 = vld [vmem:[#allocation2 + $0x18] sm:$0xff]
      %v5359 = vld [vmem:[#allocation2 + $0x20] sm:$0xff]
      %v5360 = vld [vmem:[#allocation2 + $0x28] sm:$0xf]
      %v5361 = vpack.c.bf16 %v5357, %v5356
      %v5362 = vpack.c.bf16 %v5359, %v5358
      %v5363 = vpack.c.bf16 %v5360, %v5360
      %s5364 = scalar_lea.vmem %s16, 64
      %v5365 = vld [vmem:[%s5364] sm:$0xf]
      %v5366 = vld [vmem:[%s5364 + $0x4] sm:$0xf]
      %v5367 = vld [vmem:[%s5364 + $0x8] sm:$0xf]
      %v5368 = vld [vmem:[%s5364 + $0xc] sm:$0xf]
      %v5373 = vunpack.c.l.b16 %v5365
      %v5374 = vunpack.c.l.b16 %v5366
      %v5375 = vunpack.c.l.b16 %v5367
      %v5376 = vunpack.c.l.b16 %v5368
      %v5377 = vpack.c.b16 %v5374, %v5373
      %v5378 = vpack.c.b16 %v5376, %v5375
      %v5382 = vsel %vm2089, %v5361, 0
      %v5385 = vsel %vm2089, %v5362, 0
      %v5388 = vsel %vm2089, %v5363, 0
      %5390 = vmatpush.bf16.msra.mxu0 0
      %5391 = vmatpush.bf16.msra.mxu0 0
      %5392 = vmatpush.bf16.msra.mxu0 0
      %5393 = vmatpush.bf16.msra.mxu0 0
      %5394 = vmatpush.bf16.msra.mxu0 0
      %5395 = vmatpush.bf16.msra.mxu0 0
      %5396 = vmatpush.bf16.msra.mxu0 %v5378
      %5397 = vmatpush.bf16.msra.mxu0 %v5377
      %5398 = vmatmul.bf16.gmra.mxu0 %v5382
      %v5399 = vpop.f32.mrf.mxu0
      %v5400 = vadd.f32 0.0, %v5399
      %v5401 = vpop.f32.mrf.mxu0
      %v5402 = vadd.f32 0.0, %v5401
      %5403 = vmatmul.bf16.gmra.mxu0 %v5385
      %v5404 = vpop.f32.mrf.mxu0
      %v5405 = vadd.f32 0.0, %v5404
      %v5406 = vpop.f32.mrf.mxu0
      %v5407 = vadd.f32 0.0, %v5406
      %5408 = vmatmul.bf16.gmra.mxu0 %v5388
      %v5409 = vpop.f32.mrf.mxu0
      %v5410 = vadd.f32 0.0, %v5409
      %v5411 = vpop.f32.mrf.mxu0
      %5412 = vdwg.mxu0
      %v5413 = vadd.f32 %v5351, %v5400
      %v5414 = vadd.f32 %v5352, %v5402
      %v5415 = vadd.f32 %v5353, %v5405
      %v5416 = vadd.f32 %v5354, %v5407
      %v5417 = vadd.f32 %v5355, %v5410
      %v5418 = vld [vmem:[#allocation2 + $0x9] sm:$0xff]
      %v5419 = vld [vmem:[#allocation2 + $0x11] sm:$0xff]
      %v5420 = vld [vmem:[#allocation2 + $0x19] sm:$0xff]
      %v5421 = vld [vmem:[#allocation2 + $0x21] sm:$0xff]
      %v5422 = vld [vmem:[#allocation2 + $0x29] sm:$0xf]
      %v5423 = vpack.c.bf16 %v5419, %v5418
      %v5424 = vpack.c.bf16 %v5421, %v5420
      %v5425 = vpack.c.bf16 %v5422, %v5422
      %s5426 = scalar_lea.vmem %s16, 80
      %v5427 = vld [vmem:[%s5426] sm:$0xf]
      %v5428 = vld [vmem:[%s5426 + $0x4] sm:$0xf]
      %v5429 = vld [vmem:[%s5426 + $0x8] sm:$0xf]
      %v5430 = vld [vmem:[%s5426 + $0xc] sm:$0xf]
      %v5435 = vunpack.c.l.b16 %v5427
      %v5436 = vunpack.c.l.b16 %v5428
      %v5437 = vunpack.c.l.b16 %v5429
      %v5438 = vunpack.c.l.b16 %v5430
      %v5439 = vpack.c.b16 %v5436, %v5435
      %v5440 = vpack.c.b16 %v5438, %v5437
      %v5444 = vsel %vm2089, %v5423, 0
      %v5447 = vsel %vm2089, %v5424, 0
      %v5450 = vsel %vm2089, %v5425, 0
      %5452 = vmatpush.bf16.msra.mxu0 0
      %5453 = vmatpush.bf16.msra.mxu0 0
      %5454 = vmatpush.bf16.msra.mxu0 0
      %5455 = vmatpush.bf16.msra.mxu0 0
      %5456 = vmatpush.bf16.msra.mxu0 0
      %5457 = vmatpush.bf16.msra.mxu0 0
      %5458 = vmatpush.bf16.msra.mxu0 %v5440
      %5459 = vmatpush.bf16.msra.mxu0 %v5439
      %5460 = vmatmul.bf16.gmra.mxu0 %v5444
      %v5461 = vpop.f32.mrf.mxu0
      %v5462 = vadd.f32 0.0, %v5461
      %v5463 = vpop.f32.mrf.mxu0
      %v5464 = vadd.f32 0.0, %v5463
      %5465 = vmatmul.bf16.gmra.mxu0 %v5447
      %v5466 = vpop.f32.mrf.mxu0
      %v5467 = vadd.f32 0.0, %v5466
      %v5468 = vpop.f32.mrf.mxu0
      %v5469 = vadd.f32 0.0, %v5468
      %5470 = vmatmul.bf16.gmra.mxu0 %v5450
      %v5471 = vpop.f32.mrf.mxu0
      %v5472 = vadd.f32 0.0, %v5471
      %v5473 = vpop.f32.mrf.mxu0
      %5474 = vdwg.mxu0
      %v5475 = vadd.f32 %v5413, %v5462
      %v5476 = vadd.f32 %v5414, %v5464
      %v5477 = vadd.f32 %v5415, %v5467
      %v5478 = vadd.f32 %v5416, %v5469
      %v5479 = vadd.f32 %v5417, %v5472
      %v5480 = vld [vmem:[#allocation2 + $0xd] sm:$0xff]
      %v5481 = vld [vmem:[#allocation2 + $0x15] sm:$0xff]
      %v5482 = vld [vmem:[#allocation2 + $0x1d] sm:$0xff]
      %v5483 = vld [vmem:[#allocation2 + $0x25] sm:$0xff]
      %v5484 = vld [vmem:[#allocation2 + $0x2d] sm:$0xf]
      %v5485 = vpack.c.bf16 %v5481, %v5480
      %v5486 = vpack.c.bf16 %v5483, %v5482
      %v5487 = vpack.c.bf16 %v5484, %v5484
      %s5488 = scalar_lea.vmem %s16, 96
      %v5489 = vld [vmem:[%s5488] sm:$0xf]
      %v5490 = vld [vmem:[%s5488 + $0x4] sm:$0xf]
      %v5491 = vld [vmem:[%s5488 + $0x8] sm:$0xf]
      %v5492 = vld [vmem:[%s5488 + $0xc] sm:$0xf]
      %v5497 = vunpack.c.l.b16 %v5489
      %v5498 = vunpack.c.l.b16 %v5490
      %v5499 = vunpack.c.l.b16 %v5491
      %v5500 = vunpack.c.l.b16 %v5492
      %v5501 = vpack.c.b16 %v5498, %v5497
      %v5502 = vpack.c.b16 %v5500, %v5499
      %v5506 = vsel %vm2089, %v5485, 0
      %v5509 = vsel %vm2089, %v5486, 0
      %v5512 = vsel %vm2089, %v5487, 0
      %5514 = vmatpush.bf16.msra.mxu0 0
      %5515 = vmatpush.bf16.msra.mxu0 0
      %5516 = vmatpush.bf16.msra.mxu0 0
      %5517 = vmatpush.bf16.msra.mxu0 0
      %5518 = vmatpush.bf16.msra.mxu0 0
      %5519 = vmatpush.bf16.msra.mxu0 0
      %5520 = vmatpush.bf16.msra.mxu0 %v5502
      %5521 = vmatpush.bf16.msra.mxu0 %v5501
      %5522 = vmatmul.bf16.gmra.mxu0 %v5506
      %v5523 = vpop.f32.mrf.mxu0
      %v5524 = vadd.f32 0.0, %v5523
      %v5525 = vpop.f32.mrf.mxu0
      %v5526 = vadd.f32 0.0, %v5525
      %5527 = vmatmul.bf16.gmra.mxu0 %v5509
      %v5528 = vpop.f32.mrf.mxu0
      %v5529 = vadd.f32 0.0, %v5528
      %v5530 = vpop.f32.mrf.mxu0
      %v5531 = vadd.f32 0.0, %v5530
      %5532 = vmatmul.bf16.gmra.mxu0 %v5512
      %v5533 = vpop.f32.mrf.mxu0
      %v5534 = vadd.f32 0.0, %v5533
      %v5535 = vpop.f32.mrf.mxu0
      %5536 = vdwg.mxu0
      %v5537 = vadd.f32 %v5475, %v5524
      %v5538 = vadd.f32 %v5476, %v5526
      %v5539 = vadd.f32 %v5477, %v5529
      %v5540 = vadd.f32 %v5478, %v5531
      %v5541 = vadd.f32 %v5479, %v5534
      %v5542 = vld [vmem:[#allocation2 + $0xe] sm:$0xff]
      %v5543 = vld [vmem:[#allocation2 + $0x16] sm:$0xff]
      %v5544 = vld [vmem:[#allocation2 + $0x1e] sm:$0xff]
      %v5545 = vld [vmem:[#allocation2 + $0x26] sm:$0xff]
      %v5546 = vld [vmem:[#allocation2 + $0x2e] sm:$0xf]
      %v5547 = vpack.c.bf16 %v5543, %v5542
      %v5548 = vpack.c.bf16 %v5545, %v5544
      %v5549 = vpack.c.bf16 %v5546, %v5546
      %s5550 = scalar_lea.vmem %s16, 112
      %v5551 = vld [vmem:[%s5550] sm:$0xf]
      %v5552 = vld [vmem:[%s5550 + $0x4] sm:$0xf]
      %v5553 = vld [vmem:[%s5550 + $0x8] sm:$0xf]
      %v5554 = vld [vmem:[%s5550 + $0xc] sm:$0xf]
      %v5559 = vunpack.c.l.b16 %v5551
      %v5560 = vunpack.c.l.b16 %v5552
      %v5561 = vunpack.c.l.b16 %v5553
      %v5562 = vunpack.c.l.b16 %v5554
      %v5563 = vpack.c.b16 %v5560, %v5559
      %v5564 = vpack.c.b16 %v5562, %v5561
      %v5568 = vsel %vm2089, %v5547, 0
      %v5571 = vsel %vm2089, %v5548, 0
      %v5574 = vsel %vm2089, %v5549, 0
      %5576 = vmatpush.bf16.msra.mxu0 0
      %5577 = vmatpush.bf16.msra.mxu0 0
      %5578 = vmatpush.bf16.msra.mxu0 0
      %5579 = vmatpush.bf16.msra.mxu0 0
      %5580 = vmatpush.bf16.msra.mxu0 0
      %5581 = vmatpush.bf16.msra.mxu0 0
      %5582 = vmatpush.bf16.msra.mxu0 %v5564
      %5583 = vmatpush.bf16.msra.mxu0 %v5563
      %5584 = vmatmul.bf16.gmra.mxu0 %v5568
      %v5585 = vpop.f32.mrf.mxu0
      %v5586 = vadd.f32 0.0, %v5585
      %v5587 = vpop.f32.mrf.mxu0
      %v5588 = vadd.f32 0.0, %v5587
      %5589 = vmatmul.bf16.gmra.mxu0 %v5571
      %v5590 = vpop.f32.mrf.mxu0
      %v5591 = vadd.f32 0.0, %v5590
      %v5592 = vpop.f32.mrf.mxu0
      %v5593 = vadd.f32 0.0, %v5592
      %5594 = vmatmul.bf16.gmra.mxu0 %v5574
      %v5595 = vpop.f32.mrf.mxu0
      %v5596 = vadd.f32 0.0, %v5595
      %v5597 = vpop.f32.mrf.mxu0
      %5598 = vdwg.mxu0
      %v5599 = vadd.f32 %v5537, %v5586
      %v5600 = vadd.f32 %v5538, %v5588
      %v5601 = vadd.f32 %v5539, %v5591
      %v5602 = vadd.f32 %v5540, %v5593
      %v5603 = vadd.f32 %v5541, %v5596
      %v5604 = vld [vmem:[#allocation2 + $0xf] sm:$0xff]
      %v5605 = vld [vmem:[#allocation2 + $0x17] sm:$0xff]
      %v5606 = vld [vmem:[#allocation2 + $0x1f] sm:$0xff]
      %v5607 = vld [vmem:[#allocation2 + $0x27] sm:$0xff]
      %v5608 = vld [vmem:[#allocation2 + $0x2f] sm:$0xf]
      %v5609 = vpack.c.bf16 %v5605, %v5604
      %v5610 = vpack.c.bf16 %v5607, %v5606
      %v5611 = vpack.c.bf16 %v5608, %v5608
      %s5612 = scalar_lea.vmem %s16, 128
      %v5613 = vld [vmem:[%s5612] sm:$0xf]
      %v5614 = vld [vmem:[%s5612 + $0x4] sm:$0xf]
      %v5615 = vld [vmem:[%s5612 + $0x8] sm:$0xf]
      %v5616 = vld [vmem:[%s5612 + $0xc] sm:$0xf]
      %v5621 = vunpack.c.l.b16 %v5613
      %v5622 = vunpack.c.l.b16 %v5614
      %v5623 = vunpack.c.l.b16 %v5615
      %v5624 = vunpack.c.l.b16 %v5616
      %v5625 = vpack.c.b16 %v5622, %v5621
      %v5626 = vpack.c.b16 %v5624, %v5623
      %v5630 = vsel %vm2089, %v5609, 0
      %v5633 = vsel %vm2089, %v5610, 0
      %v5636 = vsel %vm2089, %v5611, 0
      %5638 = vmatpush.bf16.msra.mxu0 0
      %5639 = vmatpush.bf16.msra.mxu0 0
      %5640 = vmatpush.bf16.msra.mxu0 0
      %5641 = vmatpush.bf16.msra.mxu0 0
      %5642 = vmatpush.bf16.msra.mxu0 0
      %5643 = vmatpush.bf16.msra.mxu0 0
      %5644 = vmatpush.bf16.msra.mxu0 %v5626
      %5645 = vmatpush.bf16.msra.mxu0 %v5625
      %5646 = vmatmul.bf16.gmra.mxu0 %v5630
      %v5647 = vpop.f32.mrf.mxu0
      %v5648 = vadd.f32 0.0, %v5647
      %v5649 = vpop.f32.mrf.mxu0
      %v5650 = vadd.f32 0.0, %v5649
      %5651 = vmatmul.bf16.gmra.mxu0 %v5633
      %v5652 = vpop.f32.mrf.mxu0
      %v5653 = vadd.f32 0.0, %v5652
      %v5654 = vpop.f32.mrf.mxu0
      %v5655 = vadd.f32 0.0, %v5654
      %5656 = vmatmul.bf16.gmra.mxu0 %v5636
      %v5657 = vpop.f32.mrf.mxu0
      %v5658 = vadd.f32 0.0, %v5657
      %v5659 = vpop.f32.mrf.mxu0
      %5660 = vdwg.mxu0
      %v5661 = vadd.f32 %v5599, %v5648
      %v5662 = vadd.f32 %v5600, %v5650
      %v5663 = vadd.f32 %v5601, %v5653
      %v5664 = vadd.f32 %v5602, %v5655
      %v5665 = vadd.f32 %v5603, %v5658
      %v5666 = vmul.f32 %v5661, %v1342
      %v5667 = vmul.f32 %v5662, %v1347
      %v5668 = vmul.f32 %v5663, %v1352
      %v5669 = vmul.f32 %v5664, %v1357
      %v5670 = vmul.f32 %v5665, %v1362
      %v5671 = vmax.f32 %v5666, 0.0
      %v5672 = vmax.f32 %v5667, 0.0
      %v5673 = vmax.f32 %v5668, 0.0
      %v5674 = vmax.f32 %v5669, 0.0
      %v5675 = vmax.f32 %v5670, 0.0
      %5676 = vst.msk [vmem:[#allocation2 + $0x8] sm:$0xff] %vm3224, %v5671
      %5677 = vst.msk [vmem:[#allocation2 + $0x10] sm:$0xff] %vm3224, %v5672
      %5678 = vst.msk [vmem:[#allocation2 + $0x18] sm:$0xff] %vm3224, %v5673
      %5679 = vst.msk [vmem:[#allocation2 + $0x20] sm:$0xff] %vm3224, %v5674
      %5680 = vst.msk [vmem:[#allocation2 + $0x28] sm:$0xf] %vm3229, %v5675
      %v5681 = vld [vmem:[#allocation2 + $0x8] sm:$0xff]
      %v5682 = vld [vmem:[#allocation2 + $0x10] sm:$0xff]
      %v5683 = vld [vmem:[#allocation2 + $0x18] sm:$0xff]
      %v5684 = vld [vmem:[#allocation2 + $0x20] sm:$0xff]
      %v5685 = vld [vmem:[#allocation2 + $0x28] sm:$0xf]
      %v5686 = vpack.c.bf16 %v5682, %v5681
      %v5687 = vpack.c.bf16 %v5684, %v5683
      %v5688 = vpack.c.bf16 %v5685, %v5685
      %v5689 = vld [vmem:[%s17] sm:$0xf]
      %v5691 = vsel %vm3224, %v5686, 0
      %v5694 = vsel %vm3224, %v5687, 0
      %v5697 = vsel %vm3224, %v5688, 0
      %v5700 = vsel %vm3249, %v5689, 0
      %5702 = vmatpush.bf16.msra.mxu0 0
      %5703 = vmatpush.bf16.msra.mxu0 0
      %5704 = vmatpush.bf16.msra.mxu0 0
      %5705 = vmatpush.bf16.msra.mxu0 0
      %5706 = vmatpush.bf16.msra.mxu0 0
      %5707 = vmatpush.bf16.msra.mxu0 0
      %5708 = vmatpush.bf16.msra.mxu0 0
      %5709 = vmatpush.bf16.msra.mxu0 %v5700
      %5710 = vmatmul.bf16.gmra.mxu0 %v5691
      %v5711 = vpop.f32.mrf.mxu0
      %v5712 = vadd.f32 0.0, %v5711
      %v5713 = vpop.f32.mrf.mxu0
      %v5714 = vadd.f32 0.0, %v5713
      %5715 = vmatmul.bf16.gmra.mxu0 %v5694
      %v5716 = vpop.f32.mrf.mxu0
      %v5717 = vadd.f32 0.0, %v5716
      %v5718 = vpop.f32.mrf.mxu0
      %v5719 = vadd.f32 0.0, %v5718
      %5720 = vmatmul.bf16.gmra.mxu0 %v5697
      %v5721 = vpop.f32.mrf.mxu0
      %v5722 = vadd.f32 0.0, %v5721
      %v5723 = vpop.f32.mrf.mxu0
      %5724 = vdwg.mxu0
      %v5725 = vmul.f32 %v5712, %v1342
      %v5726 = vmul.f32 %v5714, %v1347
      %v5727 = vmul.f32 %v5717, %v1352
      %v5728 = vmul.f32 %v5719, %v1357
      %v5729 = vmul.f32 %v5722, %v1362
      %v5730 = vadd.f32 %v5104, %v5725
      %v5731 = vadd.f32 %v5105, %v5726
      %v5732 = vadd.f32 %v5106, %v5727
      %v5733 = vadd.f32 %v5107, %v5728
      %v5734 = vadd.f32 %v5108, %v5729
      %v5735 = vmax.f32 %v5730, 0.0
      %v5736 = vmax.f32 %v5731, 0.0
      %v5737 = vmax.f32 %v5732, 0.0
      %v5738 = vmax.f32 %v5733, 0.0
      %v5739 = vmax.f32 %v5734, 0.0
      %5740 = vst.msk [vmem:[#allocation2 + $0x8] sm:$0xff] %vm2089, %v5735
      %5741 = vst.msk [vmem:[#allocation2 + $0x10] sm:$0xff] %vm2089, %v5736
      %5742 = vst.msk [vmem:[#allocation2 + $0x18] sm:$0xff] %vm2089, %v5737
      %5743 = vst.msk [vmem:[#allocation2 + $0x20] sm:$0xff] %vm2089, %v5738
      %5744 = vst.msk [vmem:[#allocation2 + $0x28] sm:$0xf] %vm2094, %v5739
      %v5745 = vld [vmem:[#allocation2 + $0x1] sm:$0xff]
      %v5746 = vld [vmem:[#allocation2 + $0x9] sm:$0xff]
      %v5747 = vld [vmem:[#allocation2 + $0x11] sm:$0xff]
      %v5748 = vld [vmem:[#allocation2 + $0x19] sm:$0xff]
      %v5749 = vld [vmem:[#allocation2 + $0x21] sm:$0xf]
      %v5750 = vpack.c.bf16 %v5746, %v5745
      %v5751 = vpack.c.bf16 %v5748, %v5747
      %v5752 = vpack.c.bf16 %v5749, %v5749
      %v5753 = vld [vmem:[%s18] sm:$0xf]
      %v5754 = vld [vmem:[%s18 + $0x4] sm:$0xf]
      %v5755 = vld [vmem:[%s18 + $0x8] sm:$0xf]
      %v5756 = vld [vmem:[%s18 + $0xc] sm:$0xf]
      %v5757 = vld [vmem:[#allocation2 + $0x2] sm:$0xff]
      %v5758 = vld [vmem:[#allocation2 + $0xa] sm:$0xff]
      %v5759 = vld [vmem:[#allocation2 + $0x12] sm:$0xff]
      %v5760 = vld [vmem:[#allocation2 + $0x1a] sm:$0xff]
      %v5761 = vld [vmem:[#allocation2 + $0x22] sm:$0xf]
      %v5762 = vpack.c.bf16 %v5758, %v5757
      %v5763 = vpack.c.bf16 %v5760, %v5759
      %v5764 = vpack.c.bf16 %v5761, %v5761
      %s5765 = scalar_lea.vmem %s18, 16
      %v5766 = vld [vmem:[%s5765] sm:$0xf]
      %v5767 = vld [vmem:[%s5765 + $0x4] sm:$0xf]
      %v5768 = vld [vmem:[%s5765 + $0x8] sm:$0xf]
      %v5769 = vld [vmem:[%s5765 + $0xc] sm:$0xf]
      %v5774 = vunpack.c.l.b16 %v5766
      %v5775 = vunpack.c.l.b16 %v5767
      %v5776 = vunpack.c.l.b16 %v5768
      %v5777 = vunpack.c.l.b16 %v5769
      %v5778 = vpack.c.b16 %v5775, %v5774
      %v5779 = vpack.c.b16 %v5777, %v5776
      %v5783 = vsel %vm2089, %v5762, 0
      %v5786 = vsel %vm2089, %v5763, 0
      %v5789 = vsel %vm2089, %v5764, 0
      %5791 = vmatpush.bf16.msra.mxu0 0
      %5792 = vmatpush.bf16.msra.mxu0 0
      %5793 = vmatpush.bf16.msra.mxu0 0
      %5794 = vmatpush.bf16.msra.mxu0 0
      %5795 = vmatpush.bf16.msra.mxu0 0
      %5796 = vmatpush.bf16.msra.mxu0 0
      %5797 = vmatpush.bf16.msra.mxu0 %v5779
      %5798 = vmatpush.bf16.msra.mxu0 %v5778
      %5799 = vmatmul.bf16.gmra.mxu0 %v5783
      %v5800 = vpop.f32.mrf.mxu0
      %v5801 = vadd.f32 0.0, %v5800
      %v5802 = vpop.f32.mrf.mxu0
      %v5803 = vadd.f32 0.0, %v5802
      %5804 = vmatmul.bf16.gmra.mxu0 %v5786
      %v5805 = vpop.f32.mrf.mxu0
      %v5806 = vadd.f32 0.0, %v5805
      %v5807 = vpop.f32.mrf.mxu0
      %v5808 = vadd.f32 0.0, %v5807
      %5809 = vmatmul.bf16.gmra.mxu0 %v5789
      %v5810 = vpop.f32.mrf.mxu0
      %v5811 = vadd.f32 0.0, %v5810
      %v5812 = vpop.f32.mrf.mxu0
      %5813 = vdwg.mxu0
      %v5818 = vunpack.c.l.b16 %v5753
      %v5819 = vunpack.c.l.b16 %v5754
      %v5820 = vunpack.c.l.b16 %v5755
      %v5821 = vunpack.c.l.b16 %v5756
      %v5822 = vpack.c.b16 %v5819, %v5818
      %v5823 = vpack.c.b16 %v5821, %v5820
      %v5827 = vsel %vm2089, %v5750, 0
      %v5830 = vsel %vm2089, %v5751, 0
      %v5833 = vsel %vm2089, %v5752, 0
      %5835 = vmatpush.bf16.msra.mxu0 0
      %5836 = vmatpush.bf16.msra.mxu0 0
      %5837 = vmatpush.bf16.msra.mxu0 0
      %5838 = vmatpush.bf16.msra.mxu0 0
      %5839 = vmatpush.bf16.msra.mxu0 0
      %5840 = vmatpush.bf16.msra.mxu0 0
      %5841 = vmatpush.bf16.msra.mxu0 %v5823
      %5842 = vmatpush.bf16.msra.mxu0 %v5822
      %5843 = vmatmul.bf16.gmra.mxu0 %v5827
      %v5844 = vpop.f32.mrf.mxu0
      %v5845 = vadd.f32 %v5801, %v5844
      %v5846 = vpop.f32.mrf.mxu0
      %v5847 = vadd.f32 %v5803, %v5846
      %5848 = vmatmul.bf16.gmra.mxu0 %v5830
      %v5849 = vpop.f32.mrf.mxu0
      %v5850 = vadd.f32 %v5806, %v5849
      %v5851 = vpop.f32.mrf.mxu0
      %v5852 = vadd.f32 %v5808, %v5851
      %5853 = vmatmul.bf16.gmra.mxu0 %v5833
      %v5854 = vpop.f32.mrf.mxu0
      %v5855 = vadd.f32 %v5811, %v5854
      %v5856 = vpop.f32.mrf.mxu0
      %5857 = vdwg.mxu0
      %v5858 = vld [vmem:[#allocation2 + $0x3] sm:$0xff]
      %v5859 = vld [vmem:[#allocation2 + $0xb] sm:$0xff]
      %v5860 = vld [vmem:[#allocation2 + $0x13] sm:$0xff]
      %v5861 = vld [vmem:[#allocation2 + $0x1b] sm:$0xff]
      %v5862 = vld [vmem:[#allocation2 + $0x23] sm:$0xf]
      %v5863 = vpack.c.bf16 %v5859, %v5858
      %v5864 = vpack.c.bf16 %v5861, %v5860
      %v5865 = vpack.c.bf16 %v5862, %v5862
      %s5866 = scalar_lea.vmem %s18, 32
      %v5867 = vld [vmem:[%s5866] sm:$0xf]
      %v5868 = vld [vmem:[%s5866 + $0x4] sm:$0xf]
      %v5869 = vld [vmem:[%s5866 + $0x8] sm:$0xf]
      %v5870 = vld [vmem:[%s5866 + $0xc] sm:$0xf]
      %v5875 = vunpack.c.l.b16 %v5867
      %v5876 = vunpack.c.l.b16 %v5868
      %v5877 = vunpack.c.l.b16 %v5869
      %v5878 = vunpack.c.l.b16 %v5870
      %v5879 = vpack.c.b16 %v5876, %v5875
      %v5880 = vpack.c.b16 %v5878, %v5877
      %v5884 = vsel %vm2089, %v5863, 0
      %v5887 = vsel %vm2089, %v5864, 0
      %v5890 = vsel %vm2089, %v5865, 0
      %5892 = vmatpush.bf16.msra.mxu0 0
      %5893 = vmatpush.bf16.msra.mxu0 0
      %5894 = vmatpush.bf16.msra.mxu0 0
      %5895 = vmatpush.bf16.msra.mxu0 0
      %5896 = vmatpush.bf16.msra.mxu0 0
      %5897 = vmatpush.bf16.msra.mxu0 0
      %5898 = vmatpush.bf16.msra.mxu0 %v5880
      %5899 = vmatpush.bf16.msra.mxu0 %v5879
      %5900 = vmatmul.bf16.gmra.mxu0 %v5884
      %v5901 = vpop.f32.mrf.mxu0
      %v5902 = vadd.f32 0.0, %v5901
      %v5903 = vpop.f32.mrf.mxu0
      %v5904 = vadd.f32 0.0, %v5903
      %5905 = vmatmul.bf16.gmra.mxu0 %v5887
      %v5906 = vpop.f32.mrf.mxu0
      %v5907 = vadd.f32 0.0, %v5906
      %v5908 = vpop.f32.mrf.mxu0
      %v5909 = vadd.f32 0.0, %v5908
      %5910 = vmatmul.bf16.gmra.mxu0 %v5890
      %v5911 = vpop.f32.mrf.mxu0
      %v5912 = vadd.f32 0.0, %v5911
      %v5913 = vpop.f32.mrf.mxu0
      %5914 = vdwg.mxu0
      %v5915 = vadd.f32 %v5845, %v5902
      %v5916 = vadd.f32 %v5847, %v5904
      %v5917 = vadd.f32 %v5850, %v5907
      %v5918 = vadd.f32 %v5852, %v5909
      %v5919 = vadd.f32 %v5855, %v5912
      %v5920 = vld [vmem:[#allocation2 + $0x7] sm:$0xff]
      %v5921 = vld [vmem:[#allocation2 + $0xf] sm:$0xff]
      %v5922 = vld [vmem:[#allocation2 + $0x17] sm:$0xff]
      %v5923 = vld [vmem:[#allocation2 + $0x1f] sm:$0xff]
      %v5924 = vld [vmem:[#allocation2 + $0x27] sm:$0xf]
      %v5925 = vpack.c.bf16 %v5921, %v5920
      %v5926 = vpack.c.bf16 %v5923, %v5922
      %v5927 = vpack.c.bf16 %v5924, %v5924
      %s5928 = scalar_lea.vmem %s18, 48
      %v5929 = vld [vmem:[%s5928] sm:$0xf]
      %v5930 = vld [vmem:[%s5928 + $0x4] sm:$0xf]
      %v5931 = vld [vmem:[%s5928 + $0x8] sm:$0xf]
      %v5932 = vld [vmem:[%s5928 + $0xc] sm:$0xf]
      %v5937 = vunpack.c.l.b16 %v5929
      %v5938 = vunpack.c.l.b16 %v5930
      %v5939 = vunpack.c.l.b16 %v5931
      %v5940 = vunpack.c.l.b16 %v5932
      %v5941 = vpack.c.b16 %v5938, %v5937
      %v5942 = vpack.c.b16 %v5940, %v5939
      %v5946 = vsel %vm2089, %v5925, 0
      %v5949 = vsel %vm2089, %v5926, 0
      %v5952 = vsel %vm2089, %v5927, 0
      %5954 = vmatpush.bf16.msra.mxu0 0
      %5955 = vmatpush.bf16.msra.mxu0 0
      %5956 = vmatpush.bf16.msra.mxu0 0
      %5957 = vmatpush.bf16.msra.mxu0 0
      %5958 = vmatpush.bf16.msra.mxu0 0
      %5959 = vmatpush.bf16.msra.mxu0 0
      %5960 = vmatpush.bf16.msra.mxu0 %v5942
      %5961 = vmatpush.bf16.msra.mxu0 %v5941
      %5962 = vmatmul.bf16.gmra.mxu0 %v5946
      %v5963 = vpop.f32.mrf.mxu0
      %v5964 = vadd.f32 0.0, %v5963
      %v5965 = vpop.f32.mrf.mxu0
      %v5966 = vadd.f32 0.0, %v5965
      %5967 = vmatmul.bf16.gmra.mxu0 %v5949
      %v5968 = vpop.f32.mrf.mxu0
      %v5969 = vadd.f32 0.0, %v5968
      %v5970 = vpop.f32.mrf.mxu0
      %v5971 = vadd.f32 0.0, %v5970
      %5972 = vmatmul.bf16.gmra.mxu0 %v5952
      %v5973 = vpop.f32.mrf.mxu0
      %v5974 = vadd.f32 0.0, %v5973
      %v5975 = vpop.f32.mrf.mxu0
      %5976 = vdwg.mxu0
      %v5977 = vadd.f32 %v5915, %v5964
      %v5978 = vadd.f32 %v5916, %v5966
      %v5979 = vadd.f32 %v5917, %v5969
      %v5980 = vadd.f32 %v5918, %v5971
      %v5981 = vadd.f32 %v5919, %v5974
      %v5982 = vld [vmem:[#allocation2 + $0x8] sm:$0xff]
      %v5983 = vld [vmem:[#allocation2 + $0x10] sm:$0xff]
      %v5984 = vld [vmem:[#allocation2 + $0x18] sm:$0xff]
      %v5985 = vld [vmem:[#allocation2 + $0x20] sm:$0xff]
      %v5986 = vld [vmem:[#allocation2 + $0x28] sm:$0xf]
      %v5987 = vpack.c.bf16 %v5983, %v5982
      %v5988 = vpack.c.bf16 %v5985, %v5984
      %v5989 = vpack.c.bf16 %v5986, %v5986
      %s5990 = scalar_lea.vmem %s18, 64
      %v5991 = vld [vmem:[%s5990] sm:$0xf]
      %v5992 = vld [vmem:[%s5990 + $0x4] sm:$0xf]
      %v5993 = vld [vmem:[%s5990 + $0x8] sm:$0xf]
      %v5994 = vld [vmem:[%s5990 + $0xc] sm:$0xf]
      %v5999 = vunpack.c.l.b16 %v5991
      %v6000 = vunpack.c.l.b16 %v5992
      %v6001 = vunpack.c.l.b16 %v5993
      %v6002 = vunpack.c.l.b16 %v5994
      %v6003 = vpack.c.b16 %v6000, %v5999
      %v6004 = vpack.c.b16 %v6002, %v6001
      %v6008 = vsel %vm2089, %v5987, 0
      %v6011 = vsel %vm2089, %v5988, 0
      %v6014 = vsel %vm2089, %v5989, 0
      %6016 = vmatpush.bf16.msra.mxu0 0
      %6017 = vmatpush.bf16.msra.mxu0 0
      %6018 = vmatpush.bf16.msra.mxu0 0
      %6019 = vmatpush.bf16.msra.mxu0 0
      %6020 = vmatpush.bf16.msra.mxu0 0
      %6021 = vmatpush.bf16.msra.mxu0 0
      %6022 = vmatpush.bf16.msra.mxu0 %v6004
      %6023 = vmatpush.bf16.msra.mxu0 %v6003
      %6024 = vmatmul.bf16.gmra.mxu0 %v6008
      %v6025 = vpop.f32.mrf.mxu0
      %v6026 = vadd.f32 0.0, %v6025
      %v6027 = vpop.f32.mrf.mxu0
      %v6028 = vadd.f32 0.0, %v6027
      %6029 = vmatmul.bf16.gmra.mxu0 %v6011
      %v6030 = vpop.f32.mrf.mxu0
      %v6031 = vadd.f32 0.0, %v6030
      %v6032 = vpop.f32.mrf.mxu0
      %v6033 = vadd.f32 0.0, %v6032
      %6034 = vmatmul.bf16.gmra.mxu0 %v6014
      %v6035 = vpop.f32.mrf.mxu0
      %v6036 = vadd.f32 0.0, %v6035
      %v6037 = vpop.f32.mrf.mxu0
      %6038 = vdwg.mxu0
      %v6039 = vadd.f32 %v5977, %v6026
      %v6040 = vadd.f32 %v5978, %v6028
      %v6041 = vadd.f32 %v5979, %v6031
      %v6042 = vadd.f32 %v5980, %v6033
      %v6043 = vadd.f32 %v5981, %v6036
      %v6044 = vld [vmem:[#allocation2 + $0x9] sm:$0xff]
      %v6045 = vld [vmem:[#allocation2 + $0x11] sm:$0xff]
      %v6046 = vld [vmem:[#allocation2 + $0x19] sm:$0xff]
      %v6047 = vld [vmem:[#allocation2 + $0x21] sm:$0xff]
      %v6048 = vld [vmem:[#allocation2 + $0x29] sm:$0xf]
      %v6049 = vpack.c.bf16 %v6045, %v6044
      %v6050 = vpack.c.bf16 %v6047, %v6046
      %v6051 = vpack.c.bf16 %v6048, %v6048
      %s6052 = scalar_lea.vmem %s18, 80
      %v6053 = vld [vmem:[%s6052] sm:$0xf]
      %v6054 = vld [vmem:[%s6052 + $0x4] sm:$0xf]
      %v6055 = vld [vmem:[%s6052 + $0x8] sm:$0xf]
      %v6056 = vld [vmem:[%s6052 + $0xc] sm:$0xf]
      %v6061 = vunpack.c.l.b16 %v6053
      %v6062 = vunpack.c.l.b16 %v6054
      %v6063 = vunpack.c.l.b16 %v6055
      %v6064 = vunpack.c.l.b16 %v6056
      %v6065 = vpack.c.b16 %v6062, %v6061
      %v6066 = vpack.c.b16 %v6064, %v6063
      %v6070 = vsel %vm2089, %v6049, 0
      %v6073 = vsel %vm2089, %v6050, 0
      %v6076 = vsel %vm2089, %v6051, 0
      %6078 = vmatpush.bf16.msra.mxu0 0
      %6079 = vmatpush.bf16.msra.mxu0 0
      %6080 = vmatpush.bf16.msra.mxu0 0
      %6081 = vmatpush.bf16.msra.mxu0 0
      %6082 = vmatpush.bf16.msra.mxu0 0
      %6083 = vmatpush.bf16.msra.mxu0 0
      %6084 = vmatpush.bf16.msra.mxu0 %v6066
      %6085 = vmatpush.bf16.msra.mxu0 %v6065
      %6086 = vmatmul.bf16.gmra.mxu0 %v6070
      %v6087 = vpop.f32.mrf.mxu0
      %v6088 = vadd.f32 0.0, %v6087
      %v6089 = vpop.f32.mrf.mxu0
      %v6090 = vadd.f32 0.0, %v6089
      %6091 = vmatmul.bf16.gmra.mxu0 %v6073
      %v6092 = vpop.f32.mrf.mxu0
      %v6093 = vadd.f32 0.0, %v6092
      %v6094 = vpop.f32.mrf.mxu0
      %v6095 = vadd.f32 0.0, %v6094
      %6096 = vmatmul.bf16.gmra.mxu0 %v6076
      %v6097 = vpop.f32.mrf.mxu0
      %v6098 = vadd.f32 0.0, %v6097
      %v6099 = vpop.f32.mrf.mxu0
      %6100 = vdwg.mxu0
      %v6101 = vadd.f32 %v6039, %v6088
      %v6102 = vadd.f32 %v6040, %v6090
      %v6103 = vadd.f32 %v6041, %v6093
      %v6104 = vadd.f32 %v6042, %v6095
      %v6105 = vadd.f32 %v6043, %v6098
      %v6106 = vld [vmem:[#allocation2 + $0xd] sm:$0xff]
      %v6107 = vld [vmem:[#allocation2 + $0x15] sm:$0xff]
      %v6108 = vld [vmem:[#allocation2 + $0x1d] sm:$0xff]
      %v6109 = vld [vmem:[#allocation2 + $0x25] sm:$0xff]
      %v6110 = vld [vmem:[#allocation2 + $0x2d] sm:$0xf]
      %v6111 = vpack.c.bf16 %v6107, %v6106
      %v6112 = vpack.c.bf16 %v6109, %v6108
      %v6113 = vpack.c.bf16 %v6110, %v6110
      %s6114 = scalar_lea.vmem %s18, 96
      %v6115 = vld [vmem:[%s6114] sm:$0xf]
      %v6116 = vld [vmem:[%s6114 + $0x4] sm:$0xf]
      %v6117 = vld [vmem:[%s6114 + $0x8] sm:$0xf]
      %v6118 = vld [vmem:[%s6114 + $0xc] sm:$0xf]
      %v6123 = vunpack.c.l.b16 %v6115
      %v6124 = vunpack.c.l.b16 %v6116
      %v6125 = vunpack.c.l.b16 %v6117
      %v6126 = vunpack.c.l.b16 %v6118
      %v6127 = vpack.c.b16 %v6124, %v6123
      %v6128 = vpack.c.b16 %v6126, %v6125
      %v6132 = vsel %vm2089, %v6111, 0
      %v6135 = vsel %vm2089, %v6112, 0
      %v6138 = vsel %vm2089, %v6113, 0
      %6140 = vmatpush.bf16.msra.mxu0 0
      %6141 = vmatpush.bf16.msra.mxu0 0
      %6142 = vmatpush.bf16.msra.mxu0 0
      %6143 = vmatpush.bf16.msra.mxu0 0
      %6144 = vmatpush.bf16.msra.mxu0 0
      %6145 = vmatpush.bf16.msra.mxu0 0
      %6146 = vmatpush.bf16.msra.mxu0 %v6128
      %6147 = vmatpush.bf16.msra.mxu0 %v6127
      %6148 = vmatmul.bf16.gmra.mxu0 %v6132
      %v6149 = vpop.f32.mrf.mxu0
      %v6150 = vadd.f32 0.0, %v6149
      %v6151 = vpop.f32.mrf.mxu0
      %v6152 = vadd.f32 0.0, %v6151
      %6153 = vmatmul.bf16.gmra.mxu0 %v6135
      %v6154 = vpop.f32.mrf.mxu0
      %v6155 = vadd.f32 0.0, %v6154
      %v6156 = vpop.f32.mrf.mxu0
      %v6157 = vadd.f32 0.0, %v6156
      %6158 = vmatmul.bf16.gmra.mxu0 %v6138
      %v6159 = vpop.f32.mrf.mxu0
      %v6160 = vadd.f32 0.0, %v6159
      %v6161 = vpop.f32.mrf.mxu0
      %6162 = vdwg.mxu0
      %v6163 = vadd.f32 %v6101, %v6150
      %v6164 = vadd.f32 %v6102, %v6152
      %v6165 = vadd.f32 %v6103, %v6155
      %v6166 = vadd.f32 %v6104, %v6157
      %v6167 = vadd.f32 %v6105, %v6160
      %v6168 = vld [vmem:[#allocation2 + $0xe] sm:$0xff]
      %v6169 = vld [vmem:[#allocation2 + $0x16] sm:$0xff]
      %v6170 = vld [vmem:[#allocation2 + $0x1e] sm:$0xff]
      %v6171 = vld [vmem:[#allocation2 + $0x26] sm:$0xff]
      %v6172 = vld [vmem:[#allocation2 + $0x2e] sm:$0xf]
      %v6173 = vpack.c.bf16 %v6169, %v6168
      %v6174 = vpack.c.bf16 %v6171, %v6170
      %v6175 = vpack.c.bf16 %v6172, %v6172
      %s6176 = scalar_lea.vmem %s18, 112
      %v6177 = vld [vmem:[%s6176] sm:$0xf]
      %v6178 = vld [vmem:[%s6176 + $0x4] sm:$0xf]
      %v6179 = vld [vmem:[%s6176 + $0x8] sm:$0xf]
      %v6180 = vld [vmem:[%s6176 + $0xc] sm:$0xf]
      %v6185 = vunpack.c.l.b16 %v6177
      %v6186 = vunpack.c.l.b16 %v6178
      %v6187 = vunpack.c.l.b16 %v6179
      %v6188 = vunpack.c.l.b16 %v6180
      %v6189 = vpack.c.b16 %v6186, %v6185
      %v6190 = vpack.c.b16 %v6188, %v6187
      %v6194 = vsel %vm2089, %v6173, 0
      %v6197 = vsel %vm2089, %v6174, 0
      %v6200 = vsel %vm2089, %v6175, 0
      %6202 = vmatpush.bf16.msra.mxu0 0
      %6203 = vmatpush.bf16.msra.mxu0 0
      %6204 = vmatpush.bf16.msra.mxu0 0
      %6205 = vmatpush.bf16.msra.mxu0 0
      %6206 = vmatpush.bf16.msra.mxu0 0
      %6207 = vmatpush.bf16.msra.mxu0 0
      %6208 = vmatpush.bf16.msra.mxu0 %v6190
      %6209 = vmatpush.bf16.msra.mxu0 %v6189
      %6210 = vmatmul.bf16.gmra.mxu0 %v6194
      %v6211 = vpop.f32.mrf.mxu0
      %v6212 = vadd.f32 0.0, %v6211
      %v6213 = vpop.f32.mrf.mxu0
      %v6214 = vadd.f32 0.0, %v6213
      %6215 = vmatmul.bf16.gmra.mxu0 %v6197
      %v6216 = vpop.f32.mrf.mxu0
      %v6217 = vadd.f32 0.0, %v6216
      %v6218 = vpop.f32.mrf.mxu0
      %v6219 = vadd.f32 0.0, %v6218
      %6220 = vmatmul.bf16.gmra.mxu0 %v6200
      %v6221 = vpop.f32.mrf.mxu0
      %v6222 = vadd.f32 0.0, %v6221
      %v6223 = vpop.f32.mrf.mxu0
      %6224 = vdwg.mxu0
      %v6225 = vadd.f32 %v6163, %v6212
      %v6226 = vadd.f32 %v6164, %v6214
      %v6227 = vadd.f32 %v6165, %v6217
      %v6228 = vadd.f32 %v6166, %v6219
      %v6229 = vadd.f32 %v6167, %v6222
      %v6230 = vld [vmem:[#allocation2 + $0xf] sm:$0xff]
      %v6231 = vld [vmem:[#allocation2 + $0x17] sm:$0xff]
      %v6232 = vld [vmem:[#allocation2 + $0x1f] sm:$0xff]
      %v6233 = vld [vmem:[#allocation2 + $0x27] sm:$0xff]
      %v6234 = vld [vmem:[#allocation2 + $0x2f] sm:$0xf]
      %v6235 = vpack.c.bf16 %v6231, %v6230
      %v6236 = vpack.c.bf16 %v6233, %v6232
      %v6237 = vpack.c.bf16 %v6234, %v6234
      %s6238 = scalar_lea.vmem %s18, 128
      %v6239 = vld [vmem:[%s6238] sm:$0xf]
      %v6240 = vld [vmem:[%s6238 + $0x4] sm:$0xf]
      %v6241 = vld [vmem:[%s6238 + $0x8] sm:$0xf]
      %v6242 = vld [vmem:[%s6238 + $0xc] sm:$0xf]
      %v6247 = vunpack.c.l.b16 %v6239
      %v6248 = vunpack.c.l.b16 %v6240
      %v6249 = vunpack.c.l.b16 %v6241
      %v6250 = vunpack.c.l.b16 %v6242
      %v6251 = vpack.c.b16 %v6248, %v6247
      %v6252 = vpack.c.b16 %v6250, %v6249
      %v6256 = vsel %vm2089, %v6235, 0
      %v6259 = vsel %vm2089, %v6236, 0
      %v6262 = vsel %vm2089, %v6237, 0
      %6264 = vmatpush.bf16.msra.mxu0 0
      %6265 = vmatpush.bf16.msra.mxu0 0
      %6266 = vmatpush.bf16.msra.mxu0 0
      %6267 = vmatpush.bf16.msra.mxu0 0
      %6268 = vmatpush.bf16.msra.mxu0 0
      %6269 = vmatpush.bf16.msra.mxu0 0
      %6270 = vmatpush.bf16.msra.mxu0 %v6252
      %6271 = vmatpush.bf16.msra.mxu0 %v6251
      %6272 = vmatmul.bf16.gmra.mxu0 %v6256
      %v6273 = vpop.f32.mrf.mxu0
      %v6274 = vadd.f32 0.0, %v6273
      %v6275 = vpop.f32.mrf.mxu0
      %v6276 = vadd.f32 0.0, %v6275
      %6277 = vmatmul.bf16.gmra.mxu0 %v6259
      %v6278 = vpop.f32.mrf.mxu0
      %v6279 = vadd.f32 0.0, %v6278
      %v6280 = vpop.f32.mrf.mxu0
      %v6281 = vadd.f32 0.0, %v6280
      %6282 = vmatmul.bf16.gmra.mxu0 %v6262
      %v6283 = vpop.f32.mrf.mxu0
      %v6284 = vadd.f32 0.0, %v6283
      %v6285 = vpop.f32.mrf.mxu0
      %6286 = vdwg.mxu0
      %v6287 = vadd.f32 %v6225, %v6274
      %v6288 = vadd.f32 %v6226, %v6276
      %v6289 = vadd.f32 %v6227, %v6279
      %v6290 = vadd.f32 %v6228, %v6281
      %v6291 = vadd.f32 %v6229, %v6284
      %v6292 = vld [vmem:[%s19] sm:$0x1]
      %v6294 = vperm.slane %v6292, 0
      %v6296 = vadd.f32 %v6287, %v6294
      %v6297 = vadd.f32 %v6288, %v6294
      %v6298 = vadd.f32 %v6289, %v6294
      %v6299 = vadd.f32 %v6290, %v6294
      %v6300 = vadd.f32 %v6291, %v6294
      %v6301 = vmul.f32 %v6296, %v1342
      %v6302 = vmul.f32 %v6297, %v1347
      %v6303 = vmul.f32 %v6298, %v1352
      %v6304 = vmul.f32 %v6299, %v1357
      %v6305 = vmul.f32 %v6300, %v1362
      %v6306 = vmax.f32 %v6301, 0.0
      %v6307 = vmax.f32 %v6302, 0.0
      %v6308 = vmax.f32 %v6303, 0.0
      %v6309 = vmax.f32 %v6304, 0.0
      %v6310 = vmax.f32 %v6305, 0.0
      %6311 = vst.msk [vmem:[#allocation2 + $0x8] sm:$0xff] %vm690, %v6306
      %6312 = vst.msk [vmem:[#allocation2 + $0x10] sm:$0xff] %vm690, %v6307
      %6313 = vst.msk [vmem:[#allocation2 + $0x18] sm:$0xff] %vm690, %v6308
      %6314 = vst.msk [vmem:[#allocation2 + $0x20] sm:$0xff] %vm690, %v6309
      %6315 = vst.msk [vmem:[#allocation2 + $0x28] sm:$0xf] %vm697, %v6310
      %v6316 = vld [vmem:[#allocation2 + $0x1] sm:$0xff]
      %v6317 = vld [vmem:[#allocation2 + $0x9] sm:$0xff]
      %v6318 = vld [vmem:[#allocation2 + $0x11] sm:$0xff]
      %v6319 = vld [vmem:[#allocation2 + $0x19] sm:$0xff]
      %v6320 = vld [vmem:[#allocation2 + $0x21] sm:$0xf]
      %v6321 = vpack.c.bf16 %v6317, %v6316
      %v6322 = vpack.c.bf16 %v6319, %v6318
      %v6323 = vpack.c.bf16 %v6320, %v6320
      %v6324 = vld [vmem:[%s20] sm:$0xf]
      %v6325 = vld [vmem:[%s20 + $0x4] sm:$0xf]
      %v6326 = vld [vmem:[%s20 + $0x8] sm:$0xf]
      %v6327 = vld [vmem:[%s20 + $0xc] sm:$0xf]
      %v6328 = vld [vmem:[%s20 + $0x10] sm:$0xf]
      %v6329 = vld [vmem:[%s20 + $0x14] sm:$0xf]
      %v6330 = vld [vmem:[%s20 + $0x18] sm:$0xf]
      %v6331 = vld [vmem:[%s20 + $0x1c] sm:$0xf]
      %v6332 = vld [vmem:[#allocation2 + $0x2] sm:$0xff]
      %v6333 = vld [vmem:[#allocation2 + $0xa] sm:$0xff]
      %v6334 = vld [vmem:[#allocation2 + $0x12] sm:$0xff]
      %v6335 = vld [vmem:[#allocation2 + $0x1a] sm:$0xff]
      %v6336 = vld [vmem:[#allocation2 + $0x22] sm:$0xf]
      %v6337 = vpack.c.bf16 %v6333, %v6332
      %v6338 = vpack.c.bf16 %v6335, %v6334
      %v6339 = vpack.c.bf16 %v6336, %v6336
      %s6340 = scalar_lea.vmem %s20, 32
      %v6341 = vld [vmem:[%s6340] sm:$0xf]
      %v6342 = vld [vmem:[%s6340 + $0x4] sm:$0xf]
      %v6343 = vld [vmem:[%s6340 + $0x8] sm:$0xf]
      %v6344 = vld [vmem:[%s6340 + $0xc] sm:$0xf]
      %v6345 = vld [vmem:[%s6340 + $0x10] sm:$0xf]
      %v6346 = vld [vmem:[%s6340 + $0x14] sm:$0xf]
      %v6347 = vld [vmem:[%s6340 + $0x18] sm:$0xf]
      %v6348 = vld [vmem:[%s6340 + $0x1c] sm:$0xf]
      %v6357 = vunpack.c.l.b16 %v6341
      %v6358 = vunpack.c.l.b16 %v6342
      %v6359 = vunpack.c.l.b16 %v6343
      %v6360 = vunpack.c.l.b16 %v6344
      %v6361 = vunpack.c.l.b16 %v6345
      %v6362 = vunpack.c.l.b16 %v6346
      %v6363 = vunpack.c.l.b16 %v6347
      %v6364 = vunpack.c.l.b16 %v6348
      %v6365 = vpack.c.b16 %v6358, %v6357
      %v6366 = vpack.c.b16 %v6360, %v6359
      %v6367 = vpack.c.b16 %v6362, %v6361
      %v6368 = vpack.c.b16 %v6364, %v6363
      %v6374 = vsel %vm690, %v6337, 0
      %v6377 = vsel %vm690, %v6338, 0
      %v6380 = vsel %vm690, %v6339, 0
      %6382 = vmatpush.bf16.msra.mxu0 0
      %6383 = vmatpush.bf16.msra.mxu0 0
      %6384 = vmatpush.bf16.msra.mxu0 0
      %6385 = vmatpush.bf16.msra.mxu0 0
      %6386 = vmatpush.bf16.msra.mxu0 %v6368
      %6387 = vmatpush.bf16.msra.mxu0 %v6367
      %6388 = vmatpush.bf16.msra.mxu0 %v6366
      %6389 = vmatpush.bf16.msra.mxu0 %v6365
      %6390 = vmatmul.bf16.gmra.mxu0 %v6374
      %v6391 = vpop.f32.mrf.mxu0
      %v6392 = vadd.f32 0.0, %v6391
      %v6393 = vpop.f32.mrf.mxu0
      %v6394 = vadd.f32 0.0, %v6393
      %6395 = vmatmul.bf16.gmra.mxu0 %v6377
      %v6396 = vpop.f32.mrf.mxu0
      %v6397 = vadd.f32 0.0, %v6396
      %v6398 = vpop.f32.mrf.mxu0
      %v6399 = vadd.f32 0.0, %v6398
      %6400 = vmatmul.bf16.gmra.mxu0 %v6380
      %v6401 = vpop.f32.mrf.mxu0
      %v6402 = vadd.f32 0.0, %v6401
      %v6403 = vpop.f32.mrf.mxu0
      %6404 = vdwg.mxu0
      %v6413 = vunpack.c.l.b16 %v6324
      %v6414 = vunpack.c.l.b16 %v6325
      %v6415 = vunpack.c.l.b16 %v6326
      %v6416 = vunpack.c.l.b16 %v6327
      %v6417 = vunpack.c.l.b16 %v6328
      %v6418 = vunpack.c.l.b16 %v6329
      %v6419 = vunpack.c.l.b16 %v6330
      %v6420 = vunpack.c.l.b16 %v6331
      %v6421 = vpack.c.b16 %v6414, %v6413
      %v6422 = vpack.c.b16 %v6416, %v6415
      %v6423 = vpack.c.b16 %v6418, %v6417
      %v6424 = vpack.c.b16 %v6420, %v6419
      %v6430 = vsel %vm690, %v6321, 0
      %v6433 = vsel %vm690, %v6322, 0
      %v6436 = vsel %vm690, %v6323, 0
      %6438 = vmatpush.bf16.msra.mxu0 0
      %6439 = vmatpush.bf16.msra.mxu0 0
      %6440 = vmatpush.bf16.msra.mxu0 0
      %6441 = vmatpush.bf16.msra.mxu0 0
      %6442 = vmatpush.bf16.msra.mxu0 %v6424
      %6443 = vmatpush.bf16.msra.mxu0 %v6423
      %6444 = vmatpush.bf16.msra.mxu0 %v6422
      %6445 = vmatpush.bf16.msra.mxu0 %v6421
      %6446 = vmatmul.bf16.gmra.mxu0 %v6430
      %v6447 = vpop.f32.mrf.mxu0
      %v6448 = vadd.f32 %v6392, %v6447
      %v6449 = vpop.f32.mrf.mxu0
      %v6450 = vadd.f32 %v6394, %v6449
      %6451 = vmatmul.bf16.gmra.mxu0 %v6433
      %v6452 = vpop.f32.mrf.mxu0
      %v6453 = vadd.f32 %v6397, %v6452
      %v6454 = vpop.f32.mrf.mxu0
      %v6455 = vadd.f32 %v6399, %v6454
      %6456 = vmatmul.bf16.gmra.mxu0 %v6436
      %v6457 = vpop.f32.mrf.mxu0
      %v6458 = vadd.f32 %v6402, %v6457
      %v6459 = vpop.f32.mrf.mxu0
      %6460 = vdwg.mxu0
      %v6461 = vld [vmem:[#allocation2 + $0x3] sm:$0xff]
      %v6462 = vld [vmem:[#allocation2 + $0xb] sm:$0xff]
      %v6463 = vld [vmem:[#allocation2 + $0x13] sm:$0xff]
      %v6464 = vld [vmem:[#allocation2 + $0x1b] sm:$0xff]
      %v6465 = vld [vmem:[#allocation2 + $0x23] sm:$0xf]
      %v6466 = vpack.c.bf16 %v6462, %v6461
      %v6467 = vpack.c.bf16 %v6464, %v6463
      %v6468 = vpack.c.bf16 %v6465, %v6465
      %s6469 = scalar_lea.vmem %s20, 64
      %v6470 = vld [vmem:[%s6469] sm:$0xf]
      %v6471 = vld [vmem:[%s6469 + $0x4] sm:$0xf]
      %v6472 = vld [vmem:[%s6469 + $0x8] sm:$0xf]
      %v6473 = vld [vmem:[%s6469 + $0xc] sm:$0xf]
      %v6474 = vld [vmem:[%s6469 + $0x10] sm:$0xf]
      %v6475 = vld [vmem:[%s6469 + $0x14] sm:$0xf]
      %v6476 = vld [vmem:[%s6469 + $0x18] sm:$0xf]
      %v6477 = vld [vmem:[%s6469 + $0x1c] sm:$0xf]
      %v6486 = vunpack.c.l.b16 %v6470
      %v6487 = vunpack.c.l.b16 %v6471
      %v6488 = vunpack.c.l.b16 %v6472
      %v6489 = vunpack.c.l.b16 %v6473
      %v6490 = vunpack.c.l.b16 %v6474
      %v6491 = vunpack.c.l.b16 %v6475
      %v6492 = vunpack.c.l.b16 %v6476
      %v6493 = vunpack.c.l.b16 %v6477
      %v6494 = vpack.c.b16 %v6487, %v6486
      %v6495 = vpack.c.b16 %v6489, %v6488
      %v6496 = vpack.c.b16 %v6491, %v6490
      %v6497 = vpack.c.b16 %v6493, %v6492
      %v6503 = vsel %vm690, %v6466, 0
      %v6506 = vsel %vm690, %v6467, 0
      %v6509 = vsel %vm690, %v6468, 0
      %6511 = vmatpush.bf16.msra.mxu0 0
      %6512 = vmatpush.bf16.msra.mxu0 0
      %6513 = vmatpush.bf16.msra.mxu0 0
      %6514 = vmatpush.bf16.msra.mxu0 0
      %6515 = vmatpush.bf16.msra.mxu0 %v6497
      %6516 = vmatpush.bf16.msra.mxu0 %v6496
      %6517 = vmatpush.bf16.msra.mxu0 %v6495
      %6518 = vmatpush.bf16.msra.mxu0 %v6494
      %6519 = vmatmul.bf16.gmra.mxu0 %v6503
      %v6520 = vpop.f32.mrf.mxu0
      %v6521 = vadd.f32 0.0, %v6520
      %v6522 = vpop.f32.mrf.mxu0
      %v6523 = vadd.f32 0.0, %v6522
      %6524 = vmatmul.bf16.gmra.mxu0 %v6506
      %v6525 = vpop.f32.mrf.mxu0
      %v6526 = vadd.f32 0.0, %v6525
      %v6527 = vpop.f32.mrf.mxu0
      %v6528 = vadd.f32 0.0, %v6527
      %6529 = vmatmul.bf16.gmra.mxu0 %v6509
      %v6530 = vpop.f32.mrf.mxu0
      %v6531 = vadd.f32 0.0, %v6530
      %v6532 = vpop.f32.mrf.mxu0
      %6533 = vdwg.mxu0
      %v6534 = vadd.f32 %v6448, %v6521
      %v6535 = vadd.f32 %v6450, %v6523
      %v6536 = vadd.f32 %v6453, %v6526
      %v6537 = vadd.f32 %v6455, %v6528
      %v6538 = vadd.f32 %v6458, %v6531
      %v6539 = vld [vmem:[#allocation2 + $0x7] sm:$0xff]
      %v6540 = vld [vmem:[#allocation2 + $0xf] sm:$0xff]
      %v6541 = vld [vmem:[#allocation2 + $0x17] sm:$0xff]
      %v6542 = vld [vmem:[#allocation2 + $0x1f] sm:$0xff]
      %v6543 = vld [vmem:[#allocation2 + $0x27] sm:$0xf]
      %v6544 = vpack.c.bf16 %v6540, %v6539
      %v6545 = vpack.c.bf16 %v6542, %v6541
      %v6546 = vpack.c.bf16 %v6543, %v6543
      %s6547 = scalar_lea.vmem %s20, 96
      %v6548 = vld [vmem:[%s6547] sm:$0xf]
      %v6549 = vld [vmem:[%s6547 + $0x4] sm:$0xf]
      %v6550 = vld [vmem:[%s6547 + $0x8] sm:$0xf]
      %v6551 = vld [vmem:[%s6547 + $0xc] sm:$0xf]
      %v6552 = vld [vmem:[%s6547 + $0x10] sm:$0xf]
      %v6553 = vld [vmem:[%s6547 + $0x14] sm:$0xf]
      %v6554 = vld [vmem:[%s6547 + $0x18] sm:$0xf]
      %v6555 = vld [vmem:[%s6547 + $0x1c] sm:$0xf]
      %v6564 = vunpack.c.l.b16 %v6548
      %v6565 = vunpack.c.l.b16 %v6549
      %v6566 = vunpack.c.l.b16 %v6550
      %v6567 = vunpack.c.l.b16 %v6551
      %v6568 = vunpack.c.l.b16 %v6552
      %v6569 = vunpack.c.l.b16 %v6553
      %v6570 = vunpack.c.l.b16 %v6554
      %v6571 = vunpack.c.l.b16 %v6555
      %v6572 = vpack.c.b16 %v6565, %v6564
      %v6573 = vpack.c.b16 %v6567, %v6566
      %v6574 = vpack.c.b16 %v6569, %v6568
      %v6575 = vpack.c.b16 %v6571, %v6570
      %v6581 = vsel %vm690, %v6544, 0
      %v6584 = vsel %vm690, %v6545, 0
      %v6587 = vsel %vm690, %v6546, 0
      %6589 = vmatpush.bf16.msra.mxu0 0
      %6590 = vmatpush.bf16.msra.mxu0 0
      %6591 = vmatpush.bf16.msra.mxu0 0
      %6592 = vmatpush.bf16.msra.mxu0 0
      %6593 = vmatpush.bf16.msra.mxu0 %v6575
      %6594 = vmatpush.bf16.msra.mxu0 %v6574
      %6595 = vmatpush.bf16.msra.mxu0 %v6573
      %6596 = vmatpush.bf16.msra.mxu0 %v6572
      %6597 = vmatmul.bf16.gmra.mxu0 %v6581
      %v6598 = vpop.f32.mrf.mxu0
      %v6599 = vadd.f32 0.0, %v6598
      %v6600 = vpop.f32.mrf.mxu0
      %v6601 = vadd.f32 0.0, %v6600
      %6602 = vmatmul.bf16.gmra.mxu0 %v6584
      %v6603 = vpop.f32.mrf.mxu0
      %v6604 = vadd.f32 0.0, %v6603
      %v6605 = vpop.f32.mrf.mxu0
      %v6606 = vadd.f32 0.0, %v6605
      %6607 = vmatmul.bf16.gmra.mxu0 %v6587
      %v6608 = vpop.f32.mrf.mxu0
      %v6609 = vadd.f32 0.0, %v6608
      %v6610 = vpop.f32.mrf.mxu0
      %6611 = vdwg.mxu0
      %v6612 = vadd.f32 %v6534, %v6599
      %v6613 = vadd.f32 %v6535, %v6601
      %v6614 = vadd.f32 %v6536, %v6604
      %v6615 = vadd.f32 %v6537, %v6606
      %v6616 = vadd.f32 %v6538, %v6609
      %v6617 = vld [vmem:[#allocation2 + $0x8] sm:$0xff]
      %v6618 = vld [vmem:[#allocation2 + $0x10] sm:$0xff]
      %v6619 = vld [vmem:[#allocation2 + $0x18] sm:$0xff]
      %v6620 = vld [vmem:[#allocation2 + $0x20] sm:$0xff]
      %v6621 = vld [vmem:[#allocation2 + $0x28] sm:$0xf]
      %v6622 = vpack.c.bf16 %v6618, %v6617
      %v6623 = vpack.c.bf16 %v6620, %v6619
      %v6624 = vpack.c.bf16 %v6621, %v6621
      %s6625 = scalar_lea.vmem %s20, 128
      %v6626 = vld [vmem:[%s6625] sm:$0xf]
      %v6627 = vld [vmem:[%s6625 + $0x4] sm:$0xf]
      %v6628 = vld [vmem:[%s6625 + $0x8] sm:$0xf]
      %v6629 = vld [vmem:[%s6625 + $0xc] sm:$0xf]
      %v6630 = vld [vmem:[%s6625 + $0x10] sm:$0xf]
      %v6631 = vld [vmem:[%s6625 + $0x14] sm:$0xf]
      %v6632 = vld [vmem:[%s6625 + $0x18] sm:$0xf]
      %v6633 = vld [vmem:[%s6625 + $0x1c] sm:$0xf]
      %v6642 = vunpack.c.l.b16 %v6626
      %v6643 = vunpack.c.l.b16 %v6627
      %v6644 = vunpack.c.l.b16 %v6628
      %v6645 = vunpack.c.l.b16 %v6629
      %v6646 = vunpack.c.l.b16 %v6630
      %v6647 = vunpack.c.l.b16 %v6631
      %v6648 = vunpack.c.l.b16 %v6632
      %v6649 = vunpack.c.l.b16 %v6633
      %v6650 = vpack.c.b16 %v6643, %v6642
      %v6651 = vpack.c.b16 %v6645, %v6644
      %v6652 = vpack.c.b16 %v6647, %v6646
      %v6653 = vpack.c.b16 %v6649, %v6648
      %v6659 = vsel %vm690, %v6622, 0
      %v6662 = vsel %vm690, %v6623, 0
      %v6665 = vsel %vm690, %v6624, 0
      %6667 = vmatpush.bf16.msra.mxu0 0
      %6668 = vmatpush.bf16.msra.mxu0 0
      %6669 = vmatpush.bf16.msra.mxu0 0
      %6670 = vmatpush.bf16.msra.mxu0 0
      %6671 = vmatpush.bf16.msra.mxu0 %v6653
      %6672 = vmatpush.bf16.msra.mxu0 %v6652
      %6673 = vmatpush.bf16.msra.mxu0 %v6651
      %6674 = vmatpush.bf16.msra.mxu0 %v6650
      %6675 = vmatmul.bf16.gmra.mxu0 %v6659
      %v6676 = vpop.f32.mrf.mxu0
      %v6677 = vadd.f32 0.0, %v6676
      %v6678 = vpop.f32.mrf.mxu0
      %v6679 = vadd.f32 0.0, %v6678
      %6680 = vmatmul.bf16.gmra.mxu0 %v6662
      %v6681 = vpop.f32.mrf.mxu0
      %v6682 = vadd.f32 0.0, %v6681
      %v6683 = vpop.f32.mrf.mxu0
      %v6684 = vadd.f32 0.0, %v6683
      %6685 = vmatmul.bf16.gmra.mxu0 %v6665
      %v6686 = vpop.f32.mrf.mxu0
      %v6687 = vadd.f32 0.0, %v6686
      %v6688 = vpop.f32.mrf.mxu0
      %6689 = vdwg.mxu0
      %v6690 = vadd.f32 %v6612, %v6677
      %v6691 = vadd.f32 %v6613, %v6679
      %v6692 = vadd.f32 %v6614, %v6682
      %v6693 = vadd.f32 %v6615, %v6684
      %v6694 = vadd.f32 %v6616, %v6687
      %v6695 = vld [vmem:[#allocation2 + $0x9] sm:$0xff]
      %v6696 = vld [vmem:[#allocation2 + $0x11] sm:$0xff]
      %v6697 = vld [vmem:[#allocation2 + $0x19] sm:$0xff]
      %v6698 = vld [vmem:[#allocation2 + $0x21] sm:$0xff]
      %v6699 = vld [vmem:[#allocation2 + $0x29] sm:$0xf]
      %v6700 = vpack.c.bf16 %v6696, %v6695
      %v6701 = vpack.c.bf16 %v6698, %v6697
      %v6702 = vpack.c.bf16 %v6699, %v6699
      %s6703 = scalar_lea.vmem %s20, 160
      %v6704 = vld [vmem:[%s6703] sm:$0xf]
      %v6705 = vld [vmem:[%s6703 + $0x4] sm:$0xf]
      %v6706 = vld [vmem:[%s6703 + $0x8] sm:$0xf]
      %v6707 = vld [vmem:[%s6703 + $0xc] sm:$0xf]
      %v6708 = vld [vmem:[%s6703 + $0x10] sm:$0xf]
      %v6709 = vld [vmem:[%s6703 + $0x14] sm:$0xf]
      %v6710 = vld [vmem:[%s6703 + $0x18] sm:$0xf]
      %v6711 = vld [vmem:[%s6703 + $0x1c] sm:$0xf]
      %v6720 = vunpack.c.l.b16 %v6704
      %v6721 = vunpack.c.l.b16 %v6705
      %v6722 = vunpack.c.l.b16 %v6706
      %v6723 = vunpack.c.l.b16 %v6707
      %v6724 = vunpack.c.l.b16 %v6708
      %v6725 = vunpack.c.l.b16 %v6709
      %v6726 = vunpack.c.l.b16 %v6710
      %v6727 = vunpack.c.l.b16 %v6711
      %v6728 = vpack.c.b16 %v6721, %v6720
      %v6729 = vpack.c.b16 %v6723, %v6722
      %v6730 = vpack.c.b16 %v6725, %v6724
      %v6731 = vpack.c.b16 %v6727, %v6726
      %v6737 = vsel %vm690, %v6700, 0
      %v6740 = vsel %vm690, %v6701, 0
      %v6743 = vsel %vm690, %v6702, 0
      %6745 = vmatpush.bf16.msra.mxu0 0
      %6746 = vmatpush.bf16.msra.mxu0 0
      %6747 = vmatpush.bf16.msra.mxu0 0
      %6748 = vmatpush.bf16.msra.mxu0 0
      %6749 = vmatpush.bf16.msra.mxu0 %v6731
      %6750 = vmatpush.bf16.msra.mxu0 %v6730
      %6751 = vmatpush.bf16.msra.mxu0 %v6729
      %6752 = vmatpush.bf16.msra.mxu0 %v6728
      %6753 = vmatmul.bf16.gmra.mxu0 %v6737
      %v6754 = vpop.f32.mrf.mxu0
      %v6755 = vadd.f32 0.0, %v6754
      %v6756 = vpop.f32.mrf.mxu0
      %v6757 = vadd.f32 0.0, %v6756
      %6758 = vmatmul.bf16.gmra.mxu0 %v6740
      %v6759 = vpop.f32.mrf.mxu0
      %v6760 = vadd.f32 0.0, %v6759
      %v6761 = vpop.f32.mrf.mxu0
      %v6762 = vadd.f32 0.0, %v6761
      %6763 = vmatmul.bf16.gmra.mxu0 %v6743
      %v6764 = vpop.f32.mrf.mxu0
      %v6765 = vadd.f32 0.0, %v6764
      %v6766 = vpop.f32.mrf.mxu0
      %6767 = vdwg.mxu0
      %v6768 = vadd.f32 %v6690, %v6755
      %v6769 = vadd.f32 %v6691, %v6757
      %v6770 = vadd.f32 %v6692, %v6760
      %v6771 = vadd.f32 %v6693, %v6762
      %v6772 = vadd.f32 %v6694, %v6765
      %v6773 = vld [vmem:[#allocation2 + $0xd] sm:$0xff]
      %v6774 = vld [vmem:[#allocation2 + $0x15] sm:$0xff]
      %v6775 = vld [vmem:[#allocation2 + $0x1d] sm:$0xff]
      %v6776 = vld [vmem:[#allocation2 + $0x25] sm:$0xff]
      %v6777 = vld [vmem:[#allocation2 + $0x2d] sm:$0xf]
      %v6778 = vpack.c.bf16 %v6774, %v6773
      %v6779 = vpack.c.bf16 %v6776, %v6775
      %v6780 = vpack.c.bf16 %v6777, %v6777
      %s6781 = scalar_lea.vmem %s20, 192
      %v6782 = vld [vmem:[%s6781] sm:$0xf]
      %v6783 = vld [vmem:[%s6781 + $0x4] sm:$0xf]
      %v6784 = vld [vmem:[%s6781 + $0x8] sm:$0xf]
      %v6785 = vld [vmem:[%s6781 + $0xc] sm:$0xf]
      %v6786 = vld [vmem:[%s6781 + $0x10] sm:$0xf]
      %v6787 = vld [vmem:[%s6781 + $0x14] sm:$0xf]
      %v6788 = vld [vmem:[%s6781 + $0x18] sm:$0xf]
      %v6789 = vld [vmem:[%s6781 + $0x1c] sm:$0xf]
      %v6798 = vunpack.c.l.b16 %v6782
      %v6799 = vunpack.c.l.b16 %v6783
      %v6800 = vunpack.c.l.b16 %v6784
      %v6801 = vunpack.c.l.b16 %v6785
      %v6802 = vunpack.c.l.b16 %v6786
      %v6803 = vunpack.c.l.b16 %v6787
      %v6804 = vunpack.c.l.b16 %v6788
      %v6805 = vunpack.c.l.b16 %v6789
      %v6806 = vpack.c.b16 %v6799, %v6798
      %v6807 = vpack.c.b16 %v6801, %v6800
      %v6808 = vpack.c.b16 %v6803, %v6802
      %v6809 = vpack.c.b16 %v6805, %v6804
      %v6815 = vsel %vm690, %v6778, 0
      %v6818 = vsel %vm690, %v6779, 0
      %v6821 = vsel %vm690, %v6780, 0
      %6823 = vmatpush.bf16.msra.mxu0 0
      %6824 = vmatpush.bf16.msra.mxu0 0
      %6825 = vmatpush.bf16.msra.mxu0 0
      %6826 = vmatpush.bf16.msra.mxu0 0
      %6827 = vmatpush.bf16.msra.mxu0 %v6809
      %6828 = vmatpush.bf16.msra.mxu0 %v6808
      %6829 = vmatpush.bf16.msra.mxu0 %v6807
      %6830 = vmatpush.bf16.msra.mxu0 %v6806
      %6831 = vmatmul.bf16.gmra.mxu0 %v6815
      %v6832 = vpop.f32.mrf.mxu0
      %v6833 = vadd.f32 0.0, %v6832
      %v6834 = vpop.f32.mrf.mxu0
      %v6835 = vadd.f32 0.0, %v6834
      %6836 = vmatmul.bf16.gmra.mxu0 %v6818
      %v6837 = vpop.f32.mrf.mxu0
      %v6838 = vadd.f32 0.0, %v6837
      %v6839 = vpop.f32.mrf.mxu0
      %v6840 = vadd.f32 0.0, %v6839
      %6841 = vmatmul.bf16.gmra.mxu0 %v6821
      %v6842 = vpop.f32.mrf.mxu0
      %v6843 = vadd.f32 0.0, %v6842
      %v6844 = vpop.f32.mrf.mxu0
      %6845 = vdwg.mxu0
      %v6846 = vadd.f32 %v6768, %v6833
      %v6847 = vadd.f32 %v6769, %v6835
      %v6848 = vadd.f32 %v6770, %v6838
      %v6849 = vadd.f32 %v6771, %v6840
      %v6850 = vadd.f32 %v6772, %v6843
      %v6851 = vld [vmem:[#allocation2 + $0xe] sm:$0xff]
      %v6852 = vld [vmem:[#allocation2 + $0x16] sm:$0xff]
      %v6853 = vld [vmem:[#allocation2 + $0x1e] sm:$0xff]
      %v6854 = vld [vmem:[#allocation2 + $0x26] sm:$0xff]
      %v6855 = vld [vmem:[#allocation2 + $0x2e] sm:$0xf]
      %v6856 = vpack.c.bf16 %v6852, %v6851
      %v6857 = vpack.c.bf16 %v6854, %v6853
      %v6858 = vpack.c.bf16 %v6855, %v6855
      %s6859 = scalar_lea.vmem %s20, 224
      %v6860 = vld [vmem:[%s6859] sm:$0xf]
      %v6861 = vld [vmem:[%s6859 + $0x4] sm:$0xf]
      %v6862 = vld [vmem:[%s6859 + $0x8] sm:$0xf]
      %v6863 = vld [vmem:[%s6859 + $0xc] sm:$0xf]
      %v6864 = vld [vmem:[%s6859 + $0x10] sm:$0xf]
      %v6865 = vld [vmem:[%s6859 + $0x14] sm:$0xf]
      %v6866 = vld [vmem:[%s6859 + $0x18] sm:$0xf]
      %v6867 = vld [vmem:[%s6859 + $0x1c] sm:$0xf]
      %v6876 = vunpack.c.l.b16 %v6860
      %v6877 = vunpack.c.l.b16 %v6861
      %v6878 = vunpack.c.l.b16 %v6862
      %v6879 = vunpack.c.l.b16 %v6863
      %v6880 = vunpack.c.l.b16 %v6864
      %v6881 = vunpack.c.l.b16 %v6865
      %v6882 = vunpack.c.l.b16 %v6866
      %v6883 = vunpack.c.l.b16 %v6867
      %v6884 = vpack.c.b16 %v6877, %v6876
      %v6885 = vpack.c.b16 %v6879, %v6878
      %v6886 = vpack.c.b16 %v6881, %v6880
      %v6887 = vpack.c.b16 %v6883, %v6882
      %v6893 = vsel %vm690, %v6856, 0
      %v6896 = vsel %vm690, %v6857, 0
      %v6899 = vsel %vm690, %v6858, 0
      %6901 = vmatpush.bf16.msra.mxu0 0
      %6902 = vmatpush.bf16.msra.mxu0 0
      %6903 = vmatpush.bf16.msra.mxu0 0
      %6904 = vmatpush.bf16.msra.mxu0 0
      %6905 = vmatpush.bf16.msra.mxu0 %v6887
      %6906 = vmatpush.bf16.msra.mxu0 %v6886
      %6907 = vmatpush.bf16.msra.mxu0 %v6885
      %6908 = vmatpush.bf16.msra.mxu0 %v6884
      %6909 = vmatmul.bf16.gmra.mxu0 %v6893
      %v6910 = vpop.f32.mrf.mxu0
      %v6911 = vadd.f32 0.0, %v6910
      %v6912 = vpop.f32.mrf.mxu0
      %v6913 = vadd.f32 0.0, %v6912
      %6914 = vmatmul.bf16.gmra.mxu0 %v6896
      %v6915 = vpop.f32.mrf.mxu0
      %v6916 = vadd.f32 0.0, %v6915
      %v6917 = vpop.f32.mrf.mxu0
      %v6918 = vadd.f32 0.0, %v6917
      %6919 = vmatmul.bf16.gmra.mxu0 %v6899
      %v6920 = vpop.f32.mrf.mxu0
      %v6921 = vadd.f32 0.0, %v6920
      %v6922 = vpop.f32.mrf.mxu0
      %6923 = vdwg.mxu0
      %v6924 = vadd.f32 %v6846, %v6911
      %v6925 = vadd.f32 %v6847, %v6913
      %v6926 = vadd.f32 %v6848, %v6916
      %v6927 = vadd.f32 %v6849, %v6918
      %v6928 = vadd.f32 %v6850, %v6921
      %v6929 = vld [vmem:[#allocation2 + $0xf] sm:$0xff]
      %v6930 = vld [vmem:[#allocation2 + $0x17] sm:$0xff]
      %v6931 = vld [vmem:[#allocation2 + $0x1f] sm:$0xff]
      %v6932 = vld [vmem:[#allocation2 + $0x27] sm:$0xff]
      %v6933 = vld [vmem:[#allocation2 + $0x2f] sm:$0xf]
      %v6934 = vpack.c.bf16 %v6930, %v6929
      %v6935 = vpack.c.bf16 %v6932, %v6931
      %v6936 = vpack.c.bf16 %v6933, %v6933
      %s6937 = scalar_lea.vmem %s20, 256
      %v6938 = vld [vmem:[%s6937] sm:$0xf]
      %v6939 = vld [vmem:[%s6937 + $0x4] sm:$0xf]
      %v6940 = vld [vmem:[%s6937 + $0x8] sm:$0xf]
      %v6941 = vld [vmem:[%s6937 + $0xc] sm:$0xf]
      %v6942 = vld [vmem:[%s6937 + $0x10] sm:$0xf]
      %v6943 = vld [vmem:[%s6937 + $0x14] sm:$0xf]
      %v6944 = vld [vmem:[%s6937 + $0x18] sm:$0xf]
      %v6945 = vld [vmem:[%s6937 + $0x1c] sm:$0xf]
      %v6954 = vunpack.c.l.b16 %v6938
      %v6955 = vunpack.c.l.b16 %v6939
      %v6956 = vunpack.c.l.b16 %v6940
      %v6957 = vunpack.c.l.b16 %v6941
      %v6958 = vunpack.c.l.b16 %v6942
      %v6959 = vunpack.c.l.b16 %v6943
      %v6960 = vunpack.c.l.b16 %v6944
      %v6961 = vunpack.c.l.b16 %v6945
      %v6962 = vpack.c.b16 %v6955, %v6954
      %v6963 = vpack.c.b16 %v6957, %v6956
      %v6964 = vpack.c.b16 %v6959, %v6958
      %v6965 = vpack.c.b16 %v6961, %v6960
      %v6971 = vsel %vm690, %v6934, 0
      %v6974 = vsel %vm690, %v6935, 0
      %v6977 = vsel %vm690, %v6936, 0
      %6979 = vmatpush.bf16.msra.mxu0 0
      %6980 = vmatpush.bf16.msra.mxu0 0
      %6981 = vmatpush.bf16.msra.mxu0 0
      %6982 = vmatpush.bf16.msra.mxu0 0
      %6983 = vmatpush.bf16.msra.mxu0 %v6965
      %6984 = vmatpush.bf16.msra.mxu0 %v6964
      %6985 = vmatpush.bf16.msra.mxu0 %v6963
      %6986 = vmatpush.bf16.msra.mxu0 %v6962
      %6987 = vmatmul.bf16.gmra.mxu0 %v6971
      %v6988 = vpop.f32.mrf.mxu0
      %v6989 = vadd.f32 0.0, %v6988
      %v6990 = vpop.f32.mrf.mxu0
      %v6991 = vadd.f32 0.0, %v6990
      %6992 = vmatmul.bf16.gmra.mxu0 %v6974
      %v6993 = vpop.f32.mrf.mxu0
      %v6994 = vadd.f32 0.0, %v6993
      %v6995 = vpop.f32.mrf.mxu0
      %v6996 = vadd.f32 0.0, %v6995
      %6997 = vmatmul.bf16.gmra.mxu0 %v6977
      %v6998 = vpop.f32.mrf.mxu0
      %v6999 = vadd.f32 0.0, %v6998
      %v7000 = vpop.f32.mrf.mxu0
      %7001 = vdwg.mxu0
      %v7002 = vadd.f32 %v6924, %v6989
      %v7003 = vadd.f32 %v6925, %v6991
      %v7004 = vadd.f32 %v6926, %v6994
      %v7005 = vadd.f32 %v6927, %v6996
      %v7006 = vadd.f32 %v6928, %v6999
      %v7007 = vld [vmem:[%s21] sm:$0x1]
      %v7009 = vperm.slane %v7007, 0
      %v7011 = vadd.f32 %v7002, %v7009
      %v7012 = vadd.f32 %v7003, %v7009
      %v7013 = vadd.f32 %v7004, %v7009
      %v7014 = vadd.f32 %v7005, %v7009
      %v7015 = vadd.f32 %v7006, %v7009
      %v7016 = vmul.f32 %v7011, %v1342
      %v7017 = vmul.f32 %v7012, %v1347
      %v7018 = vmul.f32 %v7013, %v1352
      %v7019 = vmul.f32 %v7014, %v1357
      %v7020 = vmul.f32 %v7015, %v1362
      %7021 = vst.msk [vmem:[%s683] sm:$0xff] %vm704, %v7016
      %7022 = vst.msk [vmem:[%s683 + $0x8] sm:$0xff] %vm704, %v7017
      %7023 = vst.msk [vmem:[%s683 + $0x10] sm:$0xff] %vm704, %v7018
      %7024 = vst.msk [vmem:[%s683 + $0x18] sm:$0xff] %vm704, %v7019
      %7025 = vst.msk [vmem:[%s683 + $0x20] sm:$0xf] %vm709, %v7020
      %p7026 = scmp.lt.s32.totalorder %s33, 1
      %s7027 = scalar_select %p7026, %s33, 1
      %s7028 = smul.addr %s7027, 5
      %s7029 = smul.addr %s7028, 8
      %s7030 = scalar_lea.vmem %s22, %s7029
      // Predicated region
      $region109: #{forward.1} parent=107 // pred_check
        %p7031 = pneg %p518
      $region110: #{forward.1} parent=107 // pred_check_branch
        %7033 = sbr.rel (%p7031) target = $region112
      $region111: #{forward.1} parent=107 // pred_region
        _
      $region112: #{forward.1} parent=107 // pred_fallthru
        _
    $region108: #{forward.1} parent=5 // pred_fallthru
      _
    %p7034 = scmp.le.s32.totalorder 2, %s28
    // Predicated region
    $region113: #{forward.1} parent=5 // pred_check
      %p7035 = pneg %p7034
    $region114: #{forward.1} parent=5 // pred_check_branch
      %7037 = sbr.rel (%p7035) target = $region116
    $region115: #{forward.1} parent=5 // pred_region
      %s7038 = ssub.s32 %s28, 2
      // Predicated region
      $region117: #{forward.1} parent=115 // pred_check
        %p7039 = pneg %p524
      $region118: #{forward.1} parent=115 // pred_check_branch
        %7041 = sbr.rel (%p7039) target = $region120
      $region119: #{forward.1} parent=115 // pred_region
        %p7042 = scmp.lt.s32.totalorder %s34, 1
        %s7043 = scalar_select %p7042, %s34, 1
        %s7044 = smul.addr %s7043, 5
        %s7045 = smul.addr %s7044, 8
        %s7046 = scalar_lea.vmem %s22, %s7045
      $region120: #{forward.1} parent=115 // pred_fallthru
        _
    $region116: #{forward.1} parent=5 // pred_fallthru
      _
  $region6: #{forward.1} parent=0 // loop_footer
    %s32 = sadd.s32 1, %s28
  $region7: #{forward.1} parent=0 // loop_footer_branch
    %27 = sbr.rel target = $region3
  $region8: #{forward.1} parent=0 // loop_exit
    _

</llo_original>
